<compile_context>
chip_gen: v5e
topology: v5e:2x2
jax: 0.10.0
libtpu: 0.0.40
codegen_flags: <defaults>
</compile_context>

<pallas_src>
import functools

import jax
import jax.numpy as jnp
from jax.experimental import pallas as pl
from jax.experimental.pallas import tpu as pltpu

BN_EPS = 1e-5

# Set to jnp.bfloat16 on v6e/v7x for full-rate MXU at large resolutions (the
# accumulation, bias/activation epilogue and the output stay in float32, which
# also keeps the v5e VPU/EUP path happy).  Default f32 keeps bit-tight accuracy.
COMPUTE_DTYPE = jnp.float32


# ---------------------------------------------------------------------------
# Fused whole-network kernel (one grid step == one image)
# ---------------------------------------------------------------------------
def _disc_kernel(z1_ref, w1_ref, b1_ref, w2_ref, b2_ref, w3_ref, w4_ref, b4_ref,
                 out_ref, y2_ref, p3_ref, p4_ref, *, dims):
    oh2, ow2, oh3, ow3, oh4, ow4 = dims

    # Zero the padded scratches (supplies the zero borders of the pad=1 convs).
    y2_ref[...] = jnp.zeros(y2_ref.shape, y2_ref.dtype)
    p3_ref[...] = jnp.zeros(p3_ref.shape, p3_ref.dtype)
    p4_ref[...] = jnp.zeros(p4_ref.shape, p4_ref.dtype)

    # ---- layer 1: conv1(k4,s2,p1) + bn1(folded) + leaky_relu ---------------
    # Input z1 is a double space-to-depth layout (parity, H/4+1, W/4+1, 24); the
    # output (H/2, W/2, 64) is produced in 4 parity groups and written directly
    # into the space-to-depth layout y2 that conv2 consumes.
    n1 = oh2 * ow2
    for e in range(2):
        for f in range(2):
            acc = jnp.zeros((n1, 64), jnp.float32)
            for a in range(2):
                for c in range(2):
                    al, be = divmod(e + a, 2)
                    ga, de = divmod(f + c, 2)
                    tap = z1_ref[0, 2 * be + de, al:al + oh2, ga:ga + ow2, :]
                    acc = acc + jnp.dot(tap.reshape(n1, 24), w1_ref[a, c],
                                        preferred_element_type=jnp.float32)
            acc = acc + b1_ref[...]
            acc = jnp.where(acc >= 0.0, acc, 0.2 * acc)
            q0, r2 = (0, 1) if e == 0 else (1, 0)
            s0, t2 = (0, 1) if f == 0 else (1, 0)
            y2_ref[2 * r2 + t2, q0:q0 + oh2, s0:s0 + ow2, :] = (
                acc.astype(y2_ref.dtype).reshape(oh2, ow2, 64))

    # ---- layer 2: conv2(k4,s2,p1) + bn2(folded) + leaky_relu ---------------
    acc2 = jnp.zeros((n1, 128), jnp.float32)
    for a in range(2):
        for c in range(2):
            for j in range(4):
                tap = y2_ref[j, a:a + oh2, c:c + ow2, :]
                acc2 = acc2 + jnp.dot(tap.reshape(n1, 64), w2_ref[a, c, j],
                                      preferred_element_type=jnp.float32)
    acc2 = acc2 + b2_ref[...]
    acc2 = jnp.where(acc2 >= 0.0, acc2, 0.2 * acc2)
    p3_ref[1:1 + oh2, 1:1 + ow2, :] = acc2.astype(p3_ref.dtype).reshape(oh2, ow2, 128)

    # ---- layer 3: conv3(k4,s1,p1) + leaky_relu (no BN, no bias) ------------
    n3 = oh3 * ow3
    acc3 = jnp.zeros((n3, 256), jnp.float32)
    for ki in range(4):
        for kj in range(4):
            tap = p3_ref[ki:ki + oh3, kj:kj + ow3, :]
            acc3 = acc3 + jnp.dot(tap.reshape(n3, 128), w3_ref[ki, kj],
                                  preferred_element_type=jnp.float32)
    acc3 = jnp.where(acc3 >= 0.0, acc3, 0.2 * acc3)
    p4_ref[1:1 + oh3, 1:1 + ow3, :] = acc3.astype(p4_ref.dtype).reshape(oh3, ow3, 256)

    # ---- layer 4: ZeroPad2d(1) + last_conv(k4,s1,p0,bias) + sigmoid --------
    # Output channels are padded to 128 so the GEMM / store are lane-dense.
    n4 = oh4 * ow4
    acc4 = jnp.zeros((n4, 128), jnp.float32)
    for ki in range(4):
        for kj in range(4):
            tap = p4_ref[ki:ki + oh4, kj:kj + ow4, :]
            acc4 = acc4 + jnp.dot(tap.reshape(n4, 256), w4_ref[ki, kj],
                                  preferred_element_type=jnp.float32)
    out_ref[0] = jax.nn.sigmoid(acc4 + b4_ref[...]).astype(out_ref.dtype)


# ---------------------------------------------------------------------------
# Host-side layout prep (cheap pad/reshape/transpose only — no K expansion)
# ---------------------------------------------------------------------------
def _space_to_depth(x):
    """(N, H, W, C) -> (N, H//2, W//2, 4*C); channel order (row-par, col-par, c)."""
    n, h, w, c = x.shape
    x = x.reshape(n, h // 2, 2, w // 2, 2, c)
    x = jnp.transpose(x, (0, 1, 3, 2, 4, 5))
    return x.reshape(n, h // 2, w // 2, 4 * c)


def _prep_input(inp, tar):
    """NCHW inp/tar -> conv1-ready double space-to-depth layout (N,4,H/4+1,W/4+1,24)."""
    x = jnp.concatenate([inp, tar], axis=1)              # (N, 6, H, W)
    x = jnp.transpose(x, (0, 2, 3, 1))                   # NHWC
    n = x.shape[0]
    xp = jnp.pad(x, ((0, 0), (1, 1), (1, 1), (0, 0)))    # conv1 pad=1
    y1 = _space_to_depth(xp)                             # (N, H/2+1, W/2+1, 24)
    y1 = jnp.pad(y1, ((0, 0), (0, 1), (0, 1), (0, 0)))   # make dims even (pad never read)
    _, r, s, cq = y1.shape
    z1 = y1.reshape(n, r // 2, 2, s // 2, 2, cq)
    z1 = jnp.transpose(z1, (0, 2, 4, 1, 3, 5))           # parities to a leading axis
    return z1.reshape(n, 4, r // 2, s // 2, cq).astype(COMPUTE_DTYPE)


def _prepare_weights(params):
    """Fold BN into weights, rewrite stride-2 convs as stride-1 s2d convs,
    pad the last conv's single output channel to 128 lanes."""
    s1 = params["bn1_gamma"] * jax.lax.rsqrt(params["bn1_var"] + BN_EPS)
    b1 = params["bn1_beta"] - params["bn1_mean"] * s1
    s2 = params["bn2_gamma"] * jax.lax.rsqrt(params["bn2_var"] + BN_EPS)
    b2 = params["bn2_beta"] - params["bn2_mean"] * s2

    def s2d_weight(w_oihw, scale):
        oc, ic, kh, kw = w_oihw.shape
        w = jnp.transpose(w_oihw, (2, 3, 1, 0))          # (kh, kw, ic, oc)
        w = w.reshape(2, 2, 2, 2, ic, oc)                # (a, b, c, d, ic, oc)
        w = jnp.transpose(w, (0, 2, 1, 3, 4, 5))         # (a, c, b, d, ic, oc)
        w = w.reshape(2, 2, 4 * ic, oc)                  # rows ordered (2b+d)*ic+ic
        return w * scale[None, None, None, :]            # fold BN scale into oc

    w1p = s2d_weight(params["w1"], s1)                            # (2,2,24,64)
    w2p = s2d_weight(params["w2"], s2).reshape(2, 2, 4, 64, 128)  # (2,2,4,64,128)
    w3p = jnp.transpose(params["w3"], (2, 3, 1, 0))               # (4,4,128,256)
    w4 = jnp.transpose(params["w4"], (2, 3, 1, 0))                # (4,4,256,1)
    w4p = jnp.pad(w4, ((0, 0), (0, 0), (0, 0), (0, 127)))         # lane-dense OC
    b4p = jnp.pad(params["b4"], (0, 127)).reshape(1, 128)

    cd = COMPUTE_DTYPE
    return (w1p.astype(cd), b1.reshape(1, -1).astype(jnp.float32),
            w2p.astype(cd), b2.reshape(1, -1).astype(jnp.float32),
            w3p.astype(cd), w4p.astype(cd), b4p.astype(jnp.float32))


# ---------------------------------------------------------------------------
# Forward pass (eval mode)
# ---------------------------------------------------------------------------
def discriminator1_forward(params, inp, tar):
    """inp, tar: NCHW float32. Returns NCHW float32 (post-sigmoid)."""
    n, _, h, w = inp.shape
    assert h % 4 == 0 and w % 4 == 0 and h >= 12 and w >= 12
    oh2, ow2 = h // 4, w // 4          # conv2 output spatial (== conv1 output // 2)
    oh3, ow3 = oh2 - 1, ow2 - 1        # conv3 output spatial
    oh4, ow4 = oh3 - 1, ow3 - 1        # last_conv output spatial

    z1 = _prep_input(inp, tar)
    w1p, b1p, w2p, b2p, w3p, w4p, b4p = _prepare_weights(params)

    kernel = functools.partial(_disc_kernel, dims=(oh2, ow2, oh3, ow3, oh4, ow4))

    out = pl.pallas_call(
        kernel,
        out_shape=jax.ShapeDtypeStruct((n, oh4 * ow4, 128), jnp.float32),
        grid=(n,),
        in_specs=[
            pl.BlockSpec((1, 4, oh2 + 1, ow2 + 1, 24), lambda i: (i, 0, 0, 0, 0)),
            pl.BlockSpec((2, 2, 24, 64), lambda i: (0, 0, 0, 0)),
            pl.BlockSpec((1, 64), lambda i: (0, 0)),
            pl.BlockSpec((2, 2, 4, 64, 128), lambda i: (0, 0, 0, 0, 0)),
            pl.BlockSpec((1, 128), lambda i: (0, 0)),
            pl.BlockSpec((4, 4, 128, 256), lambda i: (0, 0, 0, 0)),
            pl.BlockSpec((4, 4, 256, 128), lambda i: (0, 0, 0, 0)),
            pl.BlockSpec((1, 128), lambda i: (0, 0)),
        ],
        out_specs=pl.BlockSpec((1, oh4 * ow4, 128), lambda i: (i, 0, 0)),
        scratch_shapes=[
            pltpu.VMEM((4, oh2 + 1, ow2 + 1, 64), COMPUTE_DTYPE),   # conv1 out (s2d, padded)
            pltpu.VMEM((oh2 + 2, ow2 + 2, 128), COMPUTE_DTYPE),     # conv2 out (padded)
            pltpu.VMEM((oh3 + 2, ow3 + 2, 256), COMPUTE_DTYPE),     # conv3 out (padded)
        ],
        compiler_params=pltpu.CompilerParams(dimension_semantics=("parallel",)),
    )(z1, w1p, b1p, w2p, b2p, w3p, w4p, b4p)

    out = out[:, :, 0].reshape(n, oh4, ow4)     # real channel of the lane-padded conv
    return out[:, None, :, :]                   # NCHW (N, 1, oh4, ow4)


# ---------------------------------------------------------------------------
# Pure-JAX reference (lax.conv) for correctness checking
# ---------------------------------------------------------------------------
def reference_forward(params, inp, tar):
    def conv(x, w, stride, pad):
        return jax.lax.conv_general_dilated(
            x, w, window_strides=(stride, stride),
            padding=[(pad, pad), (pad, pad)],
            dimension_numbers=("NCHW", "OIHW", "NCHW"))

    def bn(x, g, b, m, v):
        g, b, m, v = (t[None, :, None, None] for t in (g, b, m, v))
        return (x - m) / jnp.sqrt(v + BN_EPS) * g + b

    def lrelu(x):
        return jnp.where(x >= 0, x, 0.2 * x)

    x = jnp.concatenate([inp, tar], axis=1)
    x = lrelu(bn(conv(x, params["w1"], 2, 1),
                 params["bn1_gamma"], params["bn1_beta"],
                 params["bn1_mean"], params["bn1_var"]))
    x = lrelu(bn(conv(x, params["w2"], 2, 1),
                 params["bn2_gamma"], params["bn2_beta"],
                 params["bn2_mean"], params["bn2_var"]))
    x = lrelu(conv(x, params["w3"], 1, 1))
    x = jnp.pad(x, ((0, 0), (0, 0), (1, 1), (1, 1)))
    x = conv(x, params["w4"], 1, 0) + params["b4"][None, :, None, None]
    return jax.nn.sigmoid(x)


# ---------------------------------------------------------------------------
# Deterministic parameter construction
# ---------------------------------------------------------------------------
def make_params(key):
    ks = jax.random.split(key, 12)
    p = {}
    p["w1"] = 0.05 * jax.random.normal(ks[0], (64, 6, 4, 4), jnp.float32)
    p["w2"] = 0.05 * jax.random.normal(ks[1], (128, 64, 4, 4), jnp.float32)
    p["w3"] = 0.05 * jax.random.normal(ks[2], (256, 128, 4, 4), jnp.float32)
    p["w4"] = 0.05 * jax.random.normal(ks[3], (1, 256, 4, 4), jnp.float32)
    p["b4"] = 0.05 * jax.random.normal(ks[4], (1,), jnp.float32)

    p["bn1_gamma"] = 1.0 + 0.1 * jax.random.normal(ks[5], (64,), jnp.float32)
    p["bn1_beta"] = 0.1 * jax.random.normal(ks[6], (64,), jnp.float32)
    p["bn1_mean"] = 0.1 * jax.random.normal(ks[7], (64,), jnp.float32)
    p["bn1_var"] = jax.random.uniform(ks[8], (64,), jnp.float32, 0.5, 1.5)

    p["bn2_gamma"] = 1.0 + 0.1 * jax.random.normal(ks[9], (128,), jnp.float32)
    p["bn2_beta"] = 0.1 * jax.random.normal(ks[10], (128,), jnp.float32)
    p["bn2_mean"] = 0.1 * jax.random.normal(ks[11], (128,), jnp.float32)
    p["bn2_var"] = jnp.linspace(0.5, 1.5, 128, dtype=jnp.float32)
    return p


if __name__ == "__main__":
    key = jax.random.PRNGKey(0)
    k_inp, k_tar, k_par = jax.random.split(key, 3)

    params = make_params(k_par)
    inp = jax.random.normal(k_inp, (2, 3, 16, 16), jnp.float32)
    tar = jax.random.normal(k_tar, (2, 3, 16, 16), jnp.float32)

    out = jax.jit(discriminator1_forward)(params, inp, tar)
    out = jax.block_until_ready(out)
    assert out.shape == (2, 1, 2, 2), out.shape

    ref = jax.block_until_ready(reference_forward(params, inp, tar))
    err = float(jnp.max(jnp.abs(out - ref)))
    assert err < 1e-3, err

    print("KERNEL_OK")
</pallas_src>

<mosaic_0001>
module attributes {stable_mosaic.version = 11 : i64} {
  func.func @_disc_kernel(%arg0: i32, %arg1: memref<1x4x5x5x24xf32, #tpu.memory_space<vmem>>, %arg2: memref<2x2x24x64xf32, #tpu.memory_space<vmem>>, %arg3: memref<1x64xf32, #tpu.memory_space<vmem>>, %arg4: memref<2x2x4x64x128xf32, #tpu.memory_space<vmem>>, %arg5: memref<1x128xf32, #tpu.memory_space<vmem>>, %arg6: memref<4x4x128x256xf32, #tpu.memory_space<vmem>>, %arg7: memref<4x4x256x128xf32, #tpu.memory_space<vmem>>, %arg8: memref<1x128xf32, #tpu.memory_space<vmem>>, %arg9: memref<1x4x128xf32, #tpu.memory_space<vmem>>, %arg10: memref<4x5x5x64xf32, #tpu.memory_space<vmem>>, %arg11: memref<6x6x128xf32, #tpu.memory_space<vmem>>, %arg12: memref<5x5x256xf32, #tpu.memory_space<vmem>>) attributes {dimension_semantics = [#tpu.dimension_semantics<parallel>], iteration_bounds = array<i64: 2>, scalar_prefetch = 0 : i64, scratch_operands = 3 : i64, tpu.core_type = #tpu.core_type<tc>, window_params = [{transform_indices = @transform_0, window_bounds = array<i64: 1, 4, 5, 5, 24>}, {pipeline_mode = #tpu.pipeline_mode<synchronous>, transform_indices = @transform_1, window_bounds = array<i64: 2, 2, 24, 64>}, {pipeline_mode = #tpu.pipeline_mode<synchronous>, transform_indices = @transform_2, window_bounds = array<i64: 1, 64>}, {pipeline_mode = #tpu.pipeline_mode<synchronous>, transform_indices = @transform_3, window_bounds = array<i64: 2, 2, 4, 64, 128>}, {pipeline_mode = #tpu.pipeline_mode<synchronous>, transform_indices = @transform_4, window_bounds = array<i64: 1, 128>}, {pipeline_mode = #tpu.pipeline_mode<synchronous>, transform_indices = @transform_5, window_bounds = array<i64: 4, 4, 128, 256>}, {pipeline_mode = #tpu.pipeline_mode<synchronous>, transform_indices = @transform_6, window_bounds = array<i64: 4, 4, 256, 128>}, {pipeline_mode = #tpu.pipeline_mode<synchronous>, transform_indices = @transform_7, window_bounds = array<i64: 1, 128>}, {transform_indices = @transform_8, window_bounds = array<i64: 1, 4, 128>}]} {
    %cst = arith.constant 0.000000e+00 : f32
    %0 = vector.broadcast %cst : f32 to vector<4x5x5x64xf32>
    %c0 = arith.constant 0 : index
    %c0_0 = arith.constant 0 : index
    %c0_1 = arith.constant 0 : index
    %c0_2 = arith.constant 0 : index
    %1 = vector.load %arg10[%c0, %c0_0, %c0_1, %c0_2] : memref<4x5x5x64xf32, #tpu.memory_space<vmem>>, vector<4x5x5x64xf32>
    tpu.vector_store %arg10[%c0, %c0_0, %c0_1, %c0_2], %0 {strides = array<i32>} : memref<4x5x5x64xf32, #tpu.memory_space<vmem>>, vector<4x5x5x64xf32>,
    %cst_3 = arith.constant 0.000000e+00 : f32
    %2 = vector.broadcast %cst_3 : f32 to vector<6x6x128xf32>
    %c0_4 = arith.constant 0 : index
    %c0_5 = arith.constant 0 : index
    %c0_6 = arith.constant 0 : index
    %3 = vector.load %arg11[%c0_4, %c0_5, %c0_6] : memref<6x6x128xf32, #tpu.memory_space<vmem>>, vector<6x6x128xf32>
    tpu.vector_store %arg11[%c0_4, %c0_5, %c0_6], %2 {strides = array<i32>} : memref<6x6x128xf32, #tpu.memory_space<vmem>>, vector<6x6x128xf32>,
    %cst_7 = arith.constant 0.000000e+00 : f32
    %4 = vector.broadcast %cst_7 : f32 to vector<5x5x256xf32>
    %c0_8 = arith.constant 0 : index
    %c0_9 = arith.constant 0 : index
    %c0_10 = arith.constant 0 : index
    %5 = vector.load %arg12[%c0_8, %c0_9, %c0_10] : memref<5x5x256xf32, #tpu.memory_space<vmem>>, vector<5x5x256xf32>
    tpu.vector_store %arg12[%c0_8, %c0_9, %c0_10], %4 {strides = array<i32>} : memref<5x5x256xf32, #tpu.memory_space<vmem>>, vector<5x5x256xf32>,
    %cst_11 = arith.constant 0.000000e+00 : f32
    %6 = vector.broadcast %cst_11 : f32 to vector<16x64xf32>
    %c0_12 = arith.constant 0 : index
    %c0_13 = arith.constant 0 : index
    %c0_14 = arith.constant 0 : index
    %c0_15 = arith.constant 0 : index
    %c0_16 = arith.constant 0 : index
    %7 = vector.load %arg1[%c0_12, %c0_13, %c0_14, %c0_15, %c0_16] : memref<1x4x5x5x24xf32, #tpu.memory_space<vmem>>, vector<1x1x4x4x24xf32>
    %8 = vector.shape_cast %7 : vector<1x1x4x4x24xf32> to vector<4x4x24xf32>
    %9 = vector.shape_cast %8 : vector<4x4x24xf32> to vector<16x24xf32>
    %c0_17 = arith.constant 0 : index
    %c0_18 = arith.constant 0 : index
    %c0_19 = arith.constant 0 : index
    %c0_20 = arith.constant 0 : index
    %10 = vector.load %arg2[%c0_17, %c0_18, %c0_19, %c0_20] : memref<2x2x24x64xf32, #tpu.memory_space<vmem>>, vector<1x1x24x64xf32>
    %11 = vector.shape_cast %10 : vector<1x1x24x64xf32> to vector<24x64xf32>
    %cst_21 = arith.constant dense<0.000000e+00> : vector<16x64xf32>
    %12 = tpu.matmul %9, %11, %cst_21 {dimension_numbers = #tpu.dot_dimension_numbers<[1], [0], [0], [1], [0, 0, 1, 1], [], []>} : vector<16x24xf32>, vector<24x64xf32>, vector<16x64xf32> -> vector<16x64xf32>
    %13 = arith.addf %6, %12 : vector<16x64xf32>
    %c0_22 = arith.constant 0 : index
    %c1 = arith.constant 1 : index
    %c0_23 = arith.constant 0 : index
    %c0_24 = arith.constant 0 : index
    %c0_25 = arith.constant 0 : index
    %14 = vector.load %arg1[%c0_22, %c1, %c0_23, %c0_24, %c0_25] : memref<1x4x5x5x24xf32, #tpu.memory_space<vmem>>, vector<1x1x4x4x24xf32>
    %15 = vector.shape_cast %14 : vector<1x1x4x4x24xf32> to vector<4x4x24xf32>
    %16 = vector.shape_cast %15 : vector<4x4x24xf32> to vector<16x24xf32>
    %c0_26 = arith.constant 0 : index
    %c1_27 = arith.constant 1 : index
    %c0_28 = arith.constant 0 : index
    %c0_29 = arith.constant 0 : index
    %17 = vector.load %arg2[%c0_26, %c1_27, %c0_28, %c0_29] : memref<2x2x24x64xf32, #tpu.memory_space<vmem>>, vector<1x1x24x64xf32>
    %18 = vector.shape_cast %17 : vector<1x1x24x64xf32> to vector<24x64xf32>
    %cst_30 = arith.constant dense<0.000000e+00> : vector<16x64xf32>
    %19 = tpu.matmul %16, %18, %cst_30 {dimension_numbers = #tpu.dot_dimension_numbers<[1], [0], [0], [1], [0, 0, 1, 1], [], []>} : vector<16x24xf32>, vector<24x64xf32>, vector<16x64xf32> -> vector<16x64xf32>
    %20 = arith.addf %13, %19 : vector<16x64xf32>
    %c0_31 = arith.constant 0 : index
    %c2 = arith.constant 2 : index
    %c0_32 = arith.constant 0 : index
    %c0_33 = arith.constant 0 : index
    %c0_34 = arith.constant 0 : index
    %21 = vector.load %arg1[%c0_31, %c2, %c0_32, %c0_33, %c0_34] : memref<1x4x5x5x24xf32, #tpu.memory_space<vmem>>, vector<1x1x4x4x24xf32>
    %22 = vector.shape_cast %21 : vector<1x1x4x4x24xf32> to vector<4x4x24xf32>
    %23 = vector.shape_cast %22 : vector<4x4x24xf32> to vector<16x24xf32>
    %c1_35 = arith.constant 1 : index
    %c0_36 = arith.constant 0 : index
    %c0_37 = arith.constant 0 : index
    %c0_38 = arith.constant 0 : index
    %24 = vector.load %arg2[%c1_35, %c0_36, %c0_37, %c0_38] : memref<2x2x24x64xf32, #tpu.memory_space<vmem>>, vector<1x1x24x64xf32>
    %25 = vector.shape_cast %24 : vector<1x1x24x64xf32> to vector<24x64xf32>
    %cst_39 = arith.constant dense<0.000000e+00> : vector<16x64xf32>
    %26 = tpu.matmul %23, %25, %cst_39 {dimension_numbers = #tpu.dot_dimension_numbers<[1], [0], [0], [1], [0, 0, 1, 1], [], []>} : vector<16x24xf32>, vector<24x64xf32>, vector<16x64xf32> -> vector<16x64xf32>
    %27 = arith.addf %20, %26 : vector<16x64xf32>
    %c0_40 = arith.constant 0 : index
    %c3 = arith.constant 3 : index
    %c0_41 = arith.constant 0 : index
    %c0_42 = arith.constant 0 : index
    %c0_43 = arith.constant 0 : index
    %28 = vector.load %arg1[%c0_40, %c3, %c0_41, %c0_42, %c0_43] : memref<1x4x5x5x24xf32, #tpu.memory_space<vmem>>, vector<1x1x4x4x24xf32>
    %29 = vector.shape_cast %28 : vector<1x1x4x4x24xf32> to vector<4x4x24xf32>
    %30 = vector.shape_cast %29 : vector<4x4x24xf32> to vector<16x24xf32>
    %c1_44 = arith.constant 1 : index
    %c1_45 = arith.constant 1 : index
    %c0_46 = arith.constant 0 : index
    %c0_47 = arith.constant 0 : index
    %31 = vector.load %arg2[%c1_44, %c1_45, %c0_46, %c0_47] : memref<2x2x24x64xf32, #tpu.memory_space<vmem>>, vector<1x1x24x64xf32>
    %32 = vector.shape_cast %31 : vector<1x1x24x64xf32> to vector<24x64xf32>
    %cst_48 = arith.constant dense<0.000000e+00> : vector<16x64xf32>
    %33 = tpu.matmul %30, %32, %cst_48 {dimension_numbers = #tpu.dot_dimension_numbers<[1], [0], [0], [1], [0, 0, 1, 1], [], []>} : vector<16x24xf32>, vector<24x64xf32>, vector<16x64xf32> -> vector<16x64xf32>
    %34 = arith.addf %27, %33 : vector<16x64xf32>
    %c0_49 = arith.constant 0 : index
    %c0_50 = arith.constant 0 : index
    %35 = vector.load %arg3[%c0_49, %c0_50] : memref<1x64xf32, #tpu.memory_space<vmem>>, vector<1x64xf32>
    %36 = vector.broadcast %35 : vector<1x64xf32> to vector<16x64xf32>
    %37 = arith.addf %34, %36 : vector<16x64xf32>
    %cst_51 = arith.constant 0.000000e+00 : f32
    %38 = vector.broadcast %cst_51 : f32 to vector<16x64xf32>
    %39 = arith.cmpf oge, %37, %38 : vector<16x64xf32>
    %cst_52 = arith.constant 2.000000e-01 : f32
    %40 = vector.broadcast %cst_52 : f32 to vector<16x64xf32>
    %41 = arith.mulf %40, %37 : vector<16x64xf32>
    %42 = arith.select %39, %37, %41 : vector<16x64xi1>, vector<16x64xf32>
    %43 = vector.shape_cast %42 : vector<16x64xf32> to vector<4x4x64xf32>
    %c3_53 = arith.constant 3 : index
    %c0_54 = arith.constant 0 : index
    %c0_55 = arith.constant 0 : index
    %c0_56 = arith.constant 0 : index
    %44 = vector.load %arg10[%c3_53, %c0_54, %c0_55, %c0_56] : memref<4x5x5x64xf32, #tpu.memory_space<vmem>>, vector<1x4x4x64xf32>
    %45 = vector.shape_cast %44 : vector<1x4x4x64xf32> to vector<4x4x64xf32>
    %46 = vector.shape_cast %43 : vector<4x4x64xf32> to vector<1x4x4x64xf32>
    tpu.vector_store %arg10[%c3_53, %c0_54, %c0_55, %c0_56], %46 {strides = array<i32>} : memref<4x5x5x64xf32, #tpu.memory_space<vmem>>, vector<1x4x4x64xf32>,
    %cst_57 = arith.constant 0.000000e+00 : f32
    %47 = vector.broadcast %cst_57 : f32 to vector<16x64xf32>
    %c0_58 = arith.constant 0 : index
    %c1_59 = arith.constant 1 : index
    %c0_60 = arith.constant 0 : index
    %c0_61 = arith.constant 0 : index
    %c0_62 = arith.constant 0 : index
    %48 = vector.load %arg1[%c0_58, %c1_59, %c0_60, %c0_61, %c0_62] : memref<1x4x5x5x24xf32, #tpu.memory_space<vmem>>, vector<1x1x4x4x24xf32>
    %49 = vector.shape_cast %48 : vector<1x1x4x4x24xf32> to vector<4x4x24xf32>
    %50 = vector.shape_cast %49 : vector<4x4x24xf32> to vector<16x24xf32>
    %c0_63 = arith.constant 0 : index
    %c0_64 = arith.constant 0 : index
    %c0_65 = arith.constant 0 : index
    %c0_66 = arith.constant 0 : index
    %51 = vector.load %arg2[%c0_63, %c0_64, %c0_65, %c0_66] : memref<2x2x24x64xf32, #tpu.memory_space<vmem>>, vector<1x1x24x64xf32>
    %52 = vector.shape_cast %51 : vector<1x1x24x64xf32> to vector<24x64xf32>
    %cst_67 = arith.constant dense<0.000000e+00> : vector<16x64xf32>
    %53 = tpu.matmul %50, %52, %cst_67 {dimension_numbers = #tpu.dot_dimension_numbers<[1], [0], [0], [1], [0, 0, 1, 1], [], []>} : vector<16x24xf32>, vector<24x64xf32>, vector<16x64xf32> -> vector<16x64xf32>
    %54 = arith.addf %47, %53 : vector<16x64xf32>
    %c0_68 = arith.constant 0 : index
    %c0_69 = arith.constant 0 : index
    %c0_70 = arith.constant 0 : index
    %c1_71 = arith.constant 1 : index
    %c0_72 = arith.constant 0 : index
    %55 = vector.load %arg1[%c0_68, %c0_69, %c0_70, %c1_71, %c0_72] : memref<1x4x5x5x24xf32, #tpu.memory_space<vmem>>, vector<1x1x4x4x24xf32>
    %56 = vector.shape_cast %55 : vector<1x1x4x4x24xf32> to vector<4x4x24xf32>
    %57 = vector.shape_cast %56 : vector<4x4x24xf32> to vector<16x24xf32>
    %c0_73 = arith.constant 0 : index
    %c1_74 = arith.constant 1 : index
    %c0_75 = arith.constant 0 : index
    %c0_76 = arith.constant 0 : index
    %58 = vector.load %arg2[%c0_73, %c1_74, %c0_75, %c0_76] : memref<2x2x24x64xf32, #tpu.memory_space<vmem>>, vector<1x1x24x64xf32>
    %59 = vector.shape_cast %58 : vector<1x1x24x64xf32> to vector<24x64xf32>
    %cst_77 = arith.constant dense<0.000000e+00> : vector<16x64xf32>
    %60 = tpu.matmul %57, %59, %cst_77 {dimension_numbers = #tpu.dot_dimension_numbers<[1], [0], [0], [1], [0, 0, 1, 1], [], []>} : vector<16x24xf32>, vector<24x64xf32>, vector<16x64xf32> -> vector<16x64xf32>
    %61 = arith.addf %54, %60 : vector<16x64xf32>
    %c0_78 = arith.constant 0 : index
    %c3_79 = arith.constant 3 : index
    %c0_80 = arith.constant 0 : index
    %c0_81 = arith.constant 0 : index
    %c0_82 = arith.constant 0 : index
    %62 = vector.load %arg1[%c0_78, %c3_79, %c0_80, %c0_81, %c0_82] : memref<1x4x5x5x24xf32, #tpu.memory_space<vmem>>, vector<1x1x4x4x24xf32>
    %63 = vector.shape_cast %62 : vector<1x1x4x4x24xf32> to vector<4x4x24xf32>
    %64 = vector.shape_cast %63 : vector<4x4x24xf32> to vector<16x24xf32>
    %c1_83 = arith.constant 1 : index
    %c0_84 = arith.constant 0 : index
    %c0_85 = arith.constant 0 : index
    %c0_86 = arith.constant 0 : index
    %65 = vector.load %arg2[%c1_83, %c0_84, %c0_85, %c0_86] : memref<2x2x24x64xf32, #tpu.memory_space<vmem>>, vector<1x1x24x64xf32>
    %66 = vector.shape_cast %65 : vector<1x1x24x64xf32> to vector<24x64xf32>
    %cst_87 = arith.constant dense<0.000000e+00> : vector<16x64xf32>
    %67 = tpu.matmul %64, %66, %cst_87 {dimension_numbers = #tpu.dot_dimension_numbers<[1], [0], [0], [1], [0, 0, 1, 1], [], []>} : vector<16x24xf32>, vector<24x64xf32>, vector<16x64xf32> -> vector<16x64xf32>
    %68 = arith.addf %61, %67 : vector<16x64xf32>
    %c0_88 = arith.constant 0 : index
    %c2_89 = arith.constant 2 : index
    %c0_90 = arith.constant 0 : index
    %c1_91 = arith.constant 1 : index
    %c0_92 = arith.constant 0 : index
    %69 = vector.load %arg1[%c0_88, %c2_89, %c0_90, %c1_91, %c0_92] : memref<1x4x5x5x24xf32, #tpu.memory_space<vmem>>, vector<1x1x4x4x24xf32>
    %70 = vector.shape_cast %69 : vector<1x1x4x4x24xf32> to vector<4x4x24xf32>
    %71 = vector.shape_cast %70 : vector<4x4x24xf32> to vector<16x24xf32>
    %c1_93 = arith.constant 1 : index
    %c1_94 = arith.constant 1 : index
    %c0_95 = arith.constant 0 : index
    %c0_96 = arith.constant 0 : index
    %72 = vector.load %arg2[%c1_93, %c1_94, %c0_95, %c0_96] : memref<2x2x24x64xf32, #tpu.memory_space<vmem>>, vector<1x1x24x64xf32>
    %73 = vector.shape_cast %72 : vector<1x1x24x64xf32> to vector<24x64xf32>
    %cst_97 = arith.constant dense<0.000000e+00> : vector<16x64xf32>
    %74 = tpu.matmul %71, %73, %cst_97 {dimension_numbers = #tpu.dot_dimension_numbers<[1], [0], [0], [1], [0, 0, 1, 1], [], []>} : vector<16x24xf32>, vector<24x64xf32>, vector<16x64xf32> -> vector<16x64xf32>
    %75 = arith.addf %68, %74 : vector<16x64xf32>
    %c0_98 = arith.constant 0 : index
    %c0_99 = arith.constant 0 : index
    %76 = vector.load %arg3[%c0_98, %c0_99] : memref<1x64xf32, #tpu.memory_space<vmem>>, vector<1x64xf32>
    %77 = vector.broadcast %76 : vector<1x64xf32> to vector<16x64xf32>
    %78 = arith.addf %75, %77 : vector<16x64xf32>
    %cst_100 = arith.constant 0.000000e+00 : f32
    %79 = vector.broadcast %cst_100 : f32 to vector<16x64xf32>
    %80 = arith.cmpf oge, %78, %79 : vector<16x64xf32>
    %cst_101 = arith.constant 2.000000e-01 : f32
    %81 = vector.broadcast %cst_101 : f32 to vector<16x64xf32>
    %82 = arith.mulf %81, %78 : vector<16x64xf32>
    %83 = arith.select %80, %78, %82 : vector<16x64xi1>, vector<16x64xf32>
    %84 = vector.shape_cast %83 : vector<16x64xf32> to vector<4x4x64xf32>
    %c2_102 = arith.constant 2 : index
    %c0_103 = arith.constant 0 : index
    %c1_104 = arith.constant 1 : index
    %c0_105 = arith.constant 0 : index
    %85 = vector.load %arg10[%c2_102, %c0_103, %c1_104, %c0_105] : memref<4x5x5x64xf32, #tpu.memory_space<vmem>>, vector<1x4x4x64xf32>
    %86 = vector.shape_cast %85 : vector<1x4x4x64xf32> to vector<4x4x64xf32>
    %87 = vector.shape_cast %84 : vector<4x4x64xf32> to vector<1x4x4x64xf32>
    tpu.vector_store %arg10[%c2_102, %c0_103, %c1_104, %c0_105], %87 {strides = array<i32>} : memref<4x5x5x64xf32, #tpu.memory_space<vmem>>, vector<1x4x4x64xf32>,
    %cst_106 = arith.constant 0.000000e+00 : f32
    %88 = vector.broadcast %cst_106 : f32 to vector<16x64xf32>
    %c0_107 = arith.constant 0 : index
    %c2_108 = arith.constant 2 : index
    %c0_109 = arith.constant 0 : index
    %c0_110 = arith.constant 0 : index
    %c0_111 = arith.constant 0 : index
    %89 = vector.load %arg1[%c0_107, %c2_108, %c0_109, %c0_110, %c0_111] : memref<1x4x5x5x24xf32, #tpu.memory_space<vmem>>, vector<1x1x4x4x24xf32>
    %90 = vector.shape_cast %89 : vector<1x1x4x4x24xf32> to vector<4x4x24xf32>
    %91 = vector.shape_cast %90 : vector<4x4x24xf32> to vector<16x24xf32>
    %c0_112 = arith.constant 0 : index
    %c0_113 = arith.constant 0 : index
    %c0_114 = arith.constant 0 : index
    %c0_115 = arith.constant 0 : index
    %92 = vector.load %arg2[%c0_112, %c0_113, %c0_114, %c0_115] : memref<2x2x24x64xf32, #tpu.memory_space<vmem>>, vector<1x1x24x64xf32>
    %93 = vector.shape_cast %92 : vector<1x1x24x64xf32> to vector<24x64xf32>
    %cst_116 = arith.constant dense<0.000000e+00> : vector<16x64xf32>
    %94 = tpu.matmul %91, %93, %cst_116 {dimension_numbers = #tpu.dot_dimension_numbers<[1], [0], [0], [1], [0, 0, 1, 1], [], []>} : vector<16x24xf32>, vector<24x64xf32>, vector<16x64xf32> -> vector<16x64xf32>
    %95 = arith.addf %88, %94 : vector<16x64xf32>
    %c0_117 = arith.constant 0 : index
    %c3_118 = arith.constant 3 : index
    %c0_119 = arith.constant 0 : index
    %c0_120 = arith.constant 0 : index
    %c0_121 = arith.constant 0 : index
    %96 = vector.load %arg1[%c0_117, %c3_118, %c0_119, %c0_120, %c0_121] : memref<1x4x5x5x24xf32, #tpu.memory_space<vmem>>, vector<1x1x4x4x24xf32>
    %97 = vector.shape_cast %96 : vector<1x1x4x4x24xf32> to vector<4x4x24xf32>
    %98 = vector.shape_cast %97 : vector<4x4x24xf32> to vector<16x24xf32>
    %c0_122 = arith.constant 0 : index
    %c1_123 = arith.constant 1 : index
    %c0_124 = arith.constant 0 : index
    %c0_125 = arith.constant 0 : index
    %99 = vector.load %arg2[%c0_122, %c1_123, %c0_124, %c0_125] : memref<2x2x24x64xf32, #tpu.memory_space<vmem>>, vector<1x1x24x64xf32>
    %100 = vector.shape_cast %99 : vector<1x1x24x64xf32> to vector<24x64xf32>
    %cst_126 = arith.constant dense<0.000000e+00> : vector<16x64xf32>
    %101 = tpu.matmul %98, %100, %cst_126 {dimension_numbers = #tpu.dot_dimension_numbers<[1], [0], [0], [1], [0, 0, 1, 1], [], []>} : vector<16x24xf32>, vector<24x64xf32>, vector<16x64xf32> -> vector<16x64xf32>
    %102 = arith.addf %95, %101 : vector<16x64xf32>
    %c0_127 = arith.constant 0 : index
    %c0_128 = arith.constant 0 : index
    %c1_129 = arith.constant 1 : index
    %c0_130 = arith.constant 0 : index
    %c0_131 = arith.constant 0 : index
    %103 = vector.load %arg1[%c0_127, %c0_128, %c1_129, %c0_130, %c0_131] : memref<1x4x5x5x24xf32, #tpu.memory_space<vmem>>, vector<1x1x4x4x24xf32>
    %104 = vector.shape_cast %103 : vector<1x1x4x4x24xf32> to vector<4x4x24xf32>
    %105 = vector.shape_cast %104 : vector<4x4x24xf32> to vector<16x24xf32>
    %c1_132 = arith.constant 1 : index
    %c0_133 = arith.constant 0 : index
    %c0_134 = arith.constant 0 : index
    %c0_135 = arith.constant 0 : index
    %106 = vector.load %arg2[%c1_132, %c0_133, %c0_134, %c0_135] : memref<2x2x24x64xf32, #tpu.memory_space<vmem>>, vector<1x1x24x64xf32>
    %107 = vector.shape_cast %106 : vector<1x1x24x64xf32> to vector<24x64xf32>
    %cst_136 = arith.constant dense<0.000000e+00> : vector<16x64xf32>
    %108 = tpu.matmul %105, %107, %cst_136 {dimension_numbers = #tpu.dot_dimension_numbers<[1], [0], [0], [1], [0, 0, 1, 1], [], []>} : vector<16x24xf32>, vector<24x64xf32>, vector<16x64xf32> -> vector<16x64xf32>
    %109 = arith.addf %102, %108 : vector<16x64xf32>
    %c0_137 = arith.constant 0 : index
    %c1_138 = arith.constant 1 : index
    %c1_139 = arith.constant 1 : index
    %c0_140 = arith.constant 0 : index
    %c0_141 = arith.constant 0 : index
    %110 = vector.load %arg1[%c0_137, %c1_138, %c1_139, %c0_140, %c0_141] : memref<1x4x5x5x24xf32, #tpu.memory_space<vmem>>, vector<1x1x4x4x24xf32>
    %111 = vector.shape_cast %110 : vector<1x1x4x4x24xf32> to vector<4x4x24xf32>
    %112 = vector.shape_cast %111 : vector<4x4x24xf32> to vector<16x24xf32>
    %c1_142 = arith.constant 1 : index
    %c1_143 = arith.constant 1 : index
    %c0_144 = arith.constant 0 : index
    %c0_145 = arith.constant 0 : index
    %113 = vector.load %arg2[%c1_142, %c1_143, %c0_144, %c0_145] : memref<2x2x24x64xf32, #tpu.memory_space<vmem>>, vector<1x1x24x64xf32>
    %114 = vector.shape_cast %113 : vector<1x1x24x64xf32> to vector<24x64xf32>
    %cst_146 = arith.constant dense<0.000000e+00> : vector<16x64xf32>
    %115 = tpu.matmul %112, %114, %cst_146 {dimension_numbers = #tpu.dot_dimension_numbers<[1], [0], [0], [1], [0, 0, 1, 1], [], []>} : vector<16x24xf32>, vector<24x64xf32>, vector<16x64xf32> -> vector<16x64xf32>
    %116 = arith.addf %109, %115 : vector<16x64xf32>
    %c0_147 = arith.constant 0 : index
    %c0_148 = arith.constant 0 : index
    %117 = vector.load %arg3[%c0_147, %c0_148] : memref<1x64xf32, #tpu.memory_space<vmem>>, vector<1x64xf32>
    %118 = vector.broadcast %117 : vector<1x64xf32> to vector<16x64xf32>
    %119 = arith.addf %116, %118 : vector<16x64xf32>
    %cst_149 = arith.constant 0.000000e+00 : f32
    %120 = vector.broadcast %cst_149 : f32 to vector<16x64xf32>
    %121 = arith.cmpf oge, %119, %120 : vector<16x64xf32>
    %cst_150 = arith.constant 2.000000e-01 : f32
    %122 = vector.broadcast %cst_150 : f32 to vector<16x64xf32>
    %123 = arith.mulf %122, %119 : vector<16x64xf32>
    %124 = arith.select %121, %119, %123 : vector<16x64xi1>, vector<16x64xf32>
    %125 = vector.shape_cast %124 : vector<16x64xf32> to vector<4x4x64xf32>
    %c1_151 = arith.constant 1 : index
    %c1_152 = arith.constant 1 : index
    %c0_153 = arith.constant 0 : index
    %c0_154 = arith.constant 0 : index
    %126 = vector.load %arg10[%c1_151, %c1_152, %c0_153, %c0_154] : memref<4x5x5x64xf32, #tpu.memory_space<vmem>>, vector<1x4x4x64xf32>
    %127 = vector.shape_cast %126 : vector<1x4x4x64xf32> to vector<4x4x64xf32>
    %128 = vector.shape_cast %125 : vector<4x4x64xf32> to vector<1x4x4x64xf32>
    tpu.vector_store %arg10[%c1_151, %c1_152, %c0_153, %c0_154], %128 {strides = array<i32>} : memref<4x5x5x64xf32, #tpu.memory_space<vmem>>, vector<1x4x4x64xf32>,
    %cst_155 = arith.constant 0.000000e+00 : f32
    %129 = vector.broadcast %cst_155 : f32 to vector<16x64xf32>
    %c0_156 = arith.constant 0 : index
    %c3_157 = arith.constant 3 : index
    %c0_158 = arith.constant 0 : index
    %c0_159 = arith.constant 0 : index
    %c0_160 = arith.constant 0 : index
    %130 = vector.load %arg1[%c0_156, %c3_157, %c0_158, %c0_159, %c0_160] : memref<1x4x5x5x24xf32, #tpu.memory_space<vmem>>, vector<1x1x4x4x24xf32>
    %131 = vector.shape_cast %130 : vector<1x1x4x4x24xf32> to vector<4x4x24xf32>
    %132 = vector.shape_cast %131 : vector<4x4x24xf32> to vector<16x24xf32>
    %c0_161 = arith.constant 0 : index
    %c0_162 = arith.constant 0 : index
    %c0_163 = arith.constant 0 : index
    %c0_164 = arith.constant 0 : index
    %133 = vector.load %arg2[%c0_161, %c0_162, %c0_163, %c0_164] : memref<2x2x24x64xf32, #tpu.memory_space<vmem>>, vector<1x1x24x64xf32>
    %134 = vector.shape_cast %133 : vector<1x1x24x64xf32> to vector<24x64xf32>
    %cst_165 = arith.constant dense<0.000000e+00> : vector<16x64xf32>
    %135 = tpu.matmul %132, %134, %cst_165 {dimension_numbers = #tpu.dot_dimension_numbers<[1], [0], [0], [1], [0, 0, 1, 1], [], []>} : vector<16x24xf32>, vector<24x64xf32>, vector<16x64xf32> -> vector<16x64xf32>
    %136 = arith.addf %129, %135 : vector<16x64xf32>
    %c0_166 = arith.constant 0 : index
    %c2_167 = arith.constant 2 : index
    %c0_168 = arith.constant 0 : index
    %c1_169 = arith.constant 1 : index
    %c0_170 = arith.constant 0 : index
    %137 = vector.load %arg1[%c0_166, %c2_167, %c0_168, %c1_169, %c0_170] : memref<1x4x5x5x24xf32, #tpu.memory_space<vmem>>, vector<1x1x4x4x24xf32>
    %138 = vector.shape_cast %137 : vector<1x1x4x4x24xf32> to vector<4x4x24xf32>
    %139 = vector.shape_cast %138 : vector<4x4x24xf32> to vector<16x24xf32>
    %c0_171 = arith.constant 0 : index
    %c1_172 = arith.constant 1 : index
    %c0_173 = arith.constant 0 : index
    %c0_174 = arith.constant 0 : index
    %140 = vector.load %arg2[%c0_171, %c1_172, %c0_173, %c0_174] : memref<2x2x24x64xf32, #tpu.memory_space<vmem>>, vector<1x1x24x64xf32>
    %141 = vector.shape_cast %140 : vector<1x1x24x64xf32> to vector<24x64xf32>
    %cst_175 = arith.constant dense<0.000000e+00> : vector<16x64xf32>
    %142 = tpu.matmul %139, %141, %cst_175 {dimension_numbers = #tpu.dot_dimension_numbers<[1], [0], [0], [1], [0, 0, 1, 1], [], []>} : vector<16x24xf32>, vector<24x64xf32>, vector<16x64xf32> -> vector<16x64xf32>
    %143 = arith.addf %136, %142 : vector<16x64xf32>
    %c0_176 = arith.constant 0 : index
    %c1_177 = arith.constant 1 : index
    %c1_178 = arith.constant 1 : index
    %c0_179 = arith.constant 0 : index
    %c0_180 = arith.constant 0 : index
    %144 = vector.load %arg1[%c0_176, %c1_177, %c1_178, %c0_179, %c0_180] : memref<1x4x5x5x24xf32, #tpu.memory_space<vmem>>, vector<1x1x4x4x24xf32>
    %145 = vector.shape_cast %144 : vector<1x1x4x4x24xf32> to vector<4x4x24xf32>
    %146 = vector.shape_cast %145 : vector<4x4x24xf32> to vector<16x24xf32>
    %c1_181 = arith.constant 1 : index
    %c0_182 = arith.constant 0 : index
    %c0_183 = arith.constant 0 : index
    %c0_184 = arith.constant 0 : index
    %147 = vector.load %arg2[%c1_181, %c0_182, %c0_183, %c0_184] : memref<2x2x24x64xf32, #tpu.memory_space<vmem>>, vector<1x1x24x64xf32>
    %148 = vector.shape_cast %147 : vector<1x1x24x64xf32> to vector<24x64xf32>
    %cst_185 = arith.constant dense<0.000000e+00> : vector<16x64xf32>
    %149 = tpu.matmul %146, %148, %cst_185 {dimension_numbers = #tpu.dot_dimension_numbers<[1], [0], [0], [1], [0, 0, 1, 1], [], []>} : vector<16x24xf32>, vector<24x64xf32>, vector<16x64xf32> -> vector<16x64xf32>
    %150 = arith.addf %143, %149 : vector<16x64xf32>
    %c0_186 = arith.constant 0 : index
    %c0_187 = arith.constant 0 : index
    %c1_188 = arith.constant 1 : index
    %c1_189 = arith.constant 1 : index
    %c0_190 = arith.constant 0 : index
    %151 = vector.load %arg1[%c0_186, %c0_187, %c1_188, %c1_189, %c0_190] : memref<1x4x5x5x24xf32, #tpu.memory_space<vmem>>, vector<1x1x4x4x24xf32>
    %152 = vector.shape_cast %151 : vector<1x1x4x4x24xf32> to vector<4x4x24xf32>
    %153 = vector.shape_cast %152 : vector<4x4x24xf32> to vector<16x24xf32>
    %c1_191 = arith.constant 1 : index
    %c1_192 = arith.constant 1 : index
    %c0_193 = arith.constant 0 : index
    %c0_194 = arith.constant 0 : index
    %154 = vector.load %arg2[%c1_191, %c1_192, %c0_193, %c0_194] : memref<2x2x24x64xf32, #tpu.memory_space<vmem>>, vector<1x1x24x64xf32>
    %155 = vector.shape_cast %154 : vector<1x1x24x64xf32> to vector<24x64xf32>
    %cst_195 = arith.constant dense<0.000000e+00> : vector<16x64xf32>
    %156 = tpu.matmul %153, %155, %cst_195 {dimension_numbers = #tpu.dot_dimension_numbers<[1], [0], [0], [1], [0, 0, 1, 1], [], []>} : vector<16x24xf32>, vector<24x64xf32>, vector<16x64xf32> -> vector<16x64xf32>
    %157 = arith.addf %150, %156 : vector<16x64xf32>
    %c0_196 = arith.constant 0 : index
    %c0_197 = arith.constant 0 : index
    %158 = vector.load %arg3[%c0_196, %c0_197] : memref<1x64xf32, #tpu.memory_space<vmem>>, vector<1x64xf32>
    %159 = vector.broadcast %158 : vector<1x64xf32> to vector<16x64xf32>
    %160 = arith.addf %157, %159 : vector<16x64xf32>
    %cst_198 = arith.constant 0.000000e+00 : f32
    %161 = vector.broadcast %cst_198 : f32 to vector<16x64xf32>
    %162 = arith.cmpf oge, %160, %161 : vector<16x64xf32>
    %cst_199 = arith.constant 2.000000e-01 : f32
    %163 = vector.broadcast %cst_199 : f32 to vector<16x64xf32>
    %164 = arith.mulf %163, %160 : vector<16x64xf32>
    %165 = arith.select %162, %160, %164 : vector<16x64xi1>, vector<16x64xf32>
    %166 = vector.shape_cast %165 : vector<16x64xf32> to vector<4x4x64xf32>
    %c0_200 = arith.constant 0 : index
    %c1_201 = arith.constant 1 : index
    %c1_202 = arith.constant 1 : index
    %c0_203 = arith.constant 0 : index
    %167 = vector.load %arg10[%c0_200, %c1_201, %c1_202, %c0_203] : memref<4x5x5x64xf32, #tpu.memory_space<vmem>>, vector<1x4x4x64xf32>
    %168 = vector.shape_cast %167 : vector<1x4x4x64xf32> to vector<4x4x64xf32>
    %169 = vector.shape_cast %166 : vector<4x4x64xf32> to vector<1x4x4x64xf32>
    tpu.vector_store %arg10[%c0_200, %c1_201, %c1_202, %c0_203], %169 {strides = array<i32>} : memref<4x5x5x64xf32, #tpu.memory_space<vmem>>, vector<1x4x4x64xf32>,
    %cst_204 = arith.constant 0.000000e+00 : f32
    %170 = vector.broadcast %cst_204 : f32 to vector<16x128xf32>
    %c0_205 = arith.constant 0 : index
    %c0_206 = arith.constant 0 : index
    %c0_207 = arith.constant 0 : index
    %c0_208 = arith.constant 0 : index
    %171 = vector.load %arg10[%c0_205, %c0_206, %c0_207, %c0_208] : memref<4x5x5x64xf32, #tpu.memory_space<vmem>>, vector<1x4x4x64xf32>
    %172 = vector.shape_cast %171 : vector<1x4x4x64xf32> to vector<4x4x64xf32>
    %173 = vector.shape_cast %172 : vector<4x4x64xf32> to vector<16x64xf32>
    %c0_209 = arith.constant 0 : index
    %c0_210 = arith.constant 0 : index
    %c0_211 = arith.constant 0 : index
    %c0_212 = arith.constant 0 : index
    %c0_213 = arith.constant 0 : index
    %174 = vector.load %arg4[%c0_209, %c0_210, %c0_211, %c0_212, %c0_213] : memref<2x2x4x64x128xf32, #tpu.memory_space<vmem>>, vector<1x1x1x64x128xf32>
    %175 = vector.shape_cast %174 : vector<1x1x1x64x128xf32> to vector<64x128xf32>
    %cst_214 = arith.constant dense<0.000000e+00> : vector<16x128xf32>
    %176 = tpu.matmul %173, %175, %cst_214 {dimension_numbers = #tpu.dot_dimension_numbers<[1], [0], [0], [1], [0, 0, 1, 1], [], []>} : vector<16x64xf32>, vector<64x128xf32>, vector<16x128xf32> -> vector<16x128xf32>
    %177 = arith.addf %170, %176 : vector<16x128xf32>
    %c1_215 = arith.constant 1 : index
    %c0_216 = arith.constant 0 : index
    %c0_217 = arith.constant 0 : index
    %c0_218 = arith.constant 0 : index
    %178 = vector.load %arg10[%c1_215, %c0_216, %c0_217, %c0_218] : memref<4x5x5x64xf32, #tpu.memory_space<vmem>>, vector<1x4x4x64xf32>
    %179 = vector.shape_cast %178 : vector<1x4x4x64xf32> to vector<4x4x64xf32>
    %180 = vector.shape_cast %179 : vector<4x4x64xf32> to vector<16x64xf32>
    %c0_219 = arith.constant 0 : index
    %c0_220 = arith.constant 0 : index
    %c1_221 = arith.constant 1 : index
    %c0_222 = arith.constant 0 : index
    %c0_223 = arith.constant 0 : index
    %181 = vector.load %arg4[%c0_219, %c0_220, %c1_221, %c0_222, %c0_223] : memref<2x2x4x64x128xf32, #tpu.memory_space<vmem>>, vector<1x1x1x64x128xf32>
    %182 = vector.shape_cast %181 : vector<1x1x1x64x128xf32> to vector<64x128xf32>
    %cst_224 = arith.constant dense<0.000000e+00> : vector<16x128xf32>
    %183 = tpu.matmul %180, %182, %cst_224 {dimension_numbers = #tpu.dot_dimension_numbers<[1], [0], [0], [1], [0, 0, 1, 1], [], []>} : vector<16x64xf32>, vector<64x128xf32>, vector<16x128xf32> -> vector<16x128xf32>
    %184 = arith.addf %177, %183 : vector<16x128xf32>
    %c2_225 = arith.constant 2 : index
    %c0_226 = arith.constant 0 : index
    %c0_227 = arith.constant 0 : index
    %c0_228 = arith.constant 0 : index
    %185 = vector.load %arg10[%c2_225, %c0_226, %c0_227, %c0_228] : memref<4x5x5x64xf32, #tpu.memory_space<vmem>>, vector<1x4x4x64xf32>
    %186 = vector.shape_cast %185 : vector<1x4x4x64xf32> to vector<4x4x64xf32>
    %187 = vector.shape_cast %186 : vector<4x4x64xf32> to vector<16x64xf32>
    %c0_229 = arith.constant 0 : index
    %c0_230 = arith.constant 0 : index
    %c2_231 = arith.constant 2 : index
    %c0_232 = arith.constant 0 : index
    %c0_233 = arith.constant 0 : index
    %188 = vector.load %arg4[%c0_229, %c0_230, %c2_231, %c0_232, %c0_233] : memref<2x2x4x64x128xf32, #tpu.memory_space<vmem>>, vector<1x1x1x64x128xf32>
    %189 = vector.shape_cast %188 : vector<1x1x1x64x128xf32> to vector<64x128xf32>
    %cst_234 = arith.constant dense<0.000000e+00> : vector<16x128xf32>
    %190 = tpu.matmul %187, %189, %cst_234 {dimension_numbers = #tpu.dot_dimension_numbers<[1], [0], [0], [1], [0, 0, 1, 1], [], []>} : vector<16x64xf32>, vector<64x128xf32>, vector<16x128xf32> -> vector<16x128xf32>
    %191 = arith.addf %184, %190 : vector<16x128xf32>
    %c3_235 = arith.constant 3 : index
    %c0_236 = arith.constant 0 : index
    %c0_237 = arith.constant 0 : index
    %c0_238 = arith.constant 0 : index
    %192 = vector.load %arg10[%c3_235, %c0_236, %c0_237, %c0_238] : memref<4x5x5x64xf32, #tpu.memory_space<vmem>>, vector<1x4x4x64xf32>
    %193 = vector.shape_cast %192 : vector<1x4x4x64xf32> to vector<4x4x64xf32>
    %194 = vector.shape_cast %193 : vector<4x4x64xf32> to vector<16x64xf32>
    %c0_239 = arith.constant 0 : index
    %c0_240 = arith.constant 0 : index
    %c3_241 = arith.constant 3 : index
    %c0_242 = arith.constant 0 : index
    %c0_243 = arith.constant 0 : index
    %195 = vector.load %arg4[%c0_239, %c0_240, %c3_241, %c0_242, %c0_243] : memref<2x2x4x64x128xf32, #tpu.memory_space<vmem>>, vector<1x1x1x64x128xf32>
    %196 = vector.shape_cast %195 : vector<1x1x1x64x128xf32> to vector<64x128xf32>
    %cst_244 = arith.constant dense<0.000000e+00> : vector<16x128xf32>
    %197 = tpu.matmul %194, %196, %cst_244 {dimension_numbers = #tpu.dot_dimension_numbers<[1], [0], [0], [1], [0, 0, 1, 1], [], []>} : vector<16x64xf32>, vector<64x128xf32>, vector<16x128xf32> -> vector<16x128xf32>
    %198 = arith.addf %191, %197 : vector<16x128xf32>
    %c0_245 = arith.constant 0 : index
    %c0_246 = arith.constant 0 : index
    %c1_247 = arith.constant 1 : index
    %c0_248 = arith.constant 0 : index
    %199 = vector.load %arg10[%c0_245, %c0_246, %c1_247, %c0_248] : memref<4x5x5x64xf32, #tpu.memory_space<vmem>>, vector<1x4x4x64xf32>
    %200 = vector.shape_cast %199 : vector<1x4x4x64xf32> to vector<4x4x64xf32>
    %201 = vector.shape_cast %200 : vector<4x4x64xf32> to vector<16x64xf32>
    %c0_249 = arith.constant 0 : index
    %c1_250 = arith.constant 1 : index
    %c0_251 = arith.constant 0 : index
    %c0_252 = arith.constant 0 : index
    %c0_253 = arith.constant 0 : index
    %202 = vector.load %arg4[%c0_249, %c1_250, %c0_251, %c0_252, %c0_253] : memref<2x2x4x64x128xf32, #tpu.memory_space<vmem>>, vector<1x1x1x64x128xf32>
    %203 = vector.shape_cast %202 : vector<1x1x1x64x128xf32> to vector<64x128xf32>
    %cst_254 = arith.constant dense<0.000000e+00> : vector<16x128xf32>
    %204 = tpu.matmul %201, %203, %cst_254 {dimension_numbers = #tpu.dot_dimension_numbers<[1], [0], [0], [1], [0, 0, 1, 1], [], []>} : vector<16x64xf32>, vector<64x128xf32>, vector<16x128xf32> -> vector<16x128xf32>
    %205 = arith.addf %198, %204 : vector<16x128xf32>
    %c1_255 = arith.constant 1 : index
    %c0_256 = arith.constant 0 : index
    %c1_257 = arith.constant 1 : index
    %c0_258 = arith.constant 0 : index
    %206 = vector.load %arg10[%c1_255, %c0_256, %c1_257, %c0_258] : memref<4x5x5x64xf32, #tpu.memory_space<vmem>>, vector<1x4x4x64xf32>
    %207 = vector.shape_cast %206 : vector<1x4x4x64xf32> to vector<4x4x64xf32>
    %208 = vector.shape_cast %207 : vector<4x4x64xf32> to vector<16x64xf32>
    %c0_259 = arith.constant 0 : index
    %c1_260 = arith.constant 1 : index
    %c1_261 = arith.constant 1 : index
    %c0_262 = arith.constant 0 : index
    %c0_263 = arith.constant 0 : index
    %209 = vector.load %arg4[%c0_259, %c1_260, %c1_261, %c0_262, %c0_263] : memref<2x2x4x64x128xf32, #tpu.memory_space<vmem>>, vector<1x1x1x64x128xf32>
    %210 = vector.shape_cast %209 : vector<1x1x1x64x128xf32> to vector<64x128xf32>
    %cst_264 = arith.constant dense<0.000000e+00> : vector<16x128xf32>
    %211 = tpu.matmul %208, %210, %cst_264 {dimension_numbers = #tpu.dot_dimension_numbers<[1], [0], [0], [1], [0, 0, 1, 1], [], []>} : vector<16x64xf32>, vector<64x128xf32>, vector<16x128xf32> -> vector<16x128xf32>
    %212 = arith.addf %205, %211 : vector<16x128xf32>
    %c2_265 = arith.constant 2 : index
    %c0_266 = arith.constant 0 : index
    %c1_267 = arith.constant 1 : index
    %c0_268 = arith.constant 0 : index
    %213 = vector.load %arg10[%c2_265, %c0_266, %c1_267, %c0_268] : memref<4x5x5x64xf32, #tpu.memory_space<vmem>>, vector<1x4x4x64xf32>
    %214 = vector.shape_cast %213 : vector<1x4x4x64xf32> to vector<4x4x64xf32>
    %215 = vector.shape_cast %214 : vector<4x4x64xf32> to vector<16x64xf32>
    %c0_269 = arith.constant 0 : index
    %c1_270 = arith.constant 1 : index
    %c2_271 = arith.constant 2 : index
    %c0_272 = arith.constant 0 : index
    %c0_273 = arith.constant 0 : index
    %216 = vector.load %arg4[%c0_269, %c1_270, %c2_271, %c0_272, %c0_273] : memref<2x2x4x64x128xf32, #tpu.memory_space<vmem>>, vector<1x1x1x64x128xf32>
    %217 = vector.shape_cast %216 : vector<1x1x1x64x128xf32> to vector<64x128xf32>
    %cst_274 = arith.constant dense<0.000000e+00> : vector<16x128xf32>
    %218 = tpu.matmul %215, %217, %cst_274 {dimension_numbers = #tpu.dot_dimension_numbers<[1], [0], [0], [1], [0, 0, 1, 1], [], []>} : vector<16x64xf32>, vector<64x128xf32>, vector<16x128xf32> -> vector<16x128xf32>
    %219 = arith.addf %212, %218 : vector<16x128xf32>
    %c3_275 = arith.constant 3 : index
    %c0_276 = arith.constant 0 : index
    %c1_277 = arith.constant 1 : index
    %c0_278 = arith.constant 0 : index
    %220 = vector.load %arg10[%c3_275, %c0_276, %c1_277, %c0_278] : memref<4x5x5x64xf32, #tpu.memory_space<vmem>>, vector<1x4x4x64xf32>
    %221 = vector.shape_cast %220 : vector<1x4x4x64xf32> to vector<4x4x64xf32>
    %222 = vector.shape_cast %221 : vector<4x4x64xf32> to vector<16x64xf32>
    %c0_279 = arith.constant 0 : index
    %c1_280 = arith.constant 1 : index
    %c3_281 = arith.constant 3 : index
    %c0_282 = arith.constant 0 : index
    %c0_283 = arith.constant 0 : index
    %223 = vector.load %arg4[%c0_279, %c1_280, %c3_281, %c0_282, %c0_283] : memref<2x2x4x64x128xf32, #tpu.memory_space<vmem>>, vector<1x1x1x64x128xf32>
    %224 = vector.shape_cast %223 : vector<1x1x1x64x128xf32> to vector<64x128xf32>
    %cst_284 = arith.constant dense<0.000000e+00> : vector<16x128xf32>
    %225 = tpu.matmul %222, %224, %cst_284 {dimension_numbers = #tpu.dot_dimension_numbers<[1], [0], [0], [1], [0, 0, 1, 1], [], []>} : vector<16x64xf32>, vector<64x128xf32>, vector<16x128xf32> -> vector<16x128xf32>
    %226 = arith.addf %219, %225 : vector<16x128xf32>
    %c0_285 = arith.constant 0 : index
    %c1_286 = arith.constant 1 : index
    %c0_287 = arith.constant 0 : index
    %c0_288 = arith.constant 0 : index
    %227 = vector.load %arg10[%c0_285, %c1_286, %c0_287, %c0_288] : memref<4x5x5x64xf32, #tpu.memory_space<vmem>>, vector<1x4x4x64xf32>
    %228 = vector.shape_cast %227 : vector<1x4x4x64xf32> to vector<4x4x64xf32>
    %229 = vector.shape_cast %228 : vector<4x4x64xf32> to vector<16x64xf32>
    %c1_289 = arith.constant 1 : index
    %c0_290 = arith.constant 0 : index
    %c0_291 = arith.constant 0 : index
    %c0_292 = arith.constant 0 : index
    %c0_293 = arith.constant 0 : index
    %230 = vector.load %arg4[%c1_289, %c0_290, %c0_291, %c0_292, %c0_293] : memref<2x2x4x64x128xf32, #tpu.memory_space<vmem>>, vector<1x1x1x64x128xf32>
    %231 = vector.shape_cast %230 : vector<1x1x1x64x128xf32> to vector<64x128xf32>
    %cst_294 = arith.constant dense<0.000000e+00> : vector<16x128xf32>
    %232 = tpu.matmul %229, %231, %cst_294 {dimension_numbers = #tpu.dot_dimension_numbers<[1], [0], [0], [1], [0, 0, 1, 1], [], []>} : vector<16x64xf32>, vector<64x128xf32>, vector<16x128xf32> -> vector<16x128xf32>
    %233 = arith.addf %226, %232 : vector<16x128xf32>
    %c1_295 = arith.constant 1 : index
    %c1_296 = arith.constant 1 : index
    %c0_297 = arith.constant 0 : index
    %c0_298 = arith.constant 0 : index
    %234 = vector.load %arg10[%c1_295, %c1_296, %c0_297, %c0_298] : memref<4x5x5x64xf32, #tpu.memory_space<vmem>>, vector<1x4x4x64xf32>
    %235 = vector.shape_cast %234 : vector<1x4x4x64xf32> to vector<4x4x64xf32>
    %236 = vector.shape_cast %235 : vector<4x4x64xf32> to vector<16x64xf32>
    %c1_299 = arith.constant 1 : index
    %c0_300 = arith.constant 0 : index
    %c1_301 = arith.constant 1 : index
    %c0_302 = arith.constant 0 : index
    %c0_303 = arith.constant 0 : index
    %237 = vector.load %arg4[%c1_299, %c0_300, %c1_301, %c0_302, %c0_303] : memref<2x2x4x64x128xf32, #tpu.memory_space<vmem>>, vector<1x1x1x64x128xf32>
    %238 = vector.shape_cast %237 : vector<1x1x1x64x128xf32> to vector<64x128xf32>
    %cst_304 = arith.constant dense<0.000000e+00> : vector<16x128xf32>
    %239 = tpu.matmul %236, %238, %cst_304 {dimension_numbers = #tpu.dot_dimension_numbers<[1], [0], [0], [1], [0, 0, 1, 1], [], []>} : vector<16x64xf32>, vector<64x128xf32>, vector<16x128xf32> -> vector<16x128xf32>
    %240 = arith.addf %233, %239 : vector<16x128xf32>
    %c2_305 = arith.constant 2 : index
    %c1_306 = arith.constant 1 : index
    %c0_307 = arith.constant 0 : index
    %c0_308 = arith.constant 0 : index
    %241 = vector.load %arg10[%c2_305, %c1_306, %c0_307, %c0_308] : memref<4x5x5x64xf32, #tpu.memory_space<vmem>>, vector<1x4x4x64xf32>
    %242 = vector.shape_cast %241 : vector<1x4x4x64xf32> to vector<4x4x64xf32>
    %243 = vector.shape_cast %242 : vector<4x4x64xf32> to vector<16x64xf32>
    %c1_309 = arith.constant 1 : index
    %c0_310 = arith.constant 0 : index
    %c2_311 = arith.constant 2 : index
    %c0_312 = arith.constant 0 : index
    %c0_313 = arith.constant 0 : index
    %244 = vector.load %arg4[%c1_309, %c0_310, %c2_311, %c0_312, %c0_313] : memref<2x2x4x64x128xf32, #tpu.memory_space<vmem>>, vector<1x1x1x64x128xf32>
    %245 = vector.shape_cast %244 : vector<1x1x1x64x128xf32> to vector<64x128xf32>
    %cst_314 = arith.constant dense<0.000000e+00> : vector<16x128xf32>
    %246 = tpu.matmul %243, %245, %cst_314 {dimension_numbers = #tpu.dot_dimension_numbers<[1], [0], [0], [1], [0, 0, 1, 1], [], []>} : vector<16x64xf32>, vector<64x128xf32>, vector<16x128xf32> -> vector<16x128xf32>
    %247 = arith.addf %240, %246 : vector<16x128xf32>
    %c3_315 = arith.constant 3 : index
    %c1_316 = arith.constant 1 : index
    %c0_317 = arith.constant 0 : index
    %c0_318 = arith.constant 0 : index
    %248 = vector.load %arg10[%c3_315, %c1_316, %c0_317, %c0_318] : memref<4x5x5x64xf32, #tpu.memory_space<vmem>>, vector<1x4x4x64xf32>
    %249 = vector.shape_cast %248 : vector<1x4x4x64xf32> to vector<4x4x64xf32>
    %250 = vector.shape_cast %249 : vector<4x4x64xf32> to vector<16x64xf32>
    %c1_319 = arith.constant 1 : index
    %c0_320 = arith.constant 0 : index
    %c3_321 = arith.constant 3 : index
    %c0_322 = arith.constant 0 : index
    %c0_323 = arith.constant 0 : index
    %251 = vector.load %arg4[%c1_319, %c0_320, %c3_321, %c0_322, %c0_323] : memref<2x2x4x64x128xf32, #tpu.memory_space<vmem>>, vector<1x1x1x64x128xf32>
    %252 = vector.shape_cast %251 : vector<1x1x1x64x128xf32> to vector<64x128xf32>
    %cst_324 = arith.constant dense<0.000000e+00> : vector<16x128xf32>
    %253 = tpu.matmul %250, %252, %cst_324 {dimension_numbers = #tpu.dot_dimension_numbers<[1], [0], [0], [1], [0, 0, 1, 1], [], []>} : vector<16x64xf32>, vector<64x128xf32>, vector<16x128xf32> -> vector<16x128xf32>
    %254 = arith.addf %247, %253 : vector<16x128xf32>
    %c0_325 = arith.constant 0 : index
    %c1_326 = arith.constant 1 : index
    %c1_327 = arith.constant 1 : index
    %c0_328 = arith.constant 0 : index
    %255 = vector.load %arg10[%c0_325, %c1_326, %c1_327, %c0_328] : memref<4x5x5x64xf32, #tpu.memory_space<vmem>>, vector<1x4x4x64xf32>
    %256 = vector.shape_cast %255 : vector<1x4x4x64xf32> to vector<4x4x64xf32>
    %257 = vector.shape_cast %256 : vector<4x4x64xf32> to vector<16x64xf32>
    %c1_329 = arith.constant 1 : index
    %c1_330 = arith.constant 1 : index
    %c0_331 = arith.constant 0 : index
    %c0_332 = arith.constant 0 : index
    %c0_333 = arith.constant 0 : index
    %258 = vector.load %arg4[%c1_329, %c1_330, %c0_331, %c0_332, %c0_333] : memref<2x2x4x64x128xf32, #tpu.memory_space<vmem>>, vector<1x1x1x64x128xf32>
    %259 = vector.shape_cast %258 : vector<1x1x1x64x128xf32> to vector<64x128xf32>
    %cst_334 = arith.constant dense<0.000000e+00> : vector<16x128xf32>
    %260 = tpu.matmul %257, %259, %cst_334 {dimension_numbers = #tpu.dot_dimension_numbers<[1], [0], [0], [1], [0, 0, 1, 1], [], []>} : vector<16x64xf32>, vector<64x128xf32>, vector<16x128xf32> -> vector<16x128xf32>
    %261 = arith.addf %254, %260 : vector<16x128xf32>
    %c1_335 = arith.constant 1 : index
    %c1_336 = arith.constant 1 : index
    %c1_337 = arith.constant 1 : index
    %c0_338 = arith.constant 0 : index
    %262 = vector.load %arg10[%c1_335, %c1_336, %c1_337, %c0_338] : memref<4x5x5x64xf32, #tpu.memory_space<vmem>>, vector<1x4x4x64xf32>
    %263 = vector.shape_cast %262 : vector<1x4x4x64xf32> to vector<4x4x64xf32>
    %264 = vector.shape_cast %263 : vector<4x4x64xf32> to vector<16x64xf32>
    %c1_339 = arith.constant 1 : index
    %c1_340 = arith.constant 1 : index
    %c1_341 = arith.constant 1 : index
    %c0_342 = arith.constant 0 : index
    %c0_343 = arith.constant 0 : index
    %265 = vector.load %arg4[%c1_339, %c1_340, %c1_341, %c0_342, %c0_343] : memref<2x2x4x64x128xf32, #tpu.memory_space<vmem>>, vector<1x1x1x64x128xf32>
    %266 = vector.shape_cast %265 : vector<1x1x1x64x128xf32> to vector<64x128xf32>
    %cst_344 = arith.constant dense<0.000000e+00> : vector<16x128xf32>
    %267 = tpu.matmul %264, %266, %cst_344 {dimension_numbers = #tpu.dot_dimension_numbers<[1], [0], [0], [1], [0, 0, 1, 1], [], []>} : vector<16x64xf32>, vector<64x128xf32>, vector<16x128xf32> -> vector<16x128xf32>
    %268 = arith.addf %261, %267 : vector<16x128xf32>
    %c2_345 = arith.constant 2 : index
    %c1_346 = arith.constant 1 : index
    %c1_347 = arith.constant 1 : index
    %c0_348 = arith.constant 0 : index
    %269 = vector.load %arg10[%c2_345, %c1_346, %c1_347, %c0_348] : memref<4x5x5x64xf32, #tpu.memory_space<vmem>>, vector<1x4x4x64xf32>
    %270 = vector.shape_cast %269 : vector<1x4x4x64xf32> to vector<4x4x64xf32>
    %271 = vector.shape_cast %270 : vector<4x4x64xf32> to vector<16x64xf32>
    %c1_349 = arith.constant 1 : index
    %c1_350 = arith.constant 1 : index
    %c2_351 = arith.constant 2 : index
    %c0_352 = arith.constant 0 : index
    %c0_353 = arith.constant 0 : index
    %272 = vector.load %arg4[%c1_349, %c1_350, %c2_351, %c0_352, %c0_353] : memref<2x2x4x64x128xf32, #tpu.memory_space<vmem>>, vector<1x1x1x64x128xf32>
    %273 = vector.shape_cast %272 : vector<1x1x1x64x128xf32> to vector<64x128xf32>
    %cst_354 = arith.constant dense<0.000000e+00> : vector<16x128xf32>
    %274 = tpu.matmul %271, %273, %cst_354 {dimension_numbers = #tpu.dot_dimension_numbers<[1], [0], [0], [1], [0, 0, 1, 1], [], []>} : vector<16x64xf32>, vector<64x128xf32>, vector<16x128xf32> -> vector<16x128xf32>
    %275 = arith.addf %268, %274 : vector<16x128xf32>
    %c3_355 = arith.constant 3 : index
    %c1_356 = arith.constant 1 : index
    %c1_357 = arith.constant 1 : index
    %c0_358 = arith.constant 0 : index
    %276 = vector.load %arg10[%c3_355, %c1_356, %c1_357, %c0_358] : memref<4x5x5x64xf32, #tpu.memory_space<vmem>>, vector<1x4x4x64xf32>
    %277 = vector.shape_cast %276 : vector<1x4x4x64xf32> to vector<4x4x64xf32>
    %278 = vector.shape_cast %277 : vector<4x4x64xf32> to vector<16x64xf32>
    %c1_359 = arith.constant 1 : index
    %c1_360 = arith.constant 1 : index
    %c3_361 = arith.constant 3 : index
    %c0_362 = arith.constant 0 : index
    %c0_363 = arith.constant 0 : index
    %279 = vector.load %arg4[%c1_359, %c1_360, %c3_361, %c0_362, %c0_363] : memref<2x2x4x64x128xf32, #tpu.memory_space<vmem>>, vector<1x1x1x64x128xf32>
    %280 = vector.shape_cast %279 : vector<1x1x1x64x128xf32> to vector<64x128xf32>
    %cst_364 = arith.constant dense<0.000000e+00> : vector<16x128xf32>
    %281 = tpu.matmul %278, %280, %cst_364 {dimension_numbers = #tpu.dot_dimension_numbers<[1], [0], [0], [1], [0, 0, 1, 1], [], []>} : vector<16x64xf32>, vector<64x128xf32>, vector<16x128xf32> -> vector<16x128xf32>
    %282 = arith.addf %275, %281 : vector<16x128xf32>
    %c0_365 = arith.constant 0 : index
    %c0_366 = arith.constant 0 : index
    %283 = vector.load %arg5[%c0_365, %c0_366] : memref<1x128xf32, #tpu.memory_space<vmem>>, vector<1x128xf32>
    %284 = vector.broadcast %283 : vector<1x128xf32> to vector<16x128xf32>
    %285 = arith.addf %282, %284 : vector<16x128xf32>
    %cst_367 = arith.constant 0.000000e+00 : f32
    %286 = vector.broadcast %cst_367 : f32 to vector<16x128xf32>
    %287 = arith.cmpf oge, %285, %286 : vector<16x128xf32>
    %cst_368 = arith.constant 2.000000e-01 : f32
    %288 = vector.broadcast %cst_368 : f32 to vector<16x128xf32>
    %289 = arith.mulf %288, %285 : vector<16x128xf32>
    %290 = arith.select %287, %285, %289 : vector<16x128xi1>, vector<16x128xf32>
    %291 = vector.shape_cast %290 : vector<16x128xf32> to vector<4x4x128xf32>
    %c1_369 = arith.constant 1 : index
    %c1_370 = arith.constant 1 : index
    %c0_371 = arith.constant 0 : index
    %292 = vector.load %arg11[%c1_369, %c1_370, %c0_371] : memref<6x6x128xf32, #tpu.memory_space<vmem>>, vector<4x4x128xf32>
    tpu.vector_store %arg11[%c1_369, %c1_370, %c0_371], %291 {strides = array<i32>} : memref<6x6x128xf32, #tpu.memory_space<vmem>>, vector<4x4x128xf32>,
    %cst_372 = arith.constant 0.000000e+00 : f32
    %293 = vector.broadcast %cst_372 : f32 to vector<9x256xf32>
    %c0_373 = arith.constant 0 : index
    %c0_374 = arith.constant 0 : index
    %c0_375 = arith.constant 0 : index
    %294 = vector.load %arg11[%c0_373, %c0_374, %c0_375] : memref<6x6x128xf32, #tpu.memory_space<vmem>>, vector<3x3x128xf32>
    %295 = vector.shape_cast %294 : vector<3x3x128xf32> to vector<9x128xf32>
    %c0_376 = arith.constant 0 : index
    %c0_377 = arith.constant 0 : index
    %c0_378 = arith.constant 0 : index
    %c0_379 = arith.constant 0 : index
    %296 = vector.load %arg6[%c0_376, %c0_377, %c0_378, %c0_379] : memref<4x4x128x256xf32, #tpu.memory_space<vmem>>, vector<1x1x128x256xf32>
    %297 = vector.shape_cast %296 : vector<1x1x128x256xf32> to vector<128x256xf32>
    %cst_380 = arith.constant dense<0.000000e+00> : vector<9x256xf32>
    %298 = tpu.matmul %295, %297, %cst_380 {dimension_numbers = #tpu.dot_dimension_numbers<[1], [0], [0], [1], [0, 0, 1, 1], [], []>} : vector<9x128xf32>, vector<128x256xf32>, vector<9x256xf32> -> vector<9x256xf32>
    %299 = arith.addf %293, %298 : vector<9x256xf32>
    %c0_381 = arith.constant 0 : index
    %c1_382 = arith.constant 1 : index
    %c0_383 = arith.constant 0 : index
    %300 = vector.load %arg11[%c0_381, %c1_382, %c0_383] : memref<6x6x128xf32, #tpu.memory_space<vmem>>, vector<3x3x128xf32>
    %301 = vector.shape_cast %300 : vector<3x3x128xf32> to vector<9x128xf32>
    %c0_384 = arith.constant 0 : index
    %c1_385 = arith.constant 1 : index
    %c0_386 = arith.constant 0 : index
    %c0_387 = arith.constant 0 : index
    %302 = vector.load %arg6[%c0_384, %c1_385, %c0_386, %c0_387] : memref<4x4x128x256xf32, #tpu.memory_space<vmem>>, vector<1x1x128x256xf32>
    %303 = vector.shape_cast %302 : vector<1x1x128x256xf32> to vector<128x256xf32>
    %cst_388 = arith.constant dense<0.000000e+00> : vector<9x256xf32>
    %304 = tpu.matmul %301, %303, %cst_388 {dimension_numbers = #tpu.dot_dimension_numbers<[1], [0], [0], [1], [0, 0, 1, 1], [], []>} : vector<9x128xf32>, vector<128x256xf32>, vector<9x256xf32> -> vector<9x256xf32>
    %305 = arith.addf %299, %304 : vector<9x256xf32>
    %c0_389 = arith.constant 0 : index
    %c2_390 = arith.constant 2 : index
    %c0_391 = arith.constant 0 : index
    %306 = vector.load %arg11[%c0_389, %c2_390, %c0_391] : memref<6x6x128xf32, #tpu.memory_space<vmem>>, vector<3x3x128xf32>
    %307 = vector.shape_cast %306 : vector<3x3x128xf32> to vector<9x128xf32>
    %c0_392 = arith.constant 0 : index
    %c2_393 = arith.constant 2 : index
    %c0_394 = arith.constant 0 : index
    %c0_395 = arith.constant 0 : index
    %308 = vector.load %arg6[%c0_392, %c2_393, %c0_394, %c0_395] : memref<4x4x128x256xf32, #tpu.memory_space<vmem>>, vector<1x1x128x256xf32>
    %309 = vector.shape_cast %308 : vector<1x1x128x256xf32> to vector<128x256xf32>
    %cst_396 = arith.constant dense<0.000000e+00> : vector<9x256xf32>
    %310 = tpu.matmul %307, %309, %cst_396 {dimension_numbers = #tpu.dot_dimension_numbers<[1], [0], [0], [1], [0, 0, 1, 1], [], []>} : vector<9x128xf32>, vector<128x256xf32>, vector<9x256xf32> -> vector<9x256xf32>
    %311 = arith.addf %305, %310 : vector<9x256xf32>
    %c0_397 = arith.constant 0 : index
    %c3_398 = arith.constant 3 : index
    %c0_399 = arith.constant 0 : index
    %312 = vector.load %arg11[%c0_397, %c3_398, %c0_399] : memref<6x6x128xf32, #tpu.memory_space<vmem>>, vector<3x3x128xf32>
    %313 = vector.shape_cast %312 : vector<3x3x128xf32> to vector<9x128xf32>
    %c0_400 = arith.constant 0 : index
    %c3_401 = arith.constant 3 : index
    %c0_402 = arith.constant 0 : index
    %c0_403 = arith.constant 0 : index
    %314 = vector.load %arg6[%c0_400, %c3_401, %c0_402, %c0_403] : memref<4x4x128x256xf32, #tpu.memory_space<vmem>>, vector<1x1x128x256xf32>
    %315 = vector.shape_cast %314 : vector<1x1x128x256xf32> to vector<128x256xf32>
    %cst_404 = arith.constant dense<0.000000e+00> : vector<9x256xf32>
    %316 = tpu.matmul %313, %315, %cst_404 {dimension_numbers = #tpu.dot_dimension_numbers<[1], [0], [0], [1], [0, 0, 1, 1], [], []>} : vector<9x128xf32>, vector<128x256xf32>, vector<9x256xf32> -> vector<9x256xf32>
    %317 = arith.addf %311, %316 : vector<9x256xf32>
    %c1_405 = arith.constant 1 : index
    %c0_406 = arith.constant 0 : index
    %c0_407 = arith.constant 0 : index
    %318 = vector.load %arg11[%c1_405, %c0_406, %c0_407] : memref<6x6x128xf32, #tpu.memory_space<vmem>>, vector<3x3x128xf32>
    %319 = vector.shape_cast %318 : vector<3x3x128xf32> to vector<9x128xf32>
    %c1_408 = arith.constant 1 : index
    %c0_409 = arith.constant 0 : index
    %c0_410 = arith.constant 0 : index
    %c0_411 = arith.constant 0 : index
    %320 = vector.load %arg6[%c1_408, %c0_409, %c0_410, %c0_411] : memref<4x4x128x256xf32, #tpu.memory_space<vmem>>, vector<1x1x128x256xf32>
    %321 = vector.shape_cast %320 : vector<1x1x128x256xf32> to vector<128x256xf32>
    %cst_412 = arith.constant dense<0.000000e+00> : vector<9x256xf32>
    %322 = tpu.matmul %319, %321, %cst_412 {dimension_numbers = #tpu.dot_dimension_numbers<[1], [0], [0], [1], [0, 0, 1, 1], [], []>} : vector<9x128xf32>, vector<128x256xf32>, vector<9x256xf32> -> vector<9x256xf32>
    %323 = arith.addf %317, %322 : vector<9x256xf32>
    %c1_413 = arith.constant 1 : index
    %c1_414 = arith.constant 1 : index
    %c0_415 = arith.constant 0 : index
    %324 = vector.load %arg11[%c1_413, %c1_414, %c0_415] : memref<6x6x128xf32, #tpu.memory_space<vmem>>, vector<3x3x128xf32>
    %325 = vector.shape_cast %324 : vector<3x3x128xf32> to vector<9x128xf32>
    %c1_416 = arith.constant 1 : index
    %c1_417 = arith.constant 1 : index
    %c0_418 = arith.constant 0 : index
    %c0_419 = arith.constant 0 : index
    %326 = vector.load %arg6[%c1_416, %c1_417, %c0_418, %c0_419] : memref<4x4x128x256xf32, #tpu.memory_space<vmem>>, vector<1x1x128x256xf32>
    %327 = vector.shape_cast %326 : vector<1x1x128x256xf32> to vector<128x256xf32>
    %cst_420 = arith.constant dense<0.000000e+00> : vector<9x256xf32>
    %328 = tpu.matmul %325, %327, %cst_420 {dimension_numbers = #tpu.dot_dimension_numbers<[1], [0], [0], [1], [0, 0, 1, 1], [], []>} : vector<9x128xf32>, vector<128x256xf32>, vector<9x256xf32> -> vector<9x256xf32>
    %329 = arith.addf %323, %328 : vector<9x256xf32>
    %c1_421 = arith.constant 1 : index
    %c2_422 = arith.constant 2 : index
    %c0_423 = arith.constant 0 : index
    %330 = vector.load %arg11[%c1_421, %c2_422, %c0_423] : memref<6x6x128xf32, #tpu.memory_space<vmem>>, vector<3x3x128xf32>
    %331 = vector.shape_cast %330 : vector<3x3x128xf32> to vector<9x128xf32>
    %c1_424 = arith.constant 1 : index
    %c2_425 = arith.constant 2 : index
    %c0_426 = arith.constant 0 : index
    %c0_427 = arith.constant 0 : index
    %332 = vector.load %arg6[%c1_424, %c2_425, %c0_426, %c0_427] : memref<4x4x128x256xf32, #tpu.memory_space<vmem>>, vector<1x1x128x256xf32>
    %333 = vector.shape_cast %332 : vector<1x1x128x256xf32> to vector<128x256xf32>
    %cst_428 = arith.constant dense<0.000000e+00> : vector<9x256xf32>
    %334 = tpu.matmul %331, %333, %cst_428 {dimension_numbers = #tpu.dot_dimension_numbers<[1], [0], [0], [1], [0, 0, 1, 1], [], []>} : vector<9x128xf32>, vector<128x256xf32>, vector<9x256xf32> -> vector<9x256xf32>
    %335 = arith.addf %329, %334 : vector<9x256xf32>
    %c1_429 = arith.constant 1 : index
    %c3_430 = arith.constant 3 : index
    %c0_431 = arith.constant 0 : index
    %336 = vector.load %arg11[%c1_429, %c3_430, %c0_431] : memref<6x6x128xf32, #tpu.memory_space<vmem>>, vector<3x3x128xf32>
    %337 = vector.shape_cast %336 : vector<3x3x128xf32> to vector<9x128xf32>
    %c1_432 = arith.constant 1 : index
    %c3_433 = arith.constant 3 : index
    %c0_434 = arith.constant 0 : index
    %c0_435 = arith.constant 0 : index
    %338 = vector.load %arg6[%c1_432, %c3_433, %c0_434, %c0_435] : memref<4x4x128x256xf32, #tpu.memory_space<vmem>>, vector<1x1x128x256xf32>
    %339 = vector.shape_cast %338 : vector<1x1x128x256xf32> to vector<128x256xf32>
    %cst_436 = arith.constant dense<0.000000e+00> : vector<9x256xf32>
    %340 = tpu.matmul %337, %339, %cst_436 {dimension_numbers = #tpu.dot_dimension_numbers<[1], [0], [0], [1], [0, 0, 1, 1], [], []>} : vector<9x128xf32>, vector<128x256xf32>, vector<9x256xf32> -> vector<9x256xf32>
    %341 = arith.addf %335, %340 : vector<9x256xf32>
    %c2_437 = arith.constant 2 : index
    %c0_438 = arith.constant 0 : index
    %c0_439 = arith.constant 0 : index
    %342 = vector.load %arg11[%c2_437, %c0_438, %c0_439] : memref<6x6x128xf32, #tpu.memory_space<vmem>>, vector<3x3x128xf32>
    %343 = vector.shape_cast %342 : vector<3x3x128xf32> to vector<9x128xf32>
    %c2_440 = arith.constant 2 : index
    %c0_441 = arith.constant 0 : index
    %c0_442 = arith.constant 0 : index
    %c0_443 = arith.constant 0 : index
    %344 = vector.load %arg6[%c2_440, %c0_441, %c0_442, %c0_443] : memref<4x4x128x256xf32, #tpu.memory_space<vmem>>, vector<1x1x128x256xf32>
    %345 = vector.shape_cast %344 : vector<1x1x128x256xf32> to vector<128x256xf32>
    %cst_444 = arith.constant dense<0.000000e+00> : vector<9x256xf32>
    %346 = tpu.matmul %343, %345, %cst_444 {dimension_numbers = #tpu.dot_dimension_numbers<[1], [0], [0], [1], [0, 0, 1, 1], [], []>} : vector<9x128xf32>, vector<128x256xf32>, vector<9x256xf32> -> vector<9x256xf32>
    %347 = arith.addf %341, %346 : vector<9x256xf32>
    %c2_445 = arith.constant 2 : index
    %c1_446 = arith.constant 1 : index
    %c0_447 = arith.constant 0 : index
    %348 = vector.load %arg11[%c2_445, %c1_446, %c0_447] : memref<6x6x128xf32, #tpu.memory_space<vmem>>, vector<3x3x128xf32>
    %349 = vector.shape_cast %348 : vector<3x3x128xf32> to vector<9x128xf32>
    %c2_448 = arith.constant 2 : index
    %c1_449 = arith.constant 1 : index
    %c0_450 = arith.constant 0 : index
    %c0_451 = arith.constant 0 : index
    %350 = vector.load %arg6[%c2_448, %c1_449, %c0_450, %c0_451] : memref<4x4x128x256xf32, #tpu.memory_space<vmem>>, vector<1x1x128x256xf32>
    %351 = vector.shape_cast %350 : vector<1x1x128x256xf32> to vector<128x256xf32>
    %cst_452 = arith.constant dense<0.000000e+00> : vector<9x256xf32>
    %352 = tpu.matmul %349, %351, %cst_452 {dimension_numbers = #tpu.dot_dimension_numbers<[1], [0], [0], [1], [0, 0, 1, 1], [], []>} : vector<9x128xf32>, vector<128x256xf32>, vector<9x256xf32> -> vector<9x256xf32>
    %353 = arith.addf %347, %352 : vector<9x256xf32>
    %c2_453 = arith.constant 2 : index
    %c2_454 = arith.constant 2 : index
    %c0_455 = arith.constant 0 : index
    %354 = vector.load %arg11[%c2_453, %c2_454, %c0_455] : memref<6x6x128xf32, #tpu.memory_space<vmem>>, vector<3x3x128xf32>
    %355 = vector.shape_cast %354 : vector<3x3x128xf32> to vector<9x128xf32>
    %c2_456 = arith.constant 2 : index
    %c2_457 = arith.constant 2 : index
    %c0_458 = arith.constant 0 : index
    %c0_459 = arith.constant 0 : index
    %356 = vector.load %arg6[%c2_456, %c2_457, %c0_458, %c0_459] : memref<4x4x128x256xf32, #tpu.memory_space<vmem>>, vector<1x1x128x256xf32>
    %357 = vector.shape_cast %356 : vector<1x1x128x256xf32> to vector<128x256xf32>
    %cst_460 = arith.constant dense<0.000000e+00> : vector<9x256xf32>
    %358 = tpu.matmul %355, %357, %cst_460 {dimension_numbers = #tpu.dot_dimension_numbers<[1], [0], [0], [1], [0, 0, 1, 1], [], []>} : vector<9x128xf32>, vector<128x256xf32>, vector<9x256xf32> -> vector<9x256xf32>
    %359 = arith.addf %353, %358 : vector<9x256xf32>
    %c2_461 = arith.constant 2 : index
    %c3_462 = arith.constant 3 : index
    %c0_463 = arith.constant 0 : index
    %360 = vector.load %arg11[%c2_461, %c3_462, %c0_463] : memref<6x6x128xf32, #tpu.memory_space<vmem>>, vector<3x3x128xf32>
    %361 = vector.shape_cast %360 : vector<3x3x128xf32> to vector<9x128xf32>
    %c2_464 = arith.constant 2 : index
    %c3_465 = arith.constant 3 : index
    %c0_466 = arith.constant 0 : index
    %c0_467 = arith.constant 0 : index
    %362 = vector.load %arg6[%c2_464, %c3_465, %c0_466, %c0_467] : memref<4x4x128x256xf32, #tpu.memory_space<vmem>>, vector<1x1x128x256xf32>
    %363 = vector.shape_cast %362 : vector<1x1x128x256xf32> to vector<128x256xf32>
    %cst_468 = arith.constant dense<0.000000e+00> : vector<9x256xf32>
    %364 = tpu.matmul %361, %363, %cst_468 {dimension_numbers = #tpu.dot_dimension_numbers<[1], [0], [0], [1], [0, 0, 1, 1], [], []>} : vector<9x128xf32>, vector<128x256xf32>, vector<9x256xf32> -> vector<9x256xf32>
    %365 = arith.addf %359, %364 : vector<9x256xf32>
    %c3_469 = arith.constant 3 : index
    %c0_470 = arith.constant 0 : index
    %c0_471 = arith.constant 0 : index
    %366 = vector.load %arg11[%c3_469, %c0_470, %c0_471] : memref<6x6x128xf32, #tpu.memory_space<vmem>>, vector<3x3x128xf32>
    %367 = vector.shape_cast %366 : vector<3x3x128xf32> to vector<9x128xf32>
    %c3_472 = arith.constant 3 : index
    %c0_473 = arith.constant 0 : index
    %c0_474 = arith.constant 0 : index
    %c0_475 = arith.constant 0 : index
    %368 = vector.load %arg6[%c3_472, %c0_473, %c0_474, %c0_475] : memref<4x4x128x256xf32, #tpu.memory_space<vmem>>, vector<1x1x128x256xf32>
    %369 = vector.shape_cast %368 : vector<1x1x128x256xf32> to vector<128x256xf32>
    %cst_476 = arith.constant dense<0.000000e+00> : vector<9x256xf32>
    %370 = tpu.matmul %367, %369, %cst_476 {dimension_numbers = #tpu.dot_dimension_numbers<[1], [0], [0], [1], [0, 0, 1, 1], [], []>} : vector<9x128xf32>, vector<128x256xf32>, vector<9x256xf32> -> vector<9x256xf32>
    %371 = arith.addf %365, %370 : vector<9x256xf32>
    %c3_477 = arith.constant 3 : index
    %c1_478 = arith.constant 1 : index
    %c0_479 = arith.constant 0 : index
    %372 = vector.load %arg11[%c3_477, %c1_478, %c0_479] : memref<6x6x128xf32, #tpu.memory_space<vmem>>, vector<3x3x128xf32>
    %373 = vector.shape_cast %372 : vector<3x3x128xf32> to vector<9x128xf32>
    %c3_480 = arith.constant 3 : index
    %c1_481 = arith.constant 1 : index
    %c0_482 = arith.constant 0 : index
    %c0_483 = arith.constant 0 : index
    %374 = vector.load %arg6[%c3_480, %c1_481, %c0_482, %c0_483] : memref<4x4x128x256xf32, #tpu.memory_space<vmem>>, vector<1x1x128x256xf32>
    %375 = vector.shape_cast %374 : vector<1x1x128x256xf32> to vector<128x256xf32>
    %cst_484 = arith.constant dense<0.000000e+00> : vector<9x256xf32>
    %376 = tpu.matmul %373, %375, %cst_484 {dimension_numbers = #tpu.dot_dimension_numbers<[1], [0], [0], [1], [0, 0, 1, 1], [], []>} : vector<9x128xf32>, vector<128x256xf32>, vector<9x256xf32> -> vector<9x256xf32>
    %377 = arith.addf %371, %376 : vector<9x256xf32>
    %c3_485 = arith.constant 3 : index
    %c2_486 = arith.constant 2 : index
    %c0_487 = arith.constant 0 : index
    %378 = vector.load %arg11[%c3_485, %c2_486, %c0_487] : memref<6x6x128xf32, #tpu.memory_space<vmem>>, vector<3x3x128xf32>
    %379 = vector.shape_cast %378 : vector<3x3x128xf32> to vector<9x128xf32>
    %c3_488 = arith.constant 3 : index
    %c2_489 = arith.constant 2 : index
    %c0_490 = arith.constant 0 : index
    %c0_491 = arith.constant 0 : index
    %380 = vector.load %arg6[%c3_488, %c2_489, %c0_490, %c0_491] : memref<4x4x128x256xf32, #tpu.memory_space<vmem>>, vector<1x1x128x256xf32>
    %381 = vector.shape_cast %380 : vector<1x1x128x256xf32> to vector<128x256xf32>
    %cst_492 = arith.constant dense<0.000000e+00> : vector<9x256xf32>
    %382 = tpu.matmul %379, %381, %cst_492 {dimension_numbers = #tpu.dot_dimension_numbers<[1], [0], [0], [1], [0, 0, 1, 1], [], []>} : vector<9x128xf32>, vector<128x256xf32>, vector<9x256xf32> -> vector<9x256xf32>
    %383 = arith.addf %377, %382 : vector<9x256xf32>
    %c3_493 = arith.constant 3 : index
    %c3_494 = arith.constant 3 : index
    %c0_495 = arith.constant 0 : index
    %384 = vector.load %arg11[%c3_493, %c3_494, %c0_495] : memref<6x6x128xf32, #tpu.memory_space<vmem>>, vector<3x3x128xf32>
    %385 = vector.shape_cast %384 : vector<3x3x128xf32> to vector<9x128xf32>
    %c3_496 = arith.constant 3 : index
    %c3_497 = arith.constant 3 : index
    %c0_498 = arith.constant 0 : index
    %c0_499 = arith.constant 0 : index
    %386 = vector.load %arg6[%c3_496, %c3_497, %c0_498, %c0_499] : memref<4x4x128x256xf32, #tpu.memory_space<vmem>>, vector<1x1x128x256xf32>
    %387 = vector.shape_cast %386 : vector<1x1x128x256xf32> to vector<128x256xf32>
    %cst_500 = arith.constant dense<0.000000e+00> : vector<9x256xf32>
    %388 = tpu.matmul %385, %387, %cst_500 {dimension_numbers = #tpu.dot_dimension_numbers<[1], [0], [0], [1], [0, 0, 1, 1], [], []>} : vector<9x128xf32>, vector<128x256xf32>, vector<9x256xf32> -> vector<9x256xf32>
    %389 = arith.addf %383, %388 : vector<9x256xf32>
    %cst_501 = arith.constant 0.000000e+00 : f32
    %390 = vector.broadcast %cst_501 : f32 to vector<9x256xf32>
    %391 = arith.cmpf oge, %389, %390 : vector<9x256xf32>
    %cst_502 = arith.constant 2.000000e-01 : f32
    %392 = vector.broadcast %cst_502 : f32 to vector<9x256xf32>
    %393 = arith.mulf %392, %389 : vector<9x256xf32>
    %394 = arith.select %391, %389, %393 : vector<9x256xi1>, vector<9x256xf32>
    %395 = vector.shape_cast %394 : vector<9x256xf32> to vector<3x3x256xf32>
    %c1_503 = arith.constant 1 : index
    %c1_504 = arith.constant 1 : index
    %c0_505 = arith.constant 0 : index
    %396 = vector.load %arg12[%c1_503, %c1_504, %c0_505] : memref<5x5x256xf32, #tpu.memory_space<vmem>>, vector<3x3x256xf32>
    tpu.vector_store %arg12[%c1_503, %c1_504, %c0_505], %395 {strides = array<i32>} : memref<5x5x256xf32, #tpu.memory_space<vmem>>, vector<3x3x256xf32>,
    %cst_506 = arith.constant 0.000000e+00 : f32
    %397 = vector.broadcast %cst_506 : f32 to vector<4x128xf32>
    %c0_507 = arith.constant 0 : index
    %c0_508 = arith.constant 0 : index
    %c0_509 = arith.constant 0 : index
    %398 = vector.load %arg12[%c0_507, %c0_508, %c0_509] : memref<5x5x256xf32, #tpu.memory_space<vmem>>, vector<2x2x256xf32>
    %399 = vector.shape_cast %398 : vector<2x2x256xf32> to vector<4x256xf32>
    %c0_510 = arith.constant 0 : index
    %c0_511 = arith.constant 0 : index
    %c0_512 = arith.constant 0 : index
    %c0_513 = arith.constant 0 : index
    %400 = vector.load %arg7[%c0_510, %c0_511, %c0_512, %c0_513] : memref<4x4x256x128xf32, #tpu.memory_space<vmem>>, vector<1x1x256x128xf32>
    %401 = vector.shape_cast %400 : vector<1x1x256x128xf32> to vector<256x128xf32>
    %cst_514 = arith.constant dense<0.000000e+00> : vector<4x128xf32>
    %402 = tpu.matmul %399, %401, %cst_514 {dimension_numbers = #tpu.dot_dimension_numbers<[1], [0], [0], [1], [0, 0, 1, 1], [], []>} : vector<4x256xf32>, vector<256x128xf32>, vector<4x128xf32> -> vector<4x128xf32>
    %403 = arith.addf %397, %402 : vector<4x128xf32>
    %c0_515 = arith.constant 0 : index
    %c1_516 = arith.constant 1 : index
    %c0_517 = arith.constant 0 : index
    %404 = vector.load %arg12[%c0_515, %c1_516, %c0_517] : memref<5x5x256xf32, #tpu.memory_space<vmem>>, vector<2x2x256xf32>
    %405 = vector.shape_cast %404 : vector<2x2x256xf32> to vector<4x256xf32>
    %c0_518 = arith.constant 0 : index
    %c1_519 = arith.constant 1 : index
    %c0_520 = arith.constant 0 : index
    %c0_521 = arith.constant 0 : index
    %406 = vector.load %arg7[%c0_518, %c1_519, %c0_520, %c0_521] : memref<4x4x256x128xf32, #tpu.memory_space<vmem>>, vector<1x1x256x128xf32>
    %407 = vector.shape_cast %406 : vector<1x1x256x128xf32> to vector<256x128xf32>
    %cst_522 = arith.constant dense<0.000000e+00> : vector<4x128xf32>
    %408 = tpu.matmul %405, %407, %cst_522 {dimension_numbers = #tpu.dot_dimension_numbers<[1], [0], [0], [1], [0, 0, 1, 1], [], []>} : vector<4x256xf32>, vector<256x128xf32>, vector<4x128xf32> -> vector<4x128xf32>
    %409 = arith.addf %403, %408 : vector<4x128xf32>
    %c0_523 = arith.constant 0 : index
    %c2_524 = arith.constant 2 : index
    %c0_525 = arith.constant 0 : index
    %410 = vector.load %arg12[%c0_523, %c2_524, %c0_525] : memref<5x5x256xf32, #tpu.memory_space<vmem>>, vector<2x2x256xf32>
    %411 = vector.shape_cast %410 : vector<2x2x256xf32> to vector<4x256xf32>
    %c0_526 = arith.constant 0 : index
    %c2_527 = arith.constant 2 : index
    %c0_528 = arith.constant 0 : index
    %c0_529 = arith.constant 0 : index
    %412 = vector.load %arg7[%c0_526, %c2_527, %c0_528, %c0_529] : memref<4x4x256x128xf32, #tpu.memory_space<vmem>>, vector<1x1x256x128xf32>
    %413 = vector.shape_cast %412 : vector<1x1x256x128xf32> to vector<256x128xf32>
    %cst_530 = arith.constant dense<0.000000e+00> : vector<4x128xf32>
    %414 = tpu.matmul %411, %413, %cst_530 {dimension_numbers = #tpu.dot_dimension_numbers<[1], [0], [0], [1], [0, 0, 1, 1], [], []>} : vector<4x256xf32>, vector<256x128xf32>, vector<4x128xf32> -> vector<4x128xf32>
    %415 = arith.addf %409, %414 : vector<4x128xf32>
    %c0_531 = arith.constant 0 : index
    %c3_532 = arith.constant 3 : index
    %c0_533 = arith.constant 0 : index
    %416 = vector.load %arg12[%c0_531, %c3_532, %c0_533] : memref<5x5x256xf32, #tpu.memory_space<vmem>>, vector<2x2x256xf32>
    %417 = vector.shape_cast %416 : vector<2x2x256xf32> to vector<4x256xf32>
    %c0_534 = arith.constant 0 : index
    %c3_535 = arith.constant 3 : index
    %c0_536 = arith.constant 0 : index
    %c0_537 = arith.constant 0 : index
    %418 = vector.load %arg7[%c0_534, %c3_535, %c0_536, %c0_537] : memref<4x4x256x128xf32, #tpu.memory_space<vmem>>, vector<1x1x256x128xf32>
    %419 = vector.shape_cast %418 : vector<1x1x256x128xf32> to vector<256x128xf32>
    %cst_538 = arith.constant dense<0.000000e+00> : vector<4x128xf32>
    %420 = tpu.matmul %417, %419, %cst_538 {dimension_numbers = #tpu.dot_dimension_numbers<[1], [0], [0], [1], [0, 0, 1, 1], [], []>} : vector<4x256xf32>, vector<256x128xf32>, vector<4x128xf32> -> vector<4x128xf32>
    %421 = arith.addf %415, %420 : vector<4x128xf32>
    %c1_539 = arith.constant 1 : index
    %c0_540 = arith.constant 0 : index
    %c0_541 = arith.constant 0 : index
    %422 = vector.load %arg12[%c1_539, %c0_540, %c0_541] : memref<5x5x256xf32, #tpu.memory_space<vmem>>, vector<2x2x256xf32>
    %423 = vector.shape_cast %422 : vector<2x2x256xf32> to vector<4x256xf32>
    %c1_542 = arith.constant 1 : index
    %c0_543 = arith.constant 0 : index
    %c0_544 = arith.constant 0 : index
    %c0_545 = arith.constant 0 : index
    %424 = vector.load %arg7[%c1_542, %c0_543, %c0_544, %c0_545] : memref<4x4x256x128xf32, #tpu.memory_space<vmem>>, vector<1x1x256x128xf32>
    %425 = vector.shape_cast %424 : vector<1x1x256x128xf32> to vector<256x128xf32>
    %cst_546 = arith.constant dense<0.000000e+00> : vector<4x128xf32>
    %426 = tpu.matmul %423, %425, %cst_546 {dimension_numbers = #tpu.dot_dimension_numbers<[1], [0], [0], [1], [0, 0, 1, 1], [], []>} : vector<4x256xf32>, vector<256x128xf32>, vector<4x128xf32> -> vector<4x128xf32>
    %427 = arith.addf %421, %426 : vector<4x128xf32>
    %c1_547 = arith.constant 1 : index
    %c1_548 = arith.constant 1 : index
    %c0_549 = arith.constant 0 : index
    %428 = vector.load %arg12[%c1_547, %c1_548, %c0_549] : memref<5x5x256xf32, #tpu.memory_space<vmem>>, vector<2x2x256xf32>
    %429 = vector.shape_cast %428 : vector<2x2x256xf32> to vector<4x256xf32>
    %c1_550 = arith.constant 1 : index
    %c1_551 = arith.constant 1 : index
    %c0_552 = arith.constant 0 : index
    %c0_553 = arith.constant 0 : index
    %430 = vector.load %arg7[%c1_550, %c1_551, %c0_552, %c0_553] : memref<4x4x256x128xf32, #tpu.memory_space<vmem>>, vector<1x1x256x128xf32>
    %431 = vector.shape_cast %430 : vector<1x1x256x128xf32> to vector<256x128xf32>
    %cst_554 = arith.constant dense<0.000000e+00> : vector<4x128xf32>
    %432 = tpu.matmul %429, %431, %cst_554 {dimension_numbers = #tpu.dot_dimension_numbers<[1], [0], [0], [1], [0, 0, 1, 1], [], []>} : vector<4x256xf32>, vector<256x128xf32>, vector<4x128xf32> -> vector<4x128xf32>
    %433 = arith.addf %427, %432 : vector<4x128xf32>
    %c1_555 = arith.constant 1 : index
    %c2_556 = arith.constant 2 : index
    %c0_557 = arith.constant 0 : index
    %434 = vector.load %arg12[%c1_555, %c2_556, %c0_557] : memref<5x5x256xf32, #tpu.memory_space<vmem>>, vector<2x2x256xf32>
    %435 = vector.shape_cast %434 : vector<2x2x256xf32> to vector<4x256xf32>
    %c1_558 = arith.constant 1 : index
    %c2_559 = arith.constant 2 : index
    %c0_560 = arith.constant 0 : index
    %c0_561 = arith.constant 0 : index
    %436 = vector.load %arg7[%c1_558, %c2_559, %c0_560, %c0_561] : memref<4x4x256x128xf32, #tpu.memory_space<vmem>>, vector<1x1x256x128xf32>
    %437 = vector.shape_cast %436 : vector<1x1x256x128xf32> to vector<256x128xf32>
    %cst_562 = arith.constant dense<0.000000e+00> : vector<4x128xf32>
    %438 = tpu.matmul %435, %437, %cst_562 {dimension_numbers = #tpu.dot_dimension_numbers<[1], [0], [0], [1], [0, 0, 1, 1], [], []>} : vector<4x256xf32>, vector<256x128xf32>, vector<4x128xf32> -> vector<4x128xf32>
    %439 = arith.addf %433, %438 : vector<4x128xf32>
    %c1_563 = arith.constant 1 : index
    %c3_564 = arith.constant 3 : index
    %c0_565 = arith.constant 0 : index
    %440 = vector.load %arg12[%c1_563, %c3_564, %c0_565] : memref<5x5x256xf32, #tpu.memory_space<vmem>>, vector<2x2x256xf32>
    %441 = vector.shape_cast %440 : vector<2x2x256xf32> to vector<4x256xf32>
    %c1_566 = arith.constant 1 : index
    %c3_567 = arith.constant 3 : index
    %c0_568 = arith.constant 0 : index
    %c0_569 = arith.constant 0 : index
    %442 = vector.load %arg7[%c1_566, %c3_567, %c0_568, %c0_569] : memref<4x4x256x128xf32, #tpu.memory_space<vmem>>, vector<1x1x256x128xf32>
    %443 = vector.shape_cast %442 : vector<1x1x256x128xf32> to vector<256x128xf32>
    %cst_570 = arith.constant dense<0.000000e+00> : vector<4x128xf32>
    %444 = tpu.matmul %441, %443, %cst_570 {dimension_numbers = #tpu.dot_dimension_numbers<[1], [0], [0], [1], [0, 0, 1, 1], [], []>} : vector<4x256xf32>, vector<256x128xf32>, vector<4x128xf32> -> vector<4x128xf32>
    %445 = arith.addf %439, %444 : vector<4x128xf32>
    %c2_571 = arith.constant 2 : index
    %c0_572 = arith.constant 0 : index
    %c0_573 = arith.constant 0 : index
    %446 = vector.load %arg12[%c2_571, %c0_572, %c0_573] : memref<5x5x256xf32, #tpu.memory_space<vmem>>, vector<2x2x256xf32>
    %447 = vector.shape_cast %446 : vector<2x2x256xf32> to vector<4x256xf32>
    %c2_574 = arith.constant 2 : index
    %c0_575 = arith.constant 0 : index
    %c0_576 = arith.constant 0 : index
    %c0_577 = arith.constant 0 : index
    %448 = vector.load %arg7[%c2_574, %c0_575, %c0_576, %c0_577] : memref<4x4x256x128xf32, #tpu.memory_space<vmem>>, vector<1x1x256x128xf32>
    %449 = vector.shape_cast %448 : vector<1x1x256x128xf32> to vector<256x128xf32>
    %cst_578 = arith.constant dense<0.000000e+00> : vector<4x128xf32>
    %450 = tpu.matmul %447, %449, %cst_578 {dimension_numbers = #tpu.dot_dimension_numbers<[1], [0], [0], [1], [0, 0, 1, 1], [], []>} : vector<4x256xf32>, vector<256x128xf32>, vector<4x128xf32> -> vector<4x128xf32>
    %451 = arith.addf %445, %450 : vector<4x128xf32>
    %c2_579 = arith.constant 2 : index
    %c1_580 = arith.constant 1 : index
    %c0_581 = arith.constant 0 : index
    %452 = vector.load %arg12[%c2_579, %c1_580, %c0_581] : memref<5x5x256xf32, #tpu.memory_space<vmem>>, vector<2x2x256xf32>
    %453 = vector.shape_cast %452 : vector<2x2x256xf32> to vector<4x256xf32>
    %c2_582 = arith.constant 2 : index
    %c1_583 = arith.constant 1 : index
    %c0_584 = arith.constant 0 : index
    %c0_585 = arith.constant 0 : index
    %454 = vector.load %arg7[%c2_582, %c1_583, %c0_584, %c0_585] : memref<4x4x256x128xf32, #tpu.memory_space<vmem>>, vector<1x1x256x128xf32>
    %455 = vector.shape_cast %454 : vector<1x1x256x128xf32> to vector<256x128xf32>
    %cst_586 = arith.constant dense<0.000000e+00> : vector<4x128xf32>
    %456 = tpu.matmul %453, %455, %cst_586 {dimension_numbers = #tpu.dot_dimension_numbers<[1], [0], [0], [1], [0, 0, 1, 1], [], []>} : vector<4x256xf32>, vector<256x128xf32>, vector<4x128xf32> -> vector<4x128xf32>
    %457 = arith.addf %451, %456 : vector<4x128xf32>
    %c2_587 = arith.constant 2 : index
    %c2_588 = arith.constant 2 : index
    %c0_589 = arith.constant 0 : index
    %458 = vector.load %arg12[%c2_587, %c2_588, %c0_589] : memref<5x5x256xf32, #tpu.memory_space<vmem>>, vector<2x2x256xf32>
    %459 = vector.shape_cast %458 : vector<2x2x256xf32> to vector<4x256xf32>
    %c2_590 = arith.constant 2 : index
    %c2_591 = arith.constant 2 : index
    %c0_592 = arith.constant 0 : index
    %c0_593 = arith.constant 0 : index
    %460 = vector.load %arg7[%c2_590, %c2_591, %c0_592, %c0_593] : memref<4x4x256x128xf32, #tpu.memory_space<vmem>>, vector<1x1x256x128xf32>
    %461 = vector.shape_cast %460 : vector<1x1x256x128xf32> to vector<256x128xf32>
    %cst_594 = arith.constant dense<0.000000e+00> : vector<4x128xf32>
    %462 = tpu.matmul %459, %461, %cst_594 {dimension_numbers = #tpu.dot_dimension_numbers<[1], [0], [0], [1], [0, 0, 1, 1], [], []>} : vector<4x256xf32>, vector<256x128xf32>, vector<4x128xf32> -> vector<4x128xf32>
    %463 = arith.addf %457, %462 : vector<4x128xf32>
    %c2_595 = arith.constant 2 : index
    %c3_596 = arith.constant 3 : index
    %c0_597 = arith.constant 0 : index
    %464 = vector.load %arg12[%c2_595, %c3_596, %c0_597] : memref<5x5x256xf32, #tpu.memory_space<vmem>>, vector<2x2x256xf32>
    %465 = vector.shape_cast %464 : vector<2x2x256xf32> to vector<4x256xf32>
    %c2_598 = arith.constant 2 : index
    %c3_599 = arith.constant 3 : index
    %c0_600 = arith.constant 0 : index
    %c0_601 = arith.constant 0 : index
    %466 = vector.load %arg7[%c2_598, %c3_599, %c0_600, %c0_601] : memref<4x4x256x128xf32, #tpu.memory_space<vmem>>, vector<1x1x256x128xf32>
    %467 = vector.shape_cast %466 : vector<1x1x256x128xf32> to vector<256x128xf32>
    %cst_602 = arith.constant dense<0.000000e+00> : vector<4x128xf32>
    %468 = tpu.matmul %465, %467, %cst_602 {dimension_numbers = #tpu.dot_dimension_numbers<[1], [0], [0], [1], [0, 0, 1, 1], [], []>} : vector<4x256xf32>, vector<256x128xf32>, vector<4x128xf32> -> vector<4x128xf32>
    %469 = arith.addf %463, %468 : vector<4x128xf32>
    %c3_603 = arith.constant 3 : index
    %c0_604 = arith.constant 0 : index
    %c0_605 = arith.constant 0 : index
    %470 = vector.load %arg12[%c3_603, %c0_604, %c0_605] : memref<5x5x256xf32, #tpu.memory_space<vmem>>, vector<2x2x256xf32>
    %471 = vector.shape_cast %470 : vector<2x2x256xf32> to vector<4x256xf32>
    %c3_606 = arith.constant 3 : index
    %c0_607 = arith.constant 0 : index
    %c0_608 = arith.constant 0 : index
    %c0_609 = arith.constant 0 : index
    %472 = vector.load %arg7[%c3_606, %c0_607, %c0_608, %c0_609] : memref<4x4x256x128xf32, #tpu.memory_space<vmem>>, vector<1x1x256x128xf32>
    %473 = vector.shape_cast %472 : vector<1x1x256x128xf32> to vector<256x128xf32>
    %cst_610 = arith.constant dense<0.000000e+00> : vector<4x128xf32>
    %474 = tpu.matmul %471, %473, %cst_610 {dimension_numbers = #tpu.dot_dimension_numbers<[1], [0], [0], [1], [0, 0, 1, 1], [], []>} : vector<4x256xf32>, vector<256x128xf32>, vector<4x128xf32> -> vector<4x128xf32>
    %475 = arith.addf %469, %474 : vector<4x128xf32>
    %c3_611 = arith.constant 3 : index
    %c1_612 = arith.constant 1 : index
    %c0_613 = arith.constant 0 : index
    %476 = vector.load %arg12[%c3_611, %c1_612, %c0_613] : memref<5x5x256xf32, #tpu.memory_space<vmem>>, vector<2x2x256xf32>
    %477 = vector.shape_cast %476 : vector<2x2x256xf32> to vector<4x256xf32>
    %c3_614 = arith.constant 3 : index
    %c1_615 = arith.constant 1 : index
    %c0_616 = arith.constant 0 : index
    %c0_617 = arith.constant 0 : index
    %478 = vector.load %arg7[%c3_614, %c1_615, %c0_616, %c0_617] : memref<4x4x256x128xf32, #tpu.memory_space<vmem>>, vector<1x1x256x128xf32>
    %479 = vector.shape_cast %478 : vector<1x1x256x128xf32> to vector<256x128xf32>
    %cst_618 = arith.constant dense<0.000000e+00> : vector<4x128xf32>
    %480 = tpu.matmul %477, %479, %cst_618 {dimension_numbers = #tpu.dot_dimension_numbers<[1], [0], [0], [1], [0, 0, 1, 1], [], []>} : vector<4x256xf32>, vector<256x128xf32>, vector<4x128xf32> -> vector<4x128xf32>
    %481 = arith.addf %475, %480 : vector<4x128xf32>
    %c3_619 = arith.constant 3 : index
    %c2_620 = arith.constant 2 : index
    %c0_621 = arith.constant 0 : index
    %482 = vector.load %arg12[%c3_619, %c2_620, %c0_621] : memref<5x5x256xf32, #tpu.memory_space<vmem>>, vector<2x2x256xf32>
    %483 = vector.shape_cast %482 : vector<2x2x256xf32> to vector<4x256xf32>
    %c3_622 = arith.constant 3 : index
    %c2_623 = arith.constant 2 : index
    %c0_624 = arith.constant 0 : index
    %c0_625 = arith.constant 0 : index
    %484 = vector.load %arg7[%c3_622, %c2_623, %c0_624, %c0_625] : memref<4x4x256x128xf32, #tpu.memory_space<vmem>>, vector<1x1x256x128xf32>
    %485 = vector.shape_cast %484 : vector<1x1x256x128xf32> to vector<256x128xf32>
    %cst_626 = arith.constant dense<0.000000e+00> : vector<4x128xf32>
    %486 = tpu.matmul %483, %485, %cst_626 {dimension_numbers = #tpu.dot_dimension_numbers<[1], [0], [0], [1], [0, 0, 1, 1], [], []>} : vector<4x256xf32>, vector<256x128xf32>, vector<4x128xf32> -> vector<4x128xf32>
    %487 = arith.addf %481, %486 : vector<4x128xf32>
    %c3_627 = arith.constant 3 : index
    %c3_628 = arith.constant 3 : index
    %c0_629 = arith.constant 0 : index
    %488 = vector.load %arg12[%c3_627, %c3_628, %c0_629] : memref<5x5x256xf32, #tpu.memory_space<vmem>>, vector<2x2x256xf32>
    %489 = vector.shape_cast %488 : vector<2x2x256xf32> to vector<4x256xf32>
    %c3_630 = arith.constant 3 : index
    %c3_631 = arith.constant 3 : index
    %c0_632 = arith.constant 0 : index
    %c0_633 = arith.constant 0 : index
    %490 = vector.load %arg7[%c3_630, %c3_631, %c0_632, %c0_633] : memref<4x4x256x128xf32, #tpu.memory_space<vmem>>, vector<1x1x256x128xf32>
    %491 = vector.shape_cast %490 : vector<1x1x256x128xf32> to vector<256x128xf32>
    %cst_634 = arith.constant dense<0.000000e+00> : vector<4x128xf32>
    %492 = tpu.matmul %489, %491, %cst_634 {dimension_numbers = #tpu.dot_dimension_numbers<[1], [0], [0], [1], [0, 0, 1, 1], [], []>} : vector<4x256xf32>, vector<256x128xf32>, vector<4x128xf32> -> vector<4x128xf32>
    %493 = arith.addf %487, %492 : vector<4x128xf32>
    %c0_635 = arith.constant 0 : index
    %c0_636 = arith.constant 0 : index
    %494 = vector.load %arg8[%c0_635, %c0_636] : memref<1x128xf32, #tpu.memory_space<vmem>>, vector<1x128xf32>
    %495 = vector.broadcast %494 : vector<1x128xf32> to vector<4x128xf32>
    %496 = arith.addf %493, %495 : vector<4x128xf32>
    %497 = arith.negf %496 : vector<4x128xf32>
    %498 = math.exp %497 : vector<4x128xf32>
    %cst_637 = arith.constant 1.000000e+00 : f32
    %499 = vector.broadcast %cst_637 : f32 to vector<4x128xf32>
    %500 = arith.addf %499, %498 : vector<4x128xf32>
    %501 = arith.divf %499, %500 : vector<4x128xf32>
    %c0_638 = arith.constant 0 : index
    %c0_639 = arith.constant 0 : index
    %c0_640 = arith.constant 0 : index
    %502 = vector.load %arg9[%c0_638, %c0_639, %c0_640] : memref<1x4x128xf32, #tpu.memory_space<vmem>>, vector<1x4x128xf32>
    %503 = vector.shape_cast %502 : vector<1x4x128xf32> to vector<4x128xf32>
    %504 = vector.shape_cast %501 : vector<4x128xf32> to vector<1x4x128xf32>
    tpu.vector_store %arg9[%c0_638, %c0_639, %c0_640], %504 {strides = array<i32>} : memref<1x4x128xf32, #tpu.memory_space<vmem>>, vector<1x4x128xf32>,
    return
  }
  func.func @transform_0(%arg0: i32) -> (i32, i32, i32, i32, i32) {
    %c0_i32 = arith.constant 0 : i32
    %c0_i32_0 = arith.constant 0 : i32
    %c0_i32_1 = arith.constant 0 : i32
    %c0_i32_2 = arith.constant 0 : i32
    %c0_i32_3 = arith.constant 0 : i32
    return %arg0, %c0_i32, %c0_i32_0, %c0_i32_1, %c0_i32_2 : i32, i32, i32, i32, i32
  }
  func.func @transform_1(%arg0: i32) -> (i32, i32, i32, i32) {
    %c0_i32 = arith.constant 0 : i32
    %c0_i32_0 = arith.constant 0 : i32
    %c0_i32_1 = arith.constant 0 : i32
    %c0_i32_2 = arith.constant 0 : i32
    %c0_i32_3 = arith.constant 0 : i32
    return %c0_i32, %c0_i32_0, %c0_i32_1, %c0_i32_2 : i32, i32, i32, i32
  }
  func.func @transform_2(%arg0: i32) -> (i32, i32) {
    %c0_i32 = arith.constant 0 : i32
    %c0_i32_0 = arith.constant 0 : i32
    %c0_i32_1 = arith.constant 0 : i32
    return %c0_i32, %c0_i32_0 : i32, i32
  }
  func.func @transform_3(%arg0: i32) -> (i32, i32, i32, i32, i32) {
    %c0_i32 = arith.constant 0 : i32
    %c0_i32_0 = arith.constant 0 : i32
    %c0_i32_1 = arith.constant 0 : i32
    %c0_i32_2 = arith.constant 0 : i32
    %c0_i32_3 = arith.constant 0 : i32
    %c0_i32_4 = arith.constant 0 : i32
    return %c0_i32, %c0_i32_0, %c0_i32_1, %c0_i32_2, %c0_i32_3 : i32, i32, i32, i32, i32
  }
  func.func @transform_4(%arg0: i32) -> (i32, i32) {
    %c0_i32 = arith.constant 0 : i32
    %c0_i32_0 = arith.constant 0 : i32
    %c0_i32_1 = arith.constant 0 : i32
    return %c0_i32, %c0_i32_0 : i32, i32
  }
  func.func @transform_5(%arg0: i32) -> (i32, i32, i32, i32) {
    %c0_i32 = arith.constant 0 : i32
    %c0_i32_0 = arith.constant 0 : i32
    %c0_i32_1 = arith.constant 0 : i32
    %c0_i32_2 = arith.constant 0 : i32
    %c0_i32_3 = arith.constant 0 : i32
    return %c0_i32, %c0_i32_0, %c0_i32_1, %c0_i32_2 : i32, i32, i32, i32
  }
  func.func @transform_6(%arg0: i32) -> (i32, i32, i32, i32) {
    %c0_i32 = arith.constant 0 : i32
    %c0_i32_0 = arith.constant 0 : i32
    %c0_i32_1 = arith.constant 0 : i32
    %c0_i32_2 = arith.constant 0 : i32
    %c0_i32_3 = arith.constant 0 : i32
    return %c0_i32, %c0_i32_0, %c0_i32_1, %c0_i32_2 : i32, i32, i32, i32
  }
  func.func @transform_7(%arg0: i32) -> (i32, i32) {
    %c0_i32 = arith.constant 0 : i32
    %c0_i32_0 = arith.constant 0 : i32
    %c0_i32_1 = arith.constant 0 : i32
    return %c0_i32, %c0_i32_0 : i32, i32
  }
  func.func @transform_8(%arg0: i32) -> (i32, i32, i32) {
    %c0_i32 = arith.constant 0 : i32
    %c0_i32_0 = arith.constant 0 : i32
    %c0_i32_1 = arith.constant 0 : i32
    return %arg0, %c0_i32, %c0_i32_0 : i32, i32, i32
  }
}

</mosaic_0001>

<llo_original>
// kernel: squeeze.1
$region0: #{squeeze.1}
  %s0 = inlined_call_operand.vmem [shape: f32[2,4], index: 0, kind: input, shape index: {}]
  %s1 = inlined_call_operand.hbm [shape: f32[2,1,2,2], index: 1, kind: output, shape index: {}]
  $region1: #{squeeze.1} parent=0
    #allocation0 [shape = 'u8[2048]{0}', space=vmem, size = 0x800, scoped, tag = 'operand span for operand 1']
    #allocation1 [shape = 's32[1]{0}', space=sflag, size = 0x4, scoped, tag = 'scoped memory for squeeze.1']
    #allocation2 [shape = 'u8[8192]{0}', space=vmem, size = 0x2000, scoped, tag = 'scoped mem for output reshape']
    #allocation3 [shape = 'u8[4096]{0}', space=vmem, size = 0x1000, scoped, tag = 'scoped mem for input reshape']
    %2 = vsyncpa [#allocation1], 0
    %s4 = ssub.s32 4, 1
    %v5 = vld [vmem:[%s0] sm:%s4]
    %6 = vst [vmem:[#allocation3] sm:%s4] %v5
    %v7 = vld [vmem:[#allocation3] sm:$0x3]
    %vm8 = vcmask 15360
    %9 = vst.msk [vmem:[#allocation2] ss:$8 sm:$0x3] %vm8, %v7
    %v10 = vld [vmem:[#allocation3] sm:$0x3]
    %11 = vrot.lane.b32.xlu0 %v10, 126
    %v12 = vpop.permute.xlu0 %11
    %vm13 = vcmask 15360
    %s14 = scalar_lea.vmem [#allocation2], 1
    %15 = vst.msk [vmem:[%s14] ss:$8 sm:$0x3] %vm13, %v12
    %s17 = ssub.s32 4, 1
    %v18 = vld [vmem:[#allocation2] sm:%s17]
    %s20 = ssub.s32 4, 1
    %21 = vst [vmem:[#allocation0] sm:%s20] %v18
    %s22 = scalar_lea.vmem [#allocation2], 8
    %v23 = vld [vmem:[%s22] sm:%s17]
    %s25 = ssub.s32 4, 1
    %s26 = scalar_lea.vmem [#allocation0], 2
    %27 = vst [vmem:[%s26] sm:%s25] %v23
    %29 = vsyncadd [#allocation1], 0
    %s31 = sshll.u32 [#allocation0], 4
    %s32 = int_to_ptr.vmem [resolvable:$true] %s31
    %s33 = sshll.u32 %s1, 4
    %s34 = int_to_ptr.hbm [resolvable:$true] %s33
    %36 = dma.vmem_to_hbm [thread:$0]  %s32, 64, %s34, [#allocation1]
    %38 = dma.done [#allocation1], 64
    %39 = vsyncpa [#allocation1], 1

// kernel: discriminator1_forward.1
$region0: #{discriminator1_forward.1}
  #allocation0 [shape = 'u32[]', space=smem, size = 0x4, offset = 0x4, fixed_abs, tag = 'smem constant byte address 0x4 - core index']
  #allocation1 [shape = 'u32[72,128]{1,0:T(1,128)}', space=vmem, size = 0x9000, scoped, tag = 'internal scratch']
  #allocation2 [shape = 'f32[4,5,5,64]{3,2,1,0:T(8,128)}', space=vmem, size = 0x14000, scoped, tag = 'scratch operand']
  #allocation3 [shape = 'f32[6,6,128]{2,1,0:T(8,128)}', space=vmem, size = 0x6000, scoped, tag = 'scratch operand']
  #allocation4 [shape = 'f32[5,5,256]{2,1,0:T(8,128)}', space=vmem, size = 0xa000, scoped, tag = 'scratch operand']
  %s0 = inlined_call_operand.vmem [shape: f32[2,4,5,5,24], index: 0, kind: input, shape index: {}]
  %s1 = inlined_call_operand.vmem [shape: f32[2,2,24,64], index: 1, kind: input, shape index: {}]
  %s2 = inlined_call_operand.vmem [shape: f32[1,64], index: 2, kind: input, shape index: {}]
  %s3 = inlined_call_operand.vmem [shape: f32[2,2,4,64,128], index: 3, kind: input, shape index: {}]
  %s4 = inlined_call_operand.vmem [shape: f32[1,128], index: 4, kind: input, shape index: {}]
  %s5 = inlined_call_operand.vmem [shape: f32[4,4,128,256], index: 5, kind: input, shape index: {}]
  %s6 = inlined_call_operand.vmem [shape: f32[4,4,256,128], index: 6, kind: input, shape index: {}]
  %s7 = inlined_call_operand.vmem [shape: f32[1,128], index: 7, kind: input, shape index: {}]
  %s8 = inlined_call_operand.vmem [shape: f32[2,4,128], index: 8, kind: output, shape index: {}]
  %s9 = sld [smem:[#allocation0]]
  $region65: #{discriminator1_forward.1} parent=0
    _
  %s11 = ssub.s32 1, %s9
  %s12 = scalar_select 0, %s11, %s9
  loop: start=0, step=1, limit=4
  $region2: #{discriminator1_forward.1} parent=0 // loop_pre_header
    _
  $region3: #{discriminator1_forward.1} parent=0 // loop_header
    %s14 = sphi 0, %s18
    %p15 = scmp.ge.s32.totalorder %s14, 4
    %s24 = sphi 0, %s26
    %s27 = sphi 0, %s24
    %s28 = sphi 0, %s27
    %s44 = sphi 0, %s28
    %s48 = sphi 0, %s48
    %s50 = sphi 0, %s48
    %s51 = sphi 0, %s50
    %s65 = sphi 0, %s51
    %s69 = sphi 0, %s69
    %s71 = sphi 0, %s69
    %s72 = sphi 0, %s71
    %s86 = sphi 0, %s72
    %s90 = sphi 0, %s90
    %s92 = sphi 0, %s90
    %s93 = sphi 0, %s92
    %s107 = sphi 0, %s93
    %s111 = sphi 0, %s111
    %s113 = sphi 0, %s111
    %s114 = sphi 0, %s113
    %s128 = sphi 0, %s114
    %s132 = sphi 0, %s132
    %s134 = sphi 0, %s132
    %s135 = sphi 0, %s134
    %s149 = sphi 0, %s135
    %s153 = sphi 0, %s153
    %s155 = sphi 0, %s153
    %s156 = sphi 0, %s155
    %s170 = sphi 0, %s156
    %s174 = sphi 0, %s174
    %s176 = sphi 0, %s174
    %s177 = sphi 0, %s176
    %s191 = sphi 0, %s177
    %s197 = sphi 0, %s199
    %s200 = sphi 0, %s197
    %s201 = sphi 0, %s200
    %s217 = sphi 0, %s201
  $region4: #{discriminator1_forward.1} parent=0 // loop_header_branch
    %17 = sbr.rel (%p15) target = $region8
  $region5: #{discriminator1_forward.1} parent=0 // loop_body
    %s19 = ssub.s32 %s14, 1
    %s20 = ssub.s32 %s14, 2
    %s21 = sadd.s32 %s14, 1
    %s22 = ssub.s32 %s14, %s21
    %p23 = scmp.eq.s32.totalorder %s22, 0
    %s25 = sadd.s32 %s24, 1
    %s26 = scalar_select %p23, %s24, %s25
    %p29 = pneg %p23
    %p30 = scmp.eq.s32.totalorder %s14, 1
    %p31 = por %p29, %p30
    %p32 = scmp.ne.s32.totalorder %s24, %s27
    %p33 = scmp.eq.s32.totalorder %s14, 0
    %p34 = por %p32, %p33
    %p35 = scmp.ne.s32.totalorder %s24, %s27
    %p36 = scmp.eq.s32.totalorder %s19, 1
    %p37 = por %p35, %p36
    %p38 = scmp.ne.s32.totalorder %s27, %s28
    %p39 = scmp.eq.s32.totalorder %s19, 0
    %p40 = por %p38, %p39
    %p41 = scmp.ne.s32.totalorder %s27, %s28
    %p42 = scmp.eq.s32.totalorder %s20, 1
    %p43 = por %p41, %p42
    %p45 = scmp.ne.s32.totalorder %s28, %s44
    %p46 = scmp.eq.s32.totalorder %s20, 0
    %p47 = por %p45, %p46
    %s49 = sadd.s32 %s48, 1
    %p52 = scmp.eq.s32.totalorder %s14, 1
    %p53 = scmp.ne.s32.totalorder %s48, %s50
    %p54 = scmp.eq.s32.totalorder %s14, 0
    %p55 = por %p53, %p54
    %p56 = scmp.ne.s32.totalorder %s48, %s50
    %p57 = scmp.eq.s32.totalorder %s19, 1
    %p58 = por %p56, %p57
    %p59 = scmp.ne.s32.totalorder %s50, %s51
    %p60 = scmp.eq.s32.totalorder %s19, 0
    %p61 = por %p59, %p60
    %p62 = scmp.ne.s32.totalorder %s50, %s51
    %p63 = scmp.eq.s32.totalorder %s20, 1
    %p64 = por %p62, %p63
    %p66 = scmp.ne.s32.totalorder %s51, %s65
    %p67 = scmp.eq.s32.totalorder %s20, 0
    %p68 = por %p66, %p67
    %s70 = sadd.s32 %s69, 1
    %p73 = scmp.eq.s32.totalorder %s14, 1
    %p74 = scmp.ne.s32.totalorder %s69, %s71
    %p75 = scmp.eq.s32.totalorder %s14, 0
    %p76 = por %p74, %p75
    %p77 = scmp.ne.s32.totalorder %s69, %s71
    %p78 = scmp.eq.s32.totalorder %s19, 1
    %p79 = por %p77, %p78
    %p80 = scmp.ne.s32.totalorder %s71, %s72
    %p81 = scmp.eq.s32.totalorder %s19, 0
    %p82 = por %p80, %p81
    %p83 = scmp.ne.s32.totalorder %s71, %s72
    %p84 = scmp.eq.s32.totalorder %s20, 1
    %p85 = por %p83, %p84
    %p87 = scmp.ne.s32.totalorder %s72, %s86
    %p88 = scmp.eq.s32.totalorder %s20, 0
    %p89 = por %p87, %p88
    %s91 = sadd.s32 %s90, 1
    %p94 = scmp.eq.s32.totalorder %s14, 1
    %p95 = scmp.ne.s32.totalorder %s90, %s92
    %p96 = scmp.eq.s32.totalorder %s14, 0
    %p97 = por %p95, %p96
    %p98 = scmp.ne.s32.totalorder %s90, %s92
    %p99 = scmp.eq.s32.totalorder %s19, 1
    %p100 = por %p98, %p99
    %p101 = scmp.ne.s32.totalorder %s92, %s93
    %p102 = scmp.eq.s32.totalorder %s19, 0
    %p103 = por %p101, %p102
    %p104 = scmp.ne.s32.totalorder %s92, %s93
    %p105 = scmp.eq.s32.totalorder %s20, 1
    %p106 = por %p104, %p105
    %p108 = scmp.ne.s32.totalorder %s93, %s107
    %p109 = scmp.eq.s32.totalorder %s20, 0
    %p110 = por %p108, %p109
    %s112 = sadd.s32 %s111, 1
    %p115 = scmp.eq.s32.totalorder %s14, 1
    %p116 = scmp.ne.s32.totalorder %s111, %s113
    %p117 = scmp.eq.s32.totalorder %s14, 0
    %p118 = por %p116, %p117
    %p119 = scmp.ne.s32.totalorder %s111, %s113
    %p120 = scmp.eq.s32.totalorder %s19, 1
    %p121 = por %p119, %p120
    %p122 = scmp.ne.s32.totalorder %s113, %s114
    %p123 = scmp.eq.s32.totalorder %s19, 0
    %p124 = por %p122, %p123
    %p125 = scmp.ne.s32.totalorder %s113, %s114
    %p126 = scmp.eq.s32.totalorder %s20, 1
    %p127 = por %p125, %p126
    %p129 = scmp.ne.s32.totalorder %s114, %s128
    %p130 = scmp.eq.s32.totalorder %s20, 0
    %p131 = por %p129, %p130
    %s133 = sadd.s32 %s132, 1
    %p136 = scmp.eq.s32.totalorder %s14, 1
    %p137 = scmp.ne.s32.totalorder %s132, %s134
    %p138 = scmp.eq.s32.totalorder %s14, 0
    %p139 = por %p137, %p138
    %p140 = scmp.ne.s32.totalorder %s132, %s134
    %p141 = scmp.eq.s32.totalorder %s19, 1
    %p142 = por %p140, %p141
    %p143 = scmp.ne.s32.totalorder %s134, %s135
    %p144 = scmp.eq.s32.totalorder %s19, 0
    %p145 = por %p143, %p144
    %p146 = scmp.ne.s32.totalorder %s134, %s135
    %p147 = scmp.eq.s32.totalorder %s20, 1
    %p148 = por %p146, %p147
    %p150 = scmp.ne.s32.totalorder %s135, %s149
    %p151 = scmp.eq.s32.totalorder %s20, 0
    %p152 = por %p150, %p151
    %s154 = sadd.s32 %s153, 1
    %p157 = scmp.eq.s32.totalorder %s14, 1
    %p158 = scmp.ne.s32.totalorder %s153, %s155
    %p159 = scmp.eq.s32.totalorder %s14, 0
    %p160 = por %p158, %p159
    %p161 = scmp.ne.s32.totalorder %s153, %s155
    %p162 = scmp.eq.s32.totalorder %s19, 1
    %p163 = por %p161, %p162
    %p164 = scmp.ne.s32.totalorder %s155, %s156
    %p165 = scmp.eq.s32.totalorder %s19, 0
    %p166 = por %p164, %p165
    %p167 = scmp.ne.s32.totalorder %s155, %s156
    %p168 = scmp.eq.s32.totalorder %s20, 1
    %p169 = por %p167, %p168
    %p171 = scmp.ne.s32.totalorder %s156, %s170
    %p172 = scmp.eq.s32.totalorder %s20, 0
    %p173 = por %p171, %p172
    %s175 = sadd.s32 %s174, 1
    %p178 = scmp.eq.s32.totalorder %s14, 1
    %p179 = scmp.ne.s32.totalorder %s174, %s176
    %p180 = scmp.eq.s32.totalorder %s14, 0
    %p181 = por %p179, %p180
    %p182 = scmp.ne.s32.totalorder %s174, %s176
    %p183 = scmp.eq.s32.totalorder %s19, 1
    %p184 = por %p182, %p183
    %p185 = scmp.ne.s32.totalorder %s176, %s177
    %p186 = scmp.eq.s32.totalorder %s19, 0
    %p187 = por %p185, %p186
    %p188 = scmp.ne.s32.totalorder %s176, %s177
    %p189 = scmp.eq.s32.totalorder %s20, 1
    %p190 = por %p188, %p189
    %p192 = scmp.ne.s32.totalorder %s177, %s191
    %p193 = scmp.eq.s32.totalorder %s20, 0
    %p194 = por %p192, %p193
    %s195 = ssub.s32 %s14, %s21
    %p196 = scmp.eq.s32.totalorder %s195, 0
    %s198 = sadd.s32 %s197, 1
    %s199 = scalar_select %p196, %s197, %s198
    %p202 = pneg %p196
    %p203 = scmp.eq.s32.totalorder %s14, 1
    %p204 = por %p202, %p203
    %p205 = scmp.ne.s32.totalorder %s197, %s200
    %p206 = scmp.eq.s32.totalorder %s14, 0
    %p207 = por %p205, %p206
    %p208 = scmp.ne.s32.totalorder %s197, %s200
    %p209 = scmp.eq.s32.totalorder %s19, 1
    %p210 = por %p208, %p209
    %p211 = scmp.ne.s32.totalorder %s200, %s201
    %p212 = scmp.eq.s32.totalorder %s19, 0
    %p213 = por %p211, %p212
    %p214 = scmp.ne.s32.totalorder %s200, %s201
    %p215 = scmp.eq.s32.totalorder %s20, 1
    %p216 = por %p214, %p215
    %p218 = scmp.ne.s32.totalorder %s201, %s217
    %p219 = scmp.eq.s32.totalorder %s20, 0
    %p220 = por %p218, %p219
    %p221 = scmp.le.s32.totalorder 1, %s14
    %p222 = scmp.lt.s32.totalorder %s14, 3
    %p223 = pnand %p221, %p222
    %p224 = pneg %p223
    // Predicated region
    $region9: #{discriminator1_forward.1} parent=5 // pred_check
      _
    $region10: #{discriminator1_forward.1} parent=5 // pred_check_branch
      %226 = sbr.rel (%p223) target = $region12
    $region11: #{discriminator1_forward.1} parent=5 // pred_region
      %s227 = ssub.s32 %s14, 1
      // Predicated region
      $region13: #{discriminator1_forward.1} parent=11 // pred_check
        %p228 = pneg %p61
      $region14: #{discriminator1_forward.1} parent=11 // pred_check_branch
        %230 = sbr.rel (%p228) target = $region16
      $region15: #{discriminator1_forward.1} parent=11 // pred_region
        _
      $region16: #{discriminator1_forward.1} parent=11 // pred_fallthru
        _
      // Predicated region
      $region17: #{discriminator1_forward.1} parent=11 // pred_check
        %p231 = pneg %p82
      $region18: #{discriminator1_forward.1} parent=11 // pred_check_branch
        %233 = sbr.rel (%p231) target = $region20
      $region19: #{discriminator1_forward.1} parent=11 // pred_region
        _
      $region20: #{discriminator1_forward.1} parent=11 // pred_fallthru
        _
      // Predicated region
      $region21: #{discriminator1_forward.1} parent=11 // pred_check
        %p234 = pneg %p103
      $region22: #{discriminator1_forward.1} parent=11 // pred_check_branch
        %236 = sbr.rel (%p234) target = $region24
      $region23: #{discriminator1_forward.1} parent=11 // pred_region
        _
      $region24: #{discriminator1_forward.1} parent=11 // pred_fallthru
        _
      // Predicated region
      $region25: #{discriminator1_forward.1} parent=11 // pred_check
        %p237 = pneg %p124
      $region26: #{discriminator1_forward.1} parent=11 // pred_check_branch
        %239 = sbr.rel (%p237) target = $region28
      $region27: #{discriminator1_forward.1} parent=11 // pred_region
        _
      $region28: #{discriminator1_forward.1} parent=11 // pred_fallthru
        _
      // Predicated region
      $region29: #{discriminator1_forward.1} parent=11 // pred_check
        %p240 = pneg %p145
      $region30: #{discriminator1_forward.1} parent=11 // pred_check_branch
        %242 = sbr.rel (%p240) target = $region32
      $region31: #{discriminator1_forward.1} parent=11 // pred_region
        _
      $region32: #{discriminator1_forward.1} parent=11 // pred_fallthru
        _
      // Predicated region
      $region33: #{discriminator1_forward.1} parent=11 // pred_check
        %p243 = pneg %p166
      $region34: #{discriminator1_forward.1} parent=11 // pred_check_branch
        %245 = sbr.rel (%p243) target = $region36
      $region35: #{discriminator1_forward.1} parent=11 // pred_region
        _
      $region36: #{discriminator1_forward.1} parent=11 // pred_fallthru
        _
      // Predicated region
      $region37: #{discriminator1_forward.1} parent=11 // pred_check
        %p246 = pneg %p187
      $region38: #{discriminator1_forward.1} parent=11 // pred_check_branch
        %248 = sbr.rel (%p246) target = $region40
      $region39: #{discriminator1_forward.1} parent=11 // pred_region
        _
      $region40: #{discriminator1_forward.1} parent=11 // pred_fallthru
        _
    $region12: #{discriminator1_forward.1} parent=5 // pred_fallthru
      _
    %p249 = scmp.lt.s32.totalorder %s14, 2
    // Predicated region
    $region41: #{discriminator1_forward.1} parent=5 // pred_check
      %p250 = pneg %p249
    $region42: #{discriminator1_forward.1} parent=5 // pred_check_branch
      %252 = sbr.rel (%p250) target = $region44
    $region43: #{discriminator1_forward.1} parent=5 // pred_region
      // Predicated region
      $region45: #{discriminator1_forward.1} parent=43 // pred_check
        %p253 = pneg %p34
      $region46: #{discriminator1_forward.1} parent=43 // pred_check_branch
        %255 = sbr.rel (%p253) target = $region48
      $region47: #{discriminator1_forward.1} parent=43 // pred_region
        %p256 = scmp.lt.s32.totalorder %s14, 1
        %s257 = scalar_select %p256, %s14, 1
        %s258 = smul.addr %s257, 20
        %s259 = smul.addr %s258, 8
        %s260 = scalar_lea.vmem %s0, %s259
      $region48: #{discriminator1_forward.1} parent=43 // pred_fallthru
        _
    $region44: #{discriminator1_forward.1} parent=5 // pred_fallthru
      _
    %p261 = scmp.le.s32.totalorder 1, %s14
    %p262 = scmp.lt.s32.totalorder %s14, 3
    %p263 = pnand %p261, %p262
    %p264 = pneg %p263
    // Predicated region
    $region49: #{discriminator1_forward.1} parent=5 // pred_check
      _
    $region50: #{discriminator1_forward.1} parent=5 // pred_check_branch
      %266 = sbr.rel (%p263) target = $region52
    $region51: #{discriminator1_forward.1} parent=5 // pred_region
      %s267 = ssub.s32 %s14, 1
      %p268 = scmp.lt.s32.totalorder %s19, 1
      %s269 = scalar_select %p268, %s19, 1
      %s270 = smul.addr %s269, 20
      %s271 = smul.addr %s270, 8
      %s272 = scalar_lea.vmem %s0, %s271
      %p273 = pneg %p40
      %p274 = pneg %p37
      %p275 = pneg %p61
      %p276 = pneg %p58
      %p277 = pneg %p82
      %p278 = pneg %p79
      %p279 = pneg %p103
      %p280 = pneg %p100
      %p281 = pneg %p124
      %p282 = pneg %p121
      %p283 = pneg %p145
      %p284 = pneg %p142
      %p285 = pneg %p166
      %p286 = pneg %p163
      %p287 = pneg %p187
      %p288 = pneg %p184
      %p289 = pneg %p213
      %p290 = pneg %p210
      %p291 = scmp.lt.s32.totalorder %s19, 1
      %s292 = scalar_select %p291, %s19, 1
      %s293 = smul.addr %s292, 4
      %s294 = scalar_lea.vmem %s8, %s293
      %p295 = scmp.lt.s32.totalorder %s19, 1
      %s296 = scalar_select %p295, %s19, 1
      %s297 = smul.addr %s296, 20
      %s298 = smul.addr %s297, 8
      %s299 = scalar_lea.vmem %s0, %s298
      %p300 = scmp.lt.s32.totalorder %s19, 1
      %s301 = scalar_select %p300, %s19, 1
      %s302 = smul.addr %s301, 4
      %s303 = scalar_lea.vmem %s8, %s302
      %vm304 = vcmask 520192
      %305 = vst.msk [vmem:[#allocation2] sm:$0x1f] %vm304, 0.0
      %306 = vst.msk [vmem:[#allocation2 + $0x8] sm:$0x1f] %vm304, 0.0
      %307 = vst.msk [vmem:[#allocation2 + $0x10] sm:$0x1f] %vm304, 0.0
      %308 = vst.msk [vmem:[#allocation2 + $0x18] sm:$0x1f] %vm304, 0.0
      %309 = vst.msk [vmem:[#allocation2 + $0x20] sm:$0x1f] %vm304, 0.0
      %310 = vst.msk [vmem:[#allocation2 + $0x28] sm:$0x1f] %vm304, 0.0
      %311 = vst.msk [vmem:[#allocation2 + $0x30] sm:$0x1f] %vm304, 0.0
      %312 = vst.msk [vmem:[#allocation2 + $0x38] sm:$0x1f] %vm304, 0.0
      %313 = vst.msk [vmem:[#allocation2 + $0x40] sm:$0x1f] %vm304, 0.0
      %314 = vst.msk [vmem:[#allocation2 + $0x48] sm:$0x1f] %vm304, 0.0
      %315 = vst.msk [vmem:[#allocation2 + $0x50] sm:$0x1f] %vm304, 0.0
      %316 = vst.msk [vmem:[#allocation2 + $0x58] sm:$0x1f] %vm304, 0.0
      %317 = vst.msk [vmem:[#allocation2 + $0x60] sm:$0x1f] %vm304, 0.0
      %318 = vst.msk [vmem:[#allocation2 + $0x68] sm:$0x1f] %vm304, 0.0
      %319 = vst.msk [vmem:[#allocation2 + $0x70] sm:$0x1f] %vm304, 0.0
      %320 = vst.msk [vmem:[#allocation2 + $0x78] sm:$0x1f] %vm304, 0.0
      %321 = vst.msk [vmem:[#allocation2 + $0x80] sm:$0x1f] %vm304, 0.0
      %322 = vst.msk [vmem:[#allocation2 + $0x88] sm:$0x1f] %vm304, 0.0
      %323 = vst.msk [vmem:[#allocation2 + $0x90] sm:$0x1f] %vm304, 0.0
      %324 = vst.msk [vmem:[#allocation2 + $0x98] sm:$0x1f] %vm304, 0.0
      %325 = vst [vmem:[#allocation3] sm:$0x3f] 0.0
      %326 = vst [vmem:[#allocation3 + $0x8] sm:$0x3f] 0.0
      %327 = vst [vmem:[#allocation3 + $0x10] sm:$0x3f] 0.0
      %328 = vst [vmem:[#allocation3 + $0x18] sm:$0x3f] 0.0
      %329 = vst [vmem:[#allocation3 + $0x20] sm:$0x3f] 0.0
      %330 = vst [vmem:[#allocation3 + $0x28] sm:$0x3f] 0.0
      %331 = vst [vmem:[#allocation4] sm:$0x1f] 0.0
      %332 = vst [vmem:[#allocation4 + $0x8] sm:$0x1f] 0.0
      %333 = vst [vmem:[#allocation4 + $0x10] sm:$0x1f] 0.0
      %334 = vst [vmem:[#allocation4 + $0x18] sm:$0x1f] 0.0
      %335 = vst [vmem:[#allocation4 + $0x20] sm:$0x1f] 0.0
      %336 = vst [vmem:[#allocation4 + $0x28] sm:$0x1f] 0.0
      %337 = vst [vmem:[#allocation4 + $0x30] sm:$0x1f] 0.0
      %338 = vst [vmem:[#allocation4 + $0x38] sm:$0x1f] 0.0
      %339 = vst [vmem:[#allocation4 + $0x40] sm:$0x1f] 0.0
      %340 = vst [vmem:[#allocation4 + $0x48] sm:$0x1f] 0.0
      %v341 = vld [vmem:[%s299] sm:$0xf]
      %v342 = vld [vmem:[%s299 + $0x8] sm:$0xf]
      %v343 = vld [vmem:[%s299 + $0x10] sm:$0xf]
      %v344 = vld [vmem:[%s299 + $0x18] sm:$0xf]
      %v345 = vld [vmem:[%s1] sm:$0xff]
      %v346 = vld [vmem:[%s1 + $0x8] sm:$0xff]
      %v347 = vld [vmem:[%s1 + $0x10] sm:$0xff]
      %s348 = scalar_lea.vmem %s299, 40
      %v349 = vld [vmem:[%s348] sm:$0xf]
      %v350 = vld [vmem:[%s348 + $0x8] sm:$0xf]
      %v351 = vld [vmem:[%s348 + $0x10] sm:$0xf]
      %v352 = vld [vmem:[%s348 + $0x18] sm:$0xf]
      %s353 = scalar_lea.vmem %s1, 24
      %v354 = vld [vmem:[%s353] sm:$0xff]
      %v355 = vld [vmem:[%s353 + $0x8] sm:$0xff]
      %v356 = vld [vmem:[%s353 + $0x10] sm:$0xff]
      %361 = vst [vmem:[#allocation1] ss:$2 sm:$0xff] %v349
      %s362 = scalar_lea.vmem [#allocation1], 1
      %363 = vst [vmem:[%s362] ss:$2 sm:$0xff] %v350
      %s364 = scalar_lea.vmem [#allocation1], 16
      %365 = vst [vmem:[%s364] ss:$2 sm:$0xff] %v351
      %s366 = scalar_lea.vmem [#allocation1], 17
      %367 = vst [vmem:[%s366] ss:$2 sm:$0xff] %v352
      %v368 = vld.sshfl [vmem:[#allocation1] sm:$0xff pattern:$0x75316420]
      %v369 = vld.sshfl [vmem:[#allocation1 + $0x10] sm:$0xff pattern:$0x75316420]
      %vm370 = vcmask 195584
      %v371 = vsel %vm370, %v368, 0
      %v373 = vsel %vm370, %v369, 0
      %375 = vmatpush.msra.mxu0 0.0
      %376 = vmatpush.msra.mxu0 0.0
      %377 = vmatpush.msra.mxu0 0.0
      %378 = vmatpush.msra.mxu0 0.0
      %379 = vmatpush.msra.mxu0 0.0
      %380 = vmatpush.msra.mxu0 0.0
      %381 = vmatpush.msra.mxu0 0.0
      %382 = vmatpush.msra.mxu0 0.0
      %383 = vmatpush.msra.mxu0 0.0
      %384 = vmatpush.msra.mxu0 0.0
      %385 = vmatpush.msra.mxu0 0.0
      %386 = vmatpush.msra.mxu0 0.0
      %387 = vmatpush.msra.mxu0 0.0
      %388 = vmatpush.msra.mxu0 %v356
      %389 = vmatpush.msra.mxu0 %v355
      %390 = vmatpush.msra.mxu0 %v354
      %391 = vmatmul.f32.gmra.mxu0 %v371
      %v392 = vpop.f32.mrf.mxu0
      %v393 = vadd.f32 0.0, %v392
      %394 = vmatmul.f32.gmra.mxu0 %v373
      %v395 = vpop.f32.mrf.mxu0
      %v396 = vadd.f32 0.0, %v395
      %397 = vdwg.mxu0
      %402 = vst [vmem:[#allocation1] ss:$2 sm:$0xff] %v341
      %s403 = scalar_lea.vmem [#allocation1], 1
      %404 = vst [vmem:[%s403] ss:$2 sm:$0xff] %v342
      %s405 = scalar_lea.vmem [#allocation1], 16
      %406 = vst [vmem:[%s405] ss:$2 sm:$0xff] %v343
      %s407 = scalar_lea.vmem [#allocation1], 17
      %408 = vst [vmem:[%s407] ss:$2 sm:$0xff] %v344
      %v409 = vld.sshfl [vmem:[#allocation1] sm:$0xff pattern:$0x75316420]
      %v410 = vld.sshfl [vmem:[#allocation1 + $0x10] sm:$0xff pattern:$0x75316420]
      %v411 = vsel %vm370, %v409, 0
      %v413 = vsel %vm370, %v410, 0
      %415 = vmatpush.msra.mxu0 0.0
      %416 = vmatpush.msra.mxu0 0.0
      %417 = vmatpush.msra.mxu0 0.0
      %418 = vmatpush.msra.mxu0 0.0
      %419 = vmatpush.msra.mxu0 0.0
      %420 = vmatpush.msra.mxu0 0.0
      %421 = vmatpush.msra.mxu0 0.0
      %422 = vmatpush.msra.mxu0 0.0
      %423 = vmatpush.msra.mxu0 0.0
      %424 = vmatpush.msra.mxu0 0.0
      %425 = vmatpush.msra.mxu0 0.0
      %426 = vmatpush.msra.mxu0 0.0
      %427 = vmatpush.msra.mxu0 0.0
      %428 = vmatpush.msra.mxu0 %v347
      %429 = vmatpush.msra.mxu0 %v346
      %430 = vmatpush.msra.mxu0 %v345
      %431 = vmatmul.f32.gmra.mxu0 %v411
      %v432 = vpop.f32.mrf.mxu0
      %v433 = vadd.f32 %v393, %v432
      %434 = vmatmul.f32.gmra.mxu0 %v413
      %v435 = vpop.f32.mrf.mxu0
      %v436 = vadd.f32 %v396, %v435
      %437 = vdwg.mxu0
      %s438 = scalar_lea.vmem %s299, 80
      %v439 = vld [vmem:[%s438] sm:$0xf]
      %v440 = vld [vmem:[%s438 + $0x8] sm:$0xf]
      %v441 = vld [vmem:[%s438 + $0x10] sm:$0xf]
      %v442 = vld [vmem:[%s438 + $0x18] sm:$0xf]
      %s443 = scalar_lea.vmem %s1, 48
      %v444 = vld [vmem:[%s443] sm:$0xff]
      %v445 = vld [vmem:[%s443 + $0x8] sm:$0xff]
      %v446 = vld [vmem:[%s443 + $0x10] sm:$0xff]
      %451 = vst [vmem:[#allocation1] ss:$2 sm:$0xff] %v439
      %s452 = scalar_lea.vmem [#allocation1], 1
      %453 = vst [vmem:[%s452] ss:$2 sm:$0xff] %v440
      %s454 = scalar_lea.vmem [#allocation1], 16
      %455 = vst [vmem:[%s454] ss:$2 sm:$0xff] %v441
      %s456 = scalar_lea.vmem [#allocation1], 17
      %457 = vst [vmem:[%s456] ss:$2 sm:$0xff] %v442
      %v458 = vld.sshfl [vmem:[#allocation1] sm:$0xff pattern:$0x75316420]
      %v459 = vld.sshfl [vmem:[#allocation1 + $0x10] sm:$0xff pattern:$0x75316420]
      %v460 = vsel %vm370, %v458, 0
      %v462 = vsel %vm370, %v459, 0
      %464 = vmatpush.msra.mxu0 0.0
      %465 = vmatpush.msra.mxu0 0.0
      %466 = vmatpush.msra.mxu0 0.0
      %467 = vmatpush.msra.mxu0 0.0
      %468 = vmatpush.msra.mxu0 0.0
      %469 = vmatpush.msra.mxu0 0.0
      %470 = vmatpush.msra.mxu0 0.0
      %471 = vmatpush.msra.mxu0 0.0
      %472 = vmatpush.msra.mxu0 0.0
      %473 = vmatpush.msra.mxu0 0.0
      %474 = vmatpush.msra.mxu0 0.0
      %475 = vmatpush.msra.mxu0 0.0
      %476 = vmatpush.msra.mxu0 0.0
      %477 = vmatpush.msra.mxu0 %v446
      %478 = vmatpush.msra.mxu0 %v445
      %479 = vmatpush.msra.mxu0 %v444
      %480 = vmatmul.f32.gmra.mxu0 %v460
      %v481 = vpop.f32.mrf.mxu0
      %v482 = vadd.f32 0.0, %v481
      %483 = vmatmul.f32.gmra.mxu0 %v462
      %v484 = vpop.f32.mrf.mxu0
      %v485 = vadd.f32 0.0, %v484
      %486 = vdwg.mxu0
      %v487 = vadd.f32 %v433, %v482
      %v488 = vadd.f32 %v436, %v485
      %s489 = scalar_lea.vmem %s299, 120
      %v490 = vld [vmem:[%s489] sm:$0xf]
      %v491 = vld [vmem:[%s489 + $0x8] sm:$0xf]
      %v492 = vld [vmem:[%s489 + $0x10] sm:$0xf]
      %v493 = vld [vmem:[%s489 + $0x18] sm:$0xf]
      %s494 = scalar_lea.vmem %s1, 72
      %v495 = vld [vmem:[%s494] sm:$0xff]
      %v496 = vld [vmem:[%s494 + $0x8] sm:$0xff]
      %v497 = vld [vmem:[%s494 + $0x10] sm:$0xff]
      %502 = vst [vmem:[#allocation1] ss:$2 sm:$0xff] %v490
      %s503 = scalar_lea.vmem [#allocation1], 1
      %504 = vst [vmem:[%s503] ss:$2 sm:$0xff] %v491
      %s505 = scalar_lea.vmem [#allocation1], 16
      %506 = vst [vmem:[%s505] ss:$2 sm:$0xff] %v492
      %s507 = scalar_lea.vmem [#allocation1], 17
      %508 = vst [vmem:[%s507] ss:$2 sm:$0xff] %v493
      %v509 = vld.sshfl [vmem:[#allocation1] sm:$0xff pattern:$0x75316420]
      %v510 = vld.sshfl [vmem:[#allocation1 + $0x10] sm:$0xff pattern:$0x75316420]
      %v511 = vsel %vm370, %v509, 0
      %v513 = vsel %vm370, %v510, 0
      %515 = vmatpush.msra.mxu0 0.0
      %516 = vmatpush.msra.mxu0 0.0
      %517 = vmatpush.msra.mxu0 0.0
      %518 = vmatpush.msra.mxu0 0.0
      %519 = vmatpush.msra.mxu0 0.0
      %520 = vmatpush.msra.mxu0 0.0
      %521 = vmatpush.msra.mxu0 0.0
      %522 = vmatpush.msra.mxu0 0.0
      %523 = vmatpush.msra.mxu0 0.0
      %524 = vmatpush.msra.mxu0 0.0
      %525 = vmatpush.msra.mxu0 0.0
      %526 = vmatpush.msra.mxu0 0.0
      %527 = vmatpush.msra.mxu0 0.0
      %528 = vmatpush.msra.mxu0 %v497
      %529 = vmatpush.msra.mxu0 %v496
      %530 = vmatpush.msra.mxu0 %v495
      %531 = vmatmul.f32.gmra.mxu0 %v511
      %v532 = vpop.f32.mrf.mxu0
      %v533 = vadd.f32 0.0, %v532
      %534 = vmatmul.f32.gmra.mxu0 %v513
      %v535 = vpop.f32.mrf.mxu0
      %v536 = vadd.f32 0.0, %v535
      %537 = vdwg.mxu0
      %v538 = vadd.f32 %v487, %v533
      %v539 = vadd.f32 %v488, %v536
      %v540 = vld [vmem:[%s2] sm:$0x1]
      %v542 = vperm.slane %v540, 0
      %v544 = vadd.f32 %v538, %v542
      %v545 = vadd.f32 %v539, %v542
      %vm546 = vcmp.ge.f32.partialorder %v544, 0.0
      %vm547 = vcmp.ge.f32.partialorder %v545, 0.0
      %v548 = vmul.f32 %v544, 0.2
      %v549 = vmul.f32 %v545, 0.2
      %v550 = vsel %vm546, %v544, %v548
      %v551 = vsel %vm547, %v545, %v549
      %v554 = vrot.slane %v550, 4
      %v555 = vrot.slane %v551, 4
      %s558 = scalar_lea.vmem [#allocation2], 120
      %vm559 = vcmask 519168
      %560 = vst.msk [vmem:[%s558] sm:$0xf] %vm559, %v550
      %561 = vst.msk [vmem:[%s558 + $0x8] sm:$0xf] %vm559, %v554
      %562 = vst.msk [vmem:[%s558 + $0x10] sm:$0xf] %vm559, %v551
      %563 = vst.msk [vmem:[%s558 + $0x18] sm:$0xf] %vm559, %v555
      %v564 = vld [vmem:[%s348] sm:$0xf]
      %v565 = vld [vmem:[%s348 + $0x8] sm:$0xf]
      %v566 = vld [vmem:[%s348 + $0x10] sm:$0xf]
      %v567 = vld [vmem:[%s348 + $0x18] sm:$0xf]
      %v568 = vld [vmem:[%s1] sm:$0xff]
      %v569 = vld [vmem:[%s1 + $0x8] sm:$0xff]
      %v570 = vld [vmem:[%s1 + $0x10] sm:$0xff]
      %v571 = vld [vmem:[%s299 + $0x1] sm:$0xf]
      %v572 = vld [vmem:[%s299 + $0x9] sm:$0xf]
      %v573 = vld [vmem:[%s299 + $0x11] sm:$0xf]
      %v574 = vld [vmem:[%s299 + $0x19] sm:$0xf]
      %v575 = vld [vmem:[%s353] sm:$0xff]
      %v576 = vld [vmem:[%s353 + $0x8] sm:$0xff]
      %v577 = vld [vmem:[%s353 + $0x10] sm:$0xff]
      %582 = vst [vmem:[#allocation1] ss:$2 sm:$0xff] %v571
      %s583 = scalar_lea.vmem [#allocation1], 1
      %584 = vst [vmem:[%s583] ss:$2 sm:$0xff] %v572
      %s585 = scalar_lea.vmem [#allocation1], 16
      %586 = vst [vmem:[%s585] ss:$2 sm:$0xff] %v573
      %s587 = scalar_lea.vmem [#allocation1], 17
      %588 = vst [vmem:[%s587] ss:$2 sm:$0xff] %v574
      %v589 = vld.sshfl [vmem:[#allocation1] sm:$0xff pattern:$0x75316420]
      %v590 = vld.sshfl [vmem:[#allocation1 + $0x10] sm:$0xff pattern:$0x75316420]
      %v591 = vsel %vm370, %v589, 0
      %v593 = vsel %vm370, %v590, 0
      %595 = vmatpush.msra.mxu0 0.0
      %596 = vmatpush.msra.mxu0 0.0
      %597 = vmatpush.msra.mxu0 0.0
      %598 = vmatpush.msra.mxu0 0.0
      %599 = vmatpush.msra.mxu0 0.0
      %600 = vmatpush.msra.mxu0 0.0
      %601 = vmatpush.msra.mxu0 0.0
      %602 = vmatpush.msra.mxu0 0.0
      %603 = vmatpush.msra.mxu0 0.0
      %604 = vmatpush.msra.mxu0 0.0
      %605 = vmatpush.msra.mxu0 0.0
      %606 = vmatpush.msra.mxu0 0.0
      %607 = vmatpush.msra.mxu0 0.0
      %608 = vmatpush.msra.mxu0 %v577
      %609 = vmatpush.msra.mxu0 %v576
      %610 = vmatpush.msra.mxu0 %v575
      %611 = vmatmul.f32.gmra.mxu0 %v591
      %v612 = vpop.f32.mrf.mxu0
      %v613 = vadd.f32 0.0, %v612
      %614 = vmatmul.f32.gmra.mxu0 %v593
      %v615 = vpop.f32.mrf.mxu0
      %v616 = vadd.f32 0.0, %v615
      %617 = vdwg.mxu0
      %622 = vst [vmem:[#allocation1] ss:$2 sm:$0xff] %v564
      %s623 = scalar_lea.vmem [#allocation1], 1
      %624 = vst [vmem:[%s623] ss:$2 sm:$0xff] %v565
      %s625 = scalar_lea.vmem [#allocation1], 16
      %626 = vst [vmem:[%s625] ss:$2 sm:$0xff] %v566
      %s627 = scalar_lea.vmem [#allocation1], 17
      %628 = vst [vmem:[%s627] ss:$2 sm:$0xff] %v567
      %v629 = vld.sshfl [vmem:[#allocation1] sm:$0xff pattern:$0x75316420]
      %v630 = vld.sshfl [vmem:[#allocation1 + $0x10] sm:$0xff pattern:$0x75316420]
      %v631 = vsel %vm370, %v629, 0
      %v633 = vsel %vm370, %v630, 0
      %635 = vmatpush.msra.mxu0 0.0
      %636 = vmatpush.msra.mxu0 0.0
      %637 = vmatpush.msra.mxu0 0.0
      %638 = vmatpush.msra.mxu0 0.0
      %639 = vmatpush.msra.mxu0 0.0
      %640 = vmatpush.msra.mxu0 0.0
      %641 = vmatpush.msra.mxu0 0.0
      %642 = vmatpush.msra.mxu0 0.0
      %643 = vmatpush.msra.mxu0 0.0
      %644 = vmatpush.msra.mxu0 0.0
      %645 = vmatpush.msra.mxu0 0.0
      %646 = vmatpush.msra.mxu0 0.0
      %647 = vmatpush.msra.mxu0 0.0
      %648 = vmatpush.msra.mxu0 %v570
      %649 = vmatpush.msra.mxu0 %v569
      %650 = vmatpush.msra.mxu0 %v568
      %651 = vmatmul.f32.gmra.mxu0 %v631
      %v652 = vpop.f32.mrf.mxu0
      %v653 = vadd.f32 %v613, %v652
      %654 = vmatmul.f32.gmra.mxu0 %v633
      %v655 = vpop.f32.mrf.mxu0
      %v656 = vadd.f32 %v616, %v655
      %657 = vdwg.mxu0
      %v658 = vld [vmem:[%s489] sm:$0xf]
      %v659 = vld [vmem:[%s489 + $0x8] sm:$0xf]
      %v660 = vld [vmem:[%s489 + $0x10] sm:$0xf]
      %v661 = vld [vmem:[%s489 + $0x18] sm:$0xf]
      %v662 = vld [vmem:[%s443] sm:$0xff]
      %v663 = vld [vmem:[%s443 + $0x8] sm:$0xff]
      %v664 = vld [vmem:[%s443 + $0x10] sm:$0xff]
      %669 = vst [vmem:[#allocation1] ss:$2 sm:$0xff] %v658
      %s670 = scalar_lea.vmem [#allocation1], 1
      %671 = vst [vmem:[%s670] ss:$2 sm:$0xff] %v659
      %s672 = scalar_lea.vmem [#allocation1], 16
      %673 = vst [vmem:[%s672] ss:$2 sm:$0xff] %v660
      %s674 = scalar_lea.vmem [#allocation1], 17
      %675 = vst [vmem:[%s674] ss:$2 sm:$0xff] %v661
      %v676 = vld.sshfl [vmem:[#allocation1] sm:$0xff pattern:$0x75316420]
      %v677 = vld.sshfl [vmem:[#allocation1 + $0x10] sm:$0xff pattern:$0x75316420]
      %v678 = vsel %vm370, %v676, 0
      %v680 = vsel %vm370, %v677, 0
      %682 = vmatpush.msra.mxu0 0.0
      %683 = vmatpush.msra.mxu0 0.0
      %684 = vmatpush.msra.mxu0 0.0
      %685 = vmatpush.msra.mxu0 0.0
      %686 = vmatpush.msra.mxu0 0.0
      %687 = vmatpush.msra.mxu0 0.0
      %688 = vmatpush.msra.mxu0 0.0
      %689 = vmatpush.msra.mxu0 0.0
      %690 = vmatpush.msra.mxu0 0.0
      %691 = vmatpush.msra.mxu0 0.0
      %692 = vmatpush.msra.mxu0 0.0
      %693 = vmatpush.msra.mxu0 0.0
      %694 = vmatpush.msra.mxu0 0.0
      %695 = vmatpush.msra.mxu0 %v664
      %696 = vmatpush.msra.mxu0 %v663
      %697 = vmatpush.msra.mxu0 %v662
      %698 = vmatmul.f32.gmra.mxu0 %v678
      %v699 = vpop.f32.mrf.mxu0
      %v700 = vadd.f32 0.0, %v699
      %701 = vmatmul.f32.gmra.mxu0 %v680
      %v702 = vpop.f32.mrf.mxu0
      %v703 = vadd.f32 0.0, %v702
      %704 = vdwg.mxu0
      %v705 = vadd.f32 %v653, %v700
      %v706 = vadd.f32 %v656, %v703
      %v707 = vld [vmem:[%s438 + $0x1] sm:$0xf]
      %v708 = vld [vmem:[%s438 + $0x9] sm:$0xf]
      %v709 = vld [vmem:[%s438 + $0x11] sm:$0xf]
      %v710 = vld [vmem:[%s438 + $0x19] sm:$0xf]
      %v711 = vld [vmem:[%s494] sm:$0xff]
      %v712 = vld [vmem:[%s494 + $0x8] sm:$0xff]
      %v713 = vld [vmem:[%s494 + $0x10] sm:$0xff]
      %718 = vst [vmem:[#allocation1] ss:$2 sm:$0xff] %v707
      %s719 = scalar_lea.vmem [#allocation1], 1
      %720 = vst [vmem:[%s719] ss:$2 sm:$0xff] %v708
      %s721 = scalar_lea.vmem [#allocation1], 16
      %722 = vst [vmem:[%s721] ss:$2 sm:$0xff] %v709
      %s723 = scalar_lea.vmem [#allocation1], 17
      %724 = vst [vmem:[%s723] ss:$2 sm:$0xff] %v710
      %v725 = vld.sshfl [vmem:[#allocation1] sm:$0xff pattern:$0x75316420]
      %v726 = vld.sshfl [vmem:[#allocation1 + $0x10] sm:$0xff pattern:$0x75316420]
      %v727 = vsel %vm370, %v725, 0
      %v729 = vsel %vm370, %v726, 0
      %731 = vmatpush.msra.mxu0 0.0
      %732 = vmatpush.msra.mxu0 0.0
      %733 = vmatpush.msra.mxu0 0.0
      %734 = vmatpush.msra.mxu0 0.0
      %735 = vmatpush.msra.mxu0 0.0
      %736 = vmatpush.msra.mxu0 0.0
      %737 = vmatpush.msra.mxu0 0.0
      %738 = vmatpush.msra.mxu0 0.0
      %739 = vmatpush.msra.mxu0 0.0
      %740 = vmatpush.msra.mxu0 0.0
      %741 = vmatpush.msra.mxu0 0.0
      %742 = vmatpush.msra.mxu0 0.0
      %743 = vmatpush.msra.mxu0 0.0
      %744 = vmatpush.msra.mxu0 %v713
      %745 = vmatpush.msra.mxu0 %v712
      %746 = vmatpush.msra.mxu0 %v711
      %747 = vmatmul.f32.gmra.mxu0 %v727
      %v748 = vpop.f32.mrf.mxu0
      %v749 = vadd.f32 0.0, %v748
      %750 = vmatmul.f32.gmra.mxu0 %v729
      %v751 = vpop.f32.mrf.mxu0
      %v752 = vadd.f32 0.0, %v751
      %753 = vdwg.mxu0
      %v754 = vadd.f32 %v705, %v749
      %v755 = vadd.f32 %v706, %v752
      %v756 = vld [vmem:[%s2] sm:$0x1]
      %v758 = vperm.slane %v756, 0
      %v760 = vadd.f32 %v754, %v758
      %v761 = vadd.f32 %v755, %v758
      %vm762 = vcmp.ge.f32.partialorder %v760, 0.0
      %vm763 = vcmp.ge.f32.partialorder %v761, 0.0
      %v764 = vmul.f32 %v760, 0.2
      %v765 = vmul.f32 %v761, 0.2
      %v766 = vsel %vm762, %v760, %v764
      %v767 = vsel %vm763, %v761, %v765
      %v770 = vrot.slane %v766, 4
      %v771 = vrot.slane %v767, 4
      %s774 = scalar_lea.vmem [#allocation2], 80
      %775 = vst.msk [vmem:[%s774 + $0x1] sm:$0xf] %vm559, %v766
      %776 = vst.msk [vmem:[%s774 + $0x9] sm:$0xf] %vm559, %v770
      %777 = vst.msk [vmem:[%s774 + $0x11] sm:$0xf] %vm559, %v767
      %778 = vst.msk [vmem:[%s774 + $0x19] sm:$0xf] %vm559, %v771
      %v779 = vld [vmem:[%s438] sm:$0xf]
      %v780 = vld [vmem:[%s438 + $0x8] sm:$0xf]
      %v781 = vld [vmem:[%s438 + $0x10] sm:$0xf]
      %v782 = vld [vmem:[%s438 + $0x18] sm:$0xf]
      %v783 = vld [vmem:[%s1] sm:$0xff]
      %v784 = vld [vmem:[%s1 + $0x8] sm:$0xff]
      %v785 = vld [vmem:[%s1 + $0x10] sm:$0xff]
      %v786 = vld [vmem:[%s489] sm:$0xf]
      %v787 = vld [vmem:[%s489 + $0x8] sm:$0xf]
      %v788 = vld [vmem:[%s489 + $0x10] sm:$0xf]
      %v789 = vld [vmem:[%s489 + $0x18] sm:$0xf]
      %v790 = vld [vmem:[%s353] sm:$0xff]
      %v791 = vld [vmem:[%s353 + $0x8] sm:$0xff]
      %v792 = vld [vmem:[%s353 + $0x10] sm:$0xff]
      %797 = vst [vmem:[#allocation1] ss:$2 sm:$0xff] %v786
      %s798 = scalar_lea.vmem [#allocation1], 1
      %799 = vst [vmem:[%s798] ss:$2 sm:$0xff] %v787
      %s800 = scalar_lea.vmem [#allocation1], 16
      %801 = vst [vmem:[%s800] ss:$2 sm:$0xff] %v788
      %s802 = scalar_lea.vmem [#allocation1], 17
      %803 = vst [vmem:[%s802] ss:$2 sm:$0xff] %v789
      %v804 = vld.sshfl [vmem:[#allocation1] sm:$0xff pattern:$0x75316420]
      %v805 = vld.sshfl [vmem:[#allocation1 + $0x10] sm:$0xff pattern:$0x75316420]
      %v806 = vsel %vm370, %v804, 0
      %v808 = vsel %vm370, %v805, 0
      %810 = vmatpush.msra.mxu0 0.0
      %811 = vmatpush.msra.mxu0 0.0
      %812 = vmatpush.msra.mxu0 0.0
      %813 = vmatpush.msra.mxu0 0.0
      %814 = vmatpush.msra.mxu0 0.0
      %815 = vmatpush.msra.mxu0 0.0
      %816 = vmatpush.msra.mxu0 0.0
      %817 = vmatpush.msra.mxu0 0.0
      %818 = vmatpush.msra.mxu0 0.0
      %819 = vmatpush.msra.mxu0 0.0
      %820 = vmatpush.msra.mxu0 0.0
      %821 = vmatpush.msra.mxu0 0.0
      %822 = vmatpush.msra.mxu0 0.0
      %823 = vmatpush.msra.mxu0 %v792
      %824 = vmatpush.msra.mxu0 %v791
      %825 = vmatpush.msra.mxu0 %v790
      %826 = vmatmul.f32.gmra.mxu0 %v806
      %v827 = vpop.f32.mrf.mxu0
      %v828 = vadd.f32 0.0, %v827
      %829 = vmatmul.f32.gmra.mxu0 %v808
      %v830 = vpop.f32.mrf.mxu0
      %v831 = vadd.f32 0.0, %v830
      %832 = vdwg.mxu0
      %837 = vst [vmem:[#allocation1] ss:$2 sm:$0xff] %v779
      %s838 = scalar_lea.vmem [#allocation1], 1
      %839 = vst [vmem:[%s838] ss:$2 sm:$0xff] %v780
      %s840 = scalar_lea.vmem [#allocation1], 16
      %841 = vst [vmem:[%s840] ss:$2 sm:$0xff] %v781
      %s842 = scalar_lea.vmem [#allocation1], 17
      %843 = vst [vmem:[%s842] ss:$2 sm:$0xff] %v782
      %v844 = vld.sshfl [vmem:[#allocation1] sm:$0xff pattern:$0x75316420]
      %v845 = vld.sshfl [vmem:[#allocation1 + $0x10] sm:$0xff pattern:$0x75316420]
      %v846 = vsel %vm370, %v844, 0
      %v848 = vsel %vm370, %v845, 0
      %850 = vmatpush.msra.mxu0 0.0
      %851 = vmatpush.msra.mxu0 0.0
      %852 = vmatpush.msra.mxu0 0.0
      %853 = vmatpush.msra.mxu0 0.0
      %854 = vmatpush.msra.mxu0 0.0
      %855 = vmatpush.msra.mxu0 0.0
      %856 = vmatpush.msra.mxu0 0.0
      %857 = vmatpush.msra.mxu0 0.0
      %858 = vmatpush.msra.mxu0 0.0
      %859 = vmatpush.msra.mxu0 0.0
      %860 = vmatpush.msra.mxu0 0.0
      %861 = vmatpush.msra.mxu0 0.0
      %862 = vmatpush.msra.mxu0 0.0
      %863 = vmatpush.msra.mxu0 %v785
      %864 = vmatpush.msra.mxu0 %v784
      %865 = vmatpush.msra.mxu0 %v783
      %866 = vmatmul.f32.gmra.mxu0 %v846
      %v867 = vpop.f32.mrf.mxu0
      %v868 = vadd.f32 %v828, %v867
      %869 = vmatmul.f32.gmra.mxu0 %v848
      %v870 = vpop.f32.mrf.mxu0
      %v871 = vadd.f32 %v831, %v870
      %872 = vdwg.mxu0
      %s873 = scalar_lea.vmem %s299, 8
      %v874 = vld [vmem:[%s873] sm:$0xf]
      %v875 = vld [vmem:[%s873 + $0x8] sm:$0xf]
      %v876 = vld [vmem:[%s873 + $0x10] sm:$0xf]
      %v877 = vld [vmem:[%s873 + $0x18] sm:$0xf]
      %v878 = vld [vmem:[%s443] sm:$0xff]
      %v879 = vld [vmem:[%s443 + $0x8] sm:$0xff]
      %v880 = vld [vmem:[%s443 + $0x10] sm:$0xff]
      %885 = vst [vmem:[#allocation1] ss:$2 sm:$0xff] %v874
      %s886 = scalar_lea.vmem [#allocation1], 1
      %887 = vst [vmem:[%s886] ss:$2 sm:$0xff] %v875
      %s888 = scalar_lea.vmem [#allocation1], 16
      %889 = vst [vmem:[%s888] ss:$2 sm:$0xff] %v876
      %s890 = scalar_lea.vmem [#allocation1], 17
      %891 = vst [vmem:[%s890] ss:$2 sm:$0xff] %v877
      %v892 = vld.sshfl [vmem:[#allocation1] sm:$0xff pattern:$0x75316420]
      %v893 = vld.sshfl [vmem:[#allocation1 + $0x10] sm:$0xff pattern:$0x75316420]
      %v894 = vsel %vm370, %v892, 0
      %v896 = vsel %vm370, %v893, 0
      %898 = vmatpush.msra.mxu0 0.0
      %899 = vmatpush.msra.mxu0 0.0
      %900 = vmatpush.msra.mxu0 0.0
      %901 = vmatpush.msra.mxu0 0.0
      %902 = vmatpush.msra.mxu0 0.0
      %903 = vmatpush.msra.mxu0 0.0
      %904 = vmatpush.msra.mxu0 0.0
      %905 = vmatpush.msra.mxu0 0.0
      %906 = vmatpush.msra.mxu0 0.0
      %907 = vmatpush.msra.mxu0 0.0
      %908 = vmatpush.msra.mxu0 0.0
      %909 = vmatpush.msra.mxu0 0.0
      %910 = vmatpush.msra.mxu0 0.0
      %911 = vmatpush.msra.mxu0 %v880
      %912 = vmatpush.msra.mxu0 %v879
      %913 = vmatpush.msra.mxu0 %v878
      %914 = vmatmul.f32.gmra.mxu0 %v894
      %v915 = vpop.f32.mrf.mxu0
      %v916 = vadd.f32 0.0, %v915
      %917 = vmatmul.f32.gmra.mxu0 %v896
      %v918 = vpop.f32.mrf.mxu0
      %v919 = vadd.f32 0.0, %v918
      %920 = vdwg.mxu0
      %v921 = vadd.f32 %v868, %v916
      %v922 = vadd.f32 %v871, %v919
      %s923 = scalar_lea.vmem %s299, 48
      %v924 = vld [vmem:[%s923] sm:$0xf]
      %v925 = vld [vmem:[%s923 + $0x8] sm:$0xf]
      %v926 = vld [vmem:[%s923 + $0x10] sm:$0xf]
      %v927 = vld [vmem:[%s923 + $0x18] sm:$0xf]
      %v928 = vld [vmem:[%s494] sm:$0xff]
      %v929 = vld [vmem:[%s494 + $0x8] sm:$0xff]
      %v930 = vld [vmem:[%s494 + $0x10] sm:$0xff]
      %935 = vst [vmem:[#allocation1] ss:$2 sm:$0xff] %v924
      %s936 = scalar_lea.vmem [#allocation1], 1
      %937 = vst [vmem:[%s936] ss:$2 sm:$0xff] %v925
      %s938 = scalar_lea.vmem [#allocation1], 16
      %939 = vst [vmem:[%s938] ss:$2 sm:$0xff] %v926
      %s940 = scalar_lea.vmem [#allocation1], 17
      %941 = vst [vmem:[%s940] ss:$2 sm:$0xff] %v927
      %v942 = vld.sshfl [vmem:[#allocation1] sm:$0xff pattern:$0x75316420]
      %v943 = vld.sshfl [vmem:[#allocation1 + $0x10] sm:$0xff pattern:$0x75316420]
      %v944 = vsel %vm370, %v942, 0
      %v946 = vsel %vm370, %v943, 0
      %948 = vmatpush.msra.mxu0 0.0
      %949 = vmatpush.msra.mxu0 0.0
      %950 = vmatpush.msra.mxu0 0.0
      %951 = vmatpush.msra.mxu0 0.0
      %952 = vmatpush.msra.mxu0 0.0
      %953 = vmatpush.msra.mxu0 0.0
      %954 = vmatpush.msra.mxu0 0.0
      %955 = vmatpush.msra.mxu0 0.0
      %956 = vmatpush.msra.mxu0 0.0
      %957 = vmatpush.msra.mxu0 0.0
      %958 = vmatpush.msra.mxu0 0.0
      %959 = vmatpush.msra.mxu0 0.0
      %960 = vmatpush.msra.mxu0 0.0
      %961 = vmatpush.msra.mxu0 %v930
      %962 = vmatpush.msra.mxu0 %v929
      %963 = vmatpush.msra.mxu0 %v928
      %964 = vmatmul.f32.gmra.mxu0 %v944
      %v965 = vpop.f32.mrf.mxu0
      %v966 = vadd.f32 0.0, %v965
      %967 = vmatmul.f32.gmra.mxu0 %v946
      %v968 = vpop.f32.mrf.mxu0
      %v969 = vadd.f32 0.0, %v968
      %970 = vdwg.mxu0
      %v971 = vadd.f32 %v921, %v966
      %v972 = vadd.f32 %v922, %v969
      %v973 = vld [vmem:[%s2] sm:$0x1]
      %v975 = vperm.slane %v973, 0
      %v977 = vadd.f32 %v971, %v975
      %v978 = vadd.f32 %v972, %v975
      %vm979 = vcmp.ge.f32.partialorder %v977, 0.0
      %vm980 = vcmp.ge.f32.partialorder %v978, 0.0
      %v981 = vmul.f32 %v977, 0.2
      %v982 = vmul.f32 %v978, 0.2
      %v983 = vsel %vm979, %v977, %v981
      %v984 = vsel %vm980, %v978, %v982
      %v987 = vrot.slane %v983, 4
      %v988 = vrot.slane %v984, 4
      %s991 = scalar_lea.vmem [#allocation2], 48
      %992 = vst.msk [vmem:[%s991] sm:$0xf] %vm559, %v983
      %993 = vst.msk [vmem:[%s991 + $0x8] sm:$0xf] %vm559, %v987
      %994 = vst.msk [vmem:[%s991 + $0x10] sm:$0xf] %vm559, %v984
      %995 = vst.msk [vmem:[%s991 + $0x18] sm:$0xf] %vm559, %v988
      %v996 = vld [vmem:[%s489] sm:$0xf]
      %v997 = vld [vmem:[%s489 + $0x8] sm:$0xf]
      %v998 = vld [vmem:[%s489 + $0x10] sm:$0xf]
      %v999 = vld [vmem:[%s489 + $0x18] sm:$0xf]
      %v1000 = vld [vmem:[%s1] sm:$0xff]
      %v1001 = vld [vmem:[%s1 + $0x8] sm:$0xff]
      %v1002 = vld [vmem:[%s1 + $0x10] sm:$0xff]
      %v1003 = vld [vmem:[%s438 + $0x1] sm:$0xf]
      %v1004 = vld [vmem:[%s438 + $0x9] sm:$0xf]
      %v1005 = vld [vmem:[%s438 + $0x11] sm:$0xf]
      %v1006 = vld [vmem:[%s438 + $0x19] sm:$0xf]
      %v1007 = vld [vmem:[%s353] sm:$0xff]
      %v1008 = vld [vmem:[%s353 + $0x8] sm:$0xff]
      %v1009 = vld [vmem:[%s353 + $0x10] sm:$0xff]
      %1014 = vst [vmem:[#allocation1] ss:$2 sm:$0xff] %v1003
      %s1015 = scalar_lea.vmem [#allocation1], 1
      %1016 = vst [vmem:[%s1015] ss:$2 sm:$0xff] %v1004
      %s1017 = scalar_lea.vmem [#allocation1], 16
      %1018 = vst [vmem:[%s1017] ss:$2 sm:$0xff] %v1005
      %s1019 = scalar_lea.vmem [#allocation1], 17
      %1020 = vst [vmem:[%s1019] ss:$2 sm:$0xff] %v1006
      %v1021 = vld.sshfl [vmem:[#allocation1] sm:$0xff pattern:$0x75316420]
      %v1022 = vld.sshfl [vmem:[#allocation1 + $0x10] sm:$0xff pattern:$0x75316420]
      %v1023 = vsel %vm370, %v1021, 0
      %v1025 = vsel %vm370, %v1022, 0
      %1027 = vmatpush.msra.mxu0 0.0
      %1028 = vmatpush.msra.mxu0 0.0
      %1029 = vmatpush.msra.mxu0 0.0
      %1030 = vmatpush.msra.mxu0 0.0
      %1031 = vmatpush.msra.mxu0 0.0
      %1032 = vmatpush.msra.mxu0 0.0
      %1033 = vmatpush.msra.mxu0 0.0
      %1034 = vmatpush.msra.mxu0 0.0
      %1035 = vmatpush.msra.mxu0 0.0
      %1036 = vmatpush.msra.mxu0 0.0
      %1037 = vmatpush.msra.mxu0 0.0
      %1038 = vmatpush.msra.mxu0 0.0
      %1039 = vmatpush.msra.mxu0 0.0
      %1040 = vmatpush.msra.mxu0 %v1009
      %1041 = vmatpush.msra.mxu0 %v1008
      %1042 = vmatpush.msra.mxu0 %v1007
      %1043 = vmatmul.f32.gmra.mxu0 %v1023
      %v1044 = vpop.f32.mrf.mxu0
      %v1045 = vadd.f32 0.0, %v1044
      %1046 = vmatmul.f32.gmra.mxu0 %v1025
      %v1047 = vpop.f32.mrf.mxu0
      %v1048 = vadd.f32 0.0, %v1047
      %1049 = vdwg.mxu0
      %1054 = vst [vmem:[#allocation1] ss:$2 sm:$0xff] %v996
      %s1055 = scalar_lea.vmem [#allocation1], 1
      %1056 = vst [vmem:[%s1055] ss:$2 sm:$0xff] %v997
      %s1057 = scalar_lea.vmem [#allocation1], 16
      %1058 = vst [vmem:[%s1057] ss:$2 sm:$0xff] %v998
      %s1059 = scalar_lea.vmem [#allocation1], 17
      %1060 = vst [vmem:[%s1059] ss:$2 sm:$0xff] %v999
      %v1061 = vld.sshfl [vmem:[#allocation1] sm:$0xff pattern:$0x75316420]
      %v1062 = vld.sshfl [vmem:[#allocation1 + $0x10] sm:$0xff pattern:$0x75316420]
      %v1063 = vsel %vm370, %v1061, 0
      %v1065 = vsel %vm370, %v1062, 0
      %1067 = vmatpush.msra.mxu0 0.0
      %1068 = vmatpush.msra.mxu0 0.0
      %1069 = vmatpush.msra.mxu0 0.0
      %1070 = vmatpush.msra.mxu0 0.0
      %1071 = vmatpush.msra.mxu0 0.0
      %1072 = vmatpush.msra.mxu0 0.0
      %1073 = vmatpush.msra.mxu0 0.0
      %1074 = vmatpush.msra.mxu0 0.0
      %1075 = vmatpush.msra.mxu0 0.0
      %1076 = vmatpush.msra.mxu0 0.0
      %1077 = vmatpush.msra.mxu0 0.0
      %1078 = vmatpush.msra.mxu0 0.0
      %1079 = vmatpush.msra.mxu0 0.0
      %1080 = vmatpush.msra.mxu0 %v1002
      %1081 = vmatpush.msra.mxu0 %v1001
      %1082 = vmatpush.msra.mxu0 %v1000
      %1083 = vmatmul.f32.gmra.mxu0 %v1063
      %v1084 = vpop.f32.mrf.mxu0
      %v1085 = vadd.f32 %v1045, %v1084
      %1086 = vmatmul.f32.gmra.mxu0 %v1065
      %v1087 = vpop.f32.mrf.mxu0
      %v1088 = vadd.f32 %v1048, %v1087
      %1089 = vdwg.mxu0
      %v1090 = vld [vmem:[%s923] sm:$0xf]
      %v1091 = vld [vmem:[%s923 + $0x8] sm:$0xf]
      %v1092 = vld [vmem:[%s923 + $0x10] sm:$0xf]
      %v1093 = vld [vmem:[%s923 + $0x18] sm:$0xf]
      %v1094 = vld [vmem:[%s443] sm:$0xff]
      %v1095 = vld [vmem:[%s443 + $0x8] sm:$0xff]
      %v1096 = vld [vmem:[%s443 + $0x10] sm:$0xff]
      %1101 = vst [vmem:[#allocation1] ss:$2 sm:$0xff] %v1090
      %s1102 = scalar_lea.vmem [#allocation1], 1
      %1103 = vst [vmem:[%s1102] ss:$2 sm:$0xff] %v1091
      %s1104 = scalar_lea.vmem [#allocation1], 16
      %1105 = vst [vmem:[%s1104] ss:$2 sm:$0xff] %v1092
      %s1106 = scalar_lea.vmem [#allocation1], 17
      %1107 = vst [vmem:[%s1106] ss:$2 sm:$0xff] %v1093
      %v1108 = vld.sshfl [vmem:[#allocation1] sm:$0xff pattern:$0x75316420]
      %v1109 = vld.sshfl [vmem:[#allocation1 + $0x10] sm:$0xff pattern:$0x75316420]
      %v1110 = vsel %vm370, %v1108, 0
      %v1112 = vsel %vm370, %v1109, 0
      %1114 = vmatpush.msra.mxu0 0.0
      %1115 = vmatpush.msra.mxu0 0.0
      %1116 = vmatpush.msra.mxu0 0.0
      %1117 = vmatpush.msra.mxu0 0.0
      %1118 = vmatpush.msra.mxu0 0.0
      %1119 = vmatpush.msra.mxu0 0.0
      %1120 = vmatpush.msra.mxu0 0.0
      %1121 = vmatpush.msra.mxu0 0.0
      %1122 = vmatpush.msra.mxu0 0.0
      %1123 = vmatpush.msra.mxu0 0.0
      %1124 = vmatpush.msra.mxu0 0.0
      %1125 = vmatpush.msra.mxu0 0.0
      %1126 = vmatpush.msra.mxu0 0.0
      %1127 = vmatpush.msra.mxu0 %v1096
      %1128 = vmatpush.msra.mxu0 %v1095
      %1129 = vmatpush.msra.mxu0 %v1094
      %1130 = vmatmul.f32.gmra.mxu0 %v1110
      %v1131 = vpop.f32.mrf.mxu0
      %v1132 = vadd.f32 0.0, %v1131
      %1133 = vmatmul.f32.gmra.mxu0 %v1112
      %v1134 = vpop.f32.mrf.mxu0
      %v1135 = vadd.f32 0.0, %v1134
      %1136 = vdwg.mxu0
      %v1137 = vadd.f32 %v1085, %v1132
      %v1138 = vadd.f32 %v1088, %v1135
      %v1139 = vld [vmem:[%s873 + $0x1] sm:$0xf]
      %v1140 = vld [vmem:[%s873 + $0x9] sm:$0xf]
      %v1141 = vld [vmem:[%s873 + $0x11] sm:$0xf]
      %v1142 = vld [vmem:[%s873 + $0x19] sm:$0xf]
      %v1143 = vld [vmem:[%s494] sm:$0xff]
      %v1144 = vld [vmem:[%s494 + $0x8] sm:$0xff]
      %v1145 = vld [vmem:[%s494 + $0x10] sm:$0xff]
      %1150 = vst [vmem:[#allocation1] ss:$2 sm:$0xff] %v1139
      %s1151 = scalar_lea.vmem [#allocation1], 1
      %1152 = vst [vmem:[%s1151] ss:$2 sm:$0xff] %v1140
      %s1153 = scalar_lea.vmem [#allocation1], 16
      %1154 = vst [vmem:[%s1153] ss:$2 sm:$0xff] %v1141
      %s1155 = scalar_lea.vmem [#allocation1], 17
      %1156 = vst [vmem:[%s1155] ss:$2 sm:$0xff] %v1142
      %v1157 = vld.sshfl [vmem:[#allocation1] sm:$0xff pattern:$0x75316420]
      %v1158 = vld.sshfl [vmem:[#allocation1 + $0x10] sm:$0xff pattern:$0x75316420]
      %v1159 = vsel %vm370, %v1157, 0
      %v1161 = vsel %vm370, %v1158, 0
      %1163 = vmatpush.msra.mxu0 0.0
      %1164 = vmatpush.msra.mxu0 0.0
      %1165 = vmatpush.msra.mxu0 0.0
      %1166 = vmatpush.msra.mxu0 0.0
      %1167 = vmatpush.msra.mxu0 0.0
      %1168 = vmatpush.msra.mxu0 0.0
      %1169 = vmatpush.msra.mxu0 0.0
      %1170 = vmatpush.msra.mxu0 0.0
      %1171 = vmatpush.msra.mxu0 0.0
      %1172 = vmatpush.msra.mxu0 0.0
      %1173 = vmatpush.msra.mxu0 0.0
      %1174 = vmatpush.msra.mxu0 0.0
      %1175 = vmatpush.msra.mxu0 0.0
      %1176 = vmatpush.msra.mxu0 %v1145
      %1177 = vmatpush.msra.mxu0 %v1144
      %1178 = vmatpush.msra.mxu0 %v1143
      %1179 = vmatmul.f32.gmra.mxu0 %v1159
      %v1180 = vpop.f32.mrf.mxu0
      %v1181 = vadd.f32 0.0, %v1180
      %1182 = vmatmul.f32.gmra.mxu0 %v1161
      %v1183 = vpop.f32.mrf.mxu0
      %v1184 = vadd.f32 0.0, %v1183
      %1185 = vdwg.mxu0
      %v1186 = vadd.f32 %v1137, %v1181
      %v1187 = vadd.f32 %v1138, %v1184
      %v1188 = vld [vmem:[%s2] sm:$0x1]
      %v1190 = vperm.slane %v1188, 0
      %v1192 = vadd.f32 %v1186, %v1190
      %v1193 = vadd.f32 %v1187, %v1190
      %vm1194 = vcmp.ge.f32.partialorder %v1192, 0.0
      %vm1195 = vcmp.ge.f32.partialorder %v1193, 0.0
      %v1196 = vmul.f32 %v1192, 0.2
      %v1197 = vmul.f32 %v1193, 0.2
      %v1198 = vsel %vm1194, %v1192, %v1196
      %v1199 = vsel %vm1195, %v1193, %v1197
      %v1202 = vrot.slane %v1198, 4
      %v1203 = vrot.slane %v1199, 4
      %s1206 = scalar_lea.vmem [#allocation2], 8
      %1207 = vst.msk [vmem:[%s1206 + $0x1] sm:$0xf] %vm559, %v1198
      %1208 = vst.msk [vmem:[%s1206 + $0x9] sm:$0xf] %vm559, %v1202
      %1209 = vst.msk [vmem:[%s1206 + $0x11] sm:$0xf] %vm559, %v1199
      %1210 = vst.msk [vmem:[%s1206 + $0x19] sm:$0xf] %vm559, %v1203
      %v1211 = vld [vmem:[#allocation2] sm:$0xf]
      %v1212 = vld [vmem:[#allocation2 + $0x8] sm:$0xf]
      %v1213 = vld [vmem:[#allocation2 + $0x10] sm:$0xf]
      %v1214 = vld [vmem:[#allocation2 + $0x18] sm:$0xf]
      %v1215 = vld [vmem:[%s3] sm:$0xff]
      %v1216 = vld [vmem:[%s3 + $0x8] sm:$0xff]
      %v1217 = vld [vmem:[%s3 + $0x10] sm:$0xff]
      %v1218 = vld [vmem:[%s3 + $0x18] sm:$0xff]
      %v1219 = vld [vmem:[%s3 + $0x20] sm:$0xff]
      %v1220 = vld [vmem:[%s3 + $0x28] sm:$0xff]
      %v1221 = vld [vmem:[%s3 + $0x30] sm:$0xff]
      %v1222 = vld [vmem:[%s3 + $0x38] sm:$0xff]
      %s1223 = scalar_lea.vmem [#allocation2], 40
      %v1224 = vld [vmem:[%s1223] sm:$0xf]
      %v1225 = vld [vmem:[%s1223 + $0x8] sm:$0xf]
      %v1226 = vld [vmem:[%s1223 + $0x10] sm:$0xf]
      %v1227 = vld [vmem:[%s1223 + $0x18] sm:$0xf]
      %s1228 = scalar_lea.vmem %s3, 64
      %v1229 = vld [vmem:[%s1228] sm:$0xff]
      %v1230 = vld [vmem:[%s1228 + $0x8] sm:$0xff]
      %v1231 = vld [vmem:[%s1228 + $0x10] sm:$0xff]
      %v1232 = vld [vmem:[%s1228 + $0x18] sm:$0xff]
      %v1233 = vld [vmem:[%s1228 + $0x20] sm:$0xff]
      %v1234 = vld [vmem:[%s1228 + $0x28] sm:$0xff]
      %v1235 = vld [vmem:[%s1228 + $0x30] sm:$0xff]
      %v1236 = vld [vmem:[%s1228 + $0x38] sm:$0xff]
      %1241 = vst [vmem:[#allocation1] ss:$2 sm:$0xff] %v1224
      %s1242 = scalar_lea.vmem [#allocation1], 1
      %1243 = vst [vmem:[%s1242] ss:$2 sm:$0xff] %v1225
      %s1244 = scalar_lea.vmem [#allocation1], 16
      %1245 = vst [vmem:[%s1244] ss:$2 sm:$0xff] %v1226
      %s1246 = scalar_lea.vmem [#allocation1], 17
      %1247 = vst [vmem:[%s1246] ss:$2 sm:$0xff] %v1227
      %v1248 = vld.sshfl [vmem:[#allocation1] sm:$0xff pattern:$0x75316420]
      %v1249 = vld.sshfl [vmem:[#allocation1 + $0x10] sm:$0xff pattern:$0x75316420]
      %vm1250 = vcmask 523264
      %v1251 = vsel %vm1250, %v1248, 0
      %v1253 = vsel %vm1250, %v1249, 0
      %1255 = vmatpush.msra.mxu0 0.0
      %1256 = vmatpush.msra.mxu0 0.0
      %1257 = vmatpush.msra.mxu0 0.0
      %1258 = vmatpush.msra.mxu0 0.0
      %1259 = vmatpush.msra.mxu0 0.0
      %1260 = vmatpush.msra.mxu0 0.0
      %1261 = vmatpush.msra.mxu0 0.0
      %1262 = vmatpush.msra.mxu0 0.0
      %1263 = vmatpush.msra.mxu0 %v1236
      %1264 = vmatpush.msra.mxu0 %v1235
      %1265 = vmatpush.msra.mxu0 %v1234
      %1266 = vmatpush.msra.mxu0 %v1233
      %1267 = vmatpush.msra.mxu0 %v1232
      %1268 = vmatpush.msra.mxu0 %v1231
      %1269 = vmatpush.msra.mxu0 %v1230
      %1270 = vmatpush.msra.mxu0 %v1229
      %1271 = vmatmul.f32.gmra.mxu0 %v1251
      %v1272 = vpop.f32.mrf.mxu0
      %v1273 = vadd.f32 0.0, %v1272
      %1274 = vmatmul.f32.gmra.mxu0 %v1253
      %v1275 = vpop.f32.mrf.mxu0
      %v1276 = vadd.f32 0.0, %v1275
      %1277 = vdwg.mxu0
      %1282 = vst [vmem:[#allocation1] ss:$2 sm:$0xff] %v1211
      %s1283 = scalar_lea.vmem [#allocation1], 1
      %1284 = vst [vmem:[%s1283] ss:$2 sm:$0xff] %v1212
      %s1285 = scalar_lea.vmem [#allocation1], 16
      %1286 = vst [vmem:[%s1285] ss:$2 sm:$0xff] %v1213
      %s1287 = scalar_lea.vmem [#allocation1], 17
      %1288 = vst [vmem:[%s1287] ss:$2 sm:$0xff] %v1214
      %v1289 = vld.sshfl [vmem:[#allocation1] sm:$0xff pattern:$0x75316420]
      %v1290 = vld.sshfl [vmem:[#allocation1 + $0x10] sm:$0xff pattern:$0x75316420]
      %v1291 = vsel %vm1250, %v1289, 0
      %v1293 = vsel %vm1250, %v1290, 0
      %1295 = vmatpush.msra.mxu0 0.0
      %1296 = vmatpush.msra.mxu0 0.0
      %1297 = vmatpush.msra.mxu0 0.0
      %1298 = vmatpush.msra.mxu0 0.0
      %1299 = vmatpush.msra.mxu0 0.0
      %1300 = vmatpush.msra.mxu0 0.0
      %1301 = vmatpush.msra.mxu0 0.0
      %1302 = vmatpush.msra.mxu0 0.0
      %1303 = vmatpush.msra.mxu0 %v1222
      %1304 = vmatpush.msra.mxu0 %v1221
      %1305 = vmatpush.msra.mxu0 %v1220
      %1306 = vmatpush.msra.mxu0 %v1219
      %1307 = vmatpush.msra.mxu0 %v1218
      %1308 = vmatpush.msra.mxu0 %v1217
      %1309 = vmatpush.msra.mxu0 %v1216
      %1310 = vmatpush.msra.mxu0 %v1215
      %1311 = vmatmul.f32.gmra.mxu0 %v1291
      %v1312 = vpop.f32.mrf.mxu0
      %v1313 = vadd.f32 %v1273, %v1312
      %1314 = vmatmul.f32.gmra.mxu0 %v1293
      %v1315 = vpop.f32.mrf.mxu0
      %v1316 = vadd.f32 %v1276, %v1315
      %1317 = vdwg.mxu0
      %v1318 = vld [vmem:[%s774] sm:$0xf]
      %v1319 = vld [vmem:[%s774 + $0x8] sm:$0xf]
      %v1320 = vld [vmem:[%s774 + $0x10] sm:$0xf]
      %v1321 = vld [vmem:[%s774 + $0x18] sm:$0xf]
      %s1322 = scalar_lea.vmem %s3, 128
      %v1323 = vld [vmem:[%s1322] sm:$0xff]
      %v1324 = vld [vmem:[%s1322 + $0x8] sm:$0xff]
      %v1325 = vld [vmem:[%s1322 + $0x10] sm:$0xff]
      %v1326 = vld [vmem:[%s1322 + $0x18] sm:$0xff]
      %v1327 = vld [vmem:[%s1322 + $0x20] sm:$0xff]
      %v1328 = vld [vmem:[%s1322 + $0x28] sm:$0xff]
      %v1329 = vld [vmem:[%s1322 + $0x30] sm:$0xff]
      %v1330 = vld [vmem:[%s1322 + $0x38] sm:$0xff]
      %1335 = vst [vmem:[#allocation1] ss:$2 sm:$0xff] %v1318
      %s1336 = scalar_lea.vmem [#allocation1], 1
      %1337 = vst [vmem:[%s1336] ss:$2 sm:$0xff] %v1319
      %s1338 = scalar_lea.vmem [#allocation1], 16
      %1339 = vst [vmem:[%s1338] ss:$2 sm:$0xff] %v1320
      %s1340 = scalar_lea.vmem [#allocation1], 17
      %1341 = vst [vmem:[%s1340] ss:$2 sm:$0xff] %v1321
      %v1342 = vld.sshfl [vmem:[#allocation1] sm:$0xff pattern:$0x75316420]
      %v1343 = vld.sshfl [vmem:[#allocation1 + $0x10] sm:$0xff pattern:$0x75316420]
      %v1344 = vsel %vm1250, %v1342, 0
      %v1346 = vsel %vm1250, %v1343, 0
      %1348 = vmatpush.msra.mxu0 0.0
      %1349 = vmatpush.msra.mxu0 0.0
      %1350 = vmatpush.msra.mxu0 0.0
      %1351 = vmatpush.msra.mxu0 0.0
      %1352 = vmatpush.msra.mxu0 0.0
      %1353 = vmatpush.msra.mxu0 0.0
      %1354 = vmatpush.msra.mxu0 0.0
      %1355 = vmatpush.msra.mxu0 0.0
      %1356 = vmatpush.msra.mxu0 %v1330
      %1357 = vmatpush.msra.mxu0 %v1329
      %1358 = vmatpush.msra.mxu0 %v1328
      %1359 = vmatpush.msra.mxu0 %v1327
      %1360 = vmatpush.msra.mxu0 %v1326
      %1361 = vmatpush.msra.mxu0 %v1325
      %1362 = vmatpush.msra.mxu0 %v1324
      %1363 = vmatpush.msra.mxu0 %v1323
      %1364 = vmatmul.f32.gmra.mxu0 %v1344
      %v1365 = vpop.f32.mrf.mxu0
      %v1366 = vadd.f32 0.0, %v1365
      %1367 = vmatmul.f32.gmra.mxu0 %v1346
      %v1368 = vpop.f32.mrf.mxu0
      %v1369 = vadd.f32 0.0, %v1368
      %1370 = vdwg.mxu0
      %v1371 = vadd.f32 %v1313, %v1366
      %v1372 = vadd.f32 %v1316, %v1369
      %v1373 = vld [vmem:[%s558] sm:$0xf]
      %v1374 = vld [vmem:[%s558 + $0x8] sm:$0xf]
      %v1375 = vld [vmem:[%s558 + $0x10] sm:$0xf]
      %v1376 = vld [vmem:[%s558 + $0x18] sm:$0xf]
      %s1377 = scalar_lea.vmem %s3, 192
      %v1378 = vld [vmem:[%s1377] sm:$0xff]
      %v1379 = vld [vmem:[%s1377 + $0x8] sm:$0xff]
      %v1380 = vld [vmem:[%s1377 + $0x10] sm:$0xff]
      %v1381 = vld [vmem:[%s1377 + $0x18] sm:$0xff]
      %v1382 = vld [vmem:[%s1377 + $0x20] sm:$0xff]
      %v1383 = vld [vmem:[%s1377 + $0x28] sm:$0xff]
      %v1384 = vld [vmem:[%s1377 + $0x30] sm:$0xff]
      %v1385 = vld [vmem:[%s1377 + $0x38] sm:$0xff]
      %1390 = vst [vmem:[#allocation1] ss:$2 sm:$0xff] %v1373
      %s1391 = scalar_lea.vmem [#allocation1], 1
      %1392 = vst [vmem:[%s1391] ss:$2 sm:$0xff] %v1374
      %s1393 = scalar_lea.vmem [#allocation1], 16
      %1394 = vst [vmem:[%s1393] ss:$2 sm:$0xff] %v1375
      %s1395 = scalar_lea.vmem [#allocation1], 17
      %1396 = vst [vmem:[%s1395] ss:$2 sm:$0xff] %v1376
      %v1397 = vld.sshfl [vmem:[#allocation1] sm:$0xff pattern:$0x75316420]
      %v1398 = vld.sshfl [vmem:[#allocation1 + $0x10] sm:$0xff pattern:$0x75316420]
      %v1399 = vsel %vm1250, %v1397, 0
      %v1401 = vsel %vm1250, %v1398, 0
      %1403 = vmatpush.msra.mxu0 0.0
      %1404 = vmatpush.msra.mxu0 0.0
      %1405 = vmatpush.msra.mxu0 0.0
      %1406 = vmatpush.msra.mxu0 0.0
      %1407 = vmatpush.msra.mxu0 0.0
      %1408 = vmatpush.msra.mxu0 0.0
      %1409 = vmatpush.msra.mxu0 0.0
      %1410 = vmatpush.msra.mxu0 0.0
      %1411 = vmatpush.msra.mxu0 %v1385
      %1412 = vmatpush.msra.mxu0 %v1384
      %1413 = vmatpush.msra.mxu0 %v1383
      %1414 = vmatpush.msra.mxu0 %v1382
      %1415 = vmatpush.msra.mxu0 %v1381
      %1416 = vmatpush.msra.mxu0 %v1380
      %1417 = vmatpush.msra.mxu0 %v1379
      %1418 = vmatpush.msra.mxu0 %v1378
      %1419 = vmatmul.f32.gmra.mxu0 %v1399
      %v1420 = vpop.f32.mrf.mxu0
      %v1421 = vadd.f32 0.0, %v1420
      %1422 = vmatmul.f32.gmra.mxu0 %v1401
      %v1423 = vpop.f32.mrf.mxu0
      %v1424 = vadd.f32 0.0, %v1423
      %1425 = vdwg.mxu0
      %v1426 = vadd.f32 %v1371, %v1421
      %v1427 = vadd.f32 %v1372, %v1424
      %v1428 = vld [vmem:[#allocation2 + $0x1] sm:$0xf]
      %v1429 = vld [vmem:[#allocation2 + $0x9] sm:$0xf]
      %v1430 = vld [vmem:[#allocation2 + $0x11] sm:$0xf]
      %v1431 = vld [vmem:[#allocation2 + $0x19] sm:$0xf]
      %s1432 = scalar_lea.vmem %s3, 256
      %v1433 = vld [vmem:[%s1432] sm:$0xff]
      %v1434 = vld [vmem:[%s1432 + $0x8] sm:$0xff]
      %v1435 = vld [vmem:[%s1432 + $0x10] sm:$0xff]
      %v1436 = vld [vmem:[%s1432 + $0x18] sm:$0xff]
      %v1437 = vld [vmem:[%s1432 + $0x20] sm:$0xff]
      %v1438 = vld [vmem:[%s1432 + $0x28] sm:$0xff]
      %v1439 = vld [vmem:[%s1432 + $0x30] sm:$0xff]
      %v1440 = vld [vmem:[%s1432 + $0x38] sm:$0xff]
      %1445 = vst [vmem:[#allocation1] ss:$2 sm:$0xff] %v1428
      %s1446 = scalar_lea.vmem [#allocation1], 1
      %1447 = vst [vmem:[%s1446] ss:$2 sm:$0xff] %v1429
      %s1448 = scalar_lea.vmem [#allocation1], 16
      %1449 = vst [vmem:[%s1448] ss:$2 sm:$0xff] %v1430
      %s1450 = scalar_lea.vmem [#allocation1], 17
      %1451 = vst [vmem:[%s1450] ss:$2 sm:$0xff] %v1431
      %v1452 = vld.sshfl [vmem:[#allocation1] sm:$0xff pattern:$0x75316420]
      %v1453 = vld.sshfl [vmem:[#allocation1 + $0x10] sm:$0xff pattern:$0x75316420]
      %v1454 = vsel %vm1250, %v1452, 0
      %v1456 = vsel %vm1250, %v1453, 0
      %1458 = vmatpush.msra.mxu0 0.0
      %1459 = vmatpush.msra.mxu0 0.0
      %1460 = vmatpush.msra.mxu0 0.0
      %1461 = vmatpush.msra.mxu0 0.0
      %1462 = vmatpush.msra.mxu0 0.0
      %1463 = vmatpush.msra.mxu0 0.0
      %1464 = vmatpush.msra.mxu0 0.0
      %1465 = vmatpush.msra.mxu0 0.0
      %1466 = vmatpush.msra.mxu0 %v1440
      %1467 = vmatpush.msra.mxu0 %v1439
      %1468 = vmatpush.msra.mxu0 %v1438
      %1469 = vmatpush.msra.mxu0 %v1437
      %1470 = vmatpush.msra.mxu0 %v1436
      %1471 = vmatpush.msra.mxu0 %v1435
      %1472 = vmatpush.msra.mxu0 %v1434
      %1473 = vmatpush.msra.mxu0 %v1433
      %1474 = vmatmul.f32.gmra.mxu0 %v1454
      %v1475 = vpop.f32.mrf.mxu0
      %v1476 = vadd.f32 0.0, %v1475
      %1477 = vmatmul.f32.gmra.mxu0 %v1456
      %v1478 = vpop.f32.mrf.mxu0
      %v1479 = vadd.f32 0.0, %v1478
      %1480 = vdwg.mxu0
      %v1481 = vadd.f32 %v1426, %v1476
      %v1482 = vadd.f32 %v1427, %v1479
      %v1483 = vld [vmem:[%s1223 + $0x1] sm:$0xf]
      %v1484 = vld [vmem:[%s1223 + $0x9] sm:$0xf]
      %v1485 = vld [vmem:[%s1223 + $0x11] sm:$0xf]
      %v1486 = vld [vmem:[%s1223 + $0x19] sm:$0xf]
      %s1487 = scalar_lea.vmem %s3, 320
      %v1488 = vld [vmem:[%s1487] sm:$0xff]
      %v1489 = vld [vmem:[%s1487 + $0x8] sm:$0xff]
      %v1490 = vld [vmem:[%s1487 + $0x10] sm:$0xff]
      %v1491 = vld [vmem:[%s1487 + $0x18] sm:$0xff]
      %v1492 = vld [vmem:[%s1487 + $0x20] sm:$0xff]
      %v1493 = vld [vmem:[%s1487 + $0x28] sm:$0xff]
      %v1494 = vld [vmem:[%s1487 + $0x30] sm:$0xff]
      %v1495 = vld [vmem:[%s1487 + $0x38] sm:$0xff]
      %1500 = vst [vmem:[#allocation1] ss:$2 sm:$0xff] %v1483
      %s1501 = scalar_lea.vmem [#allocation1], 1
      %1502 = vst [vmem:[%s1501] ss:$2 sm:$0xff] %v1484
      %s1503 = scalar_lea.vmem [#allocation1], 16
      %1504 = vst [vmem:[%s1503] ss:$2 sm:$0xff] %v1485
      %s1505 = scalar_lea.vmem [#allocation1], 17
      %1506 = vst [vmem:[%s1505] ss:$2 sm:$0xff] %v1486
      %v1507 = vld.sshfl [vmem:[#allocation1] sm:$0xff pattern:$0x75316420]
      %v1508 = vld.sshfl [vmem:[#allocation1 + $0x10] sm:$0xff pattern:$0x75316420]
      %v1509 = vsel %vm1250, %v1507, 0
      %v1511 = vsel %vm1250, %v1508, 0
      %1513 = vmatpush.msra.mxu0 0.0
      %1514 = vmatpush.msra.mxu0 0.0
      %1515 = vmatpush.msra.mxu0 0.0
      %1516 = vmatpush.msra.mxu0 0.0
      %1517 = vmatpush.msra.mxu0 0.0
      %1518 = vmatpush.msra.mxu0 0.0
      %1519 = vmatpush.msra.mxu0 0.0
      %1520 = vmatpush.msra.mxu0 0.0
      %1521 = vmatpush.msra.mxu0 %v1495
      %1522 = vmatpush.msra.mxu0 %v1494
      %1523 = vmatpush.msra.mxu0 %v1493
      %1524 = vmatpush.msra.mxu0 %v1492
      %1525 = vmatpush.msra.mxu0 %v1491
      %1526 = vmatpush.msra.mxu0 %v1490
      %1527 = vmatpush.msra.mxu0 %v1489
      %1528 = vmatpush.msra.mxu0 %v1488
      %1529 = vmatmul.f32.gmra.mxu0 %v1509
      %v1530 = vpop.f32.mrf.mxu0
      %v1531 = vadd.f32 0.0, %v1530
      %1532 = vmatmul.f32.gmra.mxu0 %v1511
      %v1533 = vpop.f32.mrf.mxu0
      %v1534 = vadd.f32 0.0, %v1533
      %1535 = vdwg.mxu0
      %v1536 = vadd.f32 %v1481, %v1531
      %v1537 = vadd.f32 %v1482, %v1534
      %v1538 = vld [vmem:[%s774 + $0x1] sm:$0xf]
      %v1539 = vld [vmem:[%s774 + $0x9] sm:$0xf]
      %v1540 = vld [vmem:[%s774 + $0x11] sm:$0xf]
      %v1541 = vld [vmem:[%s774 + $0x19] sm:$0xf]
      %s1542 = scalar_lea.vmem %s3, 384
      %v1543 = vld [vmem:[%s1542] sm:$0xff]
      %v1544 = vld [vmem:[%s1542 + $0x8] sm:$0xff]
      %v1545 = vld [vmem:[%s1542 + $0x10] sm:$0xff]
      %v1546 = vld [vmem:[%s1542 + $0x18] sm:$0xff]
      %v1547 = vld [vmem:[%s1542 + $0x20] sm:$0xff]
      %v1548 = vld [vmem:[%s1542 + $0x28] sm:$0xff]
      %v1549 = vld [vmem:[%s1542 + $0x30] sm:$0xff]
      %v1550 = vld [vmem:[%s1542 + $0x38] sm:$0xff]
      %1555 = vst [vmem:[#allocation1] ss:$2 sm:$0xff] %v1538
      %s1556 = scalar_lea.vmem [#allocation1], 1
      %1557 = vst [vmem:[%s1556] ss:$2 sm:$0xff] %v1539
      %s1558 = scalar_lea.vmem [#allocation1], 16
      %1559 = vst [vmem:[%s1558] ss:$2 sm:$0xff] %v1540
      %s1560 = scalar_lea.vmem [#allocation1], 17
      %1561 = vst [vmem:[%s1560] ss:$2 sm:$0xff] %v1541
      %v1562 = vld.sshfl [vmem:[#allocation1] sm:$0xff pattern:$0x75316420]
      %v1563 = vld.sshfl [vmem:[#allocation1 + $0x10] sm:$0xff pattern:$0x75316420]
      %v1564 = vsel %vm1250, %v1562, 0
      %v1566 = vsel %vm1250, %v1563, 0
      %1568 = vmatpush.msra.mxu0 0.0
      %1569 = vmatpush.msra.mxu0 0.0
      %1570 = vmatpush.msra.mxu0 0.0
      %1571 = vmatpush.msra.mxu0 0.0
      %1572 = vmatpush.msra.mxu0 0.0
      %1573 = vmatpush.msra.mxu0 0.0
      %1574 = vmatpush.msra.mxu0 0.0
      %1575 = vmatpush.msra.mxu0 0.0
      %1576 = vmatpush.msra.mxu0 %v1550
      %1577 = vmatpush.msra.mxu0 %v1549
      %1578 = vmatpush.msra.mxu0 %v1548
      %1579 = vmatpush.msra.mxu0 %v1547
      %1580 = vmatpush.msra.mxu0 %v1546
      %1581 = vmatpush.msra.mxu0 %v1545
      %1582 = vmatpush.msra.mxu0 %v1544
      %1583 = vmatpush.msra.mxu0 %v1543
      %1584 = vmatmul.f32.gmra.mxu0 %v1564
      %v1585 = vpop.f32.mrf.mxu0
      %v1586 = vadd.f32 0.0, %v1585
      %1587 = vmatmul.f32.gmra.mxu0 %v1566
      %v1588 = vpop.f32.mrf.mxu0
      %v1589 = vadd.f32 0.0, %v1588
      %1590 = vdwg.mxu0
      %v1591 = vadd.f32 %v1536, %v1586
      %v1592 = vadd.f32 %v1537, %v1589
      %v1593 = vld [vmem:[%s558 + $0x1] sm:$0xf]
      %v1594 = vld [vmem:[%s558 + $0x9] sm:$0xf]
      %v1595 = vld [vmem:[%s558 + $0x11] sm:$0xf]
      %v1596 = vld [vmem:[%s558 + $0x19] sm:$0xf]
      %s1597 = scalar_lea.vmem %s3, 448
      %v1598 = vld [vmem:[%s1597] sm:$0xff]
      %v1599 = vld [vmem:[%s1597 + $0x8] sm:$0xff]
      %v1600 = vld [vmem:[%s1597 + $0x10] sm:$0xff]
      %v1601 = vld [vmem:[%s1597 + $0x18] sm:$0xff]
      %v1602 = vld [vmem:[%s1597 + $0x20] sm:$0xff]
      %v1603 = vld [vmem:[%s1597 + $0x28] sm:$0xff]
      %v1604 = vld [vmem:[%s1597 + $0x30] sm:$0xff]
      %v1605 = vld [vmem:[%s1597 + $0x38] sm:$0xff]
      %1610 = vst [vmem:[#allocation1] ss:$2 sm:$0xff] %v1593
      %s1611 = scalar_lea.vmem [#allocation1], 1
      %1612 = vst [vmem:[%s1611] ss:$2 sm:$0xff] %v1594
      %s1613 = scalar_lea.vmem [#allocation1], 16
      %1614 = vst [vmem:[%s1613] ss:$2 sm:$0xff] %v1595
      %s1615 = scalar_lea.vmem [#allocation1], 17
      %1616 = vst [vmem:[%s1615] ss:$2 sm:$0xff] %v1596
      %v1617 = vld.sshfl [vmem:[#allocation1] sm:$0xff pattern:$0x75316420]
      %v1618 = vld.sshfl [vmem:[#allocation1 + $0x10] sm:$0xff pattern:$0x75316420]
      %v1619 = vsel %vm1250, %v1617, 0
      %v1621 = vsel %vm1250, %v1618, 0
      %1623 = vmatpush.msra.mxu0 0.0
      %1624 = vmatpush.msra.mxu0 0.0
      %1625 = vmatpush.msra.mxu0 0.0
      %1626 = vmatpush.msra.mxu0 0.0
      %1627 = vmatpush.msra.mxu0 0.0
      %1628 = vmatpush.msra.mxu0 0.0
      %1629 = vmatpush.msra.mxu0 0.0
      %1630 = vmatpush.msra.mxu0 0.0
      %1631 = vmatpush.msra.mxu0 %v1605
      %1632 = vmatpush.msra.mxu0 %v1604
      %1633 = vmatpush.msra.mxu0 %v1603
      %1634 = vmatpush.msra.mxu0 %v1602
      %1635 = vmatpush.msra.mxu0 %v1601
      %1636 = vmatpush.msra.mxu0 %v1600
      %1637 = vmatpush.msra.mxu0 %v1599
      %1638 = vmatpush.msra.mxu0 %v1598
      %1639 = vmatmul.f32.gmra.mxu0 %v1619
      %v1640 = vpop.f32.mrf.mxu0
      %v1641 = vadd.f32 0.0, %v1640
      %1642 = vmatmul.f32.gmra.mxu0 %v1621
      %v1643 = vpop.f32.mrf.mxu0
      %v1644 = vadd.f32 0.0, %v1643
      %1645 = vdwg.mxu0
      %v1646 = vadd.f32 %v1591, %v1641
      %v1647 = vadd.f32 %v1592, %v1644
      %v1648 = vld [vmem:[%s1206] sm:$0xf]
      %v1649 = vld [vmem:[%s1206 + $0x8] sm:$0xf]
      %v1650 = vld [vmem:[%s1206 + $0x10] sm:$0xf]
      %v1651 = vld [vmem:[%s1206 + $0x18] sm:$0xf]
      %s1652 = scalar_lea.vmem %s3, 512
      %v1653 = vld [vmem:[%s1652] sm:$0xff]
      %v1654 = vld [vmem:[%s1652 + $0x8] sm:$0xff]
      %v1655 = vld [vmem:[%s1652 + $0x10] sm:$0xff]
      %v1656 = vld [vmem:[%s1652 + $0x18] sm:$0xff]
      %v1657 = vld [vmem:[%s1652 + $0x20] sm:$0xff]
      %v1658 = vld [vmem:[%s1652 + $0x28] sm:$0xff]
      %v1659 = vld [vmem:[%s1652 + $0x30] sm:$0xff]
      %v1660 = vld [vmem:[%s1652 + $0x38] sm:$0xff]
      %1665 = vst [vmem:[#allocation1] ss:$2 sm:$0xff] %v1648
      %s1666 = scalar_lea.vmem [#allocation1], 1
      %1667 = vst [vmem:[%s1666] ss:$2 sm:$0xff] %v1649
      %s1668 = scalar_lea.vmem [#allocation1], 16
      %1669 = vst [vmem:[%s1668] ss:$2 sm:$0xff] %v1650
      %s1670 = scalar_lea.vmem [#allocation1], 17
      %1671 = vst [vmem:[%s1670] ss:$2 sm:$0xff] %v1651
      %v1672 = vld.sshfl [vmem:[#allocation1] sm:$0xff pattern:$0x75316420]
      %v1673 = vld.sshfl [vmem:[#allocation1 + $0x10] sm:$0xff pattern:$0x75316420]
      %v1674 = vsel %vm1250, %v1672, 0
      %v1676 = vsel %vm1250, %v1673, 0
      %1678 = vmatpush.msra.mxu0 0.0
      %1679 = vmatpush.msra.mxu0 0.0
      %1680 = vmatpush.msra.mxu0 0.0
      %1681 = vmatpush.msra.mxu0 0.0
      %1682 = vmatpush.msra.mxu0 0.0
      %1683 = vmatpush.msra.mxu0 0.0
      %1684 = vmatpush.msra.mxu0 0.0
      %1685 = vmatpush.msra.mxu0 0.0
      %1686 = vmatpush.msra.mxu0 %v1660
      %1687 = vmatpush.msra.mxu0 %v1659
      %1688 = vmatpush.msra.mxu0 %v1658
      %1689 = vmatpush.msra.mxu0 %v1657
      %1690 = vmatpush.msra.mxu0 %v1656
      %1691 = vmatpush.msra.mxu0 %v1655
      %1692 = vmatpush.msra.mxu0 %v1654
      %1693 = vmatpush.msra.mxu0 %v1653
      %1694 = vmatmul.f32.gmra.mxu0 %v1674
      %v1695 = vpop.f32.mrf.mxu0
      %v1696 = vadd.f32 0.0, %v1695
      %1697 = vmatmul.f32.gmra.mxu0 %v1676
      %v1698 = vpop.f32.mrf.mxu0
      %v1699 = vadd.f32 0.0, %v1698
      %1700 = vdwg.mxu0
      %v1701 = vadd.f32 %v1646, %v1696
      %v1702 = vadd.f32 %v1647, %v1699
      %v1703 = vld [vmem:[%s991] sm:$0xf]
      %v1704 = vld [vmem:[%s991 + $0x8] sm:$0xf]
      %v1705 = vld [vmem:[%s991 + $0x10] sm:$0xf]
      %v1706 = vld [vmem:[%s991 + $0x18] sm:$0xf]
      %s1707 = scalar_lea.vmem %s3, 576
      %v1708 = vld [vmem:[%s1707] sm:$0xff]
      %v1709 = vld [vmem:[%s1707 + $0x8] sm:$0xff]
      %v1710 = vld [vmem:[%s1707 + $0x10] sm:$0xff]
      %v1711 = vld [vmem:[%s1707 + $0x18] sm:$0xff]
      %v1712 = vld [vmem:[%s1707 + $0x20] sm:$0xff]
      %v1713 = vld [vmem:[%s1707 + $0x28] sm:$0xff]
      %v1714 = vld [vmem:[%s1707 + $0x30] sm:$0xff]
      %v1715 = vld [vmem:[%s1707 + $0x38] sm:$0xff]
      %1720 = vst [vmem:[#allocation1] ss:$2 sm:$0xff] %v1703
      %s1721 = scalar_lea.vmem [#allocation1], 1
      %1722 = vst [vmem:[%s1721] ss:$2 sm:$0xff] %v1704
      %s1723 = scalar_lea.vmem [#allocation1], 16
      %1724 = vst [vmem:[%s1723] ss:$2 sm:$0xff] %v1705
      %s1725 = scalar_lea.vmem [#allocation1], 17
      %1726 = vst [vmem:[%s1725] ss:$2 sm:$0xff] %v1706
      %v1727 = vld.sshfl [vmem:[#allocation1] sm:$0xff pattern:$0x75316420]
      %v1728 = vld.sshfl [vmem:[#allocation1 + $0x10] sm:$0xff pattern:$0x75316420]
      %v1729 = vsel %vm1250, %v1727, 0
      %v1731 = vsel %vm1250, %v1728, 0
      %1733 = vmatpush.msra.mxu0 0.0
      %1734 = vmatpush.msra.mxu0 0.0
      %1735 = vmatpush.msra.mxu0 0.0
      %1736 = vmatpush.msra.mxu0 0.0
      %1737 = vmatpush.msra.mxu0 0.0
      %1738 = vmatpush.msra.mxu0 0.0
      %1739 = vmatpush.msra.mxu0 0.0
      %1740 = vmatpush.msra.mxu0 0.0
      %1741 = vmatpush.msra.mxu0 %v1715
      %1742 = vmatpush.msra.mxu0 %v1714
      %1743 = vmatpush.msra.mxu0 %v1713
      %1744 = vmatpush.msra.mxu0 %v1712
      %1745 = vmatpush.msra.mxu0 %v1711
      %1746 = vmatpush.msra.mxu0 %v1710
      %1747 = vmatpush.msra.mxu0 %v1709
      %1748 = vmatpush.msra.mxu0 %v1708
      %1749 = vmatmul.f32.gmra.mxu0 %v1729
      %v1750 = vpop.f32.mrf.mxu0
      %v1751 = vadd.f32 0.0, %v1750
      %1752 = vmatmul.f32.gmra.mxu0 %v1731
      %v1753 = vpop.f32.mrf.mxu0
      %v1754 = vadd.f32 0.0, %v1753
      %1755 = vdwg.mxu0
      %v1756 = vadd.f32 %v1701, %v1751
      %v1757 = vadd.f32 %v1702, %v1754
      %s1758 = scalar_lea.vmem [#allocation2], 88
      %v1759 = vld [vmem:[%s1758] sm:$0xf]
      %v1760 = vld [vmem:[%s1758 + $0x8] sm:$0xf]
      %v1761 = vld [vmem:[%s1758 + $0x10] sm:$0xf]
      %v1762 = vld [vmem:[%s1758 + $0x18] sm:$0xf]
      %s1763 = scalar_lea.vmem %s3, 640
      %v1764 = vld [vmem:[%s1763] sm:$0xff]
      %v1765 = vld [vmem:[%s1763 + $0x8] sm:$0xff]
      %v1766 = vld [vmem:[%s1763 + $0x10] sm:$0xff]
      %v1767 = vld [vmem:[%s1763 + $0x18] sm:$0xff]
      %v1768 = vld [vmem:[%s1763 + $0x20] sm:$0xff]
      %v1769 = vld [vmem:[%s1763 + $0x28] sm:$0xff]
      %v1770 = vld [vmem:[%s1763 + $0x30] sm:$0xff]
      %v1771 = vld [vmem:[%s1763 + $0x38] sm:$0xff]
      %1776 = vst [vmem:[#allocation1] ss:$2 sm:$0xff] %v1759
      %s1777 = scalar_lea.vmem [#allocation1], 1
      %1778 = vst [vmem:[%s1777] ss:$2 sm:$0xff] %v1760
      %s1779 = scalar_lea.vmem [#allocation1], 16
      %1780 = vst [vmem:[%s1779] ss:$2 sm:$0xff] %v1761
      %s1781 = scalar_lea.vmem [#allocation1], 17
      %1782 = vst [vmem:[%s1781] ss:$2 sm:$0xff] %v1762
      %v1783 = vld.sshfl [vmem:[#allocation1] sm:$0xff pattern:$0x75316420]
      %v1784 = vld.sshfl [vmem:[#allocation1 + $0x10] sm:$0xff pattern:$0x75316420]
      %v1785 = vsel %vm1250, %v1783, 0
      %v1787 = vsel %vm1250, %v1784, 0
      %1789 = vmatpush.msra.mxu0 0.0
      %1790 = vmatpush.msra.mxu0 0.0
      %1791 = vmatpush.msra.mxu0 0.0
      %1792 = vmatpush.msra.mxu0 0.0
      %1793 = vmatpush.msra.mxu0 0.0
      %1794 = vmatpush.msra.mxu0 0.0
      %1795 = vmatpush.msra.mxu0 0.0
      %1796 = vmatpush.msra.mxu0 0.0
      %1797 = vmatpush.msra.mxu0 %v1771
      %1798 = vmatpush.msra.mxu0 %v1770
      %1799 = vmatpush.msra.mxu0 %v1769
      %1800 = vmatpush.msra.mxu0 %v1768
      %1801 = vmatpush.msra.mxu0 %v1767
      %1802 = vmatpush.msra.mxu0 %v1766
      %1803 = vmatpush.msra.mxu0 %v1765
      %1804 = vmatpush.msra.mxu0 %v1764
      %1805 = vmatmul.f32.gmra.mxu0 %v1785
      %v1806 = vpop.f32.mrf.mxu0
      %v1807 = vadd.f32 0.0, %v1806
      %1808 = vmatmul.f32.gmra.mxu0 %v1787
      %v1809 = vpop.f32.mrf.mxu0
      %v1810 = vadd.f32 0.0, %v1809
      %1811 = vdwg.mxu0
      %v1812 = vadd.f32 %v1756, %v1807
      %v1813 = vadd.f32 %v1757, %v1810
      %s1814 = scalar_lea.vmem [#allocation2], 128
      %v1815 = vld [vmem:[%s1814] sm:$0xf]
      %v1816 = vld [vmem:[%s1814 + $0x8] sm:$0xf]
      %v1817 = vld [vmem:[%s1814 + $0x10] sm:$0xf]
      %v1818 = vld [vmem:[%s1814 + $0x18] sm:$0xf]
      %s1819 = scalar_lea.vmem %s3, 704
      %v1820 = vld [vmem:[%s1819] sm:$0xff]
      %v1821 = vld [vmem:[%s1819 + $0x8] sm:$0xff]
      %v1822 = vld [vmem:[%s1819 + $0x10] sm:$0xff]
      %v1823 = vld [vmem:[%s1819 + $0x18] sm:$0xff]
      %v1824 = vld [vmem:[%s1819 + $0x20] sm:$0xff]
      %v1825 = vld [vmem:[%s1819 + $0x28] sm:$0xff]
      %v1826 = vld [vmem:[%s1819 + $0x30] sm:$0xff]
      %v1827 = vld [vmem:[%s1819 + $0x38] sm:$0xff]
      %1832 = vst [vmem:[#allocation1] ss:$2 sm:$0xff] %v1815
      %s1833 = scalar_lea.vmem [#allocation1], 1
      %1834 = vst [vmem:[%s1833] ss:$2 sm:$0xff] %v1816
      %s1835 = scalar_lea.vmem [#allocation1], 16
      %1836 = vst [vmem:[%s1835] ss:$2 sm:$0xff] %v1817
      %s1837 = scalar_lea.vmem [#allocation1], 17
      %1838 = vst [vmem:[%s1837] ss:$2 sm:$0xff] %v1818
      %v1839 = vld.sshfl [vmem:[#allocation1] sm:$0xff pattern:$0x75316420]
      %v1840 = vld.sshfl [vmem:[#allocation1 + $0x10] sm:$0xff pattern:$0x75316420]
      %v1841 = vsel %vm1250, %v1839, 0
      %v1843 = vsel %vm1250, %v1840, 0
      %1845 = vmatpush.msra.mxu0 0.0
      %1846 = vmatpush.msra.mxu0 0.0
      %1847 = vmatpush.msra.mxu0 0.0
      %1848 = vmatpush.msra.mxu0 0.0
      %1849 = vmatpush.msra.mxu0 0.0
      %1850 = vmatpush.msra.mxu0 0.0
      %1851 = vmatpush.msra.mxu0 0.0
      %1852 = vmatpush.msra.mxu0 0.0
      %1853 = vmatpush.msra.mxu0 %v1827
      %1854 = vmatpush.msra.mxu0 %v1826
      %1855 = vmatpush.msra.mxu0 %v1825
      %1856 = vmatpush.msra.mxu0 %v1824
      %1857 = vmatpush.msra.mxu0 %v1823
      %1858 = vmatpush.msra.mxu0 %v1822
      %1859 = vmatpush.msra.mxu0 %v1821
      %1860 = vmatpush.msra.mxu0 %v1820
      %1861 = vmatmul.f32.gmra.mxu0 %v1841
      %v1862 = vpop.f32.mrf.mxu0
      %v1863 = vadd.f32 0.0, %v1862
      %1864 = vmatmul.f32.gmra.mxu0 %v1843
      %v1865 = vpop.f32.mrf.mxu0
      %v1866 = vadd.f32 0.0, %v1865
      %1867 = vdwg.mxu0
      %v1868 = vadd.f32 %v1812, %v1863
      %v1869 = vadd.f32 %v1813, %v1866
      %v1870 = vld [vmem:[%s1206 + $0x1] sm:$0xf]
      %v1871 = vld [vmem:[%s1206 + $0x9] sm:$0xf]
      %v1872 = vld [vmem:[%s1206 + $0x11] sm:$0xf]
      %v1873 = vld [vmem:[%s1206 + $0x19] sm:$0xf]
      %s1874 = scalar_lea.vmem %s3, 768
      %v1875 = vld [vmem:[%s1874] sm:$0xff]
      %v1876 = vld [vmem:[%s1874 + $0x8] sm:$0xff]
      %v1877 = vld [vmem:[%s1874 + $0x10] sm:$0xff]
      %v1878 = vld [vmem:[%s1874 + $0x18] sm:$0xff]
      %v1879 = vld [vmem:[%s1874 + $0x20] sm:$0xff]
      %v1880 = vld [vmem:[%s1874 + $0x28] sm:$0xff]
      %v1881 = vld [vmem:[%s1874 + $0x30] sm:$0xff]
      %v1882 = vld [vmem:[%s1874 + $0x38] sm:$0xff]
      %1887 = vst [vmem:[#allocation1] ss:$2 sm:$0xff] %v1870
      %s1888 = scalar_lea.vmem [#allocation1], 1
      %1889 = vst [vmem:[%s1888] ss:$2 sm:$0xff] %v1871
      %s1890 = scalar_lea.vmem [#allocation1], 16
      %1891 = vst [vmem:[%s1890] ss:$2 sm:$0xff] %v1872
      %s1892 = scalar_lea.vmem [#allocation1], 17
      %1893 = vst [vmem:[%s1892] ss:$2 sm:$0xff] %v1873
      %v1894 = vld.sshfl [vmem:[#allocation1] sm:$0xff pattern:$0x75316420]
      %v1895 = vld.sshfl [vmem:[#allocation1 + $0x10] sm:$0xff pattern:$0x75316420]
      %v1896 = vsel %vm1250, %v1894, 0
      %v1898 = vsel %vm1250, %v1895, 0
      %1900 = vmatpush.msra.mxu0 0.0
      %1901 = vmatpush.msra.mxu0 0.0
      %1902 = vmatpush.msra.mxu0 0.0
      %1903 = vmatpush.msra.mxu0 0.0
      %1904 = vmatpush.msra.mxu0 0.0
      %1905 = vmatpush.msra.mxu0 0.0
      %1906 = vmatpush.msra.mxu0 0.0
      %1907 = vmatpush.msra.mxu0 0.0
      %1908 = vmatpush.msra.mxu0 %v1882
      %1909 = vmatpush.msra.mxu0 %v1881
      %1910 = vmatpush.msra.mxu0 %v1880
      %1911 = vmatpush.msra.mxu0 %v1879
      %1912 = vmatpush.msra.mxu0 %v1878
      %1913 = vmatpush.msra.mxu0 %v1877
      %1914 = vmatpush.msra.mxu0 %v1876
      %1915 = vmatpush.msra.mxu0 %v1875
      %1916 = vmatmul.f32.gmra.mxu0 %v1896
      %v1917 = vpop.f32.mrf.mxu0
      %v1918 = vadd.f32 0.0, %v1917
      %1919 = vmatmul.f32.gmra.mxu0 %v1898
      %v1920 = vpop.f32.mrf.mxu0
      %v1921 = vadd.f32 0.0, %v1920
      %1922 = vdwg.mxu0
      %v1923 = vadd.f32 %v1868, %v1918
      %v1924 = vadd.f32 %v1869, %v1921
      %v1925 = vld [vmem:[%s991 + $0x1] sm:$0xf]
      %v1926 = vld [vmem:[%s991 + $0x9] sm:$0xf]
      %v1927 = vld [vmem:[%s991 + $0x11] sm:$0xf]
      %v1928 = vld [vmem:[%s991 + $0x19] sm:$0xf]
      %s1929 = scalar_lea.vmem %s3, 832
      %v1930 = vld [vmem:[%s1929] sm:$0xff]
      %v1931 = vld [vmem:[%s1929 + $0x8] sm:$0xff]
      %v1932 = vld [vmem:[%s1929 + $0x10] sm:$0xff]
      %v1933 = vld [vmem:[%s1929 + $0x18] sm:$0xff]
      %v1934 = vld [vmem:[%s1929 + $0x20] sm:$0xff]
      %v1935 = vld [vmem:[%s1929 + $0x28] sm:$0xff]
      %v1936 = vld [vmem:[%s1929 + $0x30] sm:$0xff]
      %v1937 = vld [vmem:[%s1929 + $0x38] sm:$0xff]
      %1942 = vst [vmem:[#allocation1] ss:$2 sm:$0xff] %v1925
      %s1943 = scalar_lea.vmem [#allocation1], 1
      %1944 = vst [vmem:[%s1943] ss:$2 sm:$0xff] %v1926
      %s1945 = scalar_lea.vmem [#allocation1], 16
      %1946 = vst [vmem:[%s1945] ss:$2 sm:$0xff] %v1927
      %s1947 = scalar_lea.vmem [#allocation1], 17
      %1948 = vst [vmem:[%s1947] ss:$2 sm:$0xff] %v1928
      %v1949 = vld.sshfl [vmem:[#allocation1] sm:$0xff pattern:$0x75316420]
      %v1950 = vld.sshfl [vmem:[#allocation1 + $0x10] sm:$0xff pattern:$0x75316420]
      %v1951 = vsel %vm1250, %v1949, 0
      %v1953 = vsel %vm1250, %v1950, 0
      %1955 = vmatpush.msra.mxu0 0.0
      %1956 = vmatpush.msra.mxu0 0.0
      %1957 = vmatpush.msra.mxu0 0.0
      %1958 = vmatpush.msra.mxu0 0.0
      %1959 = vmatpush.msra.mxu0 0.0
      %1960 = vmatpush.msra.mxu0 0.0
      %1961 = vmatpush.msra.mxu0 0.0
      %1962 = vmatpush.msra.mxu0 0.0
      %1963 = vmatpush.msra.mxu0 %v1937
      %1964 = vmatpush.msra.mxu0 %v1936
      %1965 = vmatpush.msra.mxu0 %v1935
      %1966 = vmatpush.msra.mxu0 %v1934
      %1967 = vmatpush.msra.mxu0 %v1933
      %1968 = vmatpush.msra.mxu0 %v1932
      %1969 = vmatpush.msra.mxu0 %v1931
      %1970 = vmatpush.msra.mxu0 %v1930
      %1971 = vmatmul.f32.gmra.mxu0 %v1951
      %v1972 = vpop.f32.mrf.mxu0
      %v1973 = vadd.f32 0.0, %v1972
      %1974 = vmatmul.f32.gmra.mxu0 %v1953
      %v1975 = vpop.f32.mrf.mxu0
      %v1976 = vadd.f32 0.0, %v1975
      %1977 = vdwg.mxu0
      %v1978 = vadd.f32 %v1923, %v1973
      %v1979 = vadd.f32 %v1924, %v1976
      %v1980 = vld [vmem:[%s1758 + $0x1] sm:$0xf]
      %v1981 = vld [vmem:[%s1758 + $0x9] sm:$0xf]
      %v1982 = vld [vmem:[%s1758 + $0x11] sm:$0xf]
      %v1983 = vld [vmem:[%s1758 + $0x19] sm:$0xf]
      %s1984 = scalar_lea.vmem %s3, 896
      %v1985 = vld [vmem:[%s1984] sm:$0xff]
      %v1986 = vld [vmem:[%s1984 + $0x8] sm:$0xff]
      %v1987 = vld [vmem:[%s1984 + $0x10] sm:$0xff]
      %v1988 = vld [vmem:[%s1984 + $0x18] sm:$0xff]
      %v1989 = vld [vmem:[%s1984 + $0x20] sm:$0xff]
      %v1990 = vld [vmem:[%s1984 + $0x28] sm:$0xff]
      %v1991 = vld [vmem:[%s1984 + $0x30] sm:$0xff]
      %v1992 = vld [vmem:[%s1984 + $0x38] sm:$0xff]
      %1997 = vst [vmem:[#allocation1] ss:$2 sm:$0xff] %v1980
      %s1998 = scalar_lea.vmem [#allocation1], 1
      %1999 = vst [vmem:[%s1998] ss:$2 sm:$0xff] %v1981
      %s2000 = scalar_lea.vmem [#allocation1], 16
      %2001 = vst [vmem:[%s2000] ss:$2 sm:$0xff] %v1982
      %s2002 = scalar_lea.vmem [#allocation1], 17
      %2003 = vst [vmem:[%s2002] ss:$2 sm:$0xff] %v1983
      %v2004 = vld.sshfl [vmem:[#allocation1] sm:$0xff pattern:$0x75316420]
      %v2005 = vld.sshfl [vmem:[#allocation1 + $0x10] sm:$0xff pattern:$0x75316420]
      %v2006 = vsel %vm1250, %v2004, 0
      %v2008 = vsel %vm1250, %v2005, 0
      %2010 = vmatpush.msra.mxu0 0.0
      %2011 = vmatpush.msra.mxu0 0.0
      %2012 = vmatpush.msra.mxu0 0.0
      %2013 = vmatpush.msra.mxu0 0.0
      %2014 = vmatpush.msra.mxu0 0.0
      %2015 = vmatpush.msra.mxu0 0.0
      %2016 = vmatpush.msra.mxu0 0.0
      %2017 = vmatpush.msra.mxu0 0.0
      %2018 = vmatpush.msra.mxu0 %v1992
      %2019 = vmatpush.msra.mxu0 %v1991
      %2020 = vmatpush.msra.mxu0 %v1990
      %2021 = vmatpush.msra.mxu0 %v1989
      %2022 = vmatpush.msra.mxu0 %v1988
      %2023 = vmatpush.msra.mxu0 %v1987
      %2024 = vmatpush.msra.mxu0 %v1986
      %2025 = vmatpush.msra.mxu0 %v1985
      %2026 = vmatmul.f32.gmra.mxu0 %v2006
      %v2027 = vpop.f32.mrf.mxu0
      %v2028 = vadd.f32 0.0, %v2027
      %2029 = vmatmul.f32.gmra.mxu0 %v2008
      %v2030 = vpop.f32.mrf.mxu0
      %v2031 = vadd.f32 0.0, %v2030
      %2032 = vdwg.mxu0
      %v2033 = vadd.f32 %v1978, %v2028
      %v2034 = vadd.f32 %v1979, %v2031
      %v2035 = vld [vmem:[%s1814 + $0x1] sm:$0xf]
      %v2036 = vld [vmem:[%s1814 + $0x9] sm:$0xf]
      %v2037 = vld [vmem:[%s1814 + $0x11] sm:$0xf]
      %v2038 = vld [vmem:[%s1814 + $0x19] sm:$0xf]
      %s2039 = scalar_lea.vmem %s3, 960
      %v2040 = vld [vmem:[%s2039] sm:$0xff]
      %v2041 = vld [vmem:[%s2039 + $0x8] sm:$0xff]
      %v2042 = vld [vmem:[%s2039 + $0x10] sm:$0xff]
      %v2043 = vld [vmem:[%s2039 + $0x18] sm:$0xff]
      %v2044 = vld [vmem:[%s2039 + $0x20] sm:$0xff]
      %v2045 = vld [vmem:[%s2039 + $0x28] sm:$0xff]
      %v2046 = vld [vmem:[%s2039 + $0x30] sm:$0xff]
      %v2047 = vld [vmem:[%s2039 + $0x38] sm:$0xff]
      %2052 = vst [vmem:[#allocation1] ss:$2 sm:$0xff] %v2035
      %s2053 = scalar_lea.vmem [#allocation1], 1
      %2054 = vst [vmem:[%s2053] ss:$2 sm:$0xff] %v2036
      %s2055 = scalar_lea.vmem [#allocation1], 16
      %2056 = vst [vmem:[%s2055] ss:$2 sm:$0xff] %v2037
      %s2057 = scalar_lea.vmem [#allocation1], 17
      %2058 = vst [vmem:[%s2057] ss:$2 sm:$0xff] %v2038
      %v2059 = vld.sshfl [vmem:[#allocation1] sm:$0xff pattern:$0x75316420]
      %v2060 = vld.sshfl [vmem:[#allocation1 + $0x10] sm:$0xff pattern:$0x75316420]
      %v2061 = vsel %vm1250, %v2059, 0
      %v2063 = vsel %vm1250, %v2060, 0
      %2065 = vmatpush.msra.mxu0 0.0
      %2066 = vmatpush.msra.mxu0 0.0
      %2067 = vmatpush.msra.mxu0 0.0
      %2068 = vmatpush.msra.mxu0 0.0
      %2069 = vmatpush.msra.mxu0 0.0
      %2070 = vmatpush.msra.mxu0 0.0
      %2071 = vmatpush.msra.mxu0 0.0
      %2072 = vmatpush.msra.mxu0 0.0
      %2073 = vmatpush.msra.mxu0 %v2047
      %2074 = vmatpush.msra.mxu0 %v2046
      %2075 = vmatpush.msra.mxu0 %v2045
      %2076 = vmatpush.msra.mxu0 %v2044
      %2077 = vmatpush.msra.mxu0 %v2043
      %2078 = vmatpush.msra.mxu0 %v2042
      %2079 = vmatpush.msra.mxu0 %v2041
      %2080 = vmatpush.msra.mxu0 %v2040
      %2081 = vmatmul.f32.gmra.mxu0 %v2061
      %v2082 = vpop.f32.mrf.mxu0
      %v2083 = vadd.f32 0.0, %v2082
      %2084 = vmatmul.f32.gmra.mxu0 %v2063
      %v2085 = vpop.f32.mrf.mxu0
      %v2086 = vadd.f32 0.0, %v2085
      %2087 = vdwg.mxu0
      %v2088 = vadd.f32 %v2033, %v2083
      %v2089 = vadd.f32 %v2034, %v2086
      %v2090 = vld [vmem:[%s4] sm:$0x1]
      %v2092 = vperm.slane %v2090, 0
      %v2094 = vadd.f32 %v2088, %v2092
      %v2095 = vadd.f32 %v2089, %v2092
      %vm2096 = vcmp.ge.f32.partialorder %v2094, 0.0
      %vm2097 = vcmp.ge.f32.partialorder %v2095, 0.0
      %v2098 = vmul.f32 %v2094, 0.2
      %v2099 = vmul.f32 %v2095, 0.2
      %v2100 = vsel %vm2096, %v2094, %v2098
      %v2101 = vsel %vm2097, %v2095, %v2099
      %v2104 = vrot.slane %v2100, 4
      %v2105 = vrot.slane %v2101, 4
      %s2108 = scalar_lea.vmem [#allocation3], 8
      %2109 = vst [vmem:[%s2108 + $0x1] sm:$0xf] %v2100
      %2110 = vst [vmem:[%s2108 + $0x9] sm:$0xf] %v2104
      %2111 = vst [vmem:[%s2108 + $0x11] sm:$0xf] %v2101
      %2112 = vst [vmem:[%s2108 + $0x19] sm:$0xf] %v2105
      %v2113 = vld [vmem:[#allocation3] sm:$0x7]
      %v2114 = vld [vmem:[#allocation3 + $0x8] sm:$0x7]
      %v2115 = vld [vmem:[#allocation3 + $0x10] sm:$0x7]
      %v2119 = vrot.slane %v2113, 1
      %v2120 = vrot.slane %v2113, 2
      %v2121 = vrot.slane %v2114, 1
      %v2122 = vrot.slane %v2114, 2
      %v2123 = vrot.slane %v2115, 1
      %v2124 = vrot.slane %v2115, 2
      %v2125 = vld [vmem:[%s5] sm:$0xff]
      %v2126 = vld [vmem:[%s5 + $0x8] sm:$0xff]
      %v2127 = vld [vmem:[%s5 + $0x10] sm:$0xff]
      %v2128 = vld [vmem:[%s5 + $0x18] sm:$0xff]
      %v2129 = vld [vmem:[%s5 + $0x20] sm:$0xff]
      %v2130 = vld [vmem:[%s5 + $0x28] sm:$0xff]
      %v2131 = vld [vmem:[%s5 + $0x30] sm:$0xff]
      %v2132 = vld [vmem:[%s5 + $0x38] sm:$0xff]
      %v2133 = vld [vmem:[%s5 + $0x40] sm:$0xff]
      %v2134 = vld [vmem:[%s5 + $0x48] sm:$0xff]
      %v2135 = vld [vmem:[%s5 + $0x50] sm:$0xff]
      %v2136 = vld [vmem:[%s5 + $0x58] sm:$0xff]
      %v2137 = vld [vmem:[%s5 + $0x60] sm:$0xff]
      %v2138 = vld [vmem:[%s5 + $0x68] sm:$0xff]
      %v2139 = vld [vmem:[%s5 + $0x70] sm:$0xff]
      %v2140 = vld [vmem:[%s5 + $0x78] sm:$0xff]
      %v2141 = vld [vmem:[%s5 + $0x80] sm:$0xff]
      %v2142 = vld [vmem:[%s5 + $0x88] sm:$0xff]
      %v2143 = vld [vmem:[%s5 + $0x90] sm:$0xff]
      %v2144 = vld [vmem:[%s5 + $0x98] sm:$0xff]
      %v2145 = vld [vmem:[%s5 + $0xa0] sm:$0xff]
      %v2146 = vld [vmem:[%s5 + $0xa8] sm:$0xff]
      %v2147 = vld [vmem:[%s5 + $0xb0] sm:$0xff]
      %v2148 = vld [vmem:[%s5 + $0xb8] sm:$0xff]
      %v2149 = vld [vmem:[%s5 + $0xc0] sm:$0xff]
      %v2150 = vld [vmem:[%s5 + $0xc8] sm:$0xff]
      %v2151 = vld [vmem:[%s5 + $0xd0] sm:$0xff]
      %v2152 = vld [vmem:[%s5 + $0xd8] sm:$0xff]
      %v2153 = vld [vmem:[%s5 + $0xe0] sm:$0xff]
      %v2154 = vld [vmem:[%s5 + $0xe8] sm:$0xff]
      %v2155 = vld [vmem:[%s5 + $0xf0] sm:$0xff]
      %v2156 = vld [vmem:[%s5 + $0xf8] sm:$0xff]
      %v2157 = vld [vmem:[#allocation3 + $0x1] sm:$0x7]
      %v2158 = vld [vmem:[#allocation3 + $0x9] sm:$0x7]
      %v2159 = vld [vmem:[#allocation3 + $0x11] sm:$0x7]
      %v2163 = vrot.slane %v2157, 1
      %v2164 = vrot.slane %v2157, 2
      %v2165 = vrot.slane %v2158, 1
      %v2166 = vrot.slane %v2158, 2
      %v2167 = vrot.slane %v2159, 1
      %v2168 = vrot.slane %v2159, 2
      %s2169 = scalar_lea.vmem %s5, 256
      %v2170 = vld [vmem:[%s2169] sm:$0xff]
      %v2171 = vld [vmem:[%s2169 + $0x8] sm:$0xff]
      %v2172 = vld [vmem:[%s2169 + $0x10] sm:$0xff]
      %v2173 = vld [vmem:[%s2169 + $0x18] sm:$0xff]
      %v2174 = vld [vmem:[%s2169 + $0x20] sm:$0xff]
      %v2175 = vld [vmem:[%s2169 + $0x28] sm:$0xff]
      %v2176 = vld [vmem:[%s2169 + $0x30] sm:$0xff]
      %v2177 = vld [vmem:[%s2169 + $0x38] sm:$0xff]
      %v2178 = vld [vmem:[%s2169 + $0x40] sm:$0xff]
      %v2179 = vld [vmem:[%s2169 + $0x48] sm:$0xff]
      %v2180 = vld [vmem:[%s2169 + $0x50] sm:$0xff]
      %v2181 = vld [vmem:[%s2169 + $0x58] sm:$0xff]
      %v2182 = vld [vmem:[%s2169 + $0x60] sm:$0xff]
      %v2183 = vld [vmem:[%s2169 + $0x68] sm:$0xff]
      %v2184 = vld [vmem:[%s2169 + $0x70] sm:$0xff]
      %v2185 = vld [vmem:[%s2169 + $0x78] sm:$0xff]
      %v2186 = vld [vmem:[%s2169 + $0x80] sm:$0xff]
      %v2187 = vld [vmem:[%s2169 + $0x88] sm:$0xff]
      %v2188 = vld [vmem:[%s2169 + $0x90] sm:$0xff]
      %v2189 = vld [vmem:[%s2169 + $0x98] sm:$0xff]
      %v2190 = vld [vmem:[%s2169 + $0xa0] sm:$0xff]
      %v2191 = vld [vmem:[%s2169 + $0xa8] sm:$0xff]
      %v2192 = vld [vmem:[%s2169 + $0xb0] sm:$0xff]
      %v2193 = vld [vmem:[%s2169 + $0xb8] sm:$0xff]
      %v2194 = vld [vmem:[%s2169 + $0xc0] sm:$0xff]
      %v2195 = vld [vmem:[%s2169 + $0xc8] sm:$0xff]
      %v2196 = vld [vmem:[%s2169 + $0xd0] sm:$0xff]
      %v2197 = vld [vmem:[%s2169 + $0xd8] sm:$0xff]
      %v2198 = vld [vmem:[%s2169 + $0xe0] sm:$0xff]
      %v2199 = vld [vmem:[%s2169 + $0xe8] sm:$0xff]
      %v2200 = vld [vmem:[%s2169 + $0xf0] sm:$0xff]
      %v2201 = vld [vmem:[%s2169 + $0xf8] sm:$0xff]
      %2202 = vst [vmem:[#allocation1] ss:$9 sm:$0xff] %v2157
      %s2203 = scalar_lea.vmem [#allocation1], 1
      %2204 = vst [vmem:[%s2203] ss:$9 sm:$0xff] %v2163
      %s2205 = scalar_lea.vmem [#allocation1], 2
      %2206 = vst [vmem:[%s2205] ss:$9 sm:$0xff] %v2164
      %s2207 = scalar_lea.vmem [#allocation1], 3
      %2208 = vst [vmem:[%s2207] ss:$9 sm:$0xff] %v2158
      %s2209 = scalar_lea.vmem [#allocation1], 4
      %2210 = vst [vmem:[%s2209] ss:$9 sm:$0xff] %v2165
      %s2211 = scalar_lea.vmem [#allocation1], 5
      %2212 = vst [vmem:[%s2211] ss:$9 sm:$0xff] %v2166
      %s2213 = scalar_lea.vmem [#allocation1], 6
      %2214 = vst [vmem:[%s2213] ss:$9 sm:$0xff] %v2159
      %s2215 = scalar_lea.vmem [#allocation1], 7
      %2216 = vst [vmem:[%s2215] ss:$9 sm:$0xff] %v2167
      %v2217 = vld [vmem:[#allocation1] sm:$0xff]
      %2218 = vst [vmem:[#allocation1] ss:$9 sm:$0xff] %v2168
      %v2219 = vld [vmem:[#allocation1] sm:$0xff]
      %2222 = vmatpush.msra.mxu0 %v2200
      %2223 = vmatpush.msra.mxu0 %v2198
      %2224 = vmatpush.msra.mxu0 %v2196
      %2225 = vmatpush.msra.mxu0 %v2194
      %2226 = vmatpush.msra.mxu0 %v2192
      %2227 = vmatpush.msra.mxu0 %v2190
      %2228 = vmatpush.msra.mxu0 %v2188
      %2229 = vmatpush.msra.mxu0 %v2186
      %2230 = vmatpush.msra.mxu0 %v2184
      %2231 = vmatpush.msra.mxu0 %v2182
      %2232 = vmatpush.msra.mxu0 %v2180
      %2233 = vmatpush.msra.mxu0 %v2178
      %2234 = vmatpush.msra.mxu0 %v2176
      %2235 = vmatpush.msra.mxu0 %v2174
      %2236 = vmatpush.msra.mxu0 %v2172
      %2237 = vmatpush.msra.mxu0 %v2170
      %2238 = vmatmul.f32.gmra.mxu0 %v2217
      %v2239 = vpop.f32.mrf.mxu0
      %v2240 = vadd.f32 0.0, %v2239
      %2241 = vmatmul.f32.gmra.mxu0 %v2219
      %v2242 = vpop.f32.mrf.mxu0
      %v2243 = vadd.f32 0.0, %v2242
      %2244 = vdwg.mxu0
      %2245 = vmatpush.msra.mxu0 %v2201
      %2246 = vmatpush.msra.mxu0 %v2199
      %2247 = vmatpush.msra.mxu0 %v2197
      %2248 = vmatpush.msra.mxu0 %v2195
      %2249 = vmatpush.msra.mxu0 %v2193
      %2250 = vmatpush.msra.mxu0 %v2191
      %2251 = vmatpush.msra.mxu0 %v2189
      %2252 = vmatpush.msra.mxu0 %v2187
      %2253 = vmatpush.msra.mxu0 %v2185
      %2254 = vmatpush.msra.mxu0 %v2183
      %2255 = vmatpush.msra.mxu0 %v2181
      %2256 = vmatpush.msra.mxu0 %v2179
      %2257 = vmatpush.msra.mxu0 %v2177
      %2258 = vmatpush.msra.mxu0 %v2175
      %2259 = vmatpush.msra.mxu0 %v2173
      %2260 = vmatpush.msra.mxu0 %v2171
      %2261 = vmatmul.f32.gmra.mxu0 %v2217
      %v2262 = vpop.f32.mrf.mxu0
      %v2263 = vadd.f32 0.0, %v2262
      %2264 = vmatmul.f32.gmra.mxu0 %v2219
      %v2265 = vpop.f32.mrf.mxu0
      %v2266 = vadd.f32 0.0, %v2265
      %2267 = vdwg.mxu0
      %2268 = vst [vmem:[#allocation1] ss:$9 sm:$0xff] %v2113
      %s2269 = scalar_lea.vmem [#allocation1], 1
      %2270 = vst [vmem:[%s2269] ss:$9 sm:$0xff] %v2119
      %s2271 = scalar_lea.vmem [#allocation1], 2
      %2272 = vst [vmem:[%s2271] ss:$9 sm:$0xff] %v2120
      %s2273 = scalar_lea.vmem [#allocation1], 3
      %2274 = vst [vmem:[%s2273] ss:$9 sm:$0xff] %v2114
      %s2275 = scalar_lea.vmem [#allocation1], 4
      %2276 = vst [vmem:[%s2275] ss:$9 sm:$0xff] %v2121
      %s2277 = scalar_lea.vmem [#allocation1], 5
      %2278 = vst [vmem:[%s2277] ss:$9 sm:$0xff] %v2122
      %s2279 = scalar_lea.vmem [#allocation1], 6
      %2280 = vst [vmem:[%s2279] ss:$9 sm:$0xff] %v2115
      %s2281 = scalar_lea.vmem [#allocation1], 7
      %2282 = vst [vmem:[%s2281] ss:$9 sm:$0xff] %v2123
      %v2283 = vld [vmem:[#allocation1] sm:$0xff]
      %2284 = vst [vmem:[#allocation1] ss:$9 sm:$0xff] %v2124
      %v2285 = vld [vmem:[#allocation1] sm:$0xff]
      %2288 = vmatpush.msra.mxu0 %v2155
      %2289 = vmatpush.msra.mxu0 %v2153
      %2290 = vmatpush.msra.mxu0 %v2151
      %2291 = vmatpush.msra.mxu0 %v2149
      %2292 = vmatpush.msra.mxu0 %v2147
      %2293 = vmatpush.msra.mxu0 %v2145
      %2294 = vmatpush.msra.mxu0 %v2143
      %2295 = vmatpush.msra.mxu0 %v2141
      %2296 = vmatpush.msra.mxu0 %v2139
      %2297 = vmatpush.msra.mxu0 %v2137
      %2298 = vmatpush.msra.mxu0 %v2135
      %2299 = vmatpush.msra.mxu0 %v2133
      %2300 = vmatpush.msra.mxu0 %v2131
      %2301 = vmatpush.msra.mxu0 %v2129
      %2302 = vmatpush.msra.mxu0 %v2127
      %2303 = vmatpush.msra.mxu0 %v2125
      %2304 = vmatmul.f32.gmra.mxu0 %v2283
      %v2305 = vpop.f32.mrf.mxu0
      %v2306 = vadd.f32 %v2240, %v2305
      %2307 = vmatmul.f32.gmra.mxu0 %v2285
      %v2308 = vpop.f32.mrf.mxu0
      %v2309 = vadd.f32 %v2243, %v2308
      %2310 = vdwg.mxu0
      %2311 = vmatpush.msra.mxu0 %v2156
      %2312 = vmatpush.msra.mxu0 %v2154
      %2313 = vmatpush.msra.mxu0 %v2152
      %2314 = vmatpush.msra.mxu0 %v2150
      %2315 = vmatpush.msra.mxu0 %v2148
      %2316 = vmatpush.msra.mxu0 %v2146
      %2317 = vmatpush.msra.mxu0 %v2144
      %2318 = vmatpush.msra.mxu0 %v2142
      %2319 = vmatpush.msra.mxu0 %v2140
      %2320 = vmatpush.msra.mxu0 %v2138
      %2321 = vmatpush.msra.mxu0 %v2136
      %2322 = vmatpush.msra.mxu0 %v2134
      %2323 = vmatpush.msra.mxu0 %v2132
      %2324 = vmatpush.msra.mxu0 %v2130
      %2325 = vmatpush.msra.mxu0 %v2128
      %2326 = vmatpush.msra.mxu0 %v2126
      %2327 = vmatmul.f32.gmra.mxu0 %v2283
      %v2328 = vpop.f32.mrf.mxu0
      %v2329 = vadd.f32 %v2263, %v2328
      %2330 = vmatmul.f32.gmra.mxu0 %v2285
      %v2331 = vpop.f32.mrf.mxu0
      %v2332 = vadd.f32 %v2266, %v2331
      %2333 = vdwg.mxu0
      %v2334 = vld [vmem:[#allocation3 + $0x2] sm:$0x7]
      %v2335 = vld [vmem:[#allocation3 + $0xa] sm:$0x7]
      %v2336 = vld [vmem:[#allocation3 + $0x12] sm:$0x7]
      %v2340 = vrot.slane %v2334, 1
      %v2341 = vrot.slane %v2334, 2
      %v2342 = vrot.slane %v2335, 1
      %v2343 = vrot.slane %v2335, 2
      %v2344 = vrot.slane %v2336, 1
      %v2345 = vrot.slane %v2336, 2
      %s2346 = scalar_lea.vmem %s5, 512
      %v2347 = vld [vmem:[%s2346] sm:$0xff]
      %v2348 = vld [vmem:[%s2346 + $0x8] sm:$0xff]
      %v2349 = vld [vmem:[%s2346 + $0x10] sm:$0xff]
      %v2350 = vld [vmem:[%s2346 + $0x18] sm:$0xff]
      %v2351 = vld [vmem:[%s2346 + $0x20] sm:$0xff]
      %v2352 = vld [vmem:[%s2346 + $0x28] sm:$0xff]
      %v2353 = vld [vmem:[%s2346 + $0x30] sm:$0xff]
      %v2354 = vld [vmem:[%s2346 + $0x38] sm:$0xff]
      %v2355 = vld [vmem:[%s2346 + $0x40] sm:$0xff]
      %v2356 = vld [vmem:[%s2346 + $0x48] sm:$0xff]
      %v2357 = vld [vmem:[%s2346 + $0x50] sm:$0xff]
      %v2358 = vld [vmem:[%s2346 + $0x58] sm:$0xff]
      %v2359 = vld [vmem:[%s2346 + $0x60] sm:$0xff]
      %v2360 = vld [vmem:[%s2346 + $0x68] sm:$0xff]
      %v2361 = vld [vmem:[%s2346 + $0x70] sm:$0xff]
      %v2362 = vld [vmem:[%s2346 + $0x78] sm:$0xff]
      %v2363 = vld [vmem:[%s2346 + $0x80] sm:$0xff]
      %v2364 = vld [vmem:[%s2346 + $0x88] sm:$0xff]
      %v2365 = vld [vmem:[%s2346 + $0x90] sm:$0xff]
      %v2366 = vld [vmem:[%s2346 + $0x98] sm:$0xff]
      %v2367 = vld [vmem:[%s2346 + $0xa0] sm:$0xff]
      %v2368 = vld [vmem:[%s2346 + $0xa8] sm:$0xff]
      %v2369 = vld [vmem:[%s2346 + $0xb0] sm:$0xff]
      %v2370 = vld [vmem:[%s2346 + $0xb8] sm:$0xff]
      %v2371 = vld [vmem:[%s2346 + $0xc0] sm:$0xff]
      %v2372 = vld [vmem:[%s2346 + $0xc8] sm:$0xff]
      %v2373 = vld [vmem:[%s2346 + $0xd0] sm:$0xff]
      %v2374 = vld [vmem:[%s2346 + $0xd8] sm:$0xff]
      %v2375 = vld [vmem:[%s2346 + $0xe0] sm:$0xff]
      %v2376 = vld [vmem:[%s2346 + $0xe8] sm:$0xff]
      %v2377 = vld [vmem:[%s2346 + $0xf0] sm:$0xff]
      %v2378 = vld [vmem:[%s2346 + $0xf8] sm:$0xff]
      %2379 = vst [vmem:[#allocation1] ss:$9 sm:$0xff] %v2334
      %s2380 = scalar_lea.vmem [#allocation1], 1
      %2381 = vst [vmem:[%s2380] ss:$9 sm:$0xff] %v2340
      %s2382 = scalar_lea.vmem [#allocation1], 2
      %2383 = vst [vmem:[%s2382] ss:$9 sm:$0xff] %v2341
      %s2384 = scalar_lea.vmem [#allocation1], 3
      %2385 = vst [vmem:[%s2384] ss:$9 sm:$0xff] %v2335
      %s2386 = scalar_lea.vmem [#allocation1], 4
      %2387 = vst [vmem:[%s2386] ss:$9 sm:$0xff] %v2342
      %s2388 = scalar_lea.vmem [#allocation1], 5
      %2389 = vst [vmem:[%s2388] ss:$9 sm:$0xff] %v2343
      %s2390 = scalar_lea.vmem [#allocation1], 6
      %2391 = vst [vmem:[%s2390] ss:$9 sm:$0xff] %v2336
      %s2392 = scalar_lea.vmem [#allocation1], 7
      %2393 = vst [vmem:[%s2392] ss:$9 sm:$0xff] %v2344
      %v2394 = vld [vmem:[#allocation1] sm:$0xff]
      %2395 = vst [vmem:[#allocation1] ss:$9 sm:$0xff] %v2345
      %v2396 = vld [vmem:[#allocation1] sm:$0xff]
      %2399 = vmatpush.msra.mxu0 %v2377
      %2400 = vmatpush.msra.mxu0 %v2375
      %2401 = vmatpush.msra.mxu0 %v2373
      %2402 = vmatpush.msra.mxu0 %v2371
      %2403 = vmatpush.msra.mxu0 %v2369
      %2404 = vmatpush.msra.mxu0 %v2367
      %2405 = vmatpush.msra.mxu0 %v2365
      %2406 = vmatpush.msra.mxu0 %v2363
      %2407 = vmatpush.msra.mxu0 %v2361
      %2408 = vmatpush.msra.mxu0 %v2359
      %2409 = vmatpush.msra.mxu0 %v2357
      %2410 = vmatpush.msra.mxu0 %v2355
      %2411 = vmatpush.msra.mxu0 %v2353
      %2412 = vmatpush.msra.mxu0 %v2351
      %2413 = vmatpush.msra.mxu0 %v2349
      %2414 = vmatpush.msra.mxu0 %v2347
      %2415 = vmatmul.f32.gmra.mxu0 %v2394
      %v2416 = vpop.f32.mrf.mxu0
      %v2417 = vadd.f32 0.0, %v2416
      %2418 = vmatmul.f32.gmra.mxu0 %v2396
      %v2419 = vpop.f32.mrf.mxu0
      %v2420 = vadd.f32 0.0, %v2419
      %2421 = vdwg.mxu0
      %2422 = vmatpush.msra.mxu0 %v2378
      %2423 = vmatpush.msra.mxu0 %v2376
      %2424 = vmatpush.msra.mxu0 %v2374
      %2425 = vmatpush.msra.mxu0 %v2372
      %2426 = vmatpush.msra.mxu0 %v2370
      %2427 = vmatpush.msra.mxu0 %v2368
      %2428 = vmatpush.msra.mxu0 %v2366
      %2429 = vmatpush.msra.mxu0 %v2364
      %2430 = vmatpush.msra.mxu0 %v2362
      %2431 = vmatpush.msra.mxu0 %v2360
      %2432 = vmatpush.msra.mxu0 %v2358
      %2433 = vmatpush.msra.mxu0 %v2356
      %2434 = vmatpush.msra.mxu0 %v2354
      %2435 = vmatpush.msra.mxu0 %v2352
      %2436 = vmatpush.msra.mxu0 %v2350
      %2437 = vmatpush.msra.mxu0 %v2348
      %2438 = vmatmul.f32.gmra.mxu0 %v2394
      %v2439 = vpop.f32.mrf.mxu0
      %v2440 = vadd.f32 0.0, %v2439
      %2441 = vmatmul.f32.gmra.mxu0 %v2396
      %v2442 = vpop.f32.mrf.mxu0
      %v2443 = vadd.f32 0.0, %v2442
      %2444 = vdwg.mxu0
      %v2445 = vadd.f32 %v2306, %v2417
      %v2446 = vadd.f32 %v2329, %v2440
      %v2447 = vadd.f32 %v2309, %v2420
      %v2448 = vadd.f32 %v2332, %v2443
      %v2449 = vld [vmem:[#allocation3 + $0x3] sm:$0x7]
      %v2450 = vld [vmem:[#allocation3 + $0xb] sm:$0x7]
      %v2451 = vld [vmem:[#allocation3 + $0x13] sm:$0x7]
      %v2455 = vrot.slane %v2449, 1
      %v2456 = vrot.slane %v2449, 2
      %v2457 = vrot.slane %v2450, 1
      %v2458 = vrot.slane %v2450, 2
      %v2459 = vrot.slane %v2451, 1
      %v2460 = vrot.slane %v2451, 2
      %s2461 = scalar_lea.vmem %s5, 768
      %v2462 = vld [vmem:[%s2461] sm:$0xff]
      %v2463 = vld [vmem:[%s2461 + $0x8] sm:$0xff]
      %v2464 = vld [vmem:[%s2461 + $0x10] sm:$0xff]
      %v2465 = vld [vmem:[%s2461 + $0x18] sm:$0xff]
      %v2466 = vld [vmem:[%s2461 + $0x20] sm:$0xff]
      %v2467 = vld [vmem:[%s2461 + $0x28] sm:$0xff]
      %v2468 = vld [vmem:[%s2461 + $0x30] sm:$0xff]
      %v2469 = vld [vmem:[%s2461 + $0x38] sm:$0xff]
      %v2470 = vld [vmem:[%s2461 + $0x40] sm:$0xff]
      %v2471 = vld [vmem:[%s2461 + $0x48] sm:$0xff]
      %v2472 = vld [vmem:[%s2461 + $0x50] sm:$0xff]
      %v2473 = vld [vmem:[%s2461 + $0x58] sm:$0xff]
      %v2474 = vld [vmem:[%s2461 + $0x60] sm:$0xff]
      %v2475 = vld [vmem:[%s2461 + $0x68] sm:$0xff]
      %v2476 = vld [vmem:[%s2461 + $0x70] sm:$0xff]
      %v2477 = vld [vmem:[%s2461 + $0x78] sm:$0xff]
      %v2478 = vld [vmem:[%s2461 + $0x80] sm:$0xff]
      %v2479 = vld [vmem:[%s2461 + $0x88] sm:$0xff]
      %v2480 = vld [vmem:[%s2461 + $0x90] sm:$0xff]
      %v2481 = vld [vmem:[%s2461 + $0x98] sm:$0xff]
      %v2482 = vld [vmem:[%s2461 + $0xa0] sm:$0xff]
      %v2483 = vld [vmem:[%s2461 + $0xa8] sm:$0xff]
      %v2484 = vld [vmem:[%s2461 + $0xb0] sm:$0xff]
      %v2485 = vld [vmem:[%s2461 + $0xb8] sm:$0xff]
      %v2486 = vld [vmem:[%s2461 + $0xc0] sm:$0xff]
      %v2487 = vld [vmem:[%s2461 + $0xc8] sm:$0xff]
      %v2488 = vld [vmem:[%s2461 + $0xd0] sm:$0xff]
      %v2489 = vld [vmem:[%s2461 + $0xd8] sm:$0xff]
      %v2490 = vld [vmem:[%s2461 + $0xe0] sm:$0xff]
      %v2491 = vld [vmem:[%s2461 + $0xe8] sm:$0xff]
      %v2492 = vld [vmem:[%s2461 + $0xf0] sm:$0xff]
      %v2493 = vld [vmem:[%s2461 + $0xf8] sm:$0xff]
      %2494 = vst [vmem:[#allocation1] ss:$9 sm:$0xff] %v2449
      %s2495 = scalar_lea.vmem [#allocation1], 1
      %2496 = vst [vmem:[%s2495] ss:$9 sm:$0xff] %v2455
      %s2497 = scalar_lea.vmem [#allocation1], 2
      %2498 = vst [vmem:[%s2497] ss:$9 sm:$0xff] %v2456
      %s2499 = scalar_lea.vmem [#allocation1], 3
      %2500 = vst [vmem:[%s2499] ss:$9 sm:$0xff] %v2450
      %s2501 = scalar_lea.vmem [#allocation1], 4
      %2502 = vst [vmem:[%s2501] ss:$9 sm:$0xff] %v2457
      %s2503 = scalar_lea.vmem [#allocation1], 5
      %2504 = vst [vmem:[%s2503] ss:$9 sm:$0xff] %v2458
      %s2505 = scalar_lea.vmem [#allocation1], 6
      %2506 = vst [vmem:[%s2505] ss:$9 sm:$0xff] %v2451
      %s2507 = scalar_lea.vmem [#allocation1], 7
      %2508 = vst [vmem:[%s2507] ss:$9 sm:$0xff] %v2459
      %v2509 = vld [vmem:[#allocation1] sm:$0xff]
      %2510 = vst [vmem:[#allocation1] ss:$9 sm:$0xff] %v2460
      %v2511 = vld [vmem:[#allocation1] sm:$0xff]
      %2514 = vmatpush.msra.mxu0 %v2492
      %2515 = vmatpush.msra.mxu0 %v2490
      %2516 = vmatpush.msra.mxu0 %v2488
      %2517 = vmatpush.msra.mxu0 %v2486
      %2518 = vmatpush.msra.mxu0 %v2484
      %2519 = vmatpush.msra.mxu0 %v2482
      %2520 = vmatpush.msra.mxu0 %v2480
      %2521 = vmatpush.msra.mxu0 %v2478
      %2522 = vmatpush.msra.mxu0 %v2476
      %2523 = vmatpush.msra.mxu0 %v2474
      %2524 = vmatpush.msra.mxu0 %v2472
      %2525 = vmatpush.msra.mxu0 %v2470
      %2526 = vmatpush.msra.mxu0 %v2468
      %2527 = vmatpush.msra.mxu0 %v2466
      %2528 = vmatpush.msra.mxu0 %v2464
      %2529 = vmatpush.msra.mxu0 %v2462
      %2530 = vmatmul.f32.gmra.mxu0 %v2509
      %v2531 = vpop.f32.mrf.mxu0
      %v2532 = vadd.f32 0.0, %v2531
      %2533 = vmatmul.f32.gmra.mxu0 %v2511
      %v2534 = vpop.f32.mrf.mxu0
      %v2535 = vadd.f32 0.0, %v2534
      %2536 = vdwg.mxu0
      %2537 = vmatpush.msra.mxu0 %v2493
      %2538 = vmatpush.msra.mxu0 %v2491
      %2539 = vmatpush.msra.mxu0 %v2489
      %2540 = vmatpush.msra.mxu0 %v2487
      %2541 = vmatpush.msra.mxu0 %v2485
      %2542 = vmatpush.msra.mxu0 %v2483
      %2543 = vmatpush.msra.mxu0 %v2481
      %2544 = vmatpush.msra.mxu0 %v2479
      %2545 = vmatpush.msra.mxu0 %v2477
      %2546 = vmatpush.msra.mxu0 %v2475
      %2547 = vmatpush.msra.mxu0 %v2473
      %2548 = vmatpush.msra.mxu0 %v2471
      %2549 = vmatpush.msra.mxu0 %v2469
      %2550 = vmatpush.msra.mxu0 %v2467
      %2551 = vmatpush.msra.mxu0 %v2465
      %2552 = vmatpush.msra.mxu0 %v2463
      %2553 = vmatmul.f32.gmra.mxu0 %v2509
      %v2554 = vpop.f32.mrf.mxu0
      %v2555 = vadd.f32 0.0, %v2554
      %2556 = vmatmul.f32.gmra.mxu0 %v2511
      %v2557 = vpop.f32.mrf.mxu0
      %v2558 = vadd.f32 0.0, %v2557
      %2559 = vdwg.mxu0
      %v2560 = vadd.f32 %v2445, %v2532
      %v2561 = vadd.f32 %v2446, %v2555
      %v2562 = vadd.f32 %v2447, %v2535
      %v2563 = vadd.f32 %v2448, %v2558
      %v2564 = vld [vmem:[%s2108] sm:$0x7]
      %v2565 = vld [vmem:[%s2108 + $0x8] sm:$0x7]
      %v2566 = vld [vmem:[%s2108 + $0x10] sm:$0x7]
      %v2570 = vrot.slane %v2564, 1
      %v2571 = vrot.slane %v2564, 2
      %v2572 = vrot.slane %v2565, 1
      %v2573 = vrot.slane %v2565, 2
      %v2574 = vrot.slane %v2566, 1
      %v2575 = vrot.slane %v2566, 2
      %s2576 = scalar_lea.vmem %s5, 1024
      %v2577 = vld [vmem:[%s2576] sm:$0xff]
      %v2578 = vld [vmem:[%s2576 + $0x8] sm:$0xff]
      %v2579 = vld [vmem:[%s2576 + $0x10] sm:$0xff]
      %v2580 = vld [vmem:[%s2576 + $0x18] sm:$0xff]
      %v2581 = vld [vmem:[%s2576 + $0x20] sm:$0xff]
      %v2582 = vld [vmem:[%s2576 + $0x28] sm:$0xff]
      %v2583 = vld [vmem:[%s2576 + $0x30] sm:$0xff]
      %v2584 = vld [vmem:[%s2576 + $0x38] sm:$0xff]
      %v2585 = vld [vmem:[%s2576 + $0x40] sm:$0xff]
      %v2586 = vld [vmem:[%s2576 + $0x48] sm:$0xff]
      %v2587 = vld [vmem:[%s2576 + $0x50] sm:$0xff]
      %v2588 = vld [vmem:[%s2576 + $0x58] sm:$0xff]
      %v2589 = vld [vmem:[%s2576 + $0x60] sm:$0xff]
      %v2590 = vld [vmem:[%s2576 + $0x68] sm:$0xff]
      %v2591 = vld [vmem:[%s2576 + $0x70] sm:$0xff]
      %v2592 = vld [vmem:[%s2576 + $0x78] sm:$0xff]
      %v2593 = vld [vmem:[%s2576 + $0x80] sm:$0xff]
      %v2594 = vld [vmem:[%s2576 + $0x88] sm:$0xff]
      %v2595 = vld [vmem:[%s2576 + $0x90] sm:$0xff]
      %v2596 = vld [vmem:[%s2576 + $0x98] sm:$0xff]
      %v2597 = vld [vmem:[%s2576 + $0xa0] sm:$0xff]
      %v2598 = vld [vmem:[%s2576 + $0xa8] sm:$0xff]
      %v2599 = vld [vmem:[%s2576 + $0xb0] sm:$0xff]
      %v2600 = vld [vmem:[%s2576 + $0xb8] sm:$0xff]
      %v2601 = vld [vmem:[%s2576 + $0xc0] sm:$0xff]
      %v2602 = vld [vmem:[%s2576 + $0xc8] sm:$0xff]
      %v2603 = vld [vmem:[%s2576 + $0xd0] sm:$0xff]
      %v2604 = vld [vmem:[%s2576 + $0xd8] sm:$0xff]
      %v2605 = vld [vmem:[%s2576 + $0xe0] sm:$0xff]
      %v2606 = vld [vmem:[%s2576 + $0xe8] sm:$0xff]
      %v2607 = vld [vmem:[%s2576 + $0xf0] sm:$0xff]
      %v2608 = vld [vmem:[%s2576 + $0xf8] sm:$0xff]
      %2609 = vst [vmem:[#allocation1] ss:$9 sm:$0xff] %v2564
      %s2610 = scalar_lea.vmem [#allocation1], 1
      %2611 = vst [vmem:[%s2610] ss:$9 sm:$0xff] %v2570
      %s2612 = scalar_lea.vmem [#allocation1], 2
      %2613 = vst [vmem:[%s2612] ss:$9 sm:$0xff] %v2571
      %s2614 = scalar_lea.vmem [#allocation1], 3
      %2615 = vst [vmem:[%s2614] ss:$9 sm:$0xff] %v2565
      %s2616 = scalar_lea.vmem [#allocation1], 4
      %2617 = vst [vmem:[%s2616] ss:$9 sm:$0xff] %v2572
      %s2618 = scalar_lea.vmem [#allocation1], 5
      %2619 = vst [vmem:[%s2618] ss:$9 sm:$0xff] %v2573
      %s2620 = scalar_lea.vmem [#allocation1], 6
      %2621 = vst [vmem:[%s2620] ss:$9 sm:$0xff] %v2566
      %s2622 = scalar_lea.vmem [#allocation1], 7
      %2623 = vst [vmem:[%s2622] ss:$9 sm:$0xff] %v2574
      %v2624 = vld [vmem:[#allocation1] sm:$0xff]
      %2625 = vst [vmem:[#allocation1] ss:$9 sm:$0xff] %v2575
      %v2626 = vld [vmem:[#allocation1] sm:$0xff]
      %2629 = vmatpush.msra.mxu0 %v2607
      %2630 = vmatpush.msra.mxu0 %v2605
      %2631 = vmatpush.msra.mxu0 %v2603
      %2632 = vmatpush.msra.mxu0 %v2601
      %2633 = vmatpush.msra.mxu0 %v2599
      %2634 = vmatpush.msra.mxu0 %v2597
      %2635 = vmatpush.msra.mxu0 %v2595
      %2636 = vmatpush.msra.mxu0 %v2593
      %2637 = vmatpush.msra.mxu0 %v2591
      %2638 = vmatpush.msra.mxu0 %v2589
      %2639 = vmatpush.msra.mxu0 %v2587
      %2640 = vmatpush.msra.mxu0 %v2585
      %2641 = vmatpush.msra.mxu0 %v2583
      %2642 = vmatpush.msra.mxu0 %v2581
      %2643 = vmatpush.msra.mxu0 %v2579
      %2644 = vmatpush.msra.mxu0 %v2577
      %2645 = vmatmul.f32.gmra.mxu0 %v2624
      %v2646 = vpop.f32.mrf.mxu0
      %v2647 = vadd.f32 0.0, %v2646
      %2648 = vmatmul.f32.gmra.mxu0 %v2626
      %v2649 = vpop.f32.mrf.mxu0
      %v2650 = vadd.f32 0.0, %v2649
      %2651 = vdwg.mxu0
      %2652 = vmatpush.msra.mxu0 %v2608
      %2653 = vmatpush.msra.mxu0 %v2606
      %2654 = vmatpush.msra.mxu0 %v2604
      %2655 = vmatpush.msra.mxu0 %v2602
      %2656 = vmatpush.msra.mxu0 %v2600
      %2657 = vmatpush.msra.mxu0 %v2598
      %2658 = vmatpush.msra.mxu0 %v2596
      %2659 = vmatpush.msra.mxu0 %v2594
      %2660 = vmatpush.msra.mxu0 %v2592
      %2661 = vmatpush.msra.mxu0 %v2590
      %2662 = vmatpush.msra.mxu0 %v2588
      %2663 = vmatpush.msra.mxu0 %v2586
      %2664 = vmatpush.msra.mxu0 %v2584
      %2665 = vmatpush.msra.mxu0 %v2582
      %2666 = vmatpush.msra.mxu0 %v2580
      %2667 = vmatpush.msra.mxu0 %v2578
      %2668 = vmatmul.f32.gmra.mxu0 %v2624
      %v2669 = vpop.f32.mrf.mxu0
      %v2670 = vadd.f32 0.0, %v2669
      %2671 = vmatmul.f32.gmra.mxu0 %v2626
      %v2672 = vpop.f32.mrf.mxu0
      %v2673 = vadd.f32 0.0, %v2672
      %2674 = vdwg.mxu0
      %v2675 = vadd.f32 %v2560, %v2647
      %v2676 = vadd.f32 %v2561, %v2670
      %v2677 = vadd.f32 %v2562, %v2650
      %v2678 = vadd.f32 %v2563, %v2673
      %v2679 = vld [vmem:[%s2108 + $0x1] sm:$0x7]
      %v2680 = vld [vmem:[%s2108 + $0x9] sm:$0x7]
      %v2681 = vld [vmem:[%s2108 + $0x11] sm:$0x7]
      %v2685 = vrot.slane %v2679, 1
      %v2686 = vrot.slane %v2679, 2
      %v2687 = vrot.slane %v2680, 1
      %v2688 = vrot.slane %v2680, 2
      %v2689 = vrot.slane %v2681, 1
      %v2690 = vrot.slane %v2681, 2
      %s2691 = scalar_lea.vmem %s5, 1280
      %v2692 = vld [vmem:[%s2691] sm:$0xff]
      %v2693 = vld [vmem:[%s2691 + $0x8] sm:$0xff]
      %v2694 = vld [vmem:[%s2691 + $0x10] sm:$0xff]
      %v2695 = vld [vmem:[%s2691 + $0x18] sm:$0xff]
      %v2696 = vld [vmem:[%s2691 + $0x20] sm:$0xff]
      %v2697 = vld [vmem:[%s2691 + $0x28] sm:$0xff]
      %v2698 = vld [vmem:[%s2691 + $0x30] sm:$0xff]
      %v2699 = vld [vmem:[%s2691 + $0x38] sm:$0xff]
      %v2700 = vld [vmem:[%s2691 + $0x40] sm:$0xff]
      %v2701 = vld [vmem:[%s2691 + $0x48] sm:$0xff]
      %v2702 = vld [vmem:[%s2691 + $0x50] sm:$0xff]
      %v2703 = vld [vmem:[%s2691 + $0x58] sm:$0xff]
      %v2704 = vld [vmem:[%s2691 + $0x60] sm:$0xff]
      %v2705 = vld [vmem:[%s2691 + $0x68] sm:$0xff]
      %v2706 = vld [vmem:[%s2691 + $0x70] sm:$0xff]
      %v2707 = vld [vmem:[%s2691 + $0x78] sm:$0xff]
      %v2708 = vld [vmem:[%s2691 + $0x80] sm:$0xff]
      %v2709 = vld [vmem:[%s2691 + $0x88] sm:$0xff]
      %v2710 = vld [vmem:[%s2691 + $0x90] sm:$0xff]
      %v2711 = vld [vmem:[%s2691 + $0x98] sm:$0xff]
      %v2712 = vld [vmem:[%s2691 + $0xa0] sm:$0xff]
      %v2713 = vld [vmem:[%s2691 + $0xa8] sm:$0xff]
      %v2714 = vld [vmem:[%s2691 + $0xb0] sm:$0xff]
      %v2715 = vld [vmem:[%s2691 + $0xb8] sm:$0xff]
      %v2716 = vld [vmem:[%s2691 + $0xc0] sm:$0xff]
      %v2717 = vld [vmem:[%s2691 + $0xc8] sm:$0xff]
      %v2718 = vld [vmem:[%s2691 + $0xd0] sm:$0xff]
      %v2719 = vld [vmem:[%s2691 + $0xd8] sm:$0xff]
      %v2720 = vld [vmem:[%s2691 + $0xe0] sm:$0xff]
      %v2721 = vld [vmem:[%s2691 + $0xe8] sm:$0xff]
      %v2722 = vld [vmem:[%s2691 + $0xf0] sm:$0xff]
      %v2723 = vld [vmem:[%s2691 + $0xf8] sm:$0xff]
      %2724 = vst [vmem:[#allocation1] ss:$9 sm:$0xff] %v2679
      %s2725 = scalar_lea.vmem [#allocation1], 1
      %2726 = vst [vmem:[%s2725] ss:$9 sm:$0xff] %v2685
      %s2727 = scalar_lea.vmem [#allocation1], 2
      %2728 = vst [vmem:[%s2727] ss:$9 sm:$0xff] %v2686
      %s2729 = scalar_lea.vmem [#allocation1], 3
      %2730 = vst [vmem:[%s2729] ss:$9 sm:$0xff] %v2680
      %s2731 = scalar_lea.vmem [#allocation1], 4
      %2732 = vst [vmem:[%s2731] ss:$9 sm:$0xff] %v2687
      %s2733 = scalar_lea.vmem [#allocation1], 5
      %2734 = vst [vmem:[%s2733] ss:$9 sm:$0xff] %v2688
      %s2735 = scalar_lea.vmem [#allocation1], 6
      %2736 = vst [vmem:[%s2735] ss:$9 sm:$0xff] %v2681
      %s2737 = scalar_lea.vmem [#allocation1], 7
      %2738 = vst [vmem:[%s2737] ss:$9 sm:$0xff] %v2689
      %v2739 = vld [vmem:[#allocation1] sm:$0xff]
      %2740 = vst [vmem:[#allocation1] ss:$9 sm:$0xff] %v2690
      %v2741 = vld [vmem:[#allocation1] sm:$0xff]
      %2744 = vmatpush.msra.mxu0 %v2722
      %2745 = vmatpush.msra.mxu0 %v2720
      %2746 = vmatpush.msra.mxu0 %v2718
      %2747 = vmatpush.msra.mxu0 %v2716
      %2748 = vmatpush.msra.mxu0 %v2714
      %2749 = vmatpush.msra.mxu0 %v2712
      %2750 = vmatpush.msra.mxu0 %v2710
      %2751 = vmatpush.msra.mxu0 %v2708
      %2752 = vmatpush.msra.mxu0 %v2706
      %2753 = vmatpush.msra.mxu0 %v2704
      %2754 = vmatpush.msra.mxu0 %v2702
      %2755 = vmatpush.msra.mxu0 %v2700
      %2756 = vmatpush.msra.mxu0 %v2698
      %2757 = vmatpush.msra.mxu0 %v2696
      %2758 = vmatpush.msra.mxu0 %v2694
      %2759 = vmatpush.msra.mxu0 %v2692
      %2760 = vmatmul.f32.gmra.mxu0 %v2739
      %v2761 = vpop.f32.mrf.mxu0
      %v2762 = vadd.f32 0.0, %v2761
      %2763 = vmatmul.f32.gmra.mxu0 %v2741
      %v2764 = vpop.f32.mrf.mxu0
      %v2765 = vadd.f32 0.0, %v2764
      %2766 = vdwg.mxu0
      %2767 = vmatpush.msra.mxu0 %v2723
      %2768 = vmatpush.msra.mxu0 %v2721
      %2769 = vmatpush.msra.mxu0 %v2719
      %2770 = vmatpush.msra.mxu0 %v2717
      %2771 = vmatpush.msra.mxu0 %v2715
      %2772 = vmatpush.msra.mxu0 %v2713
      %2773 = vmatpush.msra.mxu0 %v2711
      %2774 = vmatpush.msra.mxu0 %v2709
      %2775 = vmatpush.msra.mxu0 %v2707
      %2776 = vmatpush.msra.mxu0 %v2705
      %2777 = vmatpush.msra.mxu0 %v2703
      %2778 = vmatpush.msra.mxu0 %v2701
      %2779 = vmatpush.msra.mxu0 %v2699
      %2780 = vmatpush.msra.mxu0 %v2697
      %2781 = vmatpush.msra.mxu0 %v2695
      %2782 = vmatpush.msra.mxu0 %v2693
      %2783 = vmatmul.f32.gmra.mxu0 %v2739
      %v2784 = vpop.f32.mrf.mxu0
      %v2785 = vadd.f32 0.0, %v2784
      %2786 = vmatmul.f32.gmra.mxu0 %v2741
      %v2787 = vpop.f32.mrf.mxu0
      %v2788 = vadd.f32 0.0, %v2787
      %2789 = vdwg.mxu0
      %v2790 = vadd.f32 %v2675, %v2762
      %v2791 = vadd.f32 %v2676, %v2785
      %v2792 = vadd.f32 %v2677, %v2765
      %v2793 = vadd.f32 %v2678, %v2788
      %v2794 = vld [vmem:[%s2108 + $0x2] sm:$0x7]
      %v2795 = vld [vmem:[%s2108 + $0xa] sm:$0x7]
      %v2796 = vld [vmem:[%s2108 + $0x12] sm:$0x7]
      %v2800 = vrot.slane %v2794, 1
      %v2801 = vrot.slane %v2794, 2
      %v2802 = vrot.slane %v2795, 1
      %v2803 = vrot.slane %v2795, 2
      %v2804 = vrot.slane %v2796, 1
      %v2805 = vrot.slane %v2796, 2
      %s2806 = scalar_lea.vmem %s5, 1536
      %v2807 = vld [vmem:[%s2806] sm:$0xff]
      %v2808 = vld [vmem:[%s2806 + $0x8] sm:$0xff]
      %v2809 = vld [vmem:[%s2806 + $0x10] sm:$0xff]
      %v2810 = vld [vmem:[%s2806 + $0x18] sm:$0xff]
      %v2811 = vld [vmem:[%s2806 + $0x20] sm:$0xff]
      %v2812 = vld [vmem:[%s2806 + $0x28] sm:$0xff]
      %v2813 = vld [vmem:[%s2806 + $0x30] sm:$0xff]
      %v2814 = vld [vmem:[%s2806 + $0x38] sm:$0xff]
      %v2815 = vld [vmem:[%s2806 + $0x40] sm:$0xff]
      %v2816 = vld [vmem:[%s2806 + $0x48] sm:$0xff]
      %v2817 = vld [vmem:[%s2806 + $0x50] sm:$0xff]
      %v2818 = vld [vmem:[%s2806 + $0x58] sm:$0xff]
      %v2819 = vld [vmem:[%s2806 + $0x60] sm:$0xff]
      %v2820 = vld [vmem:[%s2806 + $0x68] sm:$0xff]
      %v2821 = vld [vmem:[%s2806 + $0x70] sm:$0xff]
      %v2822 = vld [vmem:[%s2806 + $0x78] sm:$0xff]
      %v2823 = vld [vmem:[%s2806 + $0x80] sm:$0xff]
      %v2824 = vld [vmem:[%s2806 + $0x88] sm:$0xff]
      %v2825 = vld [vmem:[%s2806 + $0x90] sm:$0xff]
      %v2826 = vld [vmem:[%s2806 + $0x98] sm:$0xff]
      %v2827 = vld [vmem:[%s2806 + $0xa0] sm:$0xff]
      %v2828 = vld [vmem:[%s2806 + $0xa8] sm:$0xff]
      %v2829 = vld [vmem:[%s2806 + $0xb0] sm:$0xff]
      %v2830 = vld [vmem:[%s2806 + $0xb8] sm:$0xff]
      %v2831 = vld [vmem:[%s2806 + $0xc0] sm:$0xff]
      %v2832 = vld [vmem:[%s2806 + $0xc8] sm:$0xff]
      %v2833 = vld [vmem:[%s2806 + $0xd0] sm:$0xff]
      %v2834 = vld [vmem:[%s2806 + $0xd8] sm:$0xff]
      %v2835 = vld [vmem:[%s2806 + $0xe0] sm:$0xff]
      %v2836 = vld [vmem:[%s2806 + $0xe8] sm:$0xff]
      %v2837 = vld [vmem:[%s2806 + $0xf0] sm:$0xff]
      %v2838 = vld [vmem:[%s2806 + $0xf8] sm:$0xff]
      %2839 = vst [vmem:[#allocation1] ss:$9 sm:$0xff] %v2794
      %s2840 = scalar_lea.vmem [#allocation1], 1
      %2841 = vst [vmem:[%s2840] ss:$9 sm:$0xff] %v2800
      %s2842 = scalar_lea.vmem [#allocation1], 2
      %2843 = vst [vmem:[%s2842] ss:$9 sm:$0xff] %v2801
      %s2844 = scalar_lea.vmem [#allocation1], 3
      %2845 = vst [vmem:[%s2844] ss:$9 sm:$0xff] %v2795
      %s2846 = scalar_lea.vmem [#allocation1], 4
      %2847 = vst [vmem:[%s2846] ss:$9 sm:$0xff] %v2802
      %s2848 = scalar_lea.vmem [#allocation1], 5
      %2849 = vst [vmem:[%s2848] ss:$9 sm:$0xff] %v2803
      %s2850 = scalar_lea.vmem [#allocation1], 6
      %2851 = vst [vmem:[%s2850] ss:$9 sm:$0xff] %v2796
      %s2852 = scalar_lea.vmem [#allocation1], 7
      %2853 = vst [vmem:[%s2852] ss:$9 sm:$0xff] %v2804
      %v2854 = vld [vmem:[#allocation1] sm:$0xff]
      %2855 = vst [vmem:[#allocation1] ss:$9 sm:$0xff] %v2805
      %v2856 = vld [vmem:[#allocation1] sm:$0xff]
      %2859 = vmatpush.msra.mxu0 %v2837
      %2860 = vmatpush.msra.mxu0 %v2835
      %2861 = vmatpush.msra.mxu0 %v2833
      %2862 = vmatpush.msra.mxu0 %v2831
      %2863 = vmatpush.msra.mxu0 %v2829
      %2864 = vmatpush.msra.mxu0 %v2827
      %2865 = vmatpush.msra.mxu0 %v2825
      %2866 = vmatpush.msra.mxu0 %v2823
      %2867 = vmatpush.msra.mxu0 %v2821
      %2868 = vmatpush.msra.mxu0 %v2819
      %2869 = vmatpush.msra.mxu0 %v2817
      %2870 = vmatpush.msra.mxu0 %v2815
      %2871 = vmatpush.msra.mxu0 %v2813
      %2872 = vmatpush.msra.mxu0 %v2811
      %2873 = vmatpush.msra.mxu0 %v2809
      %2874 = vmatpush.msra.mxu0 %v2807
      %2875 = vmatmul.f32.gmra.mxu0 %v2854
      %v2876 = vpop.f32.mrf.mxu0
      %v2877 = vadd.f32 0.0, %v2876
      %2878 = vmatmul.f32.gmra.mxu0 %v2856
      %v2879 = vpop.f32.mrf.mxu0
      %v2880 = vadd.f32 0.0, %v2879
      %2881 = vdwg.mxu0
      %2882 = vmatpush.msra.mxu0 %v2838
      %2883 = vmatpush.msra.mxu0 %v2836
      %2884 = vmatpush.msra.mxu0 %v2834
      %2885 = vmatpush.msra.mxu0 %v2832
      %2886 = vmatpush.msra.mxu0 %v2830
      %2887 = vmatpush.msra.mxu0 %v2828
      %2888 = vmatpush.msra.mxu0 %v2826
      %2889 = vmatpush.msra.mxu0 %v2824
      %2890 = vmatpush.msra.mxu0 %v2822
      %2891 = vmatpush.msra.mxu0 %v2820
      %2892 = vmatpush.msra.mxu0 %v2818
      %2893 = vmatpush.msra.mxu0 %v2816
      %2894 = vmatpush.msra.mxu0 %v2814
      %2895 = vmatpush.msra.mxu0 %v2812
      %2896 = vmatpush.msra.mxu0 %v2810
      %2897 = vmatpush.msra.mxu0 %v2808
      %2898 = vmatmul.f32.gmra.mxu0 %v2854
      %v2899 = vpop.f32.mrf.mxu0
      %v2900 = vadd.f32 0.0, %v2899
      %2901 = vmatmul.f32.gmra.mxu0 %v2856
      %v2902 = vpop.f32.mrf.mxu0
      %v2903 = vadd.f32 0.0, %v2902
      %2904 = vdwg.mxu0
      %v2905 = vadd.f32 %v2790, %v2877
      %v2906 = vadd.f32 %v2791, %v2900
      %v2907 = vadd.f32 %v2792, %v2880
      %v2908 = vadd.f32 %v2793, %v2903
      %v2909 = vld [vmem:[%s2108 + $0x3] sm:$0x7]
      %v2910 = vld [vmem:[%s2108 + $0xb] sm:$0x7]
      %v2911 = vld [vmem:[%s2108 + $0x13] sm:$0x7]
      %v2915 = vrot.slane %v2909, 1
      %v2916 = vrot.slane %v2909, 2
      %v2917 = vrot.slane %v2910, 1
      %v2918 = vrot.slane %v2910, 2
      %v2919 = vrot.slane %v2911, 1
      %v2920 = vrot.slane %v2911, 2
      %s2921 = scalar_lea.vmem %s5, 1792
      %v2922 = vld [vmem:[%s2921] sm:$0xff]
      %v2923 = vld [vmem:[%s2921 + $0x8] sm:$0xff]
      %v2924 = vld [vmem:[%s2921 + $0x10] sm:$0xff]
      %v2925 = vld [vmem:[%s2921 + $0x18] sm:$0xff]
      %v2926 = vld [vmem:[%s2921 + $0x20] sm:$0xff]
      %v2927 = vld [vmem:[%s2921 + $0x28] sm:$0xff]
      %v2928 = vld [vmem:[%s2921 + $0x30] sm:$0xff]
      %v2929 = vld [vmem:[%s2921 + $0x38] sm:$0xff]
      %v2930 = vld [vmem:[%s2921 + $0x40] sm:$0xff]
      %v2931 = vld [vmem:[%s2921 + $0x48] sm:$0xff]
      %v2932 = vld [vmem:[%s2921 + $0x50] sm:$0xff]
      %v2933 = vld [vmem:[%s2921 + $0x58] sm:$0xff]
      %v2934 = vld [vmem:[%s2921 + $0x60] sm:$0xff]
      %v2935 = vld [vmem:[%s2921 + $0x68] sm:$0xff]
      %v2936 = vld [vmem:[%s2921 + $0x70] sm:$0xff]
      %v2937 = vld [vmem:[%s2921 + $0x78] sm:$0xff]
      %v2938 = vld [vmem:[%s2921 + $0x80] sm:$0xff]
      %v2939 = vld [vmem:[%s2921 + $0x88] sm:$0xff]
      %v2940 = vld [vmem:[%s2921 + $0x90] sm:$0xff]
      %v2941 = vld [vmem:[%s2921 + $0x98] sm:$0xff]
      %v2942 = vld [vmem:[%s2921 + $0xa0] sm:$0xff]
      %v2943 = vld [vmem:[%s2921 + $0xa8] sm:$0xff]
      %v2944 = vld [vmem:[%s2921 + $0xb0] sm:$0xff]
      %v2945 = vld [vmem:[%s2921 + $0xb8] sm:$0xff]
      %v2946 = vld [vmem:[%s2921 + $0xc0] sm:$0xff]
      %v2947 = vld [vmem:[%s2921 + $0xc8] sm:$0xff]
      %v2948 = vld [vmem:[%s2921 + $0xd0] sm:$0xff]
      %v2949 = vld [vmem:[%s2921 + $0xd8] sm:$0xff]
      %v2950 = vld [vmem:[%s2921 + $0xe0] sm:$0xff]
      %v2951 = vld [vmem:[%s2921 + $0xe8] sm:$0xff]
      %v2952 = vld [vmem:[%s2921 + $0xf0] sm:$0xff]
      %v2953 = vld [vmem:[%s2921 + $0xf8] sm:$0xff]
      %2954 = vst [vmem:[#allocation1] ss:$9 sm:$0xff] %v2909
      %s2955 = scalar_lea.vmem [#allocation1], 1
      %2956 = vst [vmem:[%s2955] ss:$9 sm:$0xff] %v2915
      %s2957 = scalar_lea.vmem [#allocation1], 2
      %2958 = vst [vmem:[%s2957] ss:$9 sm:$0xff] %v2916
      %s2959 = scalar_lea.vmem [#allocation1], 3
      %2960 = vst [vmem:[%s2959] ss:$9 sm:$0xff] %v2910
      %s2961 = scalar_lea.vmem [#allocation1], 4
      %2962 = vst [vmem:[%s2961] ss:$9 sm:$0xff] %v2917
      %s2963 = scalar_lea.vmem [#allocation1], 5
      %2964 = vst [vmem:[%s2963] ss:$9 sm:$0xff] %v2918
      %s2965 = scalar_lea.vmem [#allocation1], 6
      %2966 = vst [vmem:[%s2965] ss:$9 sm:$0xff] %v2911
      %s2967 = scalar_lea.vmem [#allocation1], 7
      %2968 = vst [vmem:[%s2967] ss:$9 sm:$0xff] %v2919
      %v2969 = vld [vmem:[#allocation1] sm:$0xff]
      %2970 = vst [vmem:[#allocation1] ss:$9 sm:$0xff] %v2920
      %v2971 = vld [vmem:[#allocation1] sm:$0xff]
      %2974 = vmatpush.msra.mxu0 %v2952
      %2975 = vmatpush.msra.mxu0 %v2950
      %2976 = vmatpush.msra.mxu0 %v2948
      %2977 = vmatpush.msra.mxu0 %v2946
      %2978 = vmatpush.msra.mxu0 %v2944
      %2979 = vmatpush.msra.mxu0 %v2942
      %2980 = vmatpush.msra.mxu0 %v2940
      %2981 = vmatpush.msra.mxu0 %v2938
      %2982 = vmatpush.msra.mxu0 %v2936
      %2983 = vmatpush.msra.mxu0 %v2934
      %2984 = vmatpush.msra.mxu0 %v2932
      %2985 = vmatpush.msra.mxu0 %v2930
      %2986 = vmatpush.msra.mxu0 %v2928
      %2987 = vmatpush.msra.mxu0 %v2926
      %2988 = vmatpush.msra.mxu0 %v2924
      %2989 = vmatpush.msra.mxu0 %v2922
      %2990 = vmatmul.f32.gmra.mxu0 %v2969
      %v2991 = vpop.f32.mrf.mxu0
      %v2992 = vadd.f32 0.0, %v2991
      %2993 = vmatmul.f32.gmra.mxu0 %v2971
      %v2994 = vpop.f32.mrf.mxu0
      %v2995 = vadd.f32 0.0, %v2994
      %2996 = vdwg.mxu0
      %2997 = vmatpush.msra.mxu0 %v2953
      %2998 = vmatpush.msra.mxu0 %v2951
      %2999 = vmatpush.msra.mxu0 %v2949
      %3000 = vmatpush.msra.mxu0 %v2947
      %3001 = vmatpush.msra.mxu0 %v2945
      %3002 = vmatpush.msra.mxu0 %v2943
      %3003 = vmatpush.msra.mxu0 %v2941
      %3004 = vmatpush.msra.mxu0 %v2939
      %3005 = vmatpush.msra.mxu0 %v2937
      %3006 = vmatpush.msra.mxu0 %v2935
      %3007 = vmatpush.msra.mxu0 %v2933
      %3008 = vmatpush.msra.mxu0 %v2931
      %3009 = vmatpush.msra.mxu0 %v2929
      %3010 = vmatpush.msra.mxu0 %v2927
      %3011 = vmatpush.msra.mxu0 %v2925
      %3012 = vmatpush.msra.mxu0 %v2923
      %3013 = vmatmul.f32.gmra.mxu0 %v2969
      %v3014 = vpop.f32.mrf.mxu0
      %v3015 = vadd.f32 0.0, %v3014
      %3016 = vmatmul.f32.gmra.mxu0 %v2971
      %v3017 = vpop.f32.mrf.mxu0
      %v3018 = vadd.f32 0.0, %v3017
      %3019 = vdwg.mxu0
      %v3020 = vadd.f32 %v2905, %v2992
      %v3021 = vadd.f32 %v2906, %v3015
      %v3022 = vadd.f32 %v2907, %v2995
      %v3023 = vadd.f32 %v2908, %v3018
      %s3024 = scalar_lea.vmem [#allocation3], 16
      %v3025 = vld [vmem:[%s3024] sm:$0x7]
      %v3026 = vld [vmem:[%s3024 + $0x8] sm:$0x7]
      %v3027 = vld [vmem:[%s3024 + $0x10] sm:$0x7]
      %v3031 = vrot.slane %v3025, 1
      %v3032 = vrot.slane %v3025, 2
      %v3033 = vrot.slane %v3026, 1
      %v3034 = vrot.slane %v3026, 2
      %v3035 = vrot.slane %v3027, 1
      %v3036 = vrot.slane %v3027, 2
      %s3037 = scalar_lea.vmem %s5, 2048
      %v3038 = vld [vmem:[%s3037] sm:$0xff]
      %v3039 = vld [vmem:[%s3037 + $0x8] sm:$0xff]
      %v3040 = vld [vmem:[%s3037 + $0x10] sm:$0xff]
      %v3041 = vld [vmem:[%s3037 + $0x18] sm:$0xff]
      %v3042 = vld [vmem:[%s3037 + $0x20] sm:$0xff]
      %v3043 = vld [vmem:[%s3037 + $0x28] sm:$0xff]
      %v3044 = vld [vmem:[%s3037 + $0x30] sm:$0xff]
      %v3045 = vld [vmem:[%s3037 + $0x38] sm:$0xff]
      %v3046 = vld [vmem:[%s3037 + $0x40] sm:$0xff]
      %v3047 = vld [vmem:[%s3037 + $0x48] sm:$0xff]
      %v3048 = vld [vmem:[%s3037 + $0x50] sm:$0xff]
      %v3049 = vld [vmem:[%s3037 + $0x58] sm:$0xff]
      %v3050 = vld [vmem:[%s3037 + $0x60] sm:$0xff]
      %v3051 = vld [vmem:[%s3037 + $0x68] sm:$0xff]
      %v3052 = vld [vmem:[%s3037 + $0x70] sm:$0xff]
      %v3053 = vld [vmem:[%s3037 + $0x78] sm:$0xff]
      %v3054 = vld [vmem:[%s3037 + $0x80] sm:$0xff]
      %v3055 = vld [vmem:[%s3037 + $0x88] sm:$0xff]
      %v3056 = vld [vmem:[%s3037 + $0x90] sm:$0xff]
      %v3057 = vld [vmem:[%s3037 + $0x98] sm:$0xff]
      %v3058 = vld [vmem:[%s3037 + $0xa0] sm:$0xff]
      %v3059 = vld [vmem:[%s3037 + $0xa8] sm:$0xff]
      %v3060 = vld [vmem:[%s3037 + $0xb0] sm:$0xff]
      %v3061 = vld [vmem:[%s3037 + $0xb8] sm:$0xff]
      %v3062 = vld [vmem:[%s3037 + $0xc0] sm:$0xff]
      %v3063 = vld [vmem:[%s3037 + $0xc8] sm:$0xff]
      %v3064 = vld [vmem:[%s3037 + $0xd0] sm:$0xff]
      %v3065 = vld [vmem:[%s3037 + $0xd8] sm:$0xff]
      %v3066 = vld [vmem:[%s3037 + $0xe0] sm:$0xff]
      %v3067 = vld [vmem:[%s3037 + $0xe8] sm:$0xff]
      %v3068 = vld [vmem:[%s3037 + $0xf0] sm:$0xff]
      %v3069 = vld [vmem:[%s3037 + $0xf8] sm:$0xff]
      %3070 = vst [vmem:[#allocation1] ss:$9 sm:$0xff] %v3025
      %s3071 = scalar_lea.vmem [#allocation1], 1
      %3072 = vst [vmem:[%s3071] ss:$9 sm:$0xff] %v3031
      %s3073 = scalar_lea.vmem [#allocation1], 2
      %3074 = vst [vmem:[%s3073] ss:$9 sm:$0xff] %v3032
      %s3075 = scalar_lea.vmem [#allocation1], 3
      %3076 = vst [vmem:[%s3075] ss:$9 sm:$0xff] %v3026
      %s3077 = scalar_lea.vmem [#allocation1], 4
      %3078 = vst [vmem:[%s3077] ss:$9 sm:$0xff] %v3033
      %s3079 = scalar_lea.vmem [#allocation1], 5
      %3080 = vst [vmem:[%s3079] ss:$9 sm:$0xff] %v3034
      %s3081 = scalar_lea.vmem [#allocation1], 6
      %3082 = vst [vmem:[%s3081] ss:$9 sm:$0xff] %v3027
      %s3083 = scalar_lea.vmem [#allocation1], 7
      %3084 = vst [vmem:[%s3083] ss:$9 sm:$0xff] %v3035
      %v3085 = vld [vmem:[#allocation1] sm:$0xff]
      %3086 = vst [vmem:[#allocation1] ss:$9 sm:$0xff] %v3036
      %v3087 = vld [vmem:[#allocation1] sm:$0xff]
      %3090 = vmatpush.msra.mxu0 %v3068
      %3091 = vmatpush.msra.mxu0 %v3066
      %3092 = vmatpush.msra.mxu0 %v3064
      %3093 = vmatpush.msra.mxu0 %v3062
      %3094 = vmatpush.msra.mxu0 %v3060
      %3095 = vmatpush.msra.mxu0 %v3058
      %3096 = vmatpush.msra.mxu0 %v3056
      %3097 = vmatpush.msra.mxu0 %v3054
      %3098 = vmatpush.msra.mxu0 %v3052
      %3099 = vmatpush.msra.mxu0 %v3050
      %3100 = vmatpush.msra.mxu0 %v3048
      %3101 = vmatpush.msra.mxu0 %v3046
      %3102 = vmatpush.msra.mxu0 %v3044
      %3103 = vmatpush.msra.mxu0 %v3042
      %3104 = vmatpush.msra.mxu0 %v3040
      %3105 = vmatpush.msra.mxu0 %v3038
      %3106 = vmatmul.f32.gmra.mxu0 %v3085
      %v3107 = vpop.f32.mrf.mxu0
      %v3108 = vadd.f32 0.0, %v3107
      %3109 = vmatmul.f32.gmra.mxu0 %v3087
      %v3110 = vpop.f32.mrf.mxu0
      %v3111 = vadd.f32 0.0, %v3110
      %3112 = vdwg.mxu0
      %3113 = vmatpush.msra.mxu0 %v3069
      %3114 = vmatpush.msra.mxu0 %v3067
      %3115 = vmatpush.msra.mxu0 %v3065
      %3116 = vmatpush.msra.mxu0 %v3063
      %3117 = vmatpush.msra.mxu0 %v3061
      %3118 = vmatpush.msra.mxu0 %v3059
      %3119 = vmatpush.msra.mxu0 %v3057
      %3120 = vmatpush.msra.mxu0 %v3055
      %3121 = vmatpush.msra.mxu0 %v3053
      %3122 = vmatpush.msra.mxu0 %v3051
      %3123 = vmatpush.msra.mxu0 %v3049
      %3124 = vmatpush.msra.mxu0 %v3047
      %3125 = vmatpush.msra.mxu0 %v3045
      %3126 = vmatpush.msra.mxu0 %v3043
      %3127 = vmatpush.msra.mxu0 %v3041
      %3128 = vmatpush.msra.mxu0 %v3039
      %3129 = vmatmul.f32.gmra.mxu0 %v3085
      %v3130 = vpop.f32.mrf.mxu0
      %v3131 = vadd.f32 0.0, %v3130
      %3132 = vmatmul.f32.gmra.mxu0 %v3087
      %v3133 = vpop.f32.mrf.mxu0
      %v3134 = vadd.f32 0.0, %v3133
      %3135 = vdwg.mxu0
      %v3136 = vadd.f32 %v3020, %v3108
      %v3137 = vadd.f32 %v3021, %v3131
      %v3138 = vadd.f32 %v3022, %v3111
      %v3139 = vadd.f32 %v3023, %v3134
      %v3140 = vld [vmem:[%s3024 + $0x1] sm:$0x7]
      %v3141 = vld [vmem:[%s3024 + $0x9] sm:$0x7]
      %v3142 = vld [vmem:[%s3024 + $0x11] sm:$0x7]
      %v3146 = vrot.slane %v3140, 1
      %v3147 = vrot.slane %v3140, 2
      %v3148 = vrot.slane %v3141, 1
      %v3149 = vrot.slane %v3141, 2
      %v3150 = vrot.slane %v3142, 1
      %v3151 = vrot.slane %v3142, 2
      %s3152 = scalar_lea.vmem %s5, 2304
      %v3153 = vld [vmem:[%s3152] sm:$0xff]
      %v3154 = vld [vmem:[%s3152 + $0x8] sm:$0xff]
      %v3155 = vld [vmem:[%s3152 + $0x10] sm:$0xff]
      %v3156 = vld [vmem:[%s3152 + $0x18] sm:$0xff]
      %v3157 = vld [vmem:[%s3152 + $0x20] sm:$0xff]
      %v3158 = vld [vmem:[%s3152 + $0x28] sm:$0xff]
      %v3159 = vld [vmem:[%s3152 + $0x30] sm:$0xff]
      %v3160 = vld [vmem:[%s3152 + $0x38] sm:$0xff]
      %v3161 = vld [vmem:[%s3152 + $0x40] sm:$0xff]
      %v3162 = vld [vmem:[%s3152 + $0x48] sm:$0xff]
      %v3163 = vld [vmem:[%s3152 + $0x50] sm:$0xff]
      %v3164 = vld [vmem:[%s3152 + $0x58] sm:$0xff]
      %v3165 = vld [vmem:[%s3152 + $0x60] sm:$0xff]
      %v3166 = vld [vmem:[%s3152 + $0x68] sm:$0xff]
      %v3167 = vld [vmem:[%s3152 + $0x70] sm:$0xff]
      %v3168 = vld [vmem:[%s3152 + $0x78] sm:$0xff]
      %v3169 = vld [vmem:[%s3152 + $0x80] sm:$0xff]
      %v3170 = vld [vmem:[%s3152 + $0x88] sm:$0xff]
      %v3171 = vld [vmem:[%s3152 + $0x90] sm:$0xff]
      %v3172 = vld [vmem:[%s3152 + $0x98] sm:$0xff]
      %v3173 = vld [vmem:[%s3152 + $0xa0] sm:$0xff]
      %v3174 = vld [vmem:[%s3152 + $0xa8] sm:$0xff]
      %v3175 = vld [vmem:[%s3152 + $0xb0] sm:$0xff]
      %v3176 = vld [vmem:[%s3152 + $0xb8] sm:$0xff]
      %v3177 = vld [vmem:[%s3152 + $0xc0] sm:$0xff]
      %v3178 = vld [vmem:[%s3152 + $0xc8] sm:$0xff]
      %v3179 = vld [vmem:[%s3152 + $0xd0] sm:$0xff]
      %v3180 = vld [vmem:[%s3152 + $0xd8] sm:$0xff]
      %v3181 = vld [vmem:[%s3152 + $0xe0] sm:$0xff]
      %v3182 = vld [vmem:[%s3152 + $0xe8] sm:$0xff]
      %v3183 = vld [vmem:[%s3152 + $0xf0] sm:$0xff]
      %v3184 = vld [vmem:[%s3152 + $0xf8] sm:$0xff]
      %3185 = vst [vmem:[#allocation1] ss:$9 sm:$0xff] %v3140
      %s3186 = scalar_lea.vmem [#allocation1], 1
      %3187 = vst [vmem:[%s3186] ss:$9 sm:$0xff] %v3146
      %s3188 = scalar_lea.vmem [#allocation1], 2
      %3189 = vst [vmem:[%s3188] ss:$9 sm:$0xff] %v3147
      %s3190 = scalar_lea.vmem [#allocation1], 3
      %3191 = vst [vmem:[%s3190] ss:$9 sm:$0xff] %v3141
      %s3192 = scalar_lea.vmem [#allocation1], 4
      %3193 = vst [vmem:[%s3192] ss:$9 sm:$0xff] %v3148
      %s3194 = scalar_lea.vmem [#allocation1], 5
      %3195 = vst [vmem:[%s3194] ss:$9 sm:$0xff] %v3149
      %s3196 = scalar_lea.vmem [#allocation1], 6
      %3197 = vst [vmem:[%s3196] ss:$9 sm:$0xff] %v3142
      %s3198 = scalar_lea.vmem [#allocation1], 7
      %3199 = vst [vmem:[%s3198] ss:$9 sm:$0xff] %v3150
      %v3200 = vld [vmem:[#allocation1] sm:$0xff]
      %3201 = vst [vmem:[#allocation1] ss:$9 sm:$0xff] %v3151
      %v3202 = vld [vmem:[#allocation1] sm:$0xff]
      %3205 = vmatpush.msra.mxu0 %v3183
      %3206 = vmatpush.msra.mxu0 %v3181
      %3207 = vmatpush.msra.mxu0 %v3179
      %3208 = vmatpush.msra.mxu0 %v3177
      %3209 = vmatpush.msra.mxu0 %v3175
      %3210 = vmatpush.msra.mxu0 %v3173
      %3211 = vmatpush.msra.mxu0 %v3171
      %3212 = vmatpush.msra.mxu0 %v3169
      %3213 = vmatpush.msra.mxu0 %v3167
      %3214 = vmatpush.msra.mxu0 %v3165
      %3215 = vmatpush.msra.mxu0 %v3163
      %3216 = vmatpush.msra.mxu0 %v3161
      %3217 = vmatpush.msra.mxu0 %v3159
      %3218 = vmatpush.msra.mxu0 %v3157
      %3219 = vmatpush.msra.mxu0 %v3155
      %3220 = vmatpush.msra.mxu0 %v3153
      %3221 = vmatmul.f32.gmra.mxu0 %v3200
      %v3222 = vpop.f32.mrf.mxu0
      %v3223 = vadd.f32 0.0, %v3222
      %3224 = vmatmul.f32.gmra.mxu0 %v3202
      %v3225 = vpop.f32.mrf.mxu0
      %v3226 = vadd.f32 0.0, %v3225
      %3227 = vdwg.mxu0
      %3228 = vmatpush.msra.mxu0 %v3184
      %3229 = vmatpush.msra.mxu0 %v3182
      %3230 = vmatpush.msra.mxu0 %v3180
      %3231 = vmatpush.msra.mxu0 %v3178
      %3232 = vmatpush.msra.mxu0 %v3176
      %3233 = vmatpush.msra.mxu0 %v3174
      %3234 = vmatpush.msra.mxu0 %v3172
      %3235 = vmatpush.msra.mxu0 %v3170
      %3236 = vmatpush.msra.mxu0 %v3168
      %3237 = vmatpush.msra.mxu0 %v3166
      %3238 = vmatpush.msra.mxu0 %v3164
      %3239 = vmatpush.msra.mxu0 %v3162
      %3240 = vmatpush.msra.mxu0 %v3160
      %3241 = vmatpush.msra.mxu0 %v3158
      %3242 = vmatpush.msra.mxu0 %v3156
      %3243 = vmatpush.msra.mxu0 %v3154
      %3244 = vmatmul.f32.gmra.mxu0 %v3200
      %v3245 = vpop.f32.mrf.mxu0
      %v3246 = vadd.f32 0.0, %v3245
      %3247 = vmatmul.f32.gmra.mxu0 %v3202
      %v3248 = vpop.f32.mrf.mxu0
      %v3249 = vadd.f32 0.0, %v3248
      %3250 = vdwg.mxu0
      %v3251 = vadd.f32 %v3136, %v3223
      %v3252 = vadd.f32 %v3137, %v3246
      %v3253 = vadd.f32 %v3138, %v3226
      %v3254 = vadd.f32 %v3139, %v3249
      %v3255 = vld [vmem:[%s3024 + $0x2] sm:$0x7]
      %v3256 = vld [vmem:[%s3024 + $0xa] sm:$0x7]
      %v3257 = vld [vmem:[%s3024 + $0x12] sm:$0x7]
      %v3261 = vrot.slane %v3255, 1
      %v3262 = vrot.slane %v3255, 2
      %v3263 = vrot.slane %v3256, 1
      %v3264 = vrot.slane %v3256, 2
      %v3265 = vrot.slane %v3257, 1
      %v3266 = vrot.slane %v3257, 2
      %s3267 = scalar_lea.vmem %s5, 2560
      %v3268 = vld [vmem:[%s3267] sm:$0xff]
      %v3269 = vld [vmem:[%s3267 + $0x8] sm:$0xff]
      %v3270 = vld [vmem:[%s3267 + $0x10] sm:$0xff]
      %v3271 = vld [vmem:[%s3267 + $0x18] sm:$0xff]
      %v3272 = vld [vmem:[%s3267 + $0x20] sm:$0xff]
      %v3273 = vld [vmem:[%s3267 + $0x28] sm:$0xff]
      %v3274 = vld [vmem:[%s3267 + $0x30] sm:$0xff]
      %v3275 = vld [vmem:[%s3267 + $0x38] sm:$0xff]
      %v3276 = vld [vmem:[%s3267 + $0x40] sm:$0xff]
      %v3277 = vld [vmem:[%s3267 + $0x48] sm:$0xff]
      %v3278 = vld [vmem:[%s3267 + $0x50] sm:$0xff]
      %v3279 = vld [vmem:[%s3267 + $0x58] sm:$0xff]
      %v3280 = vld [vmem:[%s3267 + $0x60] sm:$0xff]
      %v3281 = vld [vmem:[%s3267 + $0x68] sm:$0xff]
      %v3282 = vld [vmem:[%s3267 + $0x70] sm:$0xff]
      %v3283 = vld [vmem:[%s3267 + $0x78] sm:$0xff]
      %v3284 = vld [vmem:[%s3267 + $0x80] sm:$0xff]
      %v3285 = vld [vmem:[%s3267 + $0x88] sm:$0xff]
      %v3286 = vld [vmem:[%s3267 + $0x90] sm:$0xff]
      %v3287 = vld [vmem:[%s3267 + $0x98] sm:$0xff]
      %v3288 = vld [vmem:[%s3267 + $0xa0] sm:$0xff]
      %v3289 = vld [vmem:[%s3267 + $0xa8] sm:$0xff]
      %v3290 = vld [vmem:[%s3267 + $0xb0] sm:$0xff]
      %v3291 = vld [vmem:[%s3267 + $0xb8] sm:$0xff]
      %v3292 = vld [vmem:[%s3267 + $0xc0] sm:$0xff]
      %v3293 = vld [vmem:[%s3267 + $0xc8] sm:$0xff]
      %v3294 = vld [vmem:[%s3267 + $0xd0] sm:$0xff]
      %v3295 = vld [vmem:[%s3267 + $0xd8] sm:$0xff]
      %v3296 = vld [vmem:[%s3267 + $0xe0] sm:$0xff]
      %v3297 = vld [vmem:[%s3267 + $0xe8] sm:$0xff]
      %v3298 = vld [vmem:[%s3267 + $0xf0] sm:$0xff]
      %v3299 = vld [vmem:[%s3267 + $0xf8] sm:$0xff]
      %3300 = vst [vmem:[#allocation1] ss:$9 sm:$0xff] %v3255
      %s3301 = scalar_lea.vmem [#allocation1], 1
      %3302 = vst [vmem:[%s3301] ss:$9 sm:$0xff] %v3261
      %s3303 = scalar_lea.vmem [#allocation1], 2
      %3304 = vst [vmem:[%s3303] ss:$9 sm:$0xff] %v3262
      %s3305 = scalar_lea.vmem [#allocation1], 3
      %3306 = vst [vmem:[%s3305] ss:$9 sm:$0xff] %v3256
      %s3307 = scalar_lea.vmem [#allocation1], 4
      %3308 = vst [vmem:[%s3307] ss:$9 sm:$0xff] %v3263
      %s3309 = scalar_lea.vmem [#allocation1], 5
      %3310 = vst [vmem:[%s3309] ss:$9 sm:$0xff] %v3264
      %s3311 = scalar_lea.vmem [#allocation1], 6
      %3312 = vst [vmem:[%s3311] ss:$9 sm:$0xff] %v3257
      %s3313 = scalar_lea.vmem [#allocation1], 7
      %3314 = vst [vmem:[%s3313] ss:$9 sm:$0xff] %v3265
      %v3315 = vld [vmem:[#allocation1] sm:$0xff]
      %3316 = vst [vmem:[#allocation1] ss:$9 sm:$0xff] %v3266
      %v3317 = vld [vmem:[#allocation1] sm:$0xff]
      %3320 = vmatpush.msra.mxu0 %v3298
      %3321 = vmatpush.msra.mxu0 %v3296
      %3322 = vmatpush.msra.mxu0 %v3294
      %3323 = vmatpush.msra.mxu0 %v3292
      %3324 = vmatpush.msra.mxu0 %v3290
      %3325 = vmatpush.msra.mxu0 %v3288
      %3326 = vmatpush.msra.mxu0 %v3286
      %3327 = vmatpush.msra.mxu0 %v3284
      %3328 = vmatpush.msra.mxu0 %v3282
      %3329 = vmatpush.msra.mxu0 %v3280
      %3330 = vmatpush.msra.mxu0 %v3278
      %3331 = vmatpush.msra.mxu0 %v3276
      %3332 = vmatpush.msra.mxu0 %v3274
      %3333 = vmatpush.msra.mxu0 %v3272
      %3334 = vmatpush.msra.mxu0 %v3270
      %3335 = vmatpush.msra.mxu0 %v3268
      %3336 = vmatmul.f32.gmra.mxu0 %v3315
      %v3337 = vpop.f32.mrf.mxu0
      %v3338 = vadd.f32 0.0, %v3337
      %3339 = vmatmul.f32.gmra.mxu0 %v3317
      %v3340 = vpop.f32.mrf.mxu0
      %v3341 = vadd.f32 0.0, %v3340
      %3342 = vdwg.mxu0
      %3343 = vmatpush.msra.mxu0 %v3299
      %3344 = vmatpush.msra.mxu0 %v3297
      %3345 = vmatpush.msra.mxu0 %v3295
      %3346 = vmatpush.msra.mxu0 %v3293
      %3347 = vmatpush.msra.mxu0 %v3291
      %3348 = vmatpush.msra.mxu0 %v3289
      %3349 = vmatpush.msra.mxu0 %v3287
      %3350 = vmatpush.msra.mxu0 %v3285
      %3351 = vmatpush.msra.mxu0 %v3283
      %3352 = vmatpush.msra.mxu0 %v3281
      %3353 = vmatpush.msra.mxu0 %v3279
      %3354 = vmatpush.msra.mxu0 %v3277
      %3355 = vmatpush.msra.mxu0 %v3275
      %3356 = vmatpush.msra.mxu0 %v3273
      %3357 = vmatpush.msra.mxu0 %v3271
      %3358 = vmatpush.msra.mxu0 %v3269
      %3359 = vmatmul.f32.gmra.mxu0 %v3315
      %v3360 = vpop.f32.mrf.mxu0
      %v3361 = vadd.f32 0.0, %v3360
      %3362 = vmatmul.f32.gmra.mxu0 %v3317
      %v3363 = vpop.f32.mrf.mxu0
      %v3364 = vadd.f32 0.0, %v3363
      %3365 = vdwg.mxu0
      %v3366 = vadd.f32 %v3251, %v3338
      %v3367 = vadd.f32 %v3252, %v3361
      %v3368 = vadd.f32 %v3253, %v3341
      %v3369 = vadd.f32 %v3254, %v3364
      %v3370 = vld [vmem:[%s3024 + $0x3] sm:$0x7]
      %v3371 = vld [vmem:[%s3024 + $0xb] sm:$0x7]
      %v3372 = vld [vmem:[%s3024 + $0x13] sm:$0x7]
      %v3376 = vrot.slane %v3370, 1
      %v3377 = vrot.slane %v3370, 2
      %v3378 = vrot.slane %v3371, 1
      %v3379 = vrot.slane %v3371, 2
      %v3380 = vrot.slane %v3372, 1
      %v3381 = vrot.slane %v3372, 2
      %s3382 = scalar_lea.vmem %s5, 2816
      %v3383 = vld [vmem:[%s3382] sm:$0xff]
      %v3384 = vld [vmem:[%s3382 + $0x8] sm:$0xff]
      %v3385 = vld [vmem:[%s3382 + $0x10] sm:$0xff]
      %v3386 = vld [vmem:[%s3382 + $0x18] sm:$0xff]
      %v3387 = vld [vmem:[%s3382 + $0x20] sm:$0xff]
      %v3388 = vld [vmem:[%s3382 + $0x28] sm:$0xff]
      %v3389 = vld [vmem:[%s3382 + $0x30] sm:$0xff]
      %v3390 = vld [vmem:[%s3382 + $0x38] sm:$0xff]
      %v3391 = vld [vmem:[%s3382 + $0x40] sm:$0xff]
      %v3392 = vld [vmem:[%s3382 + $0x48] sm:$0xff]
      %v3393 = vld [vmem:[%s3382 + $0x50] sm:$0xff]
      %v3394 = vld [vmem:[%s3382 + $0x58] sm:$0xff]
      %v3395 = vld [vmem:[%s3382 + $0x60] sm:$0xff]
      %v3396 = vld [vmem:[%s3382 + $0x68] sm:$0xff]
      %v3397 = vld [vmem:[%s3382 + $0x70] sm:$0xff]
      %v3398 = vld [vmem:[%s3382 + $0x78] sm:$0xff]
      %v3399 = vld [vmem:[%s3382 + $0x80] sm:$0xff]
      %v3400 = vld [vmem:[%s3382 + $0x88] sm:$0xff]
      %v3401 = vld [vmem:[%s3382 + $0x90] sm:$0xff]
      %v3402 = vld [vmem:[%s3382 + $0x98] sm:$0xff]
      %v3403 = vld [vmem:[%s3382 + $0xa0] sm:$0xff]
      %v3404 = vld [vmem:[%s3382 + $0xa8] sm:$0xff]
      %v3405 = vld [vmem:[%s3382 + $0xb0] sm:$0xff]
      %v3406 = vld [vmem:[%s3382 + $0xb8] sm:$0xff]
      %v3407 = vld [vmem:[%s3382 + $0xc0] sm:$0xff]
      %v3408 = vld [vmem:[%s3382 + $0xc8] sm:$0xff]
      %v3409 = vld [vmem:[%s3382 + $0xd0] sm:$0xff]
      %v3410 = vld [vmem:[%s3382 + $0xd8] sm:$0xff]
      %v3411 = vld [vmem:[%s3382 + $0xe0] sm:$0xff]
      %v3412 = vld [vmem:[%s3382 + $0xe8] sm:$0xff]
      %v3413 = vld [vmem:[%s3382 + $0xf0] sm:$0xff]
      %v3414 = vld [vmem:[%s3382 + $0xf8] sm:$0xff]
      %3415 = vst [vmem:[#allocation1] ss:$9 sm:$0xff] %v3370
      %s3416 = scalar_lea.vmem [#allocation1], 1
      %3417 = vst [vmem:[%s3416] ss:$9 sm:$0xff] %v3376
      %s3418 = scalar_lea.vmem [#allocation1], 2
      %3419 = vst [vmem:[%s3418] ss:$9 sm:$0xff] %v3377
      %s3420 = scalar_lea.vmem [#allocation1], 3
      %3421 = vst [vmem:[%s3420] ss:$9 sm:$0xff] %v3371
      %s3422 = scalar_lea.vmem [#allocation1], 4
      %3423 = vst [vmem:[%s3422] ss:$9 sm:$0xff] %v3378
      %s3424 = scalar_lea.vmem [#allocation1], 5
      %3425 = vst [vmem:[%s3424] ss:$9 sm:$0xff] %v3379
      %s3426 = scalar_lea.vmem [#allocation1], 6
      %3427 = vst [vmem:[%s3426] ss:$9 sm:$0xff] %v3372
      %s3428 = scalar_lea.vmem [#allocation1], 7
      %3429 = vst [vmem:[%s3428] ss:$9 sm:$0xff] %v3380
      %v3430 = vld [vmem:[#allocation1] sm:$0xff]
      %3431 = vst [vmem:[#allocation1] ss:$9 sm:$0xff] %v3381
      %v3432 = vld [vmem:[#allocation1] sm:$0xff]
      %3435 = vmatpush.msra.mxu0 %v3413
      %3436 = vmatpush.msra.mxu0 %v3411
      %3437 = vmatpush.msra.mxu0 %v3409
      %3438 = vmatpush.msra.mxu0 %v3407
      %3439 = vmatpush.msra.mxu0 %v3405
      %3440 = vmatpush.msra.mxu0 %v3403
      %3441 = vmatpush.msra.mxu0 %v3401
      %3442 = vmatpush.msra.mxu0 %v3399
      %3443 = vmatpush.msra.mxu0 %v3397
      %3444 = vmatpush.msra.mxu0 %v3395
      %3445 = vmatpush.msra.mxu0 %v3393
      %3446 = vmatpush.msra.mxu0 %v3391
      %3447 = vmatpush.msra.mxu0 %v3389
      %3448 = vmatpush.msra.mxu0 %v3387
      %3449 = vmatpush.msra.mxu0 %v3385
      %3450 = vmatpush.msra.mxu0 %v3383
      %3451 = vmatmul.f32.gmra.mxu0 %v3430
      %v3452 = vpop.f32.mrf.mxu0
      %v3453 = vadd.f32 0.0, %v3452
      %3454 = vmatmul.f32.gmra.mxu0 %v3432
      %v3455 = vpop.f32.mrf.mxu0
      %v3456 = vadd.f32 0.0, %v3455
      %3457 = vdwg.mxu0
      %3458 = vmatpush.msra.mxu0 %v3414
      %3459 = vmatpush.msra.mxu0 %v3412
      %3460 = vmatpush.msra.mxu0 %v3410
      %3461 = vmatpush.msra.mxu0 %v3408
      %3462 = vmatpush.msra.mxu0 %v3406
      %3463 = vmatpush.msra.mxu0 %v3404
      %3464 = vmatpush.msra.mxu0 %v3402
      %3465 = vmatpush.msra.mxu0 %v3400
      %3466 = vmatpush.msra.mxu0 %v3398
      %3467 = vmatpush.msra.mxu0 %v3396
      %3468 = vmatpush.msra.mxu0 %v3394
      %3469 = vmatpush.msra.mxu0 %v3392
      %3470 = vmatpush.msra.mxu0 %v3390
      %3471 = vmatpush.msra.mxu0 %v3388
      %3472 = vmatpush.msra.mxu0 %v3386
      %3473 = vmatpush.msra.mxu0 %v3384
      %3474 = vmatmul.f32.gmra.mxu0 %v3430
      %v3475 = vpop.f32.mrf.mxu0
      %v3476 = vadd.f32 0.0, %v3475
      %3477 = vmatmul.f32.gmra.mxu0 %v3432
      %v3478 = vpop.f32.mrf.mxu0
      %v3479 = vadd.f32 0.0, %v3478
      %3480 = vdwg.mxu0
      %v3481 = vadd.f32 %v3366, %v3453
      %v3482 = vadd.f32 %v3367, %v3476
      %v3483 = vadd.f32 %v3368, %v3456
      %v3484 = vadd.f32 %v3369, %v3479
      %s3485 = scalar_lea.vmem [#allocation3], 24
      %v3486 = vld [vmem:[%s3485] sm:$0x7]
      %v3487 = vld [vmem:[%s3485 + $0x8] sm:$0x7]
      %v3488 = vld [vmem:[%s3485 + $0x10] sm:$0x7]
      %v3492 = vrot.slane %v3486, 1
      %v3493 = vrot.slane %v3486, 2
      %v3494 = vrot.slane %v3487, 1
      %v3495 = vrot.slane %v3487, 2
      %v3496 = vrot.slane %v3488, 1
      %v3497 = vrot.slane %v3488, 2
      %s3498 = scalar_lea.vmem %s5, 3072
      %v3499 = vld [vmem:[%s3498] sm:$0xff]
      %v3500 = vld [vmem:[%s3498 + $0x8] sm:$0xff]
      %v3501 = vld [vmem:[%s3498 + $0x10] sm:$0xff]
      %v3502 = vld [vmem:[%s3498 + $0x18] sm:$0xff]
      %v3503 = vld [vmem:[%s3498 + $0x20] sm:$0xff]
      %v3504 = vld [vmem:[%s3498 + $0x28] sm:$0xff]
      %v3505 = vld [vmem:[%s3498 + $0x30] sm:$0xff]
      %v3506 = vld [vmem:[%s3498 + $0x38] sm:$0xff]
      %v3507 = vld [vmem:[%s3498 + $0x40] sm:$0xff]
      %v3508 = vld [vmem:[%s3498 + $0x48] sm:$0xff]
      %v3509 = vld [vmem:[%s3498 + $0x50] sm:$0xff]
      %v3510 = vld [vmem:[%s3498 + $0x58] sm:$0xff]
      %v3511 = vld [vmem:[%s3498 + $0x60] sm:$0xff]
      %v3512 = vld [vmem:[%s3498 + $0x68] sm:$0xff]
      %v3513 = vld [vmem:[%s3498 + $0x70] sm:$0xff]
      %v3514 = vld [vmem:[%s3498 + $0x78] sm:$0xff]
      %v3515 = vld [vmem:[%s3498 + $0x80] sm:$0xff]
      %v3516 = vld [vmem:[%s3498 + $0x88] sm:$0xff]
      %v3517 = vld [vmem:[%s3498 + $0x90] sm:$0xff]
      %v3518 = vld [vmem:[%s3498 + $0x98] sm:$0xff]
      %v3519 = vld [vmem:[%s3498 + $0xa0] sm:$0xff]
      %v3520 = vld [vmem:[%s3498 + $0xa8] sm:$0xff]
      %v3521 = vld [vmem:[%s3498 + $0xb0] sm:$0xff]
      %v3522 = vld [vmem:[%s3498 + $0xb8] sm:$0xff]
      %v3523 = vld [vmem:[%s3498 + $0xc0] sm:$0xff]
      %v3524 = vld [vmem:[%s3498 + $0xc8] sm:$0xff]
      %v3525 = vld [vmem:[%s3498 + $0xd0] sm:$0xff]
      %v3526 = vld [vmem:[%s3498 + $0xd8] sm:$0xff]
      %v3527 = vld [vmem:[%s3498 + $0xe0] sm:$0xff]
      %v3528 = vld [vmem:[%s3498 + $0xe8] sm:$0xff]
      %v3529 = vld [vmem:[%s3498 + $0xf0] sm:$0xff]
      %v3530 = vld [vmem:[%s3498 + $0xf8] sm:$0xff]
      %3531 = vst [vmem:[#allocation1] ss:$9 sm:$0xff] %v3486
      %s3532 = scalar_lea.vmem [#allocation1], 1
      %3533 = vst [vmem:[%s3532] ss:$9 sm:$0xff] %v3492
      %s3534 = scalar_lea.vmem [#allocation1], 2
      %3535 = vst [vmem:[%s3534] ss:$9 sm:$0xff] %v3493
      %s3536 = scalar_lea.vmem [#allocation1], 3
      %3537 = vst [vmem:[%s3536] ss:$9 sm:$0xff] %v3487
      %s3538 = scalar_lea.vmem [#allocation1], 4
      %3539 = vst [vmem:[%s3538] ss:$9 sm:$0xff] %v3494
      %s3540 = scalar_lea.vmem [#allocation1], 5
      %3541 = vst [vmem:[%s3540] ss:$9 sm:$0xff] %v3495
      %s3542 = scalar_lea.vmem [#allocation1], 6
      %3543 = vst [vmem:[%s3542] ss:$9 sm:$0xff] %v3488
      %s3544 = scalar_lea.vmem [#allocation1], 7
      %3545 = vst [vmem:[%s3544] ss:$9 sm:$0xff] %v3496
      %v3546 = vld [vmem:[#allocation1] sm:$0xff]
      %3547 = vst [vmem:[#allocation1] ss:$9 sm:$0xff] %v3497
      %v3548 = vld [vmem:[#allocation1] sm:$0xff]
      %3551 = vmatpush.msra.mxu0 %v3529
      %3552 = vmatpush.msra.mxu0 %v3527
      %3553 = vmatpush.msra.mxu0 %v3525
      %3554 = vmatpush.msra.mxu0 %v3523
      %3555 = vmatpush.msra.mxu0 %v3521
      %3556 = vmatpush.msra.mxu0 %v3519
      %3557 = vmatpush.msra.mxu0 %v3517
      %3558 = vmatpush.msra.mxu0 %v3515
      %3559 = vmatpush.msra.mxu0 %v3513
      %3560 = vmatpush.msra.mxu0 %v3511
      %3561 = vmatpush.msra.mxu0 %v3509
      %3562 = vmatpush.msra.mxu0 %v3507
      %3563 = vmatpush.msra.mxu0 %v3505
      %3564 = vmatpush.msra.mxu0 %v3503
      %3565 = vmatpush.msra.mxu0 %v3501
      %3566 = vmatpush.msra.mxu0 %v3499
      %3567 = vmatmul.f32.gmra.mxu0 %v3546
      %v3568 = vpop.f32.mrf.mxu0
      %v3569 = vadd.f32 0.0, %v3568
      %3570 = vmatmul.f32.gmra.mxu0 %v3548
      %v3571 = vpop.f32.mrf.mxu0
      %v3572 = vadd.f32 0.0, %v3571
      %3573 = vdwg.mxu0
      %3574 = vmatpush.msra.mxu0 %v3530
      %3575 = vmatpush.msra.mxu0 %v3528
      %3576 = vmatpush.msra.mxu0 %v3526
      %3577 = vmatpush.msra.mxu0 %v3524
      %3578 = vmatpush.msra.mxu0 %v3522
      %3579 = vmatpush.msra.mxu0 %v3520
      %3580 = vmatpush.msra.mxu0 %v3518
      %3581 = vmatpush.msra.mxu0 %v3516
      %3582 = vmatpush.msra.mxu0 %v3514
      %3583 = vmatpush.msra.mxu0 %v3512
      %3584 = vmatpush.msra.mxu0 %v3510
      %3585 = vmatpush.msra.mxu0 %v3508
      %3586 = vmatpush.msra.mxu0 %v3506
      %3587 = vmatpush.msra.mxu0 %v3504
      %3588 = vmatpush.msra.mxu0 %v3502
      %3589 = vmatpush.msra.mxu0 %v3500
      %3590 = vmatmul.f32.gmra.mxu0 %v3546
      %v3591 = vpop.f32.mrf.mxu0
      %v3592 = vadd.f32 0.0, %v3591
      %3593 = vmatmul.f32.gmra.mxu0 %v3548
      %v3594 = vpop.f32.mrf.mxu0
      %v3595 = vadd.f32 0.0, %v3594
      %3596 = vdwg.mxu0
      %v3597 = vadd.f32 %v3481, %v3569
      %v3598 = vadd.f32 %v3482, %v3592
      %v3599 = vadd.f32 %v3483, %v3572
      %v3600 = vadd.f32 %v3484, %v3595
      %v3601 = vld [vmem:[%s3485 + $0x1] sm:$0x7]
      %v3602 = vld [vmem:[%s3485 + $0x9] sm:$0x7]
      %v3603 = vld [vmem:[%s3485 + $0x11] sm:$0x7]
      %v3607 = vrot.slane %v3601, 1
      %v3608 = vrot.slane %v3601, 2
      %v3609 = vrot.slane %v3602, 1
      %v3610 = vrot.slane %v3602, 2
      %v3611 = vrot.slane %v3603, 1
      %v3612 = vrot.slane %v3603, 2
      %s3613 = scalar_lea.vmem %s5, 3328
      %v3614 = vld [vmem:[%s3613] sm:$0xff]
      %v3615 = vld [vmem:[%s3613 + $0x8] sm:$0xff]
      %v3616 = vld [vmem:[%s3613 + $0x10] sm:$0xff]
      %v3617 = vld [vmem:[%s3613 + $0x18] sm:$0xff]
      %v3618 = vld [vmem:[%s3613 + $0x20] sm:$0xff]
      %v3619 = vld [vmem:[%s3613 + $0x28] sm:$0xff]
      %v3620 = vld [vmem:[%s3613 + $0x30] sm:$0xff]
      %v3621 = vld [vmem:[%s3613 + $0x38] sm:$0xff]
      %v3622 = vld [vmem:[%s3613 + $0x40] sm:$0xff]
      %v3623 = vld [vmem:[%s3613 + $0x48] sm:$0xff]
      %v3624 = vld [vmem:[%s3613 + $0x50] sm:$0xff]
      %v3625 = vld [vmem:[%s3613 + $0x58] sm:$0xff]
      %v3626 = vld [vmem:[%s3613 + $0x60] sm:$0xff]
      %v3627 = vld [vmem:[%s3613 + $0x68] sm:$0xff]
      %v3628 = vld [vmem:[%s3613 + $0x70] sm:$0xff]
      %v3629 = vld [vmem:[%s3613 + $0x78] sm:$0xff]
      %v3630 = vld [vmem:[%s3613 + $0x80] sm:$0xff]
      %v3631 = vld [vmem:[%s3613 + $0x88] sm:$0xff]
      %v3632 = vld [vmem:[%s3613 + $0x90] sm:$0xff]
      %v3633 = vld [vmem:[%s3613 + $0x98] sm:$0xff]
      %v3634 = vld [vmem:[%s3613 + $0xa0] sm:$0xff]
      %v3635 = vld [vmem:[%s3613 + $0xa8] sm:$0xff]
      %v3636 = vld [vmem:[%s3613 + $0xb0] sm:$0xff]
      %v3637 = vld [vmem:[%s3613 + $0xb8] sm:$0xff]
      %v3638 = vld [vmem:[%s3613 + $0xc0] sm:$0xff]
      %v3639 = vld [vmem:[%s3613 + $0xc8] sm:$0xff]
      %v3640 = vld [vmem:[%s3613 + $0xd0] sm:$0xff]
      %v3641 = vld [vmem:[%s3613 + $0xd8] sm:$0xff]
      %v3642 = vld [vmem:[%s3613 + $0xe0] sm:$0xff]
      %v3643 = vld [vmem:[%s3613 + $0xe8] sm:$0xff]
      %v3644 = vld [vmem:[%s3613 + $0xf0] sm:$0xff]
      %v3645 = vld [vmem:[%s3613 + $0xf8] sm:$0xff]
      %3646 = vst [vmem:[#allocation1] ss:$9 sm:$0xff] %v3601
      %s3647 = scalar_lea.vmem [#allocation1], 1
      %3648 = vst [vmem:[%s3647] ss:$9 sm:$0xff] %v3607
      %s3649 = scalar_lea.vmem [#allocation1], 2
      %3650 = vst [vmem:[%s3649] ss:$9 sm:$0xff] %v3608
      %s3651 = scalar_lea.vmem [#allocation1], 3
      %3652 = vst [vmem:[%s3651] ss:$9 sm:$0xff] %v3602
      %s3653 = scalar_lea.vmem [#allocation1], 4
      %3654 = vst [vmem:[%s3653] ss:$9 sm:$0xff] %v3609
      %s3655 = scalar_lea.vmem [#allocation1], 5
      %3656 = vst [vmem:[%s3655] ss:$9 sm:$0xff] %v3610
      %s3657 = scalar_lea.vmem [#allocation1], 6
      %3658 = vst [vmem:[%s3657] ss:$9 sm:$0xff] %v3603
      %s3659 = scalar_lea.vmem [#allocation1], 7
      %3660 = vst [vmem:[%s3659] ss:$9 sm:$0xff] %v3611
      %v3661 = vld [vmem:[#allocation1] sm:$0xff]
      %3662 = vst [vmem:[#allocation1] ss:$9 sm:$0xff] %v3612
      %v3663 = vld [vmem:[#allocation1] sm:$0xff]
      %3666 = vmatpush.msra.mxu0 %v3644
      %3667 = vmatpush.msra.mxu0 %v3642
      %3668 = vmatpush.msra.mxu0 %v3640
      %3669 = vmatpush.msra.mxu0 %v3638
      %3670 = vmatpush.msra.mxu0 %v3636
      %3671 = vmatpush.msra.mxu0 %v3634
      %3672 = vmatpush.msra.mxu0 %v3632
      %3673 = vmatpush.msra.mxu0 %v3630
      %3674 = vmatpush.msra.mxu0 %v3628
      %3675 = vmatpush.msra.mxu0 %v3626
      %3676 = vmatpush.msra.mxu0 %v3624
      %3677 = vmatpush.msra.mxu0 %v3622
      %3678 = vmatpush.msra.mxu0 %v3620
      %3679 = vmatpush.msra.mxu0 %v3618
      %3680 = vmatpush.msra.mxu0 %v3616
      %3681 = vmatpush.msra.mxu0 %v3614
      %3682 = vmatmul.f32.gmra.mxu0 %v3661
      %v3683 = vpop.f32.mrf.mxu0
      %v3684 = vadd.f32 0.0, %v3683
      %3685 = vmatmul.f32.gmra.mxu0 %v3663
      %v3686 = vpop.f32.mrf.mxu0
      %v3687 = vadd.f32 0.0, %v3686
      %3688 = vdwg.mxu0
      %3689 = vmatpush.msra.mxu0 %v3645
      %3690 = vmatpush.msra.mxu0 %v3643
      %3691 = vmatpush.msra.mxu0 %v3641
      %3692 = vmatpush.msra.mxu0 %v3639
      %3693 = vmatpush.msra.mxu0 %v3637
      %3694 = vmatpush.msra.mxu0 %v3635
      %3695 = vmatpush.msra.mxu0 %v3633
      %3696 = vmatpush.msra.mxu0 %v3631
      %3697 = vmatpush.msra.mxu0 %v3629
      %3698 = vmatpush.msra.mxu0 %v3627
      %3699 = vmatpush.msra.mxu0 %v3625
      %3700 = vmatpush.msra.mxu0 %v3623
      %3701 = vmatpush.msra.mxu0 %v3621
      %3702 = vmatpush.msra.mxu0 %v3619
      %3703 = vmatpush.msra.mxu0 %v3617
      %3704 = vmatpush.msra.mxu0 %v3615
      %3705 = vmatmul.f32.gmra.mxu0 %v3661
      %v3706 = vpop.f32.mrf.mxu0
      %v3707 = vadd.f32 0.0, %v3706
      %3708 = vmatmul.f32.gmra.mxu0 %v3663
      %v3709 = vpop.f32.mrf.mxu0
      %v3710 = vadd.f32 0.0, %v3709
      %3711 = vdwg.mxu0
      %v3712 = vadd.f32 %v3597, %v3684
      %v3713 = vadd.f32 %v3598, %v3707
      %v3714 = vadd.f32 %v3599, %v3687
      %v3715 = vadd.f32 %v3600, %v3710
      %v3716 = vld [vmem:[%s3485 + $0x2] sm:$0x7]
      %v3717 = vld [vmem:[%s3485 + $0xa] sm:$0x7]
      %v3718 = vld [vmem:[%s3485 + $0x12] sm:$0x7]
      %v3722 = vrot.slane %v3716, 1
      %v3723 = vrot.slane %v3716, 2
      %v3724 = vrot.slane %v3717, 1
      %v3725 = vrot.slane %v3717, 2
      %v3726 = vrot.slane %v3718, 1
      %v3727 = vrot.slane %v3718, 2
      %s3728 = scalar_lea.vmem %s5, 3584
      %v3729 = vld [vmem:[%s3728] sm:$0xff]
      %v3730 = vld [vmem:[%s3728 + $0x8] sm:$0xff]
      %v3731 = vld [vmem:[%s3728 + $0x10] sm:$0xff]
      %v3732 = vld [vmem:[%s3728 + $0x18] sm:$0xff]
      %v3733 = vld [vmem:[%s3728 + $0x20] sm:$0xff]
      %v3734 = vld [vmem:[%s3728 + $0x28] sm:$0xff]
      %v3735 = vld [vmem:[%s3728 + $0x30] sm:$0xff]
      %v3736 = vld [vmem:[%s3728 + $0x38] sm:$0xff]
      %v3737 = vld [vmem:[%s3728 + $0x40] sm:$0xff]
      %v3738 = vld [vmem:[%s3728 + $0x48] sm:$0xff]
      %v3739 = vld [vmem:[%s3728 + $0x50] sm:$0xff]
      %v3740 = vld [vmem:[%s3728 + $0x58] sm:$0xff]
      %v3741 = vld [vmem:[%s3728 + $0x60] sm:$0xff]
      %v3742 = vld [vmem:[%s3728 + $0x68] sm:$0xff]
      %v3743 = vld [vmem:[%s3728 + $0x70] sm:$0xff]
      %v3744 = vld [vmem:[%s3728 + $0x78] sm:$0xff]
      %v3745 = vld [vmem:[%s3728 + $0x80] sm:$0xff]
      %v3746 = vld [vmem:[%s3728 + $0x88] sm:$0xff]
      %v3747 = vld [vmem:[%s3728 + $0x90] sm:$0xff]
      %v3748 = vld [vmem:[%s3728 + $0x98] sm:$0xff]
      %v3749 = vld [vmem:[%s3728 + $0xa0] sm:$0xff]
      %v3750 = vld [vmem:[%s3728 + $0xa8] sm:$0xff]
      %v3751 = vld [vmem:[%s3728 + $0xb0] sm:$0xff]
      %v3752 = vld [vmem:[%s3728 + $0xb8] sm:$0xff]
      %v3753 = vld [vmem:[%s3728 + $0xc0] sm:$0xff]
      %v3754 = vld [vmem:[%s3728 + $0xc8] sm:$0xff]
      %v3755 = vld [vmem:[%s3728 + $0xd0] sm:$0xff]
      %v3756 = vld [vmem:[%s3728 + $0xd8] sm:$0xff]
      %v3757 = vld [vmem:[%s3728 + $0xe0] sm:$0xff]
      %v3758 = vld [vmem:[%s3728 + $0xe8] sm:$0xff]
      %v3759 = vld [vmem:[%s3728 + $0xf0] sm:$0xff]
      %v3760 = vld [vmem:[%s3728 + $0xf8] sm:$0xff]
      %3761 = vst [vmem:[#allocation1] ss:$9 sm:$0xff] %v3716
      %s3762 = scalar_lea.vmem [#allocation1], 1
      %3763 = vst [vmem:[%s3762] ss:$9 sm:$0xff] %v3722
      %s3764 = scalar_lea.vmem [#allocation1], 2
      %3765 = vst [vmem:[%s3764] ss:$9 sm:$0xff] %v3723
      %s3766 = scalar_lea.vmem [#allocation1], 3
      %3767 = vst [vmem:[%s3766] ss:$9 sm:$0xff] %v3717
      %s3768 = scalar_lea.vmem [#allocation1], 4
      %3769 = vst [vmem:[%s3768] ss:$9 sm:$0xff] %v3724
      %s3770 = scalar_lea.vmem [#allocation1], 5
      %3771 = vst [vmem:[%s3770] ss:$9 sm:$0xff] %v3725
      %s3772 = scalar_lea.vmem [#allocation1], 6
      %3773 = vst [vmem:[%s3772] ss:$9 sm:$0xff] %v3718
      %s3774 = scalar_lea.vmem [#allocation1], 7
      %3775 = vst [vmem:[%s3774] ss:$9 sm:$0xff] %v3726
      %v3776 = vld [vmem:[#allocation1] sm:$0xff]
      %3777 = vst [vmem:[#allocation1] ss:$9 sm:$0xff] %v3727
      %v3778 = vld [vmem:[#allocation1] sm:$0xff]
      %3781 = vmatpush.msra.mxu0 %v3759
      %3782 = vmatpush.msra.mxu0 %v3757
      %3783 = vmatpush.msra.mxu0 %v3755
      %3784 = vmatpush.msra.mxu0 %v3753
      %3785 = vmatpush.msra.mxu0 %v3751
      %3786 = vmatpush.msra.mxu0 %v3749
      %3787 = vmatpush.msra.mxu0 %v3747
      %3788 = vmatpush.msra.mxu0 %v3745
      %3789 = vmatpush.msra.mxu0 %v3743
      %3790 = vmatpush.msra.mxu0 %v3741
      %3791 = vmatpush.msra.mxu0 %v3739
      %3792 = vmatpush.msra.mxu0 %v3737
      %3793 = vmatpush.msra.mxu0 %v3735
      %3794 = vmatpush.msra.mxu0 %v3733
      %3795 = vmatpush.msra.mxu0 %v3731
      %3796 = vmatpush.msra.mxu0 %v3729
      %3797 = vmatmul.f32.gmra.mxu0 %v3776
      %v3798 = vpop.f32.mrf.mxu0
      %v3799 = vadd.f32 0.0, %v3798
      %3800 = vmatmul.f32.gmra.mxu0 %v3778
      %v3801 = vpop.f32.mrf.mxu0
      %v3802 = vadd.f32 0.0, %v3801
      %3803 = vdwg.mxu0
      %3804 = vmatpush.msra.mxu0 %v3760
      %3805 = vmatpush.msra.mxu0 %v3758
      %3806 = vmatpush.msra.mxu0 %v3756
      %3807 = vmatpush.msra.mxu0 %v3754
      %3808 = vmatpush.msra.mxu0 %v3752
      %3809 = vmatpush.msra.mxu0 %v3750
      %3810 = vmatpush.msra.mxu0 %v3748
      %3811 = vmatpush.msra.mxu0 %v3746
      %3812 = vmatpush.msra.mxu0 %v3744
      %3813 = vmatpush.msra.mxu0 %v3742
      %3814 = vmatpush.msra.mxu0 %v3740
      %3815 = vmatpush.msra.mxu0 %v3738
      %3816 = vmatpush.msra.mxu0 %v3736
      %3817 = vmatpush.msra.mxu0 %v3734
      %3818 = vmatpush.msra.mxu0 %v3732
      %3819 = vmatpush.msra.mxu0 %v3730
      %3820 = vmatmul.f32.gmra.mxu0 %v3776
      %v3821 = vpop.f32.mrf.mxu0
      %v3822 = vadd.f32 0.0, %v3821
      %3823 = vmatmul.f32.gmra.mxu0 %v3778
      %v3824 = vpop.f32.mrf.mxu0
      %v3825 = vadd.f32 0.0, %v3824
      %3826 = vdwg.mxu0
      %v3827 = vadd.f32 %v3712, %v3799
      %v3828 = vadd.f32 %v3713, %v3822
      %v3829 = vadd.f32 %v3714, %v3802
      %v3830 = vadd.f32 %v3715, %v3825
      %v3831 = vld [vmem:[%s3485 + $0x3] sm:$0x7]
      %v3832 = vld [vmem:[%s3485 + $0xb] sm:$0x7]
      %v3833 = vld [vmem:[%s3485 + $0x13] sm:$0x7]
      %v3837 = vrot.slane %v3831, 1
      %v3838 = vrot.slane %v3831, 2
      %v3839 = vrot.slane %v3832, 1
      %v3840 = vrot.slane %v3832, 2
      %v3841 = vrot.slane %v3833, 1
      %v3842 = vrot.slane %v3833, 2
      %s3843 = scalar_lea.vmem %s5, 3840
      %v3844 = vld [vmem:[%s3843] sm:$0xff]
      %v3845 = vld [vmem:[%s3843 + $0x8] sm:$0xff]
      %v3846 = vld [vmem:[%s3843 + $0x10] sm:$0xff]
      %v3847 = vld [vmem:[%s3843 + $0x18] sm:$0xff]
      %v3848 = vld [vmem:[%s3843 + $0x20] sm:$0xff]
      %v3849 = vld [vmem:[%s3843 + $0x28] sm:$0xff]
      %v3850 = vld [vmem:[%s3843 + $0x30] sm:$0xff]
      %v3851 = vld [vmem:[%s3843 + $0x38] sm:$0xff]
      %v3852 = vld [vmem:[%s3843 + $0x40] sm:$0xff]
      %v3853 = vld [vmem:[%s3843 + $0x48] sm:$0xff]
      %v3854 = vld [vmem:[%s3843 + $0x50] sm:$0xff]
      %v3855 = vld [vmem:[%s3843 + $0x58] sm:$0xff]
      %v3856 = vld [vmem:[%s3843 + $0x60] sm:$0xff]
      %v3857 = vld [vmem:[%s3843 + $0x68] sm:$0xff]
      %v3858 = vld [vmem:[%s3843 + $0x70] sm:$0xff]
      %v3859 = vld [vmem:[%s3843 + $0x78] sm:$0xff]
      %v3860 = vld [vmem:[%s3843 + $0x80] sm:$0xff]
      %v3861 = vld [vmem:[%s3843 + $0x88] sm:$0xff]
      %v3862 = vld [vmem:[%s3843 + $0x90] sm:$0xff]
      %v3863 = vld [vmem:[%s3843 + $0x98] sm:$0xff]
      %v3864 = vld [vmem:[%s3843 + $0xa0] sm:$0xff]
      %v3865 = vld [vmem:[%s3843 + $0xa8] sm:$0xff]
      %v3866 = vld [vmem:[%s3843 + $0xb0] sm:$0xff]
      %v3867 = vld [vmem:[%s3843 + $0xb8] sm:$0xff]
      %v3868 = vld [vmem:[%s3843 + $0xc0] sm:$0xff]
      %v3869 = vld [vmem:[%s3843 + $0xc8] sm:$0xff]
      %v3870 = vld [vmem:[%s3843 + $0xd0] sm:$0xff]
      %v3871 = vld [vmem:[%s3843 + $0xd8] sm:$0xff]
      %v3872 = vld [vmem:[%s3843 + $0xe0] sm:$0xff]
      %v3873 = vld [vmem:[%s3843 + $0xe8] sm:$0xff]
      %v3874 = vld [vmem:[%s3843 + $0xf0] sm:$0xff]
      %v3875 = vld [vmem:[%s3843 + $0xf8] sm:$0xff]
      %3876 = vst [vmem:[#allocation1] ss:$9 sm:$0xff] %v3831
      %s3877 = scalar_lea.vmem [#allocation1], 1
      %3878 = vst [vmem:[%s3877] ss:$9 sm:$0xff] %v3837
      %s3879 = scalar_lea.vmem [#allocation1], 2
      %3880 = vst [vmem:[%s3879] ss:$9 sm:$0xff] %v3838
      %s3881 = scalar_lea.vmem [#allocation1], 3
      %3882 = vst [vmem:[%s3881] ss:$9 sm:$0xff] %v3832
      %s3883 = scalar_lea.vmem [#allocation1], 4
      %3884 = vst [vmem:[%s3883] ss:$9 sm:$0xff] %v3839
      %s3885 = scalar_lea.vmem [#allocation1], 5
      %3886 = vst [vmem:[%s3885] ss:$9 sm:$0xff] %v3840
      %s3887 = scalar_lea.vmem [#allocation1], 6
      %3888 = vst [vmem:[%s3887] ss:$9 sm:$0xff] %v3833
      %s3889 = scalar_lea.vmem [#allocation1], 7
      %3890 = vst [vmem:[%s3889] ss:$9 sm:$0xff] %v3841
      %v3891 = vld [vmem:[#allocation1] sm:$0xff]
      %3892 = vst [vmem:[#allocation1] ss:$9 sm:$0xff] %v3842
      %v3893 = vld [vmem:[#allocation1] sm:$0xff]
      %3896 = vmatpush.msra.mxu0 %v3874
      %3897 = vmatpush.msra.mxu0 %v3872
      %3898 = vmatpush.msra.mxu0 %v3870
      %3899 = vmatpush.msra.mxu0 %v3868
      %3900 = vmatpush.msra.mxu0 %v3866
      %3901 = vmatpush.msra.mxu0 %v3864
      %3902 = vmatpush.msra.mxu0 %v3862
      %3903 = vmatpush.msra.mxu0 %v3860
      %3904 = vmatpush.msra.mxu0 %v3858
      %3905 = vmatpush.msra.mxu0 %v3856
      %3906 = vmatpush.msra.mxu0 %v3854
      %3907 = vmatpush.msra.mxu0 %v3852
      %3908 = vmatpush.msra.mxu0 %v3850
      %3909 = vmatpush.msra.mxu0 %v3848
      %3910 = vmatpush.msra.mxu0 %v3846
      %3911 = vmatpush.msra.mxu0 %v3844
      %3912 = vmatmul.f32.gmra.mxu0 %v3891
      %v3913 = vpop.f32.mrf.mxu0
      %v3914 = vadd.f32 0.0, %v3913
      %3915 = vmatmul.f32.gmra.mxu0 %v3893
      %v3916 = vpop.f32.mrf.mxu0
      %v3917 = vadd.f32 0.0, %v3916
      %3918 = vdwg.mxu0
      %3919 = vmatpush.msra.mxu0 %v3875
      %3920 = vmatpush.msra.mxu0 %v3873
      %3921 = vmatpush.msra.mxu0 %v3871
      %3922 = vmatpush.msra.mxu0 %v3869
      %3923 = vmatpush.msra.mxu0 %v3867
      %3924 = vmatpush.msra.mxu0 %v3865
      %3925 = vmatpush.msra.mxu0 %v3863
      %3926 = vmatpush.msra.mxu0 %v3861
      %3927 = vmatpush.msra.mxu0 %v3859
      %3928 = vmatpush.msra.mxu0 %v3857
      %3929 = vmatpush.msra.mxu0 %v3855
      %3930 = vmatpush.msra.mxu0 %v3853
      %3931 = vmatpush.msra.mxu0 %v3851
      %3932 = vmatpush.msra.mxu0 %v3849
      %3933 = vmatpush.msra.mxu0 %v3847
      %3934 = vmatpush.msra.mxu0 %v3845
      %3935 = vmatmul.f32.gmra.mxu0 %v3891
      %v3936 = vpop.f32.mrf.mxu0
      %v3937 = vadd.f32 0.0, %v3936
      %3938 = vmatmul.f32.gmra.mxu0 %v3893
      %v3939 = vpop.f32.mrf.mxu0
      %v3940 = vadd.f32 0.0, %v3939
      %3941 = vdwg.mxu0
      %v3942 = vadd.f32 %v3827, %v3914
      %v3943 = vadd.f32 %v3828, %v3937
      %v3944 = vadd.f32 %v3829, %v3917
      %v3945 = vadd.f32 %v3830, %v3940
      %vm3946 = vcmp.ge.f32.partialorder %v3942, 0.0
      %vm3947 = vcmp.ge.f32.partialorder %v3943, 0.0
      %vm3948 = vcmp.ge.f32.partialorder %v3944, 0.0
      %vm3949 = vcmp.ge.f32.partialorder %v3945, 0.0
      %v3950 = vmul.f32 %v3942, 0.2
      %v3951 = vmul.f32 %v3943, 0.2
      %v3952 = vmul.f32 %v3944, 0.2
      %v3953 = vmul.f32 %v3945, 0.2
      %v3954 = vsel %vm3946, %v3942, %v3950
      %v3955 = vsel %vm3947, %v3943, %v3951
      %v3956 = vsel %vm3948, %v3944, %v3952
      %v3957 = vsel %vm3949, %v3945, %v3953
      %v3962 = vrot.slane %v3955, 7
      %v3963 = vrot.slane %v3957, 7
      %vm3964 = vcmask 1040384
      %v3965 = vsel %vm3964, %v3954, %v3962
      %vm3966 = vcmask 1041409
      %v3967 = vsel %vm3966, %v3954, %v3962
      %v3968 = vrot.slane %v3967, 1
      %vm3969 = vcmask 1042434
      %v3970 = vsel %vm3969, %v3954, %v3962
      %v3971 = vrot.slane %v3970, 2
      %vm3972 = vcmask 1043459
      %v3973 = vsel %vm3972, %v3954, %v3962
      %v3974 = vrot.slane %v3973, 3
      %vm3975 = vcmask 1044484
      %v3976 = vsel %vm3975, %v3954, %v3962
      %v3977 = vrot.slane %v3976, 4
      %vm3978 = vcmask 1045509
      %v3979 = vsel %vm3978, %v3954, %v3962
      %v3980 = vrot.slane %v3979, 5
      %vm3981 = vcmask 1046534
      %v3982 = vsel %vm3981, %v3954, %v3962
      %v3983 = vrot.slane %v3982, 6
      %vm3984 = vcmask 1046528
      %v3985 = vsel %vm3984, %v3962, %v3954
      %v3986 = vrot.slane %v3985, 7
      %v3987 = vsel %vm3964, %v3956, %v3963
      %s3988 = scalar_lea.vmem [#allocation1], 1
      %3989 = vst [vmem:[%s3988] ss:$9 sm:$0xff] %v3965
      %s3990 = scalar_lea.vmem [#allocation1], 2
      %3991 = vst [vmem:[%s3990] ss:$9 sm:$0xff] %v3968
      %s3992 = scalar_lea.vmem [#allocation1], 3
      %3993 = vst [vmem:[%s3992] ss:$9 sm:$0xff] %v3971
      %v3994 = vld [vmem:[#allocation1] sm:$0xff]
      %v3995 = vld [vmem:[#allocation1 + $0x9] sm:$0xff]
      %3996 = vst [vmem:[%s3988] ss:$9 sm:$0xff] %v3974
      %3997 = vst [vmem:[%s3990] ss:$9 sm:$0xff] %v3977
      %3998 = vst [vmem:[%s3992] ss:$9 sm:$0xff] %v3980
      %v3999 = vld [vmem:[#allocation1] sm:$0xff]
      %v4000 = vld [vmem:[#allocation1 + $0x9] sm:$0xff]
      %4001 = vst [vmem:[%s3988] ss:$9 sm:$0xff] %v3983
      %4002 = vst [vmem:[%s3990] ss:$9 sm:$0xff] %v3986
      %4003 = vst [vmem:[%s3992] ss:$9 sm:$0xff] %v3987
      %v4004 = vld [vmem:[#allocation1] sm:$0xff]
      %v4005 = vld [vmem:[#allocation1 + $0x9] sm:$0xff]
      %s4012 = scalar_lea.vmem [#allocation4], 16
      %4013 = vst [vmem:[%s4012] sm:$0xe] %v3994
      %4014 = vst [vmem:[%s4012 + $0x8] sm:$0xe] %v3995
      %4015 = vst [vmem:[%s4012 + $0x10] sm:$0xe] %v3999
      %4016 = vst [vmem:[%s4012 + $0x18] sm:$0xe] %v4000
      %4017 = vst [vmem:[%s4012 + $0x20] sm:$0xe] %v4004
      %4018 = vst [vmem:[%s4012 + $0x28] sm:$0xe] %v4005
      %v4019 = vld [vmem:[#allocation4] sm:$0x3]
      %v4020 = vld [vmem:[#allocation4 + $0x8] sm:$0x3]
      %v4021 = vld [vmem:[#allocation4 + $0x10] sm:$0x3]
      %v4022 = vld [vmem:[#allocation4 + $0x18] sm:$0x3]
      %v4027 = vrot.slane %v4020, 6
      %v4028 = vrot.slane %v4022, 6
      %vm4029 = vcmask 1041408
      %v4030 = vsel %vm4029, %v4019, %v4027
      %v4031 = vsel %vm4029, %v4021, %v4028
      %v4032 = vld [vmem:[%s6] sm:$0xff]
      %v4033 = vld [vmem:[%s6 + $0x8] sm:$0xff]
      %v4034 = vld [vmem:[%s6 + $0x10] sm:$0xff]
      %v4035 = vld [vmem:[%s6 + $0x18] sm:$0xff]
      %v4036 = vld [vmem:[%s6 + $0x20] sm:$0xff]
      %v4037 = vld [vmem:[%s6 + $0x28] sm:$0xff]
      %v4038 = vld [vmem:[%s6 + $0x30] sm:$0xff]
      %v4039 = vld [vmem:[%s6 + $0x38] sm:$0xff]
      %v4040 = vld [vmem:[%s6 + $0x40] sm:$0xff]
      %v4041 = vld [vmem:[%s6 + $0x48] sm:$0xff]
      %v4042 = vld [vmem:[%s6 + $0x50] sm:$0xff]
      %v4043 = vld [vmem:[%s6 + $0x58] sm:$0xff]
      %v4044 = vld [vmem:[%s6 + $0x60] sm:$0xff]
      %v4045 = vld [vmem:[%s6 + $0x68] sm:$0xff]
      %v4046 = vld [vmem:[%s6 + $0x70] sm:$0xff]
      %v4047 = vld [vmem:[%s6 + $0x78] sm:$0xff]
      %v4048 = vld [vmem:[%s6 + $0x80] sm:$0xff]
      %v4049 = vld [vmem:[%s6 + $0x88] sm:$0xff]
      %v4050 = vld [vmem:[%s6 + $0x90] sm:$0xff]
      %v4051 = vld [vmem:[%s6 + $0x98] sm:$0xff]
      %v4052 = vld [vmem:[%s6 + $0xa0] sm:$0xff]
      %v4053 = vld [vmem:[%s6 + $0xa8] sm:$0xff]
      %v4054 = vld [vmem:[%s6 + $0xb0] sm:$0xff]
      %v4055 = vld [vmem:[%s6 + $0xb8] sm:$0xff]
      %v4056 = vld [vmem:[%s6 + $0xc0] sm:$0xff]
      %v4057 = vld [vmem:[%s6 + $0xc8] sm:$0xff]
      %v4058 = vld [vmem:[%s6 + $0xd0] sm:$0xff]
      %v4059 = vld [vmem:[%s6 + $0xd8] sm:$0xff]
      %v4060 = vld [vmem:[%s6 + $0xe0] sm:$0xff]
      %v4061 = vld [vmem:[%s6 + $0xe8] sm:$0xff]
      %v4062 = vld [vmem:[%s6 + $0xf0] sm:$0xff]
      %v4063 = vld [vmem:[%s6 + $0xf8] sm:$0xff]
      %v4064 = vld [vmem:[#allocation4] sm:$0x6]
      %v4065 = vld [vmem:[#allocation4 + $0x8] sm:$0x6]
      %v4066 = vld [vmem:[#allocation4 + $0x10] sm:$0x6]
      %v4067 = vld [vmem:[#allocation4 + $0x18] sm:$0x6]
      %v4072 = vrot.slane %v4065, 6
      %v4073 = vrot.slane %v4067, 6
      %v4074 = vsel %vm4029, %v4064, %v4072
      %vm4075 = vcmask 1043458
      %v4076 = vsel %vm4075, %v4064, %v4072
      %v4077 = vrot.slane %v4076, 2
      %v4078 = vsel %vm4029, %v4066, %v4073
      %v4079 = vsel %vm4075, %v4066, %v4073
      %v4080 = vrot.slane %v4079, 2
      %vm4081 = vmor %vm3964, %vm3969
      %vm4082 = vmor %vm4081, %vm3975
      %vm4083 = vmor %vm4082, %vm3981
      %v4084 = vrot.slane %v4074, 7
      %v4085 = vrot.slane %v4084, 2
      %v4086 = vrot.slane %v4077, 7
      %v4087 = vsel %vm4083, %v4085, %v4086
      %v4088 = vrot.slane %v4078, 7
      %v4089 = vrot.slane %v4088, 2
      %v4090 = vrot.slane %v4080, 7
      %v4091 = vsel %vm4083, %v4089, %v4090
      %s4092 = scalar_lea.vmem %s6, 256
      %v4093 = vld [vmem:[%s4092] sm:$0xff]
      %v4094 = vld [vmem:[%s4092 + $0x8] sm:$0xff]
      %v4095 = vld [vmem:[%s4092 + $0x10] sm:$0xff]
      %v4096 = vld [vmem:[%s4092 + $0x18] sm:$0xff]
      %v4097 = vld [vmem:[%s4092 + $0x20] sm:$0xff]
      %v4098 = vld [vmem:[%s4092 + $0x28] sm:$0xff]
      %v4099 = vld [vmem:[%s4092 + $0x30] sm:$0xff]
      %v4100 = vld [vmem:[%s4092 + $0x38] sm:$0xff]
      %v4101 = vld [vmem:[%s4092 + $0x40] sm:$0xff]
      %v4102 = vld [vmem:[%s4092 + $0x48] sm:$0xff]
      %v4103 = vld [vmem:[%s4092 + $0x50] sm:$0xff]
      %v4104 = vld [vmem:[%s4092 + $0x58] sm:$0xff]
      %v4105 = vld [vmem:[%s4092 + $0x60] sm:$0xff]
      %v4106 = vld [vmem:[%s4092 + $0x68] sm:$0xff]
      %v4107 = vld [vmem:[%s4092 + $0x70] sm:$0xff]
      %v4108 = vld [vmem:[%s4092 + $0x78] sm:$0xff]
      %v4109 = vld [vmem:[%s4092 + $0x80] sm:$0xff]
      %v4110 = vld [vmem:[%s4092 + $0x88] sm:$0xff]
      %v4111 = vld [vmem:[%s4092 + $0x90] sm:$0xff]
      %v4112 = vld [vmem:[%s4092 + $0x98] sm:$0xff]
      %v4113 = vld [vmem:[%s4092 + $0xa0] sm:$0xff]
      %v4114 = vld [vmem:[%s4092 + $0xa8] sm:$0xff]
      %v4115 = vld [vmem:[%s4092 + $0xb0] sm:$0xff]
      %v4116 = vld [vmem:[%s4092 + $0xb8] sm:$0xff]
      %v4117 = vld [vmem:[%s4092 + $0xc0] sm:$0xff]
      %v4118 = vld [vmem:[%s4092 + $0xc8] sm:$0xff]
      %v4119 = vld [vmem:[%s4092 + $0xd0] sm:$0xff]
      %v4120 = vld [vmem:[%s4092 + $0xd8] sm:$0xff]
      %v4121 = vld [vmem:[%s4092 + $0xe0] sm:$0xff]
      %v4122 = vld [vmem:[%s4092 + $0xe8] sm:$0xff]
      %v4123 = vld [vmem:[%s4092 + $0xf0] sm:$0xff]
      %v4124 = vld [vmem:[%s4092 + $0xf8] sm:$0xff]
      %4125 = vst [vmem:[#allocation1] ss:$4 sm:$0xff] %v4087
      %s4126 = scalar_lea.vmem [#allocation1], 1
      %4127 = vst [vmem:[%s4126] ss:$4 sm:$0xff] %v4091
      %v4128 = vld.sshfl [vmem:[#allocation1] sm:$0xff pattern:$0x73625140]
      %v4129 = vld.sshfl [vmem:[#allocation1 + $0x8] sm:$0xff pattern:$0x73625140]
      %4132 = vmatpush.msra.mxu0 %v4108
      %4133 = vmatpush.msra.mxu0 %v4107
      %4134 = vmatpush.msra.mxu0 %v4106
      %4135 = vmatpush.msra.mxu0 %v4105
      %4136 = vmatpush.msra.mxu0 %v4104
      %4137 = vmatpush.msra.mxu0 %v4103
      %4138 = vmatpush.msra.mxu0 %v4102
      %4139 = vmatpush.msra.mxu0 %v4101
      %4140 = vmatpush.msra.mxu0 %v4100
      %4141 = vmatpush.msra.mxu0 %v4099
      %4142 = vmatpush.msra.mxu0 %v4098
      %4143 = vmatpush.msra.mxu0 %v4097
      %4144 = vmatpush.msra.mxu0 %v4096
      %4145 = vmatpush.msra.mxu0 %v4095
      %4146 = vmatpush.msra.mxu0 %v4094
      %4147 = vmatpush.msra.mxu0 %v4093
      %4148 = vmatmul.f32.gmra.mxu0 %v4128
      %v4149 = vpop.f32.mrf.mxu0
      %v4150 = vadd.f32 0.0, %v4149
      %4151 = vdwg.mxu0
      %4152 = vmatpush.msra.mxu0 %v4124
      %4153 = vmatpush.msra.mxu0 %v4123
      %4154 = vmatpush.msra.mxu0 %v4122
      %4155 = vmatpush.msra.mxu0 %v4121
      %4156 = vmatpush.msra.mxu0 %v4120
      %4157 = vmatpush.msra.mxu0 %v4119
      %4158 = vmatpush.msra.mxu0 %v4118
      %4159 = vmatpush.msra.mxu0 %v4117
      %4160 = vmatpush.msra.mxu0 %v4116
      %4161 = vmatpush.msra.mxu0 %v4115
      %4162 = vmatpush.msra.mxu0 %v4114
      %4163 = vmatpush.msra.mxu0 %v4113
      %4164 = vmatpush.msra.mxu0 %v4112
      %4165 = vmatpush.msra.mxu0 %v4111
      %4166 = vmatpush.msra.mxu0 %v4110
      %4167 = vmatpush.msra.mxu0 %v4109
      %4168 = vmatmul.f32.gmra.mxu0 %v4129
      %v4169 = vpop.f32.mrf.mxu0
      %v4170 = vadd.f32 %v4150, %v4169
      %4171 = vdwg.mxu0
      %4172 = vst [vmem:[#allocation1] ss:$4 sm:$0xff] %v4030
      %s4173 = scalar_lea.vmem [#allocation1], 1
      %4174 = vst [vmem:[%s4173] ss:$4 sm:$0xff] %v4031
      %v4175 = vld.sshfl [vmem:[#allocation1] sm:$0xff pattern:$0x73625140]
      %v4176 = vld.sshfl [vmem:[#allocation1 + $0x8] sm:$0xff pattern:$0x73625140]
      %4179 = vmatpush.msra.mxu0 %v4047
      %4180 = vmatpush.msra.mxu0 %v4046
      %4181 = vmatpush.msra.mxu0 %v4045
      %4182 = vmatpush.msra.mxu0 %v4044
      %4183 = vmatpush.msra.mxu0 %v4043
      %4184 = vmatpush.msra.mxu0 %v4042
      %4185 = vmatpush.msra.mxu0 %v4041
      %4186 = vmatpush.msra.mxu0 %v4040
      %4187 = vmatpush.msra.mxu0 %v4039
      %4188 = vmatpush.msra.mxu0 %v4038
      %4189 = vmatpush.msra.mxu0 %v4037
      %4190 = vmatpush.msra.mxu0 %v4036
      %4191 = vmatpush.msra.mxu0 %v4035
      %4192 = vmatpush.msra.mxu0 %v4034
      %4193 = vmatpush.msra.mxu0 %v4033
      %4194 = vmatpush.msra.mxu0 %v4032
      %4195 = vmatmul.f32.gmra.mxu0 %v4175
      %v4196 = vpop.f32.mrf.mxu0
      %v4197 = vadd.f32 %v4170, %v4196
      %4198 = vdwg.mxu0
      %4199 = vmatpush.msra.mxu0 %v4063
      %4200 = vmatpush.msra.mxu0 %v4062
      %4201 = vmatpush.msra.mxu0 %v4061
      %4202 = vmatpush.msra.mxu0 %v4060
      %4203 = vmatpush.msra.mxu0 %v4059
      %4204 = vmatpush.msra.mxu0 %v4058
      %4205 = vmatpush.msra.mxu0 %v4057
      %4206 = vmatpush.msra.mxu0 %v4056
      %4207 = vmatpush.msra.mxu0 %v4055
      %4208 = vmatpush.msra.mxu0 %v4054
      %4209 = vmatpush.msra.mxu0 %v4053
      %4210 = vmatpush.msra.mxu0 %v4052
      %4211 = vmatpush.msra.mxu0 %v4051
      %4212 = vmatpush.msra.mxu0 %v4050
      %4213 = vmatpush.msra.mxu0 %v4049
      %4214 = vmatpush.msra.mxu0 %v4048
      %4215 = vmatmul.f32.gmra.mxu0 %v4176
      %v4216 = vpop.f32.mrf.mxu0
      %v4217 = vadd.f32 %v4197, %v4216
      %4218 = vdwg.mxu0
      %v4219 = vld [vmem:[#allocation4] sm:$0xc]
      %v4220 = vld [vmem:[#allocation4 + $0x8] sm:$0xc]
      %v4221 = vld [vmem:[#allocation4 + $0x10] sm:$0xc]
      %v4222 = vld [vmem:[#allocation4 + $0x18] sm:$0xc]
      %4227 = vst.sshfl [vmem:[#allocation1] sm:$0xff pattern:$0x73625140] %v4219
      %4228 = vst.sshfl [vmem:[#allocation1 + $0x8] sm:$0xff pattern:$0x73625140] %v4220
      %s4229 = scalar_lea.vmem [#allocation1], 1
      %v4230 = vld [vmem:[%s4229] ss:$4 sm:$0xff]
      %4231 = vst.sshfl [vmem:[#allocation1 + $0x20] sm:$0xff pattern:$0x73625140] %v4221
      %4232 = vst.sshfl [vmem:[#allocation1 + $0x28] sm:$0xff pattern:$0x73625140] %v4222
      %s4233 = scalar_lea.vmem [#allocation1], 33
      %v4234 = vld [vmem:[%s4233] ss:$4 sm:$0xff]
      %s4235 = scalar_lea.vmem %s6, 512
      %v4236 = vld [vmem:[%s4235] sm:$0xff]
      %v4237 = vld [vmem:[%s4235 + $0x8] sm:$0xff]
      %v4238 = vld [vmem:[%s4235 + $0x10] sm:$0xff]
      %v4239 = vld [vmem:[%s4235 + $0x18] sm:$0xff]
      %v4240 = vld [vmem:[%s4235 + $0x20] sm:$0xff]
      %v4241 = vld [vmem:[%s4235 + $0x28] sm:$0xff]
      %v4242 = vld [vmem:[%s4235 + $0x30] sm:$0xff]
      %v4243 = vld [vmem:[%s4235 + $0x38] sm:$0xff]
      %v4244 = vld [vmem:[%s4235 + $0x40] sm:$0xff]
      %v4245 = vld [vmem:[%s4235 + $0x48] sm:$0xff]
      %v4246 = vld [vmem:[%s4235 + $0x50] sm:$0xff]
      %v4247 = vld [vmem:[%s4235 + $0x58] sm:$0xff]
      %v4248 = vld [vmem:[%s4235 + $0x60] sm:$0xff]
      %v4249 = vld [vmem:[%s4235 + $0x68] sm:$0xff]
      %v4250 = vld [vmem:[%s4235 + $0x70] sm:$0xff]
      %v4251 = vld [vmem:[%s4235 + $0x78] sm:$0xff]
      %v4252 = vld [vmem:[%s4235 + $0x80] sm:$0xff]
      %v4253 = vld [vmem:[%s4235 + $0x88] sm:$0xff]
      %v4254 = vld [vmem:[%s4235 + $0x90] sm:$0xff]
      %v4255 = vld [vmem:[%s4235 + $0x98] sm:$0xff]
      %v4256 = vld [vmem:[%s4235 + $0xa0] sm:$0xff]
      %v4257 = vld [vmem:[%s4235 + $0xa8] sm:$0xff]
      %v4258 = vld [vmem:[%s4235 + $0xb0] sm:$0xff]
      %v4259 = vld [vmem:[%s4235 + $0xb8] sm:$0xff]
      %v4260 = vld [vmem:[%s4235 + $0xc0] sm:$0xff]
      %v4261 = vld [vmem:[%s4235 + $0xc8] sm:$0xff]
      %v4262 = vld [vmem:[%s4235 + $0xd0] sm:$0xff]
      %v4263 = vld [vmem:[%s4235 + $0xd8] sm:$0xff]
      %v4264 = vld [vmem:[%s4235 + $0xe0] sm:$0xff]
      %v4265 = vld [vmem:[%s4235 + $0xe8] sm:$0xff]
      %v4266 = vld [vmem:[%s4235 + $0xf0] sm:$0xff]
      %v4267 = vld [vmem:[%s4235 + $0xf8] sm:$0xff]
      %4268 = vst [vmem:[#allocation1] ss:$4 sm:$0xff] %v4230
      %s4269 = scalar_lea.vmem [#allocation1], 1
      %4270 = vst [vmem:[%s4269] ss:$4 sm:$0xff] %v4234
      %v4271 = vld.sshfl [vmem:[#allocation1] sm:$0xff pattern:$0x73625140]
      %v4272 = vld.sshfl [vmem:[#allocation1 + $0x8] sm:$0xff pattern:$0x73625140]
      %4275 = vmatpush.msra.mxu0 %v4251
      %4276 = vmatpush.msra.mxu0 %v4250
      %4277 = vmatpush.msra.mxu0 %v4249
      %4278 = vmatpush.msra.mxu0 %v4248
      %4279 = vmatpush.msra.mxu0 %v4247
      %4280 = vmatpush.msra.mxu0 %v4246
      %4281 = vmatpush.msra.mxu0 %v4245
      %4282 = vmatpush.msra.mxu0 %v4244
      %4283 = vmatpush.msra.mxu0 %v4243
      %4284 = vmatpush.msra.mxu0 %v4242
      %4285 = vmatpush.msra.mxu0 %v4241
      %4286 = vmatpush.msra.mxu0 %v4240
      %4287 = vmatpush.msra.mxu0 %v4239
      %4288 = vmatpush.msra.mxu0 %v4238
      %4289 = vmatpush.msra.mxu0 %v4237
      %4290 = vmatpush.msra.mxu0 %v4236
      %4291 = vmatmul.f32.gmra.mxu0 %v4271
      %v4292 = vpop.f32.mrf.mxu0
      %v4293 = vadd.f32 0.0, %v4292
      %4294 = vdwg.mxu0
      %4295 = vmatpush.msra.mxu0 %v4267
      %4296 = vmatpush.msra.mxu0 %v4266
      %4297 = vmatpush.msra.mxu0 %v4265
      %4298 = vmatpush.msra.mxu0 %v4264
      %4299 = vmatpush.msra.mxu0 %v4263
      %4300 = vmatpush.msra.mxu0 %v4262
      %4301 = vmatpush.msra.mxu0 %v4261
      %4302 = vmatpush.msra.mxu0 %v4260
      %4303 = vmatpush.msra.mxu0 %v4259
      %4304 = vmatpush.msra.mxu0 %v4258
      %4305 = vmatpush.msra.mxu0 %v4257
      %4306 = vmatpush.msra.mxu0 %v4256
      %4307 = vmatpush.msra.mxu0 %v4255
      %4308 = vmatpush.msra.mxu0 %v4254
      %4309 = vmatpush.msra.mxu0 %v4253
      %4310 = vmatpush.msra.mxu0 %v4252
      %4311 = vmatmul.f32.gmra.mxu0 %v4272
      %v4312 = vpop.f32.mrf.mxu0
      %v4313 = vadd.f32 %v4293, %v4312
      %4314 = vdwg.mxu0
      %v4315 = vadd.f32 %v4217, %v4313
      %v4316 = vld [vmem:[#allocation4] sm:$0x18]
      %v4317 = vld [vmem:[#allocation4 + $0x8] sm:$0x18]
      %v4318 = vld [vmem:[#allocation4 + $0x10] sm:$0x18]
      %v4319 = vld [vmem:[#allocation4 + $0x18] sm:$0x18]
      %4324 = vst.sshfl [vmem:[#allocation1] sm:$0xff pattern:$0x73625140] %v4316
      %4325 = vst.sshfl [vmem:[#allocation1 + $0x8] sm:$0xff pattern:$0x73625140] %v4317
      %s4326 = scalar_lea.vmem [#allocation1], 1
      %v4327 = vld [vmem:[%s4326] ss:$4 sm:$0xff]
      %s4328 = scalar_lea.vmem [#allocation1], 2
      %v4329 = vld [vmem:[%s4328] ss:$4 sm:$0xff]
      %4330 = vst.sshfl [vmem:[#allocation1 + $0x20] sm:$0xff pattern:$0x73625140] %v4318
      %4331 = vst.sshfl [vmem:[#allocation1 + $0x28] sm:$0xff pattern:$0x73625140] %v4319
      %s4332 = scalar_lea.vmem [#allocation1], 33
      %v4333 = vld [vmem:[%s4332] ss:$4 sm:$0xff]
      %s4334 = scalar_lea.vmem [#allocation1], 34
      %v4335 = vld [vmem:[%s4334] ss:$4 sm:$0xff]
      %v4336 = vrot.slane %v4327, 7
      %v4337 = vrot.slane %v4336, 2
      %v4338 = vrot.slane %v4329, 7
      %v4339 = vsel %vm4083, %v4337, %v4338
      %v4340 = vrot.slane %v4333, 7
      %v4341 = vrot.slane %v4340, 2
      %v4342 = vrot.slane %v4335, 7
      %v4343 = vsel %vm4083, %v4341, %v4342
      %s4344 = scalar_lea.vmem %s6, 768
      %v4345 = vld [vmem:[%s4344] sm:$0xff]
      %v4346 = vld [vmem:[%s4344 + $0x8] sm:$0xff]
      %v4347 = vld [vmem:[%s4344 + $0x10] sm:$0xff]
      %v4348 = vld [vmem:[%s4344 + $0x18] sm:$0xff]
      %v4349 = vld [vmem:[%s4344 + $0x20] sm:$0xff]
      %v4350 = vld [vmem:[%s4344 + $0x28] sm:$0xff]
      %v4351 = vld [vmem:[%s4344 + $0x30] sm:$0xff]
      %v4352 = vld [vmem:[%s4344 + $0x38] sm:$0xff]
      %v4353 = vld [vmem:[%s4344 + $0x40] sm:$0xff]
      %v4354 = vld [vmem:[%s4344 + $0x48] sm:$0xff]
      %v4355 = vld [vmem:[%s4344 + $0x50] sm:$0xff]
      %v4356 = vld [vmem:[%s4344 + $0x58] sm:$0xff]
      %v4357 = vld [vmem:[%s4344 + $0x60] sm:$0xff]
      %v4358 = vld [vmem:[%s4344 + $0x68] sm:$0xff]
      %v4359 = vld [vmem:[%s4344 + $0x70] sm:$0xff]
      %v4360 = vld [vmem:[%s4344 + $0x78] sm:$0xff]
      %v4361 = vld [vmem:[%s4344 + $0x80] sm:$0xff]
      %v4362 = vld [vmem:[%s4344 + $0x88] sm:$0xff]
      %v4363 = vld [vmem:[%s4344 + $0x90] sm:$0xff]
      %v4364 = vld [vmem:[%s4344 + $0x98] sm:$0xff]
      %v4365 = vld [vmem:[%s4344 + $0xa0] sm:$0xff]
      %v4366 = vld [vmem:[%s4344 + $0xa8] sm:$0xff]
      %v4367 = vld [vmem:[%s4344 + $0xb0] sm:$0xff]
      %v4368 = vld [vmem:[%s4344 + $0xb8] sm:$0xff]
      %v4369 = vld [vmem:[%s4344 + $0xc0] sm:$0xff]
      %v4370 = vld [vmem:[%s4344 + $0xc8] sm:$0xff]
      %v4371 = vld [vmem:[%s4344 + $0xd0] sm:$0xff]
      %v4372 = vld [vmem:[%s4344 + $0xd8] sm:$0xff]
      %v4373 = vld [vmem:[%s4344 + $0xe0] sm:$0xff]
      %v4374 = vld [vmem:[%s4344 + $0xe8] sm:$0xff]
      %v4375 = vld [vmem:[%s4344 + $0xf0] sm:$0xff]
      %v4376 = vld [vmem:[%s4344 + $0xf8] sm:$0xff]
      %4377 = vst [vmem:[#allocation1] ss:$4 sm:$0xff] %v4339
      %s4378 = scalar_lea.vmem [#allocation1], 1
      %4379 = vst [vmem:[%s4378] ss:$4 sm:$0xff] %v4343
      %v4380 = vld.sshfl [vmem:[#allocation1] sm:$0xff pattern:$0x73625140]
      %v4381 = vld.sshfl [vmem:[#allocation1 + $0x8] sm:$0xff pattern:$0x73625140]
      %4384 = vmatpush.msra.mxu0 %v4360
      %4385 = vmatpush.msra.mxu0 %v4359
      %4386 = vmatpush.msra.mxu0 %v4358
      %4387 = vmatpush.msra.mxu0 %v4357
      %4388 = vmatpush.msra.mxu0 %v4356
      %4389 = vmatpush.msra.mxu0 %v4355
      %4390 = vmatpush.msra.mxu0 %v4354
      %4391 = vmatpush.msra.mxu0 %v4353
      %4392 = vmatpush.msra.mxu0 %v4352
      %4393 = vmatpush.msra.mxu0 %v4351
      %4394 = vmatpush.msra.mxu0 %v4350
      %4395 = vmatpush.msra.mxu0 %v4349
      %4396 = vmatpush.msra.mxu0 %v4348
      %4397 = vmatpush.msra.mxu0 %v4347
      %4398 = vmatpush.msra.mxu0 %v4346
      %4399 = vmatpush.msra.mxu0 %v4345
      %4400 = vmatmul.f32.gmra.mxu0 %v4380
      %v4401 = vpop.f32.mrf.mxu0
      %v4402 = vadd.f32 0.0, %v4401
      %4403 = vdwg.mxu0
      %4404 = vmatpush.msra.mxu0 %v4376
      %4405 = vmatpush.msra.mxu0 %v4375
      %4406 = vmatpush.msra.mxu0 %v4374
      %4407 = vmatpush.msra.mxu0 %v4373
      %4408 = vmatpush.msra.mxu0 %v4372
      %4409 = vmatpush.msra.mxu0 %v4371
      %4410 = vmatpush.msra.mxu0 %v4370
      %4411 = vmatpush.msra.mxu0 %v4369
      %4412 = vmatpush.msra.mxu0 %v4368
      %4413 = vmatpush.msra.mxu0 %v4367
      %4414 = vmatpush.msra.mxu0 %v4366
      %4415 = vmatpush.msra.mxu0 %v4365
      %4416 = vmatpush.msra.mxu0 %v4364
      %4417 = vmatpush.msra.mxu0 %v4363
      %4418 = vmatpush.msra.mxu0 %v4362
      %4419 = vmatpush.msra.mxu0 %v4361
      %4420 = vmatmul.f32.gmra.mxu0 %v4381
      %v4421 = vpop.f32.mrf.mxu0
      %v4422 = vadd.f32 %v4402, %v4421
      %4423 = vdwg.mxu0
      %v4424 = vadd.f32 %v4315, %v4422
      %v4425 = vld [vmem:[%s4012] sm:$0x3]
      %v4426 = vld [vmem:[%s4012 + $0x8] sm:$0x3]
      %v4427 = vld [vmem:[%s4012 + $0x10] sm:$0x3]
      %v4428 = vld [vmem:[%s4012 + $0x18] sm:$0x3]
      %v4433 = vrot.slane %v4426, 6
      %v4434 = vrot.slane %v4428, 6
      %v4435 = vsel %vm4029, %v4425, %v4433
      %v4436 = vsel %vm4029, %v4427, %v4434
      %s4437 = scalar_lea.vmem %s6, 1024
      %v4438 = vld [vmem:[%s4437] sm:$0xff]
      %v4439 = vld [vmem:[%s4437 + $0x8] sm:$0xff]
      %v4440 = vld [vmem:[%s4437 + $0x10] sm:$0xff]
      %v4441 = vld [vmem:[%s4437 + $0x18] sm:$0xff]
      %v4442 = vld [vmem:[%s4437 + $0x20] sm:$0xff]
      %v4443 = vld [vmem:[%s4437 + $0x28] sm:$0xff]
      %v4444 = vld [vmem:[%s4437 + $0x30] sm:$0xff]
      %v4445 = vld [vmem:[%s4437 + $0x38] sm:$0xff]
      %v4446 = vld [vmem:[%s4437 + $0x40] sm:$0xff]
      %v4447 = vld [vmem:[%s4437 + $0x48] sm:$0xff]
      %v4448 = vld [vmem:[%s4437 + $0x50] sm:$0xff]
      %v4449 = vld [vmem:[%s4437 + $0x58] sm:$0xff]
      %v4450 = vld [vmem:[%s4437 + $0x60] sm:$0xff]
      %v4451 = vld [vmem:[%s4437 + $0x68] sm:$0xff]
      %v4452 = vld [vmem:[%s4437 + $0x70] sm:$0xff]
      %v4453 = vld [vmem:[%s4437 + $0x78] sm:$0xff]
      %v4454 = vld [vmem:[%s4437 + $0x80] sm:$0xff]
      %v4455 = vld [vmem:[%s4437 + $0x88] sm:$0xff]
      %v4456 = vld [vmem:[%s4437 + $0x90] sm:$0xff]
      %v4457 = vld [vmem:[%s4437 + $0x98] sm:$0xff]
      %v4458 = vld [vmem:[%s4437 + $0xa0] sm:$0xff]
      %v4459 = vld [vmem:[%s4437 + $0xa8] sm:$0xff]
      %v4460 = vld [vmem:[%s4437 + $0xb0] sm:$0xff]
      %v4461 = vld [vmem:[%s4437 + $0xb8] sm:$0xff]
      %v4462 = vld [vmem:[%s4437 + $0xc0] sm:$0xff]
      %v4463 = vld [vmem:[%s4437 + $0xc8] sm:$0xff]
      %v4464 = vld [vmem:[%s4437 + $0xd0] sm:$0xff]
      %v4465 = vld [vmem:[%s4437 + $0xd8] sm:$0xff]
      %v4466 = vld [vmem:[%s4437 + $0xe0] sm:$0xff]
      %v4467 = vld [vmem:[%s4437 + $0xe8] sm:$0xff]
      %v4468 = vld [vmem:[%s4437 + $0xf0] sm:$0xff]
      %v4469 = vld [vmem:[%s4437 + $0xf8] sm:$0xff]
      %4470 = vst [vmem:[#allocation1] ss:$4 sm:$0xff] %v4435
      %s4471 = scalar_lea.vmem [#allocation1], 1
      %4472 = vst [vmem:[%s4471] ss:$4 sm:$0xff] %v4436
      %v4473 = vld.sshfl [vmem:[#allocation1] sm:$0xff pattern:$0x73625140]
      %v4474 = vld.sshfl [vmem:[#allocation1 + $0x8] sm:$0xff pattern:$0x73625140]
      %4477 = vmatpush.msra.mxu0 %v4453
      %4478 = vmatpush.msra.mxu0 %v4452
      %4479 = vmatpush.msra.mxu0 %v4451
      %4480 = vmatpush.msra.mxu0 %v4450
      %4481 = vmatpush.msra.mxu0 %v4449
      %4482 = vmatpush.msra.mxu0 %v4448
      %4483 = vmatpush.msra.mxu0 %v4447
      %4484 = vmatpush.msra.mxu0 %v4446
      %4485 = vmatpush.msra.mxu0 %v4445
      %4486 = vmatpush.msra.mxu0 %v4444
      %4487 = vmatpush.msra.mxu0 %v4443
      %4488 = vmatpush.msra.mxu0 %v4442
      %4489 = vmatpush.msra.mxu0 %v4441
      %4490 = vmatpush.msra.mxu0 %v4440
      %4491 = vmatpush.msra.mxu0 %v4439
      %4492 = vmatpush.msra.mxu0 %v4438
      %4493 = vmatmul.f32.gmra.mxu0 %v4473
      %v4494 = vpop.f32.mrf.mxu0
      %v4495 = vadd.f32 0.0, %v4494
      %4496 = vdwg.mxu0
      %4497 = vmatpush.msra.mxu0 %v4469
      %4498 = vmatpush.msra.mxu0 %v4468
      %4499 = vmatpush.msra.mxu0 %v4467
      %4500 = vmatpush.msra.mxu0 %v4466
      %4501 = vmatpush.msra.mxu0 %v4465
      %4502 = vmatpush.msra.mxu0 %v4464
      %4503 = vmatpush.msra.mxu0 %v4463
      %4504 = vmatpush.msra.mxu0 %v4462
      %4505 = vmatpush.msra.mxu0 %v4461
      %4506 = vmatpush.msra.mxu0 %v4460
      %4507 = vmatpush.msra.mxu0 %v4459
      %4508 = vmatpush.msra.mxu0 %v4458
      %4509 = vmatpush.msra.mxu0 %v4457
      %4510 = vmatpush.msra.mxu0 %v4456
      %4511 = vmatpush.msra.mxu0 %v4455
      %4512 = vmatpush.msra.mxu0 %v4454
      %4513 = vmatmul.f32.gmra.mxu0 %v4474
      %v4514 = vpop.f32.mrf.mxu0
      %v4515 = vadd.f32 %v4495, %v4514
      %4516 = vdwg.mxu0
      %v4517 = vadd.f32 %v4424, %v4515
      %v4518 = vld [vmem:[%s4012] sm:$0x6]
      %v4519 = vld [vmem:[%s4012 + $0x8] sm:$0x6]
      %v4520 = vld [vmem:[%s4012 + $0x10] sm:$0x6]
      %v4521 = vld [vmem:[%s4012 + $0x18] sm:$0x6]
      %v4526 = vrot.slane %v4519, 6
      %v4527 = vrot.slane %v4521, 6
      %v4528 = vsel %vm4029, %v4518, %v4526
      %v4529 = vsel %vm4075, %v4518, %v4526
      %v4530 = vrot.slane %v4529, 2
      %v4531 = vsel %vm4029, %v4520, %v4527
      %v4532 = vsel %vm4075, %v4520, %v4527
      %v4533 = vrot.slane %v4532, 2
      %v4534 = vrot.slane %v4528, 7
      %v4535 = vrot.slane %v4534, 2
      %v4536 = vrot.slane %v4530, 7
      %v4537 = vsel %vm4083, %v4535, %v4536
      %v4538 = vrot.slane %v4531, 7
      %v4539 = vrot.slane %v4538, 2
      %v4540 = vrot.slane %v4533, 7
      %v4541 = vsel %vm4083, %v4539, %v4540
      %s4542 = scalar_lea.vmem %s6, 1280
      %v4543 = vld [vmem:[%s4542] sm:$0xff]
      %v4544 = vld [vmem:[%s4542 + $0x8] sm:$0xff]
      %v4545 = vld [vmem:[%s4542 + $0x10] sm:$0xff]
      %v4546 = vld [vmem:[%s4542 + $0x18] sm:$0xff]
      %v4547 = vld [vmem:[%s4542 + $0x20] sm:$0xff]
      %v4548 = vld [vmem:[%s4542 + $0x28] sm:$0xff]
      %v4549 = vld [vmem:[%s4542 + $0x30] sm:$0xff]
      %v4550 = vld [vmem:[%s4542 + $0x38] sm:$0xff]
      %v4551 = vld [vmem:[%s4542 + $0x40] sm:$0xff]
      %v4552 = vld [vmem:[%s4542 + $0x48] sm:$0xff]
      %v4553 = vld [vmem:[%s4542 + $0x50] sm:$0xff]
      %v4554 = vld [vmem:[%s4542 + $0x58] sm:$0xff]
      %v4555 = vld [vmem:[%s4542 + $0x60] sm:$0xff]
      %v4556 = vld [vmem:[%s4542 + $0x68] sm:$0xff]
      %v4557 = vld [vmem:[%s4542 + $0x70] sm:$0xff]
      %v4558 = vld [vmem:[%s4542 + $0x78] sm:$0xff]
      %v4559 = vld [vmem:[%s4542 + $0x80] sm:$0xff]
      %v4560 = vld [vmem:[%s4542 + $0x88] sm:$0xff]
      %v4561 = vld [vmem:[%s4542 + $0x90] sm:$0xff]
      %v4562 = vld [vmem:[%s4542 + $0x98] sm:$0xff]
      %v4563 = vld [vmem:[%s4542 + $0xa0] sm:$0xff]
      %v4564 = vld [vmem:[%s4542 + $0xa8] sm:$0xff]
      %v4565 = vld [vmem:[%s4542 + $0xb0] sm:$0xff]
      %v4566 = vld [vmem:[%s4542 + $0xb8] sm:$0xff]
      %v4567 = vld [vmem:[%s4542 + $0xc0] sm:$0xff]
      %v4568 = vld [vmem:[%s4542 + $0xc8] sm:$0xff]
      %v4569 = vld [vmem:[%s4542 + $0xd0] sm:$0xff]
      %v4570 = vld [vmem:[%s4542 + $0xd8] sm:$0xff]
      %v4571 = vld [vmem:[%s4542 + $0xe0] sm:$0xff]
      %v4572 = vld [vmem:[%s4542 + $0xe8] sm:$0xff]
      %v4573 = vld [vmem:[%s4542 + $0xf0] sm:$0xff]
      %v4574 = vld [vmem:[%s4542 + $0xf8] sm:$0xff]
      %4575 = vst [vmem:[#allocation1] ss:$4 sm:$0xff] %v4537
      %s4576 = scalar_lea.vmem [#allocation1], 1
      %4577 = vst [vmem:[%s4576] ss:$4 sm:$0xff] %v4541
      %v4578 = vld.sshfl [vmem:[#allocation1] sm:$0xff pattern:$0x73625140]
      %v4579 = vld.sshfl [vmem:[#allocation1 + $0x8] sm:$0xff pattern:$0x73625140]
      %4582 = vmatpush.msra.mxu0 %v4558
      %4583 = vmatpush.msra.mxu0 %v4557
      %4584 = vmatpush.msra.mxu0 %v4556
      %4585 = vmatpush.msra.mxu0 %v4555
      %4586 = vmatpush.msra.mxu0 %v4554
      %4587 = vmatpush.msra.mxu0 %v4553
      %4588 = vmatpush.msra.mxu0 %v4552
      %4589 = vmatpush.msra.mxu0 %v4551
      %4590 = vmatpush.msra.mxu0 %v4550
      %4591 = vmatpush.msra.mxu0 %v4549
      %4592 = vmatpush.msra.mxu0 %v4548
      %4593 = vmatpush.msra.mxu0 %v4547
      %4594 = vmatpush.msra.mxu0 %v4546
      %4595 = vmatpush.msra.mxu0 %v4545
      %4596 = vmatpush.msra.mxu0 %v4544
      %4597 = vmatpush.msra.mxu0 %v4543
      %4598 = vmatmul.f32.gmra.mxu0 %v4578
      %v4599 = vpop.f32.mrf.mxu0
      %v4600 = vadd.f32 0.0, %v4599
      %4601 = vdwg.mxu0
      %4602 = vmatpush.msra.mxu0 %v4574
      %4603 = vmatpush.msra.mxu0 %v4573
      %4604 = vmatpush.msra.mxu0 %v4572
      %4605 = vmatpush.msra.mxu0 %v4571
      %4606 = vmatpush.msra.mxu0 %v4570
      %4607 = vmatpush.msra.mxu0 %v4569
      %4608 = vmatpush.msra.mxu0 %v4568
      %4609 = vmatpush.msra.mxu0 %v4567
      %4610 = vmatpush.msra.mxu0 %v4566
      %4611 = vmatpush.msra.mxu0 %v4565
      %4612 = vmatpush.msra.mxu0 %v4564
      %4613 = vmatpush.msra.mxu0 %v4563
      %4614 = vmatpush.msra.mxu0 %v4562
      %4615 = vmatpush.msra.mxu0 %v4561
      %4616 = vmatpush.msra.mxu0 %v4560
      %4617 = vmatpush.msra.mxu0 %v4559
      %4618 = vmatmul.f32.gmra.mxu0 %v4579
      %v4619 = vpop.f32.mrf.mxu0
      %v4620 = vadd.f32 %v4600, %v4619
      %4621 = vdwg.mxu0
      %v4622 = vadd.f32 %v4517, %v4620
      %v4623 = vld [vmem:[%s4012] sm:$0xc]
      %v4624 = vld [vmem:[%s4012 + $0x8] sm:$0xc]
      %v4625 = vld [vmem:[%s4012 + $0x10] sm:$0xc]
      %v4626 = vld [vmem:[%s4012 + $0x18] sm:$0xc]
      %4631 = vst.sshfl [vmem:[#allocation1] sm:$0xff pattern:$0x73625140] %v4623
      %4632 = vst.sshfl [vmem:[#allocation1 + $0x8] sm:$0xff pattern:$0x73625140] %v4624
      %s4633 = scalar_lea.vmem [#allocation1], 1
      %v4634 = vld [vmem:[%s4633] ss:$4 sm:$0xff]
      %4635 = vst.sshfl [vmem:[#allocation1 + $0x20] sm:$0xff pattern:$0x73625140] %v4625
      %4636 = vst.sshfl [vmem:[#allocation1 + $0x28] sm:$0xff pattern:$0x73625140] %v4626
      %s4637 = scalar_lea.vmem [#allocation1], 33
      %v4638 = vld [vmem:[%s4637] ss:$4 sm:$0xff]
      %s4639 = scalar_lea.vmem %s6, 1536
      %v4640 = vld [vmem:[%s4639] sm:$0xff]
      %v4641 = vld [vmem:[%s4639 + $0x8] sm:$0xff]
      %v4642 = vld [vmem:[%s4639 + $0x10] sm:$0xff]
      %v4643 = vld [vmem:[%s4639 + $0x18] sm:$0xff]
      %v4644 = vld [vmem:[%s4639 + $0x20] sm:$0xff]
      %v4645 = vld [vmem:[%s4639 + $0x28] sm:$0xff]
      %v4646 = vld [vmem:[%s4639 + $0x30] sm:$0xff]
      %v4647 = vld [vmem:[%s4639 + $0x38] sm:$0xff]
      %v4648 = vld [vmem:[%s4639 + $0x40] sm:$0xff]
      %v4649 = vld [vmem:[%s4639 + $0x48] sm:$0xff]
      %v4650 = vld [vmem:[%s4639 + $0x50] sm:$0xff]
      %v4651 = vld [vmem:[%s4639 + $0x58] sm:$0xff]
      %v4652 = vld [vmem:[%s4639 + $0x60] sm:$0xff]
      %v4653 = vld [vmem:[%s4639 + $0x68] sm:$0xff]
      %v4654 = vld [vmem:[%s4639 + $0x70] sm:$0xff]
      %v4655 = vld [vmem:[%s4639 + $0x78] sm:$0xff]
      %v4656 = vld [vmem:[%s4639 + $0x80] sm:$0xff]
      %v4657 = vld [vmem:[%s4639 + $0x88] sm:$0xff]
      %v4658 = vld [vmem:[%s4639 + $0x90] sm:$0xff]
      %v4659 = vld [vmem:[%s4639 + $0x98] sm:$0xff]
      %v4660 = vld [vmem:[%s4639 + $0xa0] sm:$0xff]
      %v4661 = vld [vmem:[%s4639 + $0xa8] sm:$0xff]
      %v4662 = vld [vmem:[%s4639 + $0xb0] sm:$0xff]
      %v4663 = vld [vmem:[%s4639 + $0xb8] sm:$0xff]
      %v4664 = vld [vmem:[%s4639 + $0xc0] sm:$0xff]
      %v4665 = vld [vmem:[%s4639 + $0xc8] sm:$0xff]
      %v4666 = vld [vmem:[%s4639 + $0xd0] sm:$0xff]
      %v4667 = vld [vmem:[%s4639 + $0xd8] sm:$0xff]
      %v4668 = vld [vmem:[%s4639 + $0xe0] sm:$0xff]
      %v4669 = vld [vmem:[%s4639 + $0xe8] sm:$0xff]
      %v4670 = vld [vmem:[%s4639 + $0xf0] sm:$0xff]
      %v4671 = vld [vmem:[%s4639 + $0xf8] sm:$0xff]
      %4672 = vst [vmem:[#allocation1] ss:$4 sm:$0xff] %v4634
      %s4673 = scalar_lea.vmem [#allocation1], 1
      %4674 = vst [vmem:[%s4673] ss:$4 sm:$0xff] %v4638
      %v4675 = vld.sshfl [vmem:[#allocation1] sm:$0xff pattern:$0x73625140]
      %v4676 = vld.sshfl [vmem:[#allocation1 + $0x8] sm:$0xff pattern:$0x73625140]
      %4679 = vmatpush.msra.mxu0 %v4655
      %4680 = vmatpush.msra.mxu0 %v4654
      %4681 = vmatpush.msra.mxu0 %v4653
      %4682 = vmatpush.msra.mxu0 %v4652
      %4683 = vmatpush.msra.mxu0 %v4651
      %4684 = vmatpush.msra.mxu0 %v4650
      %4685 = vmatpush.msra.mxu0 %v4649
      %4686 = vmatpush.msra.mxu0 %v4648
      %4687 = vmatpush.msra.mxu0 %v4647
      %4688 = vmatpush.msra.mxu0 %v4646
      %4689 = vmatpush.msra.mxu0 %v4645
      %4690 = vmatpush.msra.mxu0 %v4644
      %4691 = vmatpush.msra.mxu0 %v4643
      %4692 = vmatpush.msra.mxu0 %v4642
      %4693 = vmatpush.msra.mxu0 %v4641
      %4694 = vmatpush.msra.mxu0 %v4640
      %4695 = vmatmul.f32.gmra.mxu0 %v4675
      %v4696 = vpop.f32.mrf.mxu0
      %v4697 = vadd.f32 0.0, %v4696
      %4698 = vdwg.mxu0
      %4699 = vmatpush.msra.mxu0 %v4671
      %4700 = vmatpush.msra.mxu0 %v4670
      %4701 = vmatpush.msra.mxu0 %v4669
      %4702 = vmatpush.msra.mxu0 %v4668
      %4703 = vmatpush.msra.mxu0 %v4667
      %4704 = vmatpush.msra.mxu0 %v4666
      %4705 = vmatpush.msra.mxu0 %v4665
      %4706 = vmatpush.msra.mxu0 %v4664
      %4707 = vmatpush.msra.mxu0 %v4663
      %4708 = vmatpush.msra.mxu0 %v4662
      %4709 = vmatpush.msra.mxu0 %v4661
      %4710 = vmatpush.msra.mxu0 %v4660
      %4711 = vmatpush.msra.mxu0 %v4659
      %4712 = vmatpush.msra.mxu0 %v4658
      %4713 = vmatpush.msra.mxu0 %v4657
      %4714 = vmatpush.msra.mxu0 %v4656
      %4715 = vmatmul.f32.gmra.mxu0 %v4676
      %v4716 = vpop.f32.mrf.mxu0
      %v4717 = vadd.f32 %v4697, %v4716
      %4718 = vdwg.mxu0
      %v4719 = vadd.f32 %v4622, %v4717
      %v4720 = vld [vmem:[%s4012] sm:$0x18]
      %v4721 = vld [vmem:[%s4012 + $0x8] sm:$0x18]
      %v4722 = vld [vmem:[%s4012 + $0x10] sm:$0x18]
      %v4723 = vld [vmem:[%s4012 + $0x18] sm:$0x18]
      %4728 = vst.sshfl [vmem:[#allocation1] sm:$0xff pattern:$0x73625140] %v4720
      %4729 = vst.sshfl [vmem:[#allocation1 + $0x8] sm:$0xff pattern:$0x73625140] %v4721
      %s4730 = scalar_lea.vmem [#allocation1], 1
      %v4731 = vld [vmem:[%s4730] ss:$4 sm:$0xff]
      %s4732 = scalar_lea.vmem [#allocation1], 2
      %v4733 = vld [vmem:[%s4732] ss:$4 sm:$0xff]
      %4734 = vst.sshfl [vmem:[#allocation1 + $0x20] sm:$0xff pattern:$0x73625140] %v4722
      %4735 = vst.sshfl [vmem:[#allocation1 + $0x28] sm:$0xff pattern:$0x73625140] %v4723
      %s4736 = scalar_lea.vmem [#allocation1], 33
      %v4737 = vld [vmem:[%s4736] ss:$4 sm:$0xff]
      %s4738 = scalar_lea.vmem [#allocation1], 34
      %v4739 = vld [vmem:[%s4738] ss:$4 sm:$0xff]
      %v4740 = vrot.slane %v4731, 7
      %v4741 = vrot.slane %v4740, 2
      %v4742 = vrot.slane %v4733, 7
      %v4743 = vsel %vm4083, %v4741, %v4742
      %v4744 = vrot.slane %v4737, 7
      %v4745 = vrot.slane %v4744, 2
      %v4746 = vrot.slane %v4739, 7
      %v4747 = vsel %vm4083, %v4745, %v4746
      %s4748 = scalar_lea.vmem %s6, 1792
      %v4749 = vld [vmem:[%s4748] sm:$0xff]
      %v4750 = vld [vmem:[%s4748 + $0x8] sm:$0xff]
      %v4751 = vld [vmem:[%s4748 + $0x10] sm:$0xff]
      %v4752 = vld [vmem:[%s4748 + $0x18] sm:$0xff]
      %v4753 = vld [vmem:[%s4748 + $0x20] sm:$0xff]
      %v4754 = vld [vmem:[%s4748 + $0x28] sm:$0xff]
      %v4755 = vld [vmem:[%s4748 + $0x30] sm:$0xff]
      %v4756 = vld [vmem:[%s4748 + $0x38] sm:$0xff]
      %v4757 = vld [vmem:[%s4748 + $0x40] sm:$0xff]
      %v4758 = vld [vmem:[%s4748 + $0x48] sm:$0xff]
      %v4759 = vld [vmem:[%s4748 + $0x50] sm:$0xff]
      %v4760 = vld [vmem:[%s4748 + $0x58] sm:$0xff]
      %v4761 = vld [vmem:[%s4748 + $0x60] sm:$0xff]
      %v4762 = vld [vmem:[%s4748 + $0x68] sm:$0xff]
      %v4763 = vld [vmem:[%s4748 + $0x70] sm:$0xff]
      %v4764 = vld [vmem:[%s4748 + $0x78] sm:$0xff]
      %v4765 = vld [vmem:[%s4748 + $0x80] sm:$0xff]
      %v4766 = vld [vmem:[%s4748 + $0x88] sm:$0xff]
      %v4767 = vld [vmem:[%s4748 + $0x90] sm:$0xff]
      %v4768 = vld [vmem:[%s4748 + $0x98] sm:$0xff]
      %v4769 = vld [vmem:[%s4748 + $0xa0] sm:$0xff]
      %v4770 = vld [vmem:[%s4748 + $0xa8] sm:$0xff]
      %v4771 = vld [vmem:[%s4748 + $0xb0] sm:$0xff]
      %v4772 = vld [vmem:[%s4748 + $0xb8] sm:$0xff]
      %v4773 = vld [vmem:[%s4748 + $0xc0] sm:$0xff]
      %v4774 = vld [vmem:[%s4748 + $0xc8] sm:$0xff]
      %v4775 = vld [vmem:[%s4748 + $0xd0] sm:$0xff]
      %v4776 = vld [vmem:[%s4748 + $0xd8] sm:$0xff]
      %v4777 = vld [vmem:[%s4748 + $0xe0] sm:$0xff]
      %v4778 = vld [vmem:[%s4748 + $0xe8] sm:$0xff]
      %v4779 = vld [vmem:[%s4748 + $0xf0] sm:$0xff]
      %v4780 = vld [vmem:[%s4748 + $0xf8] sm:$0xff]
      %4781 = vst [vmem:[#allocation1] ss:$4 sm:$0xff] %v4743
      %s4782 = scalar_lea.vmem [#allocation1], 1
      %4783 = vst [vmem:[%s4782] ss:$4 sm:$0xff] %v4747
      %v4784 = vld.sshfl [vmem:[#allocation1] sm:$0xff pattern:$0x73625140]
      %v4785 = vld.sshfl [vmem:[#allocation1 + $0x8] sm:$0xff pattern:$0x73625140]
      %4788 = vmatpush.msra.mxu0 %v4764
      %4789 = vmatpush.msra.mxu0 %v4763
      %4790 = vmatpush.msra.mxu0 %v4762
      %4791 = vmatpush.msra.mxu0 %v4761
      %4792 = vmatpush.msra.mxu0 %v4760
      %4793 = vmatpush.msra.mxu0 %v4759
      %4794 = vmatpush.msra.mxu0 %v4758
      %4795 = vmatpush.msra.mxu0 %v4757
      %4796 = vmatpush.msra.mxu0 %v4756
      %4797 = vmatpush.msra.mxu0 %v4755
      %4798 = vmatpush.msra.mxu0 %v4754
      %4799 = vmatpush.msra.mxu0 %v4753
      %4800 = vmatpush.msra.mxu0 %v4752
      %4801 = vmatpush.msra.mxu0 %v4751
      %4802 = vmatpush.msra.mxu0 %v4750
      %4803 = vmatpush.msra.mxu0 %v4749
      %4804 = vmatmul.f32.gmra.mxu0 %v4784
      %v4805 = vpop.f32.mrf.mxu0
      %v4806 = vadd.f32 0.0, %v4805
      %4807 = vdwg.mxu0
      %4808 = vmatpush.msra.mxu0 %v4780
      %4809 = vmatpush.msra.mxu0 %v4779
      %4810 = vmatpush.msra.mxu0 %v4778
      %4811 = vmatpush.msra.mxu0 %v4777
      %4812 = vmatpush.msra.mxu0 %v4776
      %4813 = vmatpush.msra.mxu0 %v4775
      %4814 = vmatpush.msra.mxu0 %v4774
      %4815 = vmatpush.msra.mxu0 %v4773
      %4816 = vmatpush.msra.mxu0 %v4772
      %4817 = vmatpush.msra.mxu0 %v4771
      %4818 = vmatpush.msra.mxu0 %v4770
      %4819 = vmatpush.msra.mxu0 %v4769
      %4820 = vmatpush.msra.mxu0 %v4768
      %4821 = vmatpush.msra.mxu0 %v4767
      %4822 = vmatpush.msra.mxu0 %v4766
      %4823 = vmatpush.msra.mxu0 %v4765
      %4824 = vmatmul.f32.gmra.mxu0 %v4785
      %v4825 = vpop.f32.mrf.mxu0
      %v4826 = vadd.f32 %v4806, %v4825
      %4827 = vdwg.mxu0
      %v4828 = vadd.f32 %v4719, %v4826
      %s4829 = scalar_lea.vmem [#allocation4], 32
      %v4830 = vld [vmem:[%s4829] sm:$0x3]
      %v4831 = vld [vmem:[%s4829 + $0x8] sm:$0x3]
      %v4832 = vld [vmem:[%s4829 + $0x10] sm:$0x3]
      %v4833 = vld [vmem:[%s4829 + $0x18] sm:$0x3]
      %v4838 = vrot.slane %v4831, 6
      %v4839 = vrot.slane %v4833, 6
      %v4840 = vsel %vm4029, %v4830, %v4838
      %v4841 = vsel %vm4029, %v4832, %v4839
      %s4842 = scalar_lea.vmem %s6, 2048
      %v4843 = vld [vmem:[%s4842] sm:$0xff]
      %v4844 = vld [vmem:[%s4842 + $0x8] sm:$0xff]
      %v4845 = vld [vmem:[%s4842 + $0x10] sm:$0xff]
      %v4846 = vld [vmem:[%s4842 + $0x18] sm:$0xff]
      %v4847 = vld [vmem:[%s4842 + $0x20] sm:$0xff]
      %v4848 = vld [vmem:[%s4842 + $0x28] sm:$0xff]
      %v4849 = vld [vmem:[%s4842 + $0x30] sm:$0xff]
      %v4850 = vld [vmem:[%s4842 + $0x38] sm:$0xff]
      %v4851 = vld [vmem:[%s4842 + $0x40] sm:$0xff]
      %v4852 = vld [vmem:[%s4842 + $0x48] sm:$0xff]
      %v4853 = vld [vmem:[%s4842 + $0x50] sm:$0xff]
      %v4854 = vld [vmem:[%s4842 + $0x58] sm:$0xff]
      %v4855 = vld [vmem:[%s4842 + $0x60] sm:$0xff]
      %v4856 = vld [vmem:[%s4842 + $0x68] sm:$0xff]
      %v4857 = vld [vmem:[%s4842 + $0x70] sm:$0xff]
      %v4858 = vld [vmem:[%s4842 + $0x78] sm:$0xff]
      %v4859 = vld [vmem:[%s4842 + $0x80] sm:$0xff]
      %v4860 = vld [vmem:[%s4842 + $0x88] sm:$0xff]
      %v4861 = vld [vmem:[%s4842 + $0x90] sm:$0xff]
      %v4862 = vld [vmem:[%s4842 + $0x98] sm:$0xff]
      %v4863 = vld [vmem:[%s4842 + $0xa0] sm:$0xff]
      %v4864 = vld [vmem:[%s4842 + $0xa8] sm:$0xff]
      %v4865 = vld [vmem:[%s4842 + $0xb0] sm:$0xff]
      %v4866 = vld [vmem:[%s4842 + $0xb8] sm:$0xff]
      %v4867 = vld [vmem:[%s4842 + $0xc0] sm:$0xff]
      %v4868 = vld [vmem:[%s4842 + $0xc8] sm:$0xff]
      %v4869 = vld [vmem:[%s4842 + $0xd0] sm:$0xff]
      %v4870 = vld [vmem:[%s4842 + $0xd8] sm:$0xff]
      %v4871 = vld [vmem:[%s4842 + $0xe0] sm:$0xff]
      %v4872 = vld [vmem:[%s4842 + $0xe8] sm:$0xff]
      %v4873 = vld [vmem:[%s4842 + $0xf0] sm:$0xff]
      %v4874 = vld [vmem:[%s4842 + $0xf8] sm:$0xff]
      %4875 = vst [vmem:[#allocation1] ss:$4 sm:$0xff] %v4840
      %s4876 = scalar_lea.vmem [#allocation1], 1
      %4877 = vst [vmem:[%s4876] ss:$4 sm:$0xff] %v4841
      %v4878 = vld.sshfl [vmem:[#allocation1] sm:$0xff pattern:$0x73625140]
      %v4879 = vld.sshfl [vmem:[#allocation1 + $0x8] sm:$0xff pattern:$0x73625140]
      %4882 = vmatpush.msra.mxu0 %v4858
      %4883 = vmatpush.msra.mxu0 %v4857
      %4884 = vmatpush.msra.mxu0 %v4856
      %4885 = vmatpush.msra.mxu0 %v4855
      %4886 = vmatpush.msra.mxu0 %v4854
      %4887 = vmatpush.msra.mxu0 %v4853
      %4888 = vmatpush.msra.mxu0 %v4852
      %4889 = vmatpush.msra.mxu0 %v4851
      %4890 = vmatpush.msra.mxu0 %v4850
      %4891 = vmatpush.msra.mxu0 %v4849
      %4892 = vmatpush.msra.mxu0 %v4848
      %4893 = vmatpush.msra.mxu0 %v4847
      %4894 = vmatpush.msra.mxu0 %v4846
      %4895 = vmatpush.msra.mxu0 %v4845
      %4896 = vmatpush.msra.mxu0 %v4844
      %4897 = vmatpush.msra.mxu0 %v4843
      %4898 = vmatmul.f32.gmra.mxu0 %v4878
      %v4899 = vpop.f32.mrf.mxu0
      %v4900 = vadd.f32 0.0, %v4899
      %4901 = vdwg.mxu0
      %4902 = vmatpush.msra.mxu0 %v4874
      %4903 = vmatpush.msra.mxu0 %v4873
      %4904 = vmatpush.msra.mxu0 %v4872
      %4905 = vmatpush.msra.mxu0 %v4871
      %4906 = vmatpush.msra.mxu0 %v4870
      %4907 = vmatpush.msra.mxu0 %v4869
      %4908 = vmatpush.msra.mxu0 %v4868
      %4909 = vmatpush.msra.mxu0 %v4867
      %4910 = vmatpush.msra.mxu0 %v4866
      %4911 = vmatpush.msra.mxu0 %v4865
      %4912 = vmatpush.msra.mxu0 %v4864
      %4913 = vmatpush.msra.mxu0 %v4863
      %4914 = vmatpush.msra.mxu0 %v4862
      %4915 = vmatpush.msra.mxu0 %v4861
      %4916 = vmatpush.msra.mxu0 %v4860
      %4917 = vmatpush.msra.mxu0 %v4859
      %4918 = vmatmul.f32.gmra.mxu0 %v4879
      %v4919 = vpop.f32.mrf.mxu0
      %v4920 = vadd.f32 %v4900, %v4919
      %4921 = vdwg.mxu0
      %v4922 = vadd.f32 %v4828, %v4920
      %v4923 = vld [vmem:[%s4829] sm:$0x6]
      %v4924 = vld [vmem:[%s4829 + $0x8] sm:$0x6]
      %v4925 = vld [vmem:[%s4829 + $0x10] sm:$0x6]
      %v4926 = vld [vmem:[%s4829 + $0x18] sm:$0x6]
      %v4931 = vrot.slane %v4924, 6
      %v4932 = vrot.slane %v4926, 6
      %v4933 = vsel %vm4029, %v4923, %v4931
      %v4934 = vsel %vm4075, %v4923, %v4931
      %v4935 = vrot.slane %v4934, 2
      %v4936 = vsel %vm4029, %v4925, %v4932
      %v4937 = vsel %vm4075, %v4925, %v4932
      %v4938 = vrot.slane %v4937, 2
      %v4939 = vrot.slane %v4933, 7
      %v4940 = vrot.slane %v4939, 2
      %v4941 = vrot.slane %v4935, 7
      %v4942 = vsel %vm4083, %v4940, %v4941
      %v4943 = vrot.slane %v4936, 7
      %v4944 = vrot.slane %v4943, 2
      %v4945 = vrot.slane %v4938, 7
      %v4946 = vsel %vm4083, %v4944, %v4945
      %s4947 = scalar_lea.vmem %s6, 2304
      %v4948 = vld [vmem:[%s4947] sm:$0xff]
      %v4949 = vld [vmem:[%s4947 + $0x8] sm:$0xff]
      %v4950 = vld [vmem:[%s4947 + $0x10] sm:$0xff]
      %v4951 = vld [vmem:[%s4947 + $0x18] sm:$0xff]
      %v4952 = vld [vmem:[%s4947 + $0x20] sm:$0xff]
      %v4953 = vld [vmem:[%s4947 + $0x28] sm:$0xff]
      %v4954 = vld [vmem:[%s4947 + $0x30] sm:$0xff]
      %v4955 = vld [vmem:[%s4947 + $0x38] sm:$0xff]
      %v4956 = vld [vmem:[%s4947 + $0x40] sm:$0xff]
      %v4957 = vld [vmem:[%s4947 + $0x48] sm:$0xff]
      %v4958 = vld [vmem:[%s4947 + $0x50] sm:$0xff]
      %v4959 = vld [vmem:[%s4947 + $0x58] sm:$0xff]
      %v4960 = vld [vmem:[%s4947 + $0x60] sm:$0xff]
      %v4961 = vld [vmem:[%s4947 + $0x68] sm:$0xff]
      %v4962 = vld [vmem:[%s4947 + $0x70] sm:$0xff]
      %v4963 = vld [vmem:[%s4947 + $0x78] sm:$0xff]
      %v4964 = vld [vmem:[%s4947 + $0x80] sm:$0xff]
      %v4965 = vld [vmem:[%s4947 + $0x88] sm:$0xff]
      %v4966 = vld [vmem:[%s4947 + $0x90] sm:$0xff]
      %v4967 = vld [vmem:[%s4947 + $0x98] sm:$0xff]
      %v4968 = vld [vmem:[%s4947 + $0xa0] sm:$0xff]
      %v4969 = vld [vmem:[%s4947 + $0xa8] sm:$0xff]
      %v4970 = vld [vmem:[%s4947 + $0xb0] sm:$0xff]
      %v4971 = vld [vmem:[%s4947 + $0xb8] sm:$0xff]
      %v4972 = vld [vmem:[%s4947 + $0xc0] sm:$0xff]
      %v4973 = vld [vmem:[%s4947 + $0xc8] sm:$0xff]
      %v4974 = vld [vmem:[%s4947 + $0xd0] sm:$0xff]
      %v4975 = vld [vmem:[%s4947 + $0xd8] sm:$0xff]
      %v4976 = vld [vmem:[%s4947 + $0xe0] sm:$0xff]
      %v4977 = vld [vmem:[%s4947 + $0xe8] sm:$0xff]
      %v4978 = vld [vmem:[%s4947 + $0xf0] sm:$0xff]
      %v4979 = vld [vmem:[%s4947 + $0xf8] sm:$0xff]
      %4980 = vst [vmem:[#allocation1] ss:$4 sm:$0xff] %v4942
      %s4981 = scalar_lea.vmem [#allocation1], 1
      %4982 = vst [vmem:[%s4981] ss:$4 sm:$0xff] %v4946
      %v4983 = vld.sshfl [vmem:[#allocation1] sm:$0xff pattern:$0x73625140]
      %v4984 = vld.sshfl [vmem:[#allocation1 + $0x8] sm:$0xff pattern:$0x73625140]
      %4987 = vmatpush.msra.mxu0 %v4963
      %4988 = vmatpush.msra.mxu0 %v4962
      %4989 = vmatpush.msra.mxu0 %v4961
      %4990 = vmatpush.msra.mxu0 %v4960
      %4991 = vmatpush.msra.mxu0 %v4959
      %4992 = vmatpush.msra.mxu0 %v4958
      %4993 = vmatpush.msra.mxu0 %v4957
      %4994 = vmatpush.msra.mxu0 %v4956
      %4995 = vmatpush.msra.mxu0 %v4955
      %4996 = vmatpush.msra.mxu0 %v4954
      %4997 = vmatpush.msra.mxu0 %v4953
      %4998 = vmatpush.msra.mxu0 %v4952
      %4999 = vmatpush.msra.mxu0 %v4951
      %5000 = vmatpush.msra.mxu0 %v4950
      %5001 = vmatpush.msra.mxu0 %v4949
      %5002 = vmatpush.msra.mxu0 %v4948
      %5003 = vmatmul.f32.gmra.mxu0 %v4983
      %v5004 = vpop.f32.mrf.mxu0
      %v5005 = vadd.f32 0.0, %v5004
      %5006 = vdwg.mxu0
      %5007 = vmatpush.msra.mxu0 %v4979
      %5008 = vmatpush.msra.mxu0 %v4978
      %5009 = vmatpush.msra.mxu0 %v4977
      %5010 = vmatpush.msra.mxu0 %v4976
      %5011 = vmatpush.msra.mxu0 %v4975
      %5012 = vmatpush.msra.mxu0 %v4974
      %5013 = vmatpush.msra.mxu0 %v4973
      %5014 = vmatpush.msra.mxu0 %v4972
      %5015 = vmatpush.msra.mxu0 %v4971
      %5016 = vmatpush.msra.mxu0 %v4970
      %5017 = vmatpush.msra.mxu0 %v4969
      %5018 = vmatpush.msra.mxu0 %v4968
      %5019 = vmatpush.msra.mxu0 %v4967
      %5020 = vmatpush.msra.mxu0 %v4966
      %5021 = vmatpush.msra.mxu0 %v4965
      %5022 = vmatpush.msra.mxu0 %v4964
      %5023 = vmatmul.f32.gmra.mxu0 %v4984
      %v5024 = vpop.f32.mrf.mxu0
      %v5025 = vadd.f32 %v5005, %v5024
      %5026 = vdwg.mxu0
      %v5027 = vadd.f32 %v4922, %v5025
      %v5028 = vld [vmem:[%s4829] sm:$0xc]
      %v5029 = vld [vmem:[%s4829 + $0x8] sm:$0xc]
      %v5030 = vld [vmem:[%s4829 + $0x10] sm:$0xc]
      %v5031 = vld [vmem:[%s4829 + $0x18] sm:$0xc]
      %5036 = vst.sshfl [vmem:[#allocation1] sm:$0xff pattern:$0x73625140] %v5028
      %5037 = vst.sshfl [vmem:[#allocation1 + $0x8] sm:$0xff pattern:$0x73625140] %v5029
      %s5038 = scalar_lea.vmem [#allocation1], 1
      %v5039 = vld [vmem:[%s5038] ss:$4 sm:$0xff]
      %5040 = vst.sshfl [vmem:[#allocation1 + $0x20] sm:$0xff pattern:$0x73625140] %v5030
      %5041 = vst.sshfl [vmem:[#allocation1 + $0x28] sm:$0xff pattern:$0x73625140] %v5031
      %s5042 = scalar_lea.vmem [#allocation1], 33
      %v5043 = vld [vmem:[%s5042] ss:$4 sm:$0xff]
      %s5044 = scalar_lea.vmem %s6, 2560
      %v5045 = vld [vmem:[%s5044] sm:$0xff]
      %v5046 = vld [vmem:[%s5044 + $0x8] sm:$0xff]
      %v5047 = vld [vmem:[%s5044 + $0x10] sm:$0xff]
      %v5048 = vld [vmem:[%s5044 + $0x18] sm:$0xff]
      %v5049 = vld [vmem:[%s5044 + $0x20] sm:$0xff]
      %v5050 = vld [vmem:[%s5044 + $0x28] sm:$0xff]
      %v5051 = vld [vmem:[%s5044 + $0x30] sm:$0xff]
      %v5052 = vld [vmem:[%s5044 + $0x38] sm:$0xff]
      %v5053 = vld [vmem:[%s5044 + $0x40] sm:$0xff]
      %v5054 = vld [vmem:[%s5044 + $0x48] sm:$0xff]
      %v5055 = vld [vmem:[%s5044 + $0x50] sm:$0xff]
      %v5056 = vld [vmem:[%s5044 + $0x58] sm:$0xff]
      %v5057 = vld [vmem:[%s5044 + $0x60] sm:$0xff]
      %v5058 = vld [vmem:[%s5044 + $0x68] sm:$0xff]
      %v5059 = vld [vmem:[%s5044 + $0x70] sm:$0xff]
      %v5060 = vld [vmem:[%s5044 + $0x78] sm:$0xff]
      %v5061 = vld [vmem:[%s5044 + $0x80] sm:$0xff]
      %v5062 = vld [vmem:[%s5044 + $0x88] sm:$0xff]
      %v5063 = vld [vmem:[%s5044 + $0x90] sm:$0xff]
      %v5064 = vld [vmem:[%s5044 + $0x98] sm:$0xff]
      %v5065 = vld [vmem:[%s5044 + $0xa0] sm:$0xff]
      %v5066 = vld [vmem:[%s5044 + $0xa8] sm:$0xff]
      %v5067 = vld [vmem:[%s5044 + $0xb0] sm:$0xff]
      %v5068 = vld [vmem:[%s5044 + $0xb8] sm:$0xff]
      %v5069 = vld [vmem:[%s5044 + $0xc0] sm:$0xff]
      %v5070 = vld [vmem:[%s5044 + $0xc8] sm:$0xff]
      %v5071 = vld [vmem:[%s5044 + $0xd0] sm:$0xff]
      %v5072 = vld [vmem:[%s5044 + $0xd8] sm:$0xff]
      %v5073 = vld [vmem:[%s5044 + $0xe0] sm:$0xff]
      %v5074 = vld [vmem:[%s5044 + $0xe8] sm:$0xff]
      %v5075 = vld [vmem:[%s5044 + $0xf0] sm:$0xff]
      %v5076 = vld [vmem:[%s5044 + $0xf8] sm:$0xff]
      %5077 = vst [vmem:[#allocation1] ss:$4 sm:$0xff] %v5039
      %s5078 = scalar_lea.vmem [#allocation1], 1
      %5079 = vst [vmem:[%s5078] ss:$4 sm:$0xff] %v5043
      %v5080 = vld.sshfl [vmem:[#allocation1] sm:$0xff pattern:$0x73625140]
      %v5081 = vld.sshfl [vmem:[#allocation1 + $0x8] sm:$0xff pattern:$0x73625140]
      %5084 = vmatpush.msra.mxu0 %v5060
      %5085 = vmatpush.msra.mxu0 %v5059
      %5086 = vmatpush.msra.mxu0 %v5058
      %5087 = vmatpush.msra.mxu0 %v5057
      %5088 = vmatpush.msra.mxu0 %v5056
      %5089 = vmatpush.msra.mxu0 %v5055
      %5090 = vmatpush.msra.mxu0 %v5054
      %5091 = vmatpush.msra.mxu0 %v5053
      %5092 = vmatpush.msra.mxu0 %v5052
      %5093 = vmatpush.msra.mxu0 %v5051
      %5094 = vmatpush.msra.mxu0 %v5050
      %5095 = vmatpush.msra.mxu0 %v5049
      %5096 = vmatpush.msra.mxu0 %v5048
      %5097 = vmatpush.msra.mxu0 %v5047
      %5098 = vmatpush.msra.mxu0 %v5046
      %5099 = vmatpush.msra.mxu0 %v5045
      %5100 = vmatmul.f32.gmra.mxu0 %v5080
      %v5101 = vpop.f32.mrf.mxu0
      %v5102 = vadd.f32 0.0, %v5101
      %5103 = vdwg.mxu0
      %5104 = vmatpush.msra.mxu0 %v5076
      %5105 = vmatpush.msra.mxu0 %v5075
      %5106 = vmatpush.msra.mxu0 %v5074
      %5107 = vmatpush.msra.mxu0 %v5073
      %5108 = vmatpush.msra.mxu0 %v5072
      %5109 = vmatpush.msra.mxu0 %v5071
      %5110 = vmatpush.msra.mxu0 %v5070
      %5111 = vmatpush.msra.mxu0 %v5069
      %5112 = vmatpush.msra.mxu0 %v5068
      %5113 = vmatpush.msra.mxu0 %v5067
      %5114 = vmatpush.msra.mxu0 %v5066
      %5115 = vmatpush.msra.mxu0 %v5065
      %5116 = vmatpush.msra.mxu0 %v5064
      %5117 = vmatpush.msra.mxu0 %v5063
      %5118 = vmatpush.msra.mxu0 %v5062
      %5119 = vmatpush.msra.mxu0 %v5061
      %5120 = vmatmul.f32.gmra.mxu0 %v5081
      %v5121 = vpop.f32.mrf.mxu0
      %v5122 = vadd.f32 %v5102, %v5121
      %5123 = vdwg.mxu0
      %v5124 = vadd.f32 %v5027, %v5122
      %v5125 = vld [vmem:[%s4829] sm:$0x18]
      %v5126 = vld [vmem:[%s4829 + $0x8] sm:$0x18]
      %v5127 = vld [vmem:[%s4829 + $0x10] sm:$0x18]
      %v5128 = vld [vmem:[%s4829 + $0x18] sm:$0x18]
      %5133 = vst.sshfl [vmem:[#allocation1] sm:$0xff pattern:$0x73625140] %v5125
      %5134 = vst.sshfl [vmem:[#allocation1 + $0x8] sm:$0xff pattern:$0x73625140] %v5126
      %s5135 = scalar_lea.vmem [#allocation1], 1
      %v5136 = vld [vmem:[%s5135] ss:$4 sm:$0xff]
      %s5137 = scalar_lea.vmem [#allocation1], 2
      %v5138 = vld [vmem:[%s5137] ss:$4 sm:$0xff]
      %5139 = vst.sshfl [vmem:[#allocation1 + $0x20] sm:$0xff pattern:$0x73625140] %v5127
      %5140 = vst.sshfl [vmem:[#allocation1 + $0x28] sm:$0xff pattern:$0x73625140] %v5128
      %s5141 = scalar_lea.vmem [#allocation1], 33
      %v5142 = vld [vmem:[%s5141] ss:$4 sm:$0xff]
      %s5143 = scalar_lea.vmem [#allocation1], 34
      %v5144 = vld [vmem:[%s5143] ss:$4 sm:$0xff]
      %v5145 = vrot.slane %v5136, 7
      %v5146 = vrot.slane %v5145, 2
      %v5147 = vrot.slane %v5138, 7
      %v5148 = vsel %vm4083, %v5146, %v5147
      %v5149 = vrot.slane %v5142, 7
      %v5150 = vrot.slane %v5149, 2
      %v5151 = vrot.slane %v5144, 7
      %v5152 = vsel %vm4083, %v5150, %v5151
      %s5153 = scalar_lea.vmem %s6, 2816
      %v5154 = vld [vmem:[%s5153] sm:$0xff]
      %v5155 = vld [vmem:[%s5153 + $0x8] sm:$0xff]
      %v5156 = vld [vmem:[%s5153 + $0x10] sm:$0xff]
      %v5157 = vld [vmem:[%s5153 + $0x18] sm:$0xff]
      %v5158 = vld [vmem:[%s5153 + $0x20] sm:$0xff]
      %v5159 = vld [vmem:[%s5153 + $0x28] sm:$0xff]
      %v5160 = vld [vmem:[%s5153 + $0x30] sm:$0xff]
      %v5161 = vld [vmem:[%s5153 + $0x38] sm:$0xff]
      %v5162 = vld [vmem:[%s5153 + $0x40] sm:$0xff]
      %v5163 = vld [vmem:[%s5153 + $0x48] sm:$0xff]
      %v5164 = vld [vmem:[%s5153 + $0x50] sm:$0xff]
      %v5165 = vld [vmem:[%s5153 + $0x58] sm:$0xff]
      %v5166 = vld [vmem:[%s5153 + $0x60] sm:$0xff]
      %v5167 = vld [vmem:[%s5153 + $0x68] sm:$0xff]
      %v5168 = vld [vmem:[%s5153 + $0x70] sm:$0xff]
      %v5169 = vld [vmem:[%s5153 + $0x78] sm:$0xff]
      %v5170 = vld [vmem:[%s5153 + $0x80] sm:$0xff]
      %v5171 = vld [vmem:[%s5153 + $0x88] sm:$0xff]
      %v5172 = vld [vmem:[%s5153 + $0x90] sm:$0xff]
      %v5173 = vld [vmem:[%s5153 + $0x98] sm:$0xff]
      %v5174 = vld [vmem:[%s5153 + $0xa0] sm:$0xff]
      %v5175 = vld [vmem:[%s5153 + $0xa8] sm:$0xff]
      %v5176 = vld [vmem:[%s5153 + $0xb0] sm:$0xff]
      %v5177 = vld [vmem:[%s5153 + $0xb8] sm:$0xff]
      %v5178 = vld [vmem:[%s5153 + $0xc0] sm:$0xff]
      %v5179 = vld [vmem:[%s5153 + $0xc8] sm:$0xff]
      %v5180 = vld [vmem:[%s5153 + $0xd0] sm:$0xff]
      %v5181 = vld [vmem:[%s5153 + $0xd8] sm:$0xff]
      %v5182 = vld [vmem:[%s5153 + $0xe0] sm:$0xff]
      %v5183 = vld [vmem:[%s5153 + $0xe8] sm:$0xff]
      %v5184 = vld [vmem:[%s5153 + $0xf0] sm:$0xff]
      %v5185 = vld [vmem:[%s5153 + $0xf8] sm:$0xff]
      %5186 = vst [vmem:[#allocation1] ss:$4 sm:$0xff] %v5148
      %s5187 = scalar_lea.vmem [#allocation1], 1
      %5188 = vst [vmem:[%s5187] ss:$4 sm:$0xff] %v5152
      %v5189 = vld.sshfl [vmem:[#allocation1] sm:$0xff pattern:$0x73625140]
      %v5190 = vld.sshfl [vmem:[#allocation1 + $0x8] sm:$0xff pattern:$0x73625140]
      %5193 = vmatpush.msra.mxu0 %v5169
      %5194 = vmatpush.msra.mxu0 %v5168
      %5195 = vmatpush.msra.mxu0 %v5167
      %5196 = vmatpush.msra.mxu0 %v5166
      %5197 = vmatpush.msra.mxu0 %v5165
      %5198 = vmatpush.msra.mxu0 %v5164
      %5199 = vmatpush.msra.mxu0 %v5163
      %5200 = vmatpush.msra.mxu0 %v5162
      %5201 = vmatpush.msra.mxu0 %v5161
      %5202 = vmatpush.msra.mxu0 %v5160
      %5203 = vmatpush.msra.mxu0 %v5159
      %5204 = vmatpush.msra.mxu0 %v5158
      %5205 = vmatpush.msra.mxu0 %v5157
      %5206 = vmatpush.msra.mxu0 %v5156
      %5207 = vmatpush.msra.mxu0 %v5155
      %5208 = vmatpush.msra.mxu0 %v5154
      %5209 = vmatmul.f32.gmra.mxu0 %v5189
      %v5210 = vpop.f32.mrf.mxu0
      %v5211 = vadd.f32 0.0, %v5210
      %5212 = vdwg.mxu0
      %5213 = vmatpush.msra.mxu0 %v5185
      %5214 = vmatpush.msra.mxu0 %v5184
      %5215 = vmatpush.msra.mxu0 %v5183
      %5216 = vmatpush.msra.mxu0 %v5182
      %5217 = vmatpush.msra.mxu0 %v5181
      %5218 = vmatpush.msra.mxu0 %v5180
      %5219 = vmatpush.msra.mxu0 %v5179
      %5220 = vmatpush.msra.mxu0 %v5178
      %5221 = vmatpush.msra.mxu0 %v5177
      %5222 = vmatpush.msra.mxu0 %v5176
      %5223 = vmatpush.msra.mxu0 %v5175
      %5224 = vmatpush.msra.mxu0 %v5174
      %5225 = vmatpush.msra.mxu0 %v5173
      %5226 = vmatpush.msra.mxu0 %v5172
      %5227 = vmatpush.msra.mxu0 %v5171
      %5228 = vmatpush.msra.mxu0 %v5170
      %5229 = vmatmul.f32.gmra.mxu0 %v5190
      %v5230 = vpop.f32.mrf.mxu0
      %v5231 = vadd.f32 %v5211, %v5230
      %5232 = vdwg.mxu0
      %v5233 = vadd.f32 %v5124, %v5231
      %s5234 = scalar_lea.vmem [#allocation4], 48
      %v5235 = vld [vmem:[%s5234] sm:$0x3]
      %v5236 = vld [vmem:[%s5234 + $0x8] sm:$0x3]
      %v5237 = vld [vmem:[%s5234 + $0x10] sm:$0x3]
      %v5238 = vld [vmem:[%s5234 + $0x18] sm:$0x3]
      %v5243 = vrot.slane %v5236, 6
      %v5244 = vrot.slane %v5238, 6
      %v5245 = vsel %vm4029, %v5235, %v5243
      %v5246 = vsel %vm4029, %v5237, %v5244
      %s5247 = scalar_lea.vmem %s6, 3072
      %v5248 = vld [vmem:[%s5247] sm:$0xff]
      %v5249 = vld [vmem:[%s5247 + $0x8] sm:$0xff]
      %v5250 = vld [vmem:[%s5247 + $0x10] sm:$0xff]
      %v5251 = vld [vmem:[%s5247 + $0x18] sm:$0xff]
      %v5252 = vld [vmem:[%s5247 + $0x20] sm:$0xff]
      %v5253 = vld [vmem:[%s5247 + $0x28] sm:$0xff]
      %v5254 = vld [vmem:[%s5247 + $0x30] sm:$0xff]
      %v5255 = vld [vmem:[%s5247 + $0x38] sm:$0xff]
      %v5256 = vld [vmem:[%s5247 + $0x40] sm:$0xff]
      %v5257 = vld [vmem:[%s5247 + $0x48] sm:$0xff]
      %v5258 = vld [vmem:[%s5247 + $0x50] sm:$0xff]
      %v5259 = vld [vmem:[%s5247 + $0x58] sm:$0xff]
      %v5260 = vld [vmem:[%s5247 + $0x60] sm:$0xff]
      %v5261 = vld [vmem:[%s5247 + $0x68] sm:$0xff]
      %v5262 = vld [vmem:[%s5247 + $0x70] sm:$0xff]
      %v5263 = vld [vmem:[%s5247 + $0x78] sm:$0xff]
      %v5264 = vld [vmem:[%s5247 + $0x80] sm:$0xff]
      %v5265 = vld [vmem:[%s5247 + $0x88] sm:$0xff]
      %v5266 = vld [vmem:[%s5247 + $0x90] sm:$0xff]
      %v5267 = vld [vmem:[%s5247 + $0x98] sm:$0xff]
      %v5268 = vld [vmem:[%s5247 + $0xa0] sm:$0xff]
      %v5269 = vld [vmem:[%s5247 + $0xa8] sm:$0xff]
      %v5270 = vld [vmem:[%s5247 + $0xb0] sm:$0xff]
      %v5271 = vld [vmem:[%s5247 + $0xb8] sm:$0xff]
      %v5272 = vld [vmem:[%s5247 + $0xc0] sm:$0xff]
      %v5273 = vld [vmem:[%s5247 + $0xc8] sm:$0xff]
      %v5274 = vld [vmem:[%s5247 + $0xd0] sm:$0xff]
      %v5275 = vld [vmem:[%s5247 + $0xd8] sm:$0xff]
      %v5276 = vld [vmem:[%s5247 + $0xe0] sm:$0xff]
      %v5277 = vld [vmem:[%s5247 + $0xe8] sm:$0xff]
      %v5278 = vld [vmem:[%s5247 + $0xf0] sm:$0xff]
      %v5279 = vld [vmem:[%s5247 + $0xf8] sm:$0xff]
      %5280 = vst [vmem:[#allocation1] ss:$4 sm:$0xff] %v5245
      %s5281 = scalar_lea.vmem [#allocation1], 1
      %5282 = vst [vmem:[%s5281] ss:$4 sm:$0xff] %v5246
      %v5283 = vld.sshfl [vmem:[#allocation1] sm:$0xff pattern:$0x73625140]
      %v5284 = vld.sshfl [vmem:[#allocation1 + $0x8] sm:$0xff pattern:$0x73625140]
      %5287 = vmatpush.msra.mxu0 %v5263
      %5288 = vmatpush.msra.mxu0 %v5262
      %5289 = vmatpush.msra.mxu0 %v5261
      %5290 = vmatpush.msra.mxu0 %v5260
      %5291 = vmatpush.msra.mxu0 %v5259
      %5292 = vmatpush.msra.mxu0 %v5258
      %5293 = vmatpush.msra.mxu0 %v5257
      %5294 = vmatpush.msra.mxu0 %v5256
      %5295 = vmatpush.msra.mxu0 %v5255
      %5296 = vmatpush.msra.mxu0 %v5254
      %5297 = vmatpush.msra.mxu0 %v5253
      %5298 = vmatpush.msra.mxu0 %v5252
      %5299 = vmatpush.msra.mxu0 %v5251
      %5300 = vmatpush.msra.mxu0 %v5250
      %5301 = vmatpush.msra.mxu0 %v5249
      %5302 = vmatpush.msra.mxu0 %v5248
      %5303 = vmatmul.f32.gmra.mxu0 %v5283
      %v5304 = vpop.f32.mrf.mxu0
      %v5305 = vadd.f32 0.0, %v5304
      %5306 = vdwg.mxu0
      %5307 = vmatpush.msra.mxu0 %v5279
      %5308 = vmatpush.msra.mxu0 %v5278
      %5309 = vmatpush.msra.mxu0 %v5277
      %5310 = vmatpush.msra.mxu0 %v5276
      %5311 = vmatpush.msra.mxu0 %v5275
      %5312 = vmatpush.msra.mxu0 %v5274
      %5313 = vmatpush.msra.mxu0 %v5273
      %5314 = vmatpush.msra.mxu0 %v5272
      %5315 = vmatpush.msra.mxu0 %v5271
      %5316 = vmatpush.msra.mxu0 %v5270
      %5317 = vmatpush.msra.mxu0 %v5269
      %5318 = vmatpush.msra.mxu0 %v5268
      %5319 = vmatpush.msra.mxu0 %v5267
      %5320 = vmatpush.msra.mxu0 %v5266
      %5321 = vmatpush.msra.mxu0 %v5265
      %5322 = vmatpush.msra.mxu0 %v5264
      %5323 = vmatmul.f32.gmra.mxu0 %v5284
      %v5324 = vpop.f32.mrf.mxu0
      %v5325 = vadd.f32 %v5305, %v5324
      %5326 = vdwg.mxu0
      %v5327 = vadd.f32 %v5233, %v5325
      %v5328 = vld [vmem:[%s5234] sm:$0x6]
      %v5329 = vld [vmem:[%s5234 + $0x8] sm:$0x6]
      %v5330 = vld [vmem:[%s5234 + $0x10] sm:$0x6]
      %v5331 = vld [vmem:[%s5234 + $0x18] sm:$0x6]
      %v5336 = vrot.slane %v5329, 6
      %v5337 = vrot.slane %v5331, 6
      %v5338 = vsel %vm4029, %v5328, %v5336
      %v5339 = vsel %vm4075, %v5328, %v5336
      %v5340 = vrot.slane %v5339, 2
      %v5341 = vsel %vm4029, %v5330, %v5337
      %v5342 = vsel %vm4075, %v5330, %v5337
      %v5343 = vrot.slane %v5342, 2
      %v5344 = vrot.slane %v5338, 7
      %v5345 = vrot.slane %v5344, 2
      %v5346 = vrot.slane %v5340, 7
      %v5347 = vsel %vm4083, %v5345, %v5346
      %v5348 = vrot.slane %v5341, 7
      %v5349 = vrot.slane %v5348, 2
      %v5350 = vrot.slane %v5343, 7
      %v5351 = vsel %vm4083, %v5349, %v5350
      %s5352 = scalar_lea.vmem %s6, 3328
      %v5353 = vld [vmem:[%s5352] sm:$0xff]
      %v5354 = vld [vmem:[%s5352 + $0x8] sm:$0xff]
      %v5355 = vld [vmem:[%s5352 + $0x10] sm:$0xff]
      %v5356 = vld [vmem:[%s5352 + $0x18] sm:$0xff]
      %v5357 = vld [vmem:[%s5352 + $0x20] sm:$0xff]
      %v5358 = vld [vmem:[%s5352 + $0x28] sm:$0xff]
      %v5359 = vld [vmem:[%s5352 + $0x30] sm:$0xff]
      %v5360 = vld [vmem:[%s5352 + $0x38] sm:$0xff]
      %v5361 = vld [vmem:[%s5352 + $0x40] sm:$0xff]
      %v5362 = vld [vmem:[%s5352 + $0x48] sm:$0xff]
      %v5363 = vld [vmem:[%s5352 + $0x50] sm:$0xff]
      %v5364 = vld [vmem:[%s5352 + $0x58] sm:$0xff]
      %v5365 = vld [vmem:[%s5352 + $0x60] sm:$0xff]
      %v5366 = vld [vmem:[%s5352 + $0x68] sm:$0xff]
      %v5367 = vld [vmem:[%s5352 + $0x70] sm:$0xff]
      %v5368 = vld [vmem:[%s5352 + $0x78] sm:$0xff]
      %v5369 = vld [vmem:[%s5352 + $0x80] sm:$0xff]
      %v5370 = vld [vmem:[%s5352 + $0x88] sm:$0xff]
      %v5371 = vld [vmem:[%s5352 + $0x90] sm:$0xff]
      %v5372 = vld [vmem:[%s5352 + $0x98] sm:$0xff]
      %v5373 = vld [vmem:[%s5352 + $0xa0] sm:$0xff]
      %v5374 = vld [vmem:[%s5352 + $0xa8] sm:$0xff]
      %v5375 = vld [vmem:[%s5352 + $0xb0] sm:$0xff]
      %v5376 = vld [vmem:[%s5352 + $0xb8] sm:$0xff]
      %v5377 = vld [vmem:[%s5352 + $0xc0] sm:$0xff]
      %v5378 = vld [vmem:[%s5352 + $0xc8] sm:$0xff]
      %v5379 = vld [vmem:[%s5352 + $0xd0] sm:$0xff]
      %v5380 = vld [vmem:[%s5352 + $0xd8] sm:$0xff]
      %v5381 = vld [vmem:[%s5352 + $0xe0] sm:$0xff]
      %v5382 = vld [vmem:[%s5352 + $0xe8] sm:$0xff]
      %v5383 = vld [vmem:[%s5352 + $0xf0] sm:$0xff]
      %v5384 = vld [vmem:[%s5352 + $0xf8] sm:$0xff]
      %5385 = vst [vmem:[#allocation1] ss:$4 sm:$0xff] %v5347
      %s5386 = scalar_lea.vmem [#allocation1], 1
      %5387 = vst [vmem:[%s5386] ss:$4 sm:$0xff] %v5351
      %v5388 = vld.sshfl [vmem:[#allocation1] sm:$0xff pattern:$0x73625140]
      %v5389 = vld.sshfl [vmem:[#allocation1 + $0x8] sm:$0xff pattern:$0x73625140]
      %5392 = vmatpush.msra.mxu0 %v5368
      %5393 = vmatpush.msra.mxu0 %v5367
      %5394 = vmatpush.msra.mxu0 %v5366
      %5395 = vmatpush.msra.mxu0 %v5365
      %5396 = vmatpush.msra.mxu0 %v5364
      %5397 = vmatpush.msra.mxu0 %v5363
      %5398 = vmatpush.msra.mxu0 %v5362
      %5399 = vmatpush.msra.mxu0 %v5361
      %5400 = vmatpush.msra.mxu0 %v5360
      %5401 = vmatpush.msra.mxu0 %v5359
      %5402 = vmatpush.msra.mxu0 %v5358
      %5403 = vmatpush.msra.mxu0 %v5357
      %5404 = vmatpush.msra.mxu0 %v5356
      %5405 = vmatpush.msra.mxu0 %v5355
      %5406 = vmatpush.msra.mxu0 %v5354
      %5407 = vmatpush.msra.mxu0 %v5353
      %5408 = vmatmul.f32.gmra.mxu0 %v5388
      %v5409 = vpop.f32.mrf.mxu0
      %v5410 = vadd.f32 0.0, %v5409
      %5411 = vdwg.mxu0
      %5412 = vmatpush.msra.mxu0 %v5384
      %5413 = vmatpush.msra.mxu0 %v5383
      %5414 = vmatpush.msra.mxu0 %v5382
      %5415 = vmatpush.msra.mxu0 %v5381
      %5416 = vmatpush.msra.mxu0 %v5380
      %5417 = vmatpush.msra.mxu0 %v5379
      %5418 = vmatpush.msra.mxu0 %v5378
      %5419 = vmatpush.msra.mxu0 %v5377
      %5420 = vmatpush.msra.mxu0 %v5376
      %5421 = vmatpush.msra.mxu0 %v5375
      %5422 = vmatpush.msra.mxu0 %v5374
      %5423 = vmatpush.msra.mxu0 %v5373
      %5424 = vmatpush.msra.mxu0 %v5372
      %5425 = vmatpush.msra.mxu0 %v5371
      %5426 = vmatpush.msra.mxu0 %v5370
      %5427 = vmatpush.msra.mxu0 %v5369
      %5428 = vmatmul.f32.gmra.mxu0 %v5389
      %v5429 = vpop.f32.mrf.mxu0
      %v5430 = vadd.f32 %v5410, %v5429
      %5431 = vdwg.mxu0
      %v5432 = vadd.f32 %v5327, %v5430
      %v5433 = vld [vmem:[%s5234] sm:$0xc]
      %v5434 = vld [vmem:[%s5234 + $0x8] sm:$0xc]
      %v5435 = vld [vmem:[%s5234 + $0x10] sm:$0xc]
      %v5436 = vld [vmem:[%s5234 + $0x18] sm:$0xc]
      %5441 = vst.sshfl [vmem:[#allocation1] sm:$0xff pattern:$0x73625140] %v5433
      %5442 = vst.sshfl [vmem:[#allocation1 + $0x8] sm:$0xff pattern:$0x73625140] %v5434
      %s5443 = scalar_lea.vmem [#allocation1], 1
      %v5444 = vld [vmem:[%s5443] ss:$4 sm:$0xff]
      %5445 = vst.sshfl [vmem:[#allocation1 + $0x20] sm:$0xff pattern:$0x73625140] %v5435
      %5446 = vst.sshfl [vmem:[#allocation1 + $0x28] sm:$0xff pattern:$0x73625140] %v5436
      %s5447 = scalar_lea.vmem [#allocation1], 33
      %v5448 = vld [vmem:[%s5447] ss:$4 sm:$0xff]
      %s5449 = scalar_lea.vmem %s6, 3584
      %v5450 = vld [vmem:[%s5449] sm:$0xff]
      %v5451 = vld [vmem:[%s5449 + $0x8] sm:$0xff]
      %v5452 = vld [vmem:[%s5449 + $0x10] sm:$0xff]
      %v5453 = vld [vmem:[%s5449 + $0x18] sm:$0xff]
      %v5454 = vld [vmem:[%s5449 + $0x20] sm:$0xff]
      %v5455 = vld [vmem:[%s5449 + $0x28] sm:$0xff]
      %v5456 = vld [vmem:[%s5449 + $0x30] sm:$0xff]
      %v5457 = vld [vmem:[%s5449 + $0x38] sm:$0xff]
      %v5458 = vld [vmem:[%s5449 + $0x40] sm:$0xff]
      %v5459 = vld [vmem:[%s5449 + $0x48] sm:$0xff]
      %v5460 = vld [vmem:[%s5449 + $0x50] sm:$0xff]
      %v5461 = vld [vmem:[%s5449 + $0x58] sm:$0xff]
      %v5462 = vld [vmem:[%s5449 + $0x60] sm:$0xff]
      %v5463 = vld [vmem:[%s5449 + $0x68] sm:$0xff]
      %v5464 = vld [vmem:[%s5449 + $0x70] sm:$0xff]
      %v5465 = vld [vmem:[%s5449 + $0x78] sm:$0xff]
      %v5466 = vld [vmem:[%s5449 + $0x80] sm:$0xff]
      %v5467 = vld [vmem:[%s5449 + $0x88] sm:$0xff]
      %v5468 = vld [vmem:[%s5449 + $0x90] sm:$0xff]
      %v5469 = vld [vmem:[%s5449 + $0x98] sm:$0xff]
      %v5470 = vld [vmem:[%s5449 + $0xa0] sm:$0xff]
      %v5471 = vld [vmem:[%s5449 + $0xa8] sm:$0xff]
      %v5472 = vld [vmem:[%s5449 + $0xb0] sm:$0xff]
      %v5473 = vld [vmem:[%s5449 + $0xb8] sm:$0xff]
      %v5474 = vld [vmem:[%s5449 + $0xc0] sm:$0xff]
      %v5475 = vld [vmem:[%s5449 + $0xc8] sm:$0xff]
      %v5476 = vld [vmem:[%s5449 + $0xd0] sm:$0xff]
      %v5477 = vld [vmem:[%s5449 + $0xd8] sm:$0xff]
      %v5478 = vld [vmem:[%s5449 + $0xe0] sm:$0xff]
      %v5479 = vld [vmem:[%s5449 + $0xe8] sm:$0xff]
      %v5480 = vld [vmem:[%s5449 + $0xf0] sm:$0xff]
      %v5481 = vld [vmem:[%s5449 + $0xf8] sm:$0xff]
      %5482 = vst [vmem:[#allocation1] ss:$4 sm:$0xff] %v5444
      %s5483 = scalar_lea.vmem [#allocation1], 1
      %5484 = vst [vmem:[%s5483] ss:$4 sm:$0xff] %v5448
      %v5485 = vld.sshfl [vmem:[#allocation1] sm:$0xff pattern:$0x73625140]
      %v5486 = vld.sshfl [vmem:[#allocation1 + $0x8] sm:$0xff pattern:$0x73625140]
      %5489 = vmatpush.msra.mxu0 %v5465
      %5490 = vmatpush.msra.mxu0 %v5464
      %5491 = vmatpush.msra.mxu0 %v5463
      %5492 = vmatpush.msra.mxu0 %v5462
      %5493 = vmatpush.msra.mxu0 %v5461
      %5494 = vmatpush.msra.mxu0 %v5460
      %5495 = vmatpush.msra.mxu0 %v5459
      %5496 = vmatpush.msra.mxu0 %v5458
      %5497 = vmatpush.msra.mxu0 %v5457
      %5498 = vmatpush.msra.mxu0 %v5456
      %5499 = vmatpush.msra.mxu0 %v5455
      %5500 = vmatpush.msra.mxu0 %v5454
      %5501 = vmatpush.msra.mxu0 %v5453
      %5502 = vmatpush.msra.mxu0 %v5452
      %5503 = vmatpush.msra.mxu0 %v5451
      %5504 = vmatpush.msra.mxu0 %v5450
      %5505 = vmatmul.f32.gmra.mxu0 %v5485
      %v5506 = vpop.f32.mrf.mxu0
      %v5507 = vadd.f32 0.0, %v5506
      %5508 = vdwg.mxu0
      %5509 = vmatpush.msra.mxu0 %v5481
      %5510 = vmatpush.msra.mxu0 %v5480
      %5511 = vmatpush.msra.mxu0 %v5479
      %5512 = vmatpush.msra.mxu0 %v5478
      %5513 = vmatpush.msra.mxu0 %v5477
      %5514 = vmatpush.msra.mxu0 %v5476
      %5515 = vmatpush.msra.mxu0 %v5475
      %5516 = vmatpush.msra.mxu0 %v5474
      %5517 = vmatpush.msra.mxu0 %v5473
      %5518 = vmatpush.msra.mxu0 %v5472
      %5519 = vmatpush.msra.mxu0 %v5471
      %5520 = vmatpush.msra.mxu0 %v5470
      %5521 = vmatpush.msra.mxu0 %v5469
      %5522 = vmatpush.msra.mxu0 %v5468
      %5523 = vmatpush.msra.mxu0 %v5467
      %5524 = vmatpush.msra.mxu0 %v5466
      %5525 = vmatmul.f32.gmra.mxu0 %v5486
      %v5526 = vpop.f32.mrf.mxu0
      %v5527 = vadd.f32 %v5507, %v5526
      %5528 = vdwg.mxu0
      %v5529 = vadd.f32 %v5432, %v5527
      %v5530 = vld [vmem:[%s5234] sm:$0x18]
      %v5531 = vld [vmem:[%s5234 + $0x8] sm:$0x18]
      %v5532 = vld [vmem:[%s5234 + $0x10] sm:$0x18]
      %v5533 = vld [vmem:[%s5234 + $0x18] sm:$0x18]
      %5538 = vst.sshfl [vmem:[#allocation1] sm:$0xff pattern:$0x73625140] %v5530
      %5539 = vst.sshfl [vmem:[#allocation1 + $0x8] sm:$0xff pattern:$0x73625140] %v5531
      %s5540 = scalar_lea.vmem [#allocation1], 1
      %v5541 = vld [vmem:[%s5540] ss:$4 sm:$0xff]
      %s5542 = scalar_lea.vmem [#allocation1], 2
      %v5543 = vld [vmem:[%s5542] ss:$4 sm:$0xff]
      %5544 = vst.sshfl [vmem:[#allocation1 + $0x20] sm:$0xff pattern:$0x73625140] %v5532
      %5545 = vst.sshfl [vmem:[#allocation1 + $0x28] sm:$0xff pattern:$0x73625140] %v5533
      %s5546 = scalar_lea.vmem [#allocation1], 33
      %v5547 = vld [vmem:[%s5546] ss:$4 sm:$0xff]
      %s5548 = scalar_lea.vmem [#allocation1], 34
      %v5549 = vld [vmem:[%s5548] ss:$4 sm:$0xff]
      %v5550 = vrot.slane %v5541, 7
      %v5551 = vrot.slane %v5550, 2
      %v5552 = vrot.slane %v5543, 7
      %v5553 = vsel %vm4083, %v5551, %v5552
      %v5554 = vrot.slane %v5547, 7
      %v5555 = vrot.slane %v5554, 2
      %v5556 = vrot.slane %v5549, 7
      %v5557 = vsel %vm4083, %v5555, %v5556
      %s5558 = scalar_lea.vmem %s6, 3840
      %v5559 = vld [vmem:[%s5558] sm:$0xff]
      %v5560 = vld [vmem:[%s5558 + $0x8] sm:$0xff]
      %v5561 = vld [vmem:[%s5558 + $0x10] sm:$0xff]
      %v5562 = vld [vmem:[%s5558 + $0x18] sm:$0xff]
      %v5563 = vld [vmem:[%s5558 + $0x20] sm:$0xff]
      %v5564 = vld [vmem:[%s5558 + $0x28] sm:$0xff]
      %v5565 = vld [vmem:[%s5558 + $0x30] sm:$0xff]
      %v5566 = vld [vmem:[%s5558 + $0x38] sm:$0xff]
      %v5567 = vld [vmem:[%s5558 + $0x40] sm:$0xff]
      %v5568 = vld [vmem:[%s5558 + $0x48] sm:$0xff]
      %v5569 = vld [vmem:[%s5558 + $0x50] sm:$0xff]
      %v5570 = vld [vmem:[%s5558 + $0x58] sm:$0xff]
      %v5571 = vld [vmem:[%s5558 + $0x60] sm:$0xff]
      %v5572 = vld [vmem:[%s5558 + $0x68] sm:$0xff]
      %v5573 = vld [vmem:[%s5558 + $0x70] sm:$0xff]
      %v5574 = vld [vmem:[%s5558 + $0x78] sm:$0xff]
      %v5575 = vld [vmem:[%s5558 + $0x80] sm:$0xff]
      %v5576 = vld [vmem:[%s5558 + $0x88] sm:$0xff]
      %v5577 = vld [vmem:[%s5558 + $0x90] sm:$0xff]
      %v5578 = vld [vmem:[%s5558 + $0x98] sm:$0xff]
      %v5579 = vld [vmem:[%s5558 + $0xa0] sm:$0xff]
      %v5580 = vld [vmem:[%s5558 + $0xa8] sm:$0xff]
      %v5581 = vld [vmem:[%s5558 + $0xb0] sm:$0xff]
      %v5582 = vld [vmem:[%s5558 + $0xb8] sm:$0xff]
      %v5583 = vld [vmem:[%s5558 + $0xc0] sm:$0xff]
      %v5584 = vld [vmem:[%s5558 + $0xc8] sm:$0xff]
      %v5585 = vld [vmem:[%s5558 + $0xd0] sm:$0xff]
      %v5586 = vld [vmem:[%s5558 + $0xd8] sm:$0xff]
      %v5587 = vld [vmem:[%s5558 + $0xe0] sm:$0xff]
      %v5588 = vld [vmem:[%s5558 + $0xe8] sm:$0xff]
      %v5589 = vld [vmem:[%s5558 + $0xf0] sm:$0xff]
      %v5590 = vld [vmem:[%s5558 + $0xf8] sm:$0xff]
      %5591 = vst [vmem:[#allocation1] ss:$4 sm:$0xff] %v5553
      %s5592 = scalar_lea.vmem [#allocation1], 1
      %5593 = vst [vmem:[%s5592] ss:$4 sm:$0xff] %v5557
      %v5594 = vld.sshfl [vmem:[#allocation1] sm:$0xff pattern:$0x73625140]
      %v5595 = vld.sshfl [vmem:[#allocation1 + $0x8] sm:$0xff pattern:$0x73625140]
      %5598 = vmatpush.msra.mxu0 %v5574
      %5599 = vmatpush.msra.mxu0 %v5573
      %5600 = vmatpush.msra.mxu0 %v5572
      %5601 = vmatpush.msra.mxu0 %v5571
      %5602 = vmatpush.msra.mxu0 %v5570
      %5603 = vmatpush.msra.mxu0 %v5569
      %5604 = vmatpush.msra.mxu0 %v5568
      %5605 = vmatpush.msra.mxu0 %v5567
      %5606 = vmatpush.msra.mxu0 %v5566
      %5607 = vmatpush.msra.mxu0 %v5565
      %5608 = vmatpush.msra.mxu0 %v5564
      %5609 = vmatpush.msra.mxu0 %v5563
      %5610 = vmatpush.msra.mxu0 %v5562
      %5611 = vmatpush.msra.mxu0 %v5561
      %5612 = vmatpush.msra.mxu0 %v5560
      %5613 = vmatpush.msra.mxu0 %v5559
      %5614 = vmatmul.f32.gmra.mxu0 %v5594
      %v5615 = vpop.f32.mrf.mxu0
      %v5616 = vadd.f32 0.0, %v5615
      %5617 = vdwg.mxu0
      %5618 = vmatpush.msra.mxu0 %v5590
      %5619 = vmatpush.msra.mxu0 %v5589
      %5620 = vmatpush.msra.mxu0 %v5588
      %5621 = vmatpush.msra.mxu0 %v5587
      %5622 = vmatpush.msra.mxu0 %v5586
      %5623 = vmatpush.msra.mxu0 %v5585
      %5624 = vmatpush.msra.mxu0 %v5584
      %5625 = vmatpush.msra.mxu0 %v5583
      %5626 = vmatpush.msra.mxu0 %v5582
      %5627 = vmatpush.msra.mxu0 %v5581
      %5628 = vmatpush.msra.mxu0 %v5580
      %5629 = vmatpush.msra.mxu0 %v5579
      %5630 = vmatpush.msra.mxu0 %v5578
      %5631 = vmatpush.msra.mxu0 %v5577
      %5632 = vmatpush.msra.mxu0 %v5576
      %5633 = vmatpush.msra.mxu0 %v5575
      %5634 = vmatmul.f32.gmra.mxu0 %v5595
      %v5635 = vpop.f32.mrf.mxu0
      %v5636 = vadd.f32 %v5616, %v5635
      %5637 = vdwg.mxu0
      %v5638 = vadd.f32 %v5529, %v5636
      %v5639 = vld [vmem:[%s7] sm:$0x1]
      %v5641 = vperm.slane %v5639, 0
      %v5643 = vadd.f32 %v5638, %v5641
      %v5644 = vxor.u32 %v5643, 2147483648
      %v5645 = vmul.f32 %v5644, 1.442695
      %v5646 = vpow.pop %v5645
      %v5647 = vadd.f32 %v5646, 1.0
      %v5648 = vrcp.pop %v5647
      %v5649 = vmul.f32 %v5647, %v5648
      %v5650 = vsub.f32 1.0, %v5649
      %v5651 = vmul.f32 %v5648, %v5650
      %v5652 = vadd.f32 %v5648, %v5651
      %vm5653 = vweird.f32 %v5647
      %vm5654 = vweird.f32 %v5648
      %vm5655 = vmor %vm5653, %vm5654
      %v5656 = vsel %vm5655, %v5648, %v5652
      %v5657 = vand.u32 2147483647, %v5647
      %vm5658 = vcmp.eq.f32.partialorder %v5657, 8.507059e+37
      %v5659 = vand.u32 %v5647, 2147483648
      %v5660 = vor.u32 1.1754944e-38, %v5659
      %v5661 = vsel %vm5658, %v5660, %v5656
      %v5662 = vmul.f32 1.0, %v5661
      %5663 = vst [vmem:[%s303] sm:$0xf] %v5662
      %p5664 = scmp.lt.s32.totalorder %s19, 1
      %s5665 = scalar_select %p5664, %s19, 1
      %s5666 = smul.addr %s5665, 4
      %s5667 = scalar_lea.vmem %s8, %s5666
      // Predicated region
      $region53: #{discriminator1_forward.1} parent=51 // pred_check
        %p5668 = pneg %p210
      $region54: #{discriminator1_forward.1} parent=51 // pred_check_branch
        %5670 = sbr.rel (%p5668) target = $region56
      $region55: #{discriminator1_forward.1} parent=51 // pred_region
        _
      $region56: #{discriminator1_forward.1} parent=51 // pred_fallthru
        _
    $region52: #{discriminator1_forward.1} parent=5 // pred_fallthru
      _
    %p5671 = scmp.le.s32.totalorder 2, %s14
    // Predicated region
    $region57: #{discriminator1_forward.1} parent=5 // pred_check
      %p5672 = pneg %p5671
    $region58: #{discriminator1_forward.1} parent=5 // pred_check_branch
      %5674 = sbr.rel (%p5672) target = $region60
    $region59: #{discriminator1_forward.1} parent=5 // pred_region
      %s5675 = ssub.s32 %s14, 2
      // Predicated region
      $region61: #{discriminator1_forward.1} parent=59 // pred_check
        %p5676 = pneg %p216
      $region62: #{discriminator1_forward.1} parent=59 // pred_check_branch
        %5678 = sbr.rel (%p5676) target = $region64
      $region63: #{discriminator1_forward.1} parent=59 // pred_region
        %p5679 = scmp.lt.s32.totalorder %s20, 1
        %s5680 = scalar_select %p5679, %s20, 1
        %s5681 = smul.addr %s5680, 4
        %s5682 = scalar_lea.vmem %s8, %s5681
      $region64: #{discriminator1_forward.1} parent=59 // pred_fallthru
        _
    $region60: #{discriminator1_forward.1} parent=5 // pred_fallthru
      _
  $region6: #{discriminator1_forward.1} parent=0 // loop_footer
    %s18 = sadd.s32 1, %s14
  $region7: #{discriminator1_forward.1} parent=0 // loop_footer_branch
    %13 = sbr.rel target = $region3
  $region8: #{discriminator1_forward.1} parent=0 // loop_exit
    _

</llo_original>
